<compile_context>
chip_gen: v6e
topology: v6e:2x2x1
jax: 0.10.0
libtpu: 0.0.40
codegen_flags: <defaults>
</compile_context>

<pallas_src>
import itertools

import numpy as np
import jax
import jax.numpy as jnp
from jax.experimental import pallas as pl
from jax.experimental.pallas import tpu as pltpu

PRIMES = (1, 19349663, 83492791, 48397621)   # HashedGrid primes

SUBLANE_PAD = 16   # per-level entry padding: keeps the bf16 matmul K dim
                   # 16-aligned and every strip start 8-aligned.
CHUNK = 8          # entry-axis strip height for the scatter build.


def _round_up(x, m):
    return (x + m - 1) // m * m


# ----------------------------------------------------------------------------
# Level metadata (mirrors MultigridInterpolator.__init__ / make_grid_with_size)
# ----------------------------------------------------------------------------
def make_level_metadata(levels, entries_per_level, base_grid, final_grid):
    base = np.asarray(base_grid, np.float64)
    final = np.asarray(final_grid, np.float64)
    factor = np.exp((np.log(final) - np.log(base)) / (levels - 1))
    metas = []
    for lvl in range(levels):
        grid = np.round(base * factor ** lvl).astype(np.int64)
        dense_entries = int(np.prod(grid + 1))
        if dense_entries < entries_per_level:
            sizes = grid + 1
            strides = np.concatenate([[1], np.cumprod(sizes)[:-1]])
            metas.append(dict(kind="dense", grid=grid, num_entries=dense_entries,
                              strides=[int(s) for s in strides]))
        else:
            metas.append(dict(kind="hashed", grid=grid,
                              num_entries=int(entries_per_level)))
    return metas


def _level_offsets(metas):
    """Per-level (row offset, padded entry count) in the packed table."""
    offs, off = [], 0
    for m in metas:
        e_pad = _round_up(m["num_entries"], SUBLANE_PAD)
        offs.append((off, e_pad))
        off += e_pad
    return offs, off


def pack_tables(level_tables, metas, features):
    """Pack per-level (E_l, F) tables into a block-diagonal transposed
    [L*F, E_total] bf16 matrix (level l occupies rows [l*F,(l+1)*F), cols
    [off_l, off_l+E_l); padding rows/cols are zero and never addressed with
    nonzero weight)."""
    offsets, e_total = _level_offsets(metas)
    lf = len(metas) * features
    packed = np.zeros((lf, e_total), np.float32)
    for lvl, tbl in enumerate(level_tables):
        off, _ = offsets[lvl]
        t = np.asarray(tbl, np.float32)
        packed[lvl * features:(lvl + 1) * features, off:off + t.shape[0]] = t.T
    # bf16 parameters: halves the VMEM-resident footprint and feeds the MXU
    # natively.
    return jnp.asarray(packed, dtype=jnp.bfloat16), offsets, e_total


# ----------------------------------------------------------------------------
# Pallas kernel
# ----------------------------------------------------------------------------
def make_kernel(metas, offsets, block_n, d, features, chunk=CHUNK):
    bits = list(itertools.product([0, 1], repeat=d))   # 2^d corners

    def kernel(pos_ref, table_ref, out_ref, scat_ref):
        # pos_ref  : (d, BN)          positions (coords on sublanes, lane-dense)
        # table_ref: (L*F, E_total)   packed block-diagonal bf16 table (VMEM resident)
        # out_ref  : (L*F, BN)        transposed f32 output block
        # scat_ref : (E_total, BN)    f32 scratch: one-hot * weight scatter matrix
        pos_rows = [pos_ref[j:j + 1, :] for j in range(d)]   # hoisted (1, BN) rows

        # Hoisted once per grid step: strip-local entry ids 0..chunk-1 on the
        # sublane axis (only chunk/8 f32-equivalent vregs wide per BN tile).
        strip_iota = jax.lax.broadcasted_iota(jnp.int32, (chunk, block_n), 0)

        for lvl, meta in enumerate(metas):
            off_l, e_pad = offsets[lvl]
            dense = meta["kind"] == "dense"

            # ---- per-level, per-corner weights & flat entry indices --------
            lower, c0, c1 = [], [], []
            for j in range(d):
                g = float(meta["grid"][j])                 # Python scalar (no const capture)
                scaled = pos_rows[j] * g                   # (1, BN)
                lo_f = jnp.floor(scaled)
                frac = scaled - lo_f                       # == (pos - lower/g) * g
                lower.append(lo_f.astype(jnp.int32))
                c1.append(frac)                            # weight for corner bit = 1
                c0.append(1.0 - frac)                      # weight for corner bit = 0

            corner_w, corner_idx = [], []
            for bit in bits:
                # multilinear weight for this corner (no identity multiply)
                w = c1[0] if bit[0] else c0[0]
                for j in range(1, d):
                    w = w * (c1[j] if bit[j] else c0[j])

                # flat entry index of this corner within the level's table
                if dense:
                    idx = (lower[0] + bit[0]) * meta["strides"][0]
                    for j in range(1, d):
                        idx = idx + (lower[j] + bit[j]) * meta["strides"][j]
                else:
                    num_e = meta["num_entries"]
                    pow2 = (num_e & (num_e - 1)) == 0
                    # int32 wrap is exact for the pow2 AND path (low bits of
                    # the products are wrap-invariant).
                    # TODO(synk): non-pow2 `% num_e` fallback is slow and
                    # int32-overflow-unsafe at high resolution (see header).
                    idx = (lower[0] + bit[0]) * PRIMES[0]
                    for j in range(1, d):
                        idx = jnp.bitwise_xor(idx, (lower[j] + bit[j]) * PRIMES[j])
                        idx = (idx & (num_e - 1)) if pow2 else (idx % num_e)
                corner_w.append(w)
                corner_idx.append(idx)

            # ---- strip-mined one-hot * weight scatter build ----------------
            # Entry (sublane) axis processed in chunk-row strips so the live
            # set stays small; each finished strip is stored immediately.
            for s in range(e_pad // chunk):
                lo = s * chunk                              # level-local strip base
                piece = None
                for c in range(len(bits)):
                    hit = strip_iota == (corner_idx[c] - lo)   # (chunk, BN) vs (1, BN)
                    if piece is None:
                        piece = jnp.where(hit, corner_w[c], 0.0)
                    elif dense:
                        # dense corners of one point are distinct -> pure select chain
                        piece = jnp.where(hit, corner_w[c], piece)
                    else:
                        # hashed corners may collide -> accumulate like the reference
                        piece = piece + jnp.where(hit, corner_w[c], 0.0)
                scat_ref[off_l + lo:off_l + lo + chunk, :] = piece

        # ONE fused MXU matmul for all levels + ONE full-lane-width store.
        # Explicit bf16 operands (table is bf16 already): deterministic
        # bf16-input MXU behaviour on every generation.
        out_ref[...] = jnp.dot(table_ref[...],
                               scat_ref[...].astype(jnp.bfloat16),
                               preferred_element_type=jnp.float32)

    return kernel


def multigrid_interpolate(positions, packed_table, metas, offsets, e_total,
                          features, block_n=1024, transpose_output=False):
    """Multi-grid interpolation.

    Returns the lane-dense transposed [L*F, N] layout by default (avoids an
    extra full HBM transpose pass).  Set transpose_output=True for the
    module's [N, L*F] layout.
    """
    n, d = positions.shape
    levels = len(metas)
    lf = levels * features
    assert n % block_n == 0, "pad N to a multiple of block_n"

    kernel = make_kernel(metas, offsets, block_n, d, features)

    grid_spec = pltpu.PrefetchScalarGridSpec(
        num_scalar_prefetch=0,
        grid=(n // block_n,),
        in_specs=[
            # positions transposed: coords on sublanes, points lane-dense.
            pl.BlockSpec((d, block_n), lambda i: (0, i)),
            # grid-invariant packed table: whole bf16 array resident in VMEM,
            # not part of the (double-buffered) pipeline.
            pl.BlockSpec(memory_space=pltpu.MemorySpace.VMEM),
        ],
        out_specs=pl.BlockSpec((lf, block_n), lambda i: (0, i)),
        scratch_shapes=[pltpu.VMEM((e_total, block_n), jnp.float32)],
    )
    out_t = pl.pallas_call(
        kernel,
        out_shape=jax.ShapeDtypeStruct((lf, n), jnp.float32),
        grid_spec=grid_spec,
        compiler_params=pltpu.CompilerParams(
            dimension_semantics=("parallel",)),
    )(positions.T, packed_table)
    return out_t.T if transpose_output else out_t


# ----------------------------------------------------------------------------
# Pure-numpy reference (mirrors the PyTorch forward, divide-form coefficients)
# ----------------------------------------------------------------------------
def reference(positions, level_tables, metas, features):
    pos = np.asarray(positions, np.float32)
    n, d = pos.shape
    bits = list(itertools.product([0, 1], repeat=d))
    outs = []
    for lvl, meta in enumerate(metas):
        tbl = np.asarray(level_tables[lvl], np.float32)
        grids = meta["grid"].astype(np.float32)
        grid_steps = 1.0 / grids
        lower = np.floor(pos * grids).astype(np.int64)
        lower_f = lower.astype(np.float32)
        lower_limit = lower_f / grids
        upper_limit = (lower_f + 1.0) / grids
        c0 = 1.0 - (pos - lower_limit) / grid_steps     # coef after .sub_(1).neg_()
        c1 = 1.0 - (upper_limit - pos) / grid_steps
        res = np.zeros((n, features), np.float32)
        for bit in bits:
            w = c1[:, 0] if bit[0] else c0[:, 0]
            for j in range(1, d):
                w = w * (c1[:, j] if bit[j] else c0[:, j])
            if meta["kind"] == "dense":
                idx = np.zeros((n,), np.int64)
                for j in range(d):
                    idx = idx + (lower[:, j] + bit[j]) * meta["strides"][j]
            else:
                num_e = meta["num_entries"]
                idx = (lower[:, 0] + bit[0]) * PRIMES[0]
                for j in range(1, d):
                    idx = np.bitwise_xor(idx, (lower[:, j] + bit[j]) * PRIMES[j]) % num_e
            res = res + w[:, None] * tbl[idx]
        outs.append(res)
    return np.concatenate(outs, axis=-1)


# ----------------------------------------------------------------------------
if __name__ == "__main__":
    # Module configuration (small, deterministic)
    levels = 4
    entries_per_level = 64
    base_grid = (4, 4)
    final_grid = (16, 16)
    features = 2
    d = len(base_grid)
    block_n = 1024
    n_points = 16 * block_n   # 16 grid steps -> >= 8 steps per TC on v7x megacore

    metas = make_level_metadata(levels, entries_per_level, base_grid, final_grid)

    key = jax.random.PRNGKey(0)
    k_pos, k_tbl = jax.random.split(key)
    positions = jax.random.uniform(k_pos, (n_points, d), dtype=jnp.float32)
    # Per-level embedding tables (nn.Embedding init ~ N(0,1)).  The kernel
    # stores them as bf16 parameters; round-trip here so the reference uses
    # the exact same (bf16-representable) parameter values.
    tbl_keys = jax.random.split(k_tbl, levels)
    level_tables = [
        jax.random.normal(tbl_keys[l], (metas[l]["num_entries"], features),
                          dtype=jnp.float32).astype(jnp.bfloat16).astype(jnp.float32)
        for l in range(levels)
    ]

    packed_table, offsets, e_total = pack_tables(level_tables, metas, features)

    out_t = multigrid_interpolate(positions, packed_table, metas, offsets,
                                  e_total, features, block_n=block_n)
    out_t = jax.block_until_ready(out_t)

    ref = reference(positions, level_tables, metas, features)   # [N, L*F]
    out = np.asarray(out_t).T                                   # host-side layout flip
    err = float(np.max(np.abs(out - ref)))
    # Error budget: tables are bf16-exact by construction; the corner weights
    # are quantized to bf16 at the MXU operands (~2^-8 relative), so the
    # worst-case deviation on the interpolated features is ~1e-2.
    if not np.allclose(out, ref, atol=3e-2, rtol=3e-2):
        raise SystemExit(f"mismatch: max abs err {err}")
    print("KERNEL_OK")
</pallas_src>

<mosaic_0001>
module attributes {stable_mosaic.version = 11 : i64} {
  func.func @kernel(%arg0: i32, %arg1: memref<2x1024xf32, #tpu.memory_space<vmem>>, %arg2: memref<8x224xbf16, #tpu.memory_space<vmem>>, %arg3: memref<8x1024xf32, #tpu.memory_space<vmem>>, %arg4: memref<224x1024xf32, #tpu.memory_space<vmem>>) attributes {dimension_semantics = [#tpu.dimension_semantics<parallel>], iteration_bounds = array<i64: 16>, scalar_prefetch = 0 : i64, scratch_operands = 1 : i64, tpu.core_type = #tpu.core_type<tc>, window_params = [{transform_indices = @transform_0, window_bounds = array<i64: 2, 1024>}, {pipeline_mode = #tpu.pipeline_mode<synchronous>, transform_indices = @transform_1, window_bounds = array<i64: 8, 224>}, {transform_indices = @transform_2, window_bounds = array<i64: 8, 1024>}]} {
    %c0 = arith.constant 0 : index
    %c0_0 = arith.constant 0 : index
    %0 = vector.load %arg1[%c0, %c0_0] : memref<2x1024xf32, #tpu.memory_space<vmem>>, vector<1x1024xf32>
    %c1 = arith.constant 1 : index
    %c0_1 = arith.constant 0 : index
    %1 = vector.load %arg1[%c1, %c0_1] : memref<2x1024xf32, #tpu.memory_space<vmem>>, vector<1x1024xf32>
    %2 = tpu.iota {dimensions = array<i32: 0>} : vector<8x1024xi32>
    %cst = arith.constant 4.000000e+00 : f32
    %3 = vector.broadcast %cst : f32 to vector<1x1024xf32>
    %4 = arith.mulf %0, %3 : vector<1x1024xf32>
    %5 = math.floor %4 : vector<1x1024xf32>
    %6 = arith.subf %4, %5 : vector<1x1024xf32>
    %7 = arith.fptosi %5 : vector<1x1024xf32> to vector<1x1024xi32>
    %cst_2 = arith.constant 1.000000e+00 : f32
    %8 = vector.broadcast %cst_2 : f32 to vector<1x1024xf32>
    %9 = arith.subf %8, %6 : vector<1x1024xf32>
    %cst_3 = arith.constant 4.000000e+00 : f32
    %10 = vector.broadcast %cst_3 : f32 to vector<1x1024xf32>
    %11 = arith.mulf %1, %10 : vector<1x1024xf32>
    %12 = math.floor %11 : vector<1x1024xf32>
    %13 = arith.subf %11, %12 : vector<1x1024xf32>
    %14 = arith.fptosi %12 : vector<1x1024xf32> to vector<1x1024xi32>
    %cst_4 = arith.constant 1.000000e+00 : f32
    %15 = vector.broadcast %cst_4 : f32 to vector<1x1024xf32>
    %16 = arith.subf %15, %13 : vector<1x1024xf32>
    %17 = arith.mulf %9, %16 : vector<1x1024xf32>
    %c0_i32 = arith.constant 0 : i32
    %18 = vector.broadcast %c0_i32 : i32 to vector<1x1024xi32>
    %19 = arith.addi %7, %18 : vector<1x1024xi32>
    %c1_i32 = arith.constant 1 : i32
    %20 = vector.broadcast %c1_i32 : i32 to vector<1x1024xi32>
    %21 = arith.muli %19, %20 : vector<1x1024xi32>
    %c0_i32_5 = arith.constant 0 : i32
    %22 = vector.broadcast %c0_i32_5 : i32 to vector<1x1024xi32>
    %23 = arith.addi %14, %22 : vector<1x1024xi32>
    %c5_i32 = arith.constant 5 : i32
    %24 = vector.broadcast %c5_i32 : i32 to vector<1x1024xi32>
    %25 = arith.muli %23, %24 : vector<1x1024xi32>
    %26 = arith.addi %21, %25 : vector<1x1024xi32>
    %27 = arith.mulf %9, %13 : vector<1x1024xf32>
    %c0_i32_6 = arith.constant 0 : i32
    %28 = vector.broadcast %c0_i32_6 : i32 to vector<1x1024xi32>
    %29 = arith.addi %7, %28 : vector<1x1024xi32>
    %c1_i32_7 = arith.constant 1 : i32
    %30 = vector.broadcast %c1_i32_7 : i32 to vector<1x1024xi32>
    %31 = arith.muli %29, %30 : vector<1x1024xi32>
    %c1_i32_8 = arith.constant 1 : i32
    %32 = vector.broadcast %c1_i32_8 : i32 to vector<1x1024xi32>
    %33 = arith.addi %14, %32 : vector<1x1024xi32>
    %c5_i32_9 = arith.constant 5 : i32
    %34 = vector.broadcast %c5_i32_9 : i32 to vector<1x1024xi32>
    %35 = arith.muli %33, %34 : vector<1x1024xi32>
    %36 = arith.addi %31, %35 : vector<1x1024xi32>
    %37 = arith.mulf %6, %16 : vector<1x1024xf32>
    %c1_i32_10 = arith.constant 1 : i32
    %38 = vector.broadcast %c1_i32_10 : i32 to vector<1x1024xi32>
    %39 = arith.addi %7, %38 : vector<1x1024xi32>
    %c1_i32_11 = arith.constant 1 : i32
    %40 = vector.broadcast %c1_i32_11 : i32 to vector<1x1024xi32>
    %41 = arith.muli %39, %40 : vector<1x1024xi32>
    %c0_i32_12 = arith.constant 0 : i32
    %42 = vector.broadcast %c0_i32_12 : i32 to vector<1x1024xi32>
    %43 = arith.addi %14, %42 : vector<1x1024xi32>
    %c5_i32_13 = arith.constant 5 : i32
    %44 = vector.broadcast %c5_i32_13 : i32 to vector<1x1024xi32>
    %45 = arith.muli %43, %44 : vector<1x1024xi32>
    %46 = arith.addi %41, %45 : vector<1x1024xi32>
    %47 = arith.mulf %6, %13 : vector<1x1024xf32>
    %c1_i32_14 = arith.constant 1 : i32
    %48 = vector.broadcast %c1_i32_14 : i32 to vector<1x1024xi32>
    %49 = arith.addi %7, %48 : vector<1x1024xi32>
    %c1_i32_15 = arith.constant 1 : i32
    %50 = vector.broadcast %c1_i32_15 : i32 to vector<1x1024xi32>
    %51 = arith.muli %49, %50 : vector<1x1024xi32>
    %c1_i32_16 = arith.constant 1 : i32
    %52 = vector.broadcast %c1_i32_16 : i32 to vector<1x1024xi32>
    %53 = arith.addi %14, %52 : vector<1x1024xi32>
    %c5_i32_17 = arith.constant 5 : i32
    %54 = vector.broadcast %c5_i32_17 : i32 to vector<1x1024xi32>
    %55 = arith.muli %53, %54 : vector<1x1024xi32>
    %56 = arith.addi %51, %55 : vector<1x1024xi32>
    %c0_i32_18 = arith.constant 0 : i32
    %57 = vector.broadcast %c0_i32_18 : i32 to vector<1x1024xi32>
    %58 = arith.subi %26, %57 : vector<1x1024xi32>
    %59 = vector.broadcast %58 : vector<1x1024xi32> to vector<8x1024xi32>
    %60 = arith.cmpi eq, %2, %59 : vector<8x1024xi32>
    %cst_19 = arith.constant 0.000000e+00 : f32
    %61 = vector.shape_cast %17 : vector<1x1024xf32> to vector<1x1024xf32>
    %62 = vector.broadcast %61 : vector<1x1024xf32> to vector<8x1024xf32>
    %63 = vector.broadcast %cst_19 : f32 to vector<8x1024xf32>
    %64 = arith.select %60, %62, %63 : vector<8x1024xi1>, vector<8x1024xf32>
    %c0_i32_20 = arith.constant 0 : i32
    %65 = vector.broadcast %c0_i32_20 : i32 to vector<1x1024xi32>
    %66 = arith.subi %36, %65 : vector<1x1024xi32>
    %67 = vector.broadcast %66 : vector<1x1024xi32> to vector<8x1024xi32>
    %68 = arith.cmpi eq, %2, %67 : vector<8x1024xi32>
    %69 = vector.shape_cast %27 : vector<1x1024xf32> to vector<1x1024xf32>
    %70 = vector.broadcast %69 : vector<1x1024xf32> to vector<8x1024xf32>
    %71 = arith.select %68, %70, %64 : vector<8x1024xi1>, vector<8x1024xf32>
    %c0_i32_21 = arith.constant 0 : i32
    %72 = vector.broadcast %c0_i32_21 : i32 to vector<1x1024xi32>
    %73 = arith.subi %46, %72 : vector<1x1024xi32>
    %74 = vector.broadcast %73 : vector<1x1024xi32> to vector<8x1024xi32>
    %75 = arith.cmpi eq, %2, %74 : vector<8x1024xi32>
    %76 = vector.shape_cast %37 : vector<1x1024xf32> to vector<1x1024xf32>
    %77 = vector.broadcast %76 : vector<1x1024xf32> to vector<8x1024xf32>
    %78 = arith.select %75, %77, %71 : vector<8x1024xi1>, vector<8x1024xf32>
    %c0_i32_22 = arith.constant 0 : i32
    %79 = vector.broadcast %c0_i32_22 : i32 to vector<1x1024xi32>
    %80 = arith.subi %56, %79 : vector<1x1024xi32>
    %81 = vector.broadcast %80 : vector<1x1024xi32> to vector<8x1024xi32>
    %82 = arith.cmpi eq, %2, %81 : vector<8x1024xi32>
    %83 = vector.shape_cast %47 : vector<1x1024xf32> to vector<1x1024xf32>
    %84 = vector.broadcast %83 : vector<1x1024xf32> to vector<8x1024xf32>
    %85 = arith.select %82, %84, %78 : vector<8x1024xi1>, vector<8x1024xf32>
    %c0_23 = arith.constant 0 : index
    %c0_24 = arith.constant 0 : index
    %86 = vector.load %arg4[%c0_23, %c0_24] : memref<224x1024xf32, #tpu.memory_space<vmem>>, vector<8x1024xf32>
    tpu.vector_store %arg4[%c0_23, %c0_24], %85 {strides = array<i32>} : memref<224x1024xf32, #tpu.memory_space<vmem>>, vector<8x1024xf32>,
    %c8_i32 = arith.constant 8 : i32
    %87 = vector.broadcast %c8_i32 : i32 to vector<1x1024xi32>
    %88 = arith.subi %26, %87 : vector<1x1024xi32>
    %89 = vector.broadcast %88 : vector<1x1024xi32> to vector<8x1024xi32>
    %90 = arith.cmpi eq, %2, %89 : vector<8x1024xi32>
    %cst_25 = arith.constant 0.000000e+00 : f32
    %91 = vector.shape_cast %17 : vector<1x1024xf32> to vector<1x1024xf32>
    %92 = vector.broadcast %91 : vector<1x1024xf32> to vector<8x1024xf32>
    %93 = vector.broadcast %cst_25 : f32 to vector<8x1024xf32>
    %94 = arith.select %90, %92, %93 : vector<8x1024xi1>, vector<8x1024xf32>
    %c8_i32_26 = arith.constant 8 : i32
    %95 = vector.broadcast %c8_i32_26 : i32 to vector<1x1024xi32>
    %96 = arith.subi %36, %95 : vector<1x1024xi32>
    %97 = vector.broadcast %96 : vector<1x1024xi32> to vector<8x1024xi32>
    %98 = arith.cmpi eq, %2, %97 : vector<8x1024xi32>
    %99 = vector.shape_cast %27 : vector<1x1024xf32> to vector<1x1024xf32>
    %100 = vector.broadcast %99 : vector<1x1024xf32> to vector<8x1024xf32>
    %101 = arith.select %98, %100, %94 : vector<8x1024xi1>, vector<8x1024xf32>
    %c8_i32_27 = arith.constant 8 : i32
    %102 = vector.broadcast %c8_i32_27 : i32 to vector<1x1024xi32>
    %103 = arith.subi %46, %102 : vector<1x1024xi32>
    %104 = vector.broadcast %103 : vector<1x1024xi32> to vector<8x1024xi32>
    %105 = arith.cmpi eq, %2, %104 : vector<8x1024xi32>
    %106 = vector.shape_cast %37 : vector<1x1024xf32> to vector<1x1024xf32>
    %107 = vector.broadcast %106 : vector<1x1024xf32> to vector<8x1024xf32>
    %108 = arith.select %105, %107, %101 : vector<8x1024xi1>, vector<8x1024xf32>
    %c8_i32_28 = arith.constant 8 : i32
    %109 = vector.broadcast %c8_i32_28 : i32 to vector<1x1024xi32>
    %110 = arith.subi %56, %109 : vector<1x1024xi32>
    %111 = vector.broadcast %110 : vector<1x1024xi32> to vector<8x1024xi32>
    %112 = arith.cmpi eq, %2, %111 : vector<8x1024xi32>
    %113 = vector.shape_cast %47 : vector<1x1024xf32> to vector<1x1024xf32>
    %114 = vector.broadcast %113 : vector<1x1024xf32> to vector<8x1024xf32>
    %115 = arith.select %112, %114, %108 : vector<8x1024xi1>, vector<8x1024xf32>
    %c8 = arith.constant 8 : index
    %c0_29 = arith.constant 0 : index
    %116 = vector.load %arg4[%c8, %c0_29] : memref<224x1024xf32, #tpu.memory_space<vmem>>, vector<8x1024xf32>
    tpu.vector_store %arg4[%c8, %c0_29], %115 {strides = array<i32>} : memref<224x1024xf32, #tpu.memory_space<vmem>>, vector<8x1024xf32>,
    %c16_i32 = arith.constant 16 : i32
    %117 = vector.broadcast %c16_i32 : i32 to vector<1x1024xi32>
    %118 = arith.subi %26, %117 : vector<1x1024xi32>
    %119 = vector.broadcast %118 : vector<1x1024xi32> to vector<8x1024xi32>
    %120 = arith.cmpi eq, %2, %119 : vector<8x1024xi32>
    %cst_30 = arith.constant 0.000000e+00 : f32
    %121 = vector.shape_cast %17 : vector<1x1024xf32> to vector<1x1024xf32>
    %122 = vector.broadcast %121 : vector<1x1024xf32> to vector<8x1024xf32>
    %123 = vector.broadcast %cst_30 : f32 to vector<8x1024xf32>
    %124 = arith.select %120, %122, %123 : vector<8x1024xi1>, vector<8x1024xf32>
    %c16_i32_31 = arith.constant 16 : i32
    %125 = vector.broadcast %c16_i32_31 : i32 to vector<1x1024xi32>
    %126 = arith.subi %36, %125 : vector<1x1024xi32>
    %127 = vector.broadcast %126 : vector<1x1024xi32> to vector<8x1024xi32>
    %128 = arith.cmpi eq, %2, %127 : vector<8x1024xi32>
    %129 = vector.shape_cast %27 : vector<1x1024xf32> to vector<1x1024xf32>
    %130 = vector.broadcast %129 : vector<1x1024xf32> to vector<8x1024xf32>
    %131 = arith.select %128, %130, %124 : vector<8x1024xi1>, vector<8x1024xf32>
    %c16_i32_32 = arith.constant 16 : i32
    %132 = vector.broadcast %c16_i32_32 : i32 to vector<1x1024xi32>
    %133 = arith.subi %46, %132 : vector<1x1024xi32>
    %134 = vector.broadcast %133 : vector<1x1024xi32> to vector<8x1024xi32>
    %135 = arith.cmpi eq, %2, %134 : vector<8x1024xi32>
    %136 = vector.shape_cast %37 : vector<1x1024xf32> to vector<1x1024xf32>
    %137 = vector.broadcast %136 : vector<1x1024xf32> to vector<8x1024xf32>
    %138 = arith.select %135, %137, %131 : vector<8x1024xi1>, vector<8x1024xf32>
    %c16_i32_33 = arith.constant 16 : i32
    %139 = vector.broadcast %c16_i32_33 : i32 to vector<1x1024xi32>
    %140 = arith.subi %56, %139 : vector<1x1024xi32>
    %141 = vector.broadcast %140 : vector<1x1024xi32> to vector<8x1024xi32>
    %142 = arith.cmpi eq, %2, %141 : vector<8x1024xi32>
    %143 = vector.shape_cast %47 : vector<1x1024xf32> to vector<1x1024xf32>
    %144 = vector.broadcast %143 : vector<1x1024xf32> to vector<8x1024xf32>
    %145 = arith.select %142, %144, %138 : vector<8x1024xi1>, vector<8x1024xf32>
    %c16 = arith.constant 16 : index
    %c0_34 = arith.constant 0 : index
    %146 = vector.load %arg4[%c16, %c0_34] : memref<224x1024xf32, #tpu.memory_space<vmem>>, vector<8x1024xf32>
    tpu.vector_store %arg4[%c16, %c0_34], %145 {strides = array<i32>} : memref<224x1024xf32, #tpu.memory_space<vmem>>, vector<8x1024xf32>,
    %c24_i32 = arith.constant 24 : i32
    %147 = vector.broadcast %c24_i32 : i32 to vector<1x1024xi32>
    %148 = arith.subi %26, %147 : vector<1x1024xi32>
    %149 = vector.broadcast %148 : vector<1x1024xi32> to vector<8x1024xi32>
    %150 = arith.cmpi eq, %2, %149 : vector<8x1024xi32>
    %cst_35 = arith.constant 0.000000e+00 : f32
    %151 = vector.shape_cast %17 : vector<1x1024xf32> to vector<1x1024xf32>
    %152 = vector.broadcast %151 : vector<1x1024xf32> to vector<8x1024xf32>
    %153 = vector.broadcast %cst_35 : f32 to vector<8x1024xf32>
    %154 = arith.select %150, %152, %153 : vector<8x1024xi1>, vector<8x1024xf32>
    %c24_i32_36 = arith.constant 24 : i32
    %155 = vector.broadcast %c24_i32_36 : i32 to vector<1x1024xi32>
    %156 = arith.subi %36, %155 : vector<1x1024xi32>
    %157 = vector.broadcast %156 : vector<1x1024xi32> to vector<8x1024xi32>
    %158 = arith.cmpi eq, %2, %157 : vector<8x1024xi32>
    %159 = vector.shape_cast %27 : vector<1x1024xf32> to vector<1x1024xf32>
    %160 = vector.broadcast %159 : vector<1x1024xf32> to vector<8x1024xf32>
    %161 = arith.select %158, %160, %154 : vector<8x1024xi1>, vector<8x1024xf32>
    %c24_i32_37 = arith.constant 24 : i32
    %162 = vector.broadcast %c24_i32_37 : i32 to vector<1x1024xi32>
    %163 = arith.subi %46, %162 : vector<1x1024xi32>
    %164 = vector.broadcast %163 : vector<1x1024xi32> to vector<8x1024xi32>
    %165 = arith.cmpi eq, %2, %164 : vector<8x1024xi32>
    %166 = vector.shape_cast %37 : vector<1x1024xf32> to vector<1x1024xf32>
    %167 = vector.broadcast %166 : vector<1x1024xf32> to vector<8x1024xf32>
    %168 = arith.select %165, %167, %161 : vector<8x1024xi1>, vector<8x1024xf32>
    %c24_i32_38 = arith.constant 24 : i32
    %169 = vector.broadcast %c24_i32_38 : i32 to vector<1x1024xi32>
    %170 = arith.subi %56, %169 : vector<1x1024xi32>
    %171 = vector.broadcast %170 : vector<1x1024xi32> to vector<8x1024xi32>
    %172 = arith.cmpi eq, %2, %171 : vector<8x1024xi32>
    %173 = vector.shape_cast %47 : vector<1x1024xf32> to vector<1x1024xf32>
    %174 = vector.broadcast %173 : vector<1x1024xf32> to vector<8x1024xf32>
    %175 = arith.select %172, %174, %168 : vector<8x1024xi1>, vector<8x1024xf32>
    %c24 = arith.constant 24 : index
    %c0_39 = arith.constant 0 : index
    %176 = vector.load %arg4[%c24, %c0_39] : memref<224x1024xf32, #tpu.memory_space<vmem>>, vector<8x1024xf32>
    tpu.vector_store %arg4[%c24, %c0_39], %175 {strides = array<i32>} : memref<224x1024xf32, #tpu.memory_space<vmem>>, vector<8x1024xf32>,
    %cst_40 = arith.constant 6.000000e+00 : f32
    %177 = vector.broadcast %cst_40 : f32 to vector<1x1024xf32>
    %178 = arith.mulf %0, %177 : vector<1x1024xf32>
    %179 = math.floor %178 : vector<1x1024xf32>
    %180 = arith.subf %178, %179 : vector<1x1024xf32>
    %181 = arith.fptosi %179 : vector<1x1024xf32> to vector<1x1024xi32>
    %cst_41 = arith.constant 1.000000e+00 : f32
    %182 = vector.broadcast %cst_41 : f32 to vector<1x1024xf32>
    %183 = arith.subf %182, %180 : vector<1x1024xf32>
    %cst_42 = arith.constant 6.000000e+00 : f32
    %184 = vector.broadcast %cst_42 : f32 to vector<1x1024xf32>
    %185 = arith.mulf %1, %184 : vector<1x1024xf32>
    %186 = math.floor %185 : vector<1x1024xf32>
    %187 = arith.subf %185, %186 : vector<1x1024xf32>
    %188 = arith.fptosi %186 : vector<1x1024xf32> to vector<1x1024xi32>
    %cst_43 = arith.constant 1.000000e+00 : f32
    %189 = vector.broadcast %cst_43 : f32 to vector<1x1024xf32>
    %190 = arith.subf %189, %187 : vector<1x1024xf32>
    %191 = arith.mulf %183, %190 : vector<1x1024xf32>
    %c0_i32_44 = arith.constant 0 : i32
    %192 = vector.broadcast %c0_i32_44 : i32 to vector<1x1024xi32>
    %193 = arith.addi %181, %192 : vector<1x1024xi32>
    %c1_i32_45 = arith.constant 1 : i32
    %194 = vector.broadcast %c1_i32_45 : i32 to vector<1x1024xi32>
    %195 = arith.muli %193, %194 : vector<1x1024xi32>
    %c0_i32_46 = arith.constant 0 : i32
    %196 = vector.broadcast %c0_i32_46 : i32 to vector<1x1024xi32>
    %197 = arith.addi %188, %196 : vector<1x1024xi32>
    %c7_i32 = arith.constant 7 : i32
    %198 = vector.broadcast %c7_i32 : i32 to vector<1x1024xi32>
    %199 = arith.muli %197, %198 : vector<1x1024xi32>
    %200 = arith.addi %195, %199 : vector<1x1024xi32>
    %201 = arith.mulf %183, %187 : vector<1x1024xf32>
    %c0_i32_47 = arith.constant 0 : i32
    %202 = vector.broadcast %c0_i32_47 : i32 to vector<1x1024xi32>
    %203 = arith.addi %181, %202 : vector<1x1024xi32>
    %c1_i32_48 = arith.constant 1 : i32
    %204 = vector.broadcast %c1_i32_48 : i32 to vector<1x1024xi32>
    %205 = arith.muli %203, %204 : vector<1x1024xi32>
    %c1_i32_49 = arith.constant 1 : i32
    %206 = vector.broadcast %c1_i32_49 : i32 to vector<1x1024xi32>
    %207 = arith.addi %188, %206 : vector<1x1024xi32>
    %c7_i32_50 = arith.constant 7 : i32
    %208 = vector.broadcast %c7_i32_50 : i32 to vector<1x1024xi32>
    %209 = arith.muli %207, %208 : vector<1x1024xi32>
    %210 = arith.addi %205, %209 : vector<1x1024xi32>
    %211 = arith.mulf %180, %190 : vector<1x1024xf32>
    %c1_i32_51 = arith.constant 1 : i32
    %212 = vector.broadcast %c1_i32_51 : i32 to vector<1x1024xi32>
    %213 = arith.addi %181, %212 : vector<1x1024xi32>
    %c1_i32_52 = arith.constant 1 : i32
    %214 = vector.broadcast %c1_i32_52 : i32 to vector<1x1024xi32>
    %215 = arith.muli %213, %214 : vector<1x1024xi32>
    %c0_i32_53 = arith.constant 0 : i32
    %216 = vector.broadcast %c0_i32_53 : i32 to vector<1x1024xi32>
    %217 = arith.addi %188, %216 : vector<1x1024xi32>
    %c7_i32_54 = arith.constant 7 : i32
    %218 = vector.broadcast %c7_i32_54 : i32 to vector<1x1024xi32>
    %219 = arith.muli %217, %218 : vector<1x1024xi32>
    %220 = arith.addi %215, %219 : vector<1x1024xi32>
    %221 = arith.mulf %180, %187 : vector<1x1024xf32>
    %c1_i32_55 = arith.constant 1 : i32
    %222 = vector.broadcast %c1_i32_55 : i32 to vector<1x1024xi32>
    %223 = arith.addi %181, %222 : vector<1x1024xi32>
    %c1_i32_56 = arith.constant 1 : i32
    %224 = vector.broadcast %c1_i32_56 : i32 to vector<1x1024xi32>
    %225 = arith.muli %223, %224 : vector<1x1024xi32>
    %c1_i32_57 = arith.constant 1 : i32
    %226 = vector.broadcast %c1_i32_57 : i32 to vector<1x1024xi32>
    %227 = arith.addi %188, %226 : vector<1x1024xi32>
    %c7_i32_58 = arith.constant 7 : i32
    %228 = vector.broadcast %c7_i32_58 : i32 to vector<1x1024xi32>
    %229 = arith.muli %227, %228 : vector<1x1024xi32>
    %230 = arith.addi %225, %229 : vector<1x1024xi32>
    %c0_i32_59 = arith.constant 0 : i32
    %231 = vector.broadcast %c0_i32_59 : i32 to vector<1x1024xi32>
    %232 = arith.subi %200, %231 : vector<1x1024xi32>
    %233 = vector.broadcast %232 : vector<1x1024xi32> to vector<8x1024xi32>
    %234 = arith.cmpi eq, %2, %233 : vector<8x1024xi32>
    %cst_60 = arith.constant 0.000000e+00 : f32
    %235 = vector.shape_cast %191 : vector<1x1024xf32> to vector<1x1024xf32>
    %236 = vector.broadcast %235 : vector<1x1024xf32> to vector<8x1024xf32>
    %237 = vector.broadcast %cst_60 : f32 to vector<8x1024xf32>
    %238 = arith.select %234, %236, %237 : vector<8x1024xi1>, vector<8x1024xf32>
    %c0_i32_61 = arith.constant 0 : i32
    %239 = vector.broadcast %c0_i32_61 : i32 to vector<1x1024xi32>
    %240 = arith.subi %210, %239 : vector<1x1024xi32>
    %241 = vector.broadcast %240 : vector<1x1024xi32> to vector<8x1024xi32>
    %242 = arith.cmpi eq, %2, %241 : vector<8x1024xi32>
    %243 = vector.shape_cast %201 : vector<1x1024xf32> to vector<1x1024xf32>
    %244 = vector.broadcast %243 : vector<1x1024xf32> to vector<8x1024xf32>
    %245 = arith.select %242, %244, %238 : vector<8x1024xi1>, vector<8x1024xf32>
    %c0_i32_62 = arith.constant 0 : i32
    %246 = vector.broadcast %c0_i32_62 : i32 to vector<1x1024xi32>
    %247 = arith.subi %220, %246 : vector<1x1024xi32>
    %248 = vector.broadcast %247 : vector<1x1024xi32> to vector<8x1024xi32>
    %249 = arith.cmpi eq, %2, %248 : vector<8x1024xi32>
    %250 = vector.shape_cast %211 : vector<1x1024xf32> to vector<1x1024xf32>
    %251 = vector.broadcast %250 : vector<1x1024xf32> to vector<8x1024xf32>
    %252 = arith.select %249, %251, %245 : vector<8x1024xi1>, vector<8x1024xf32>
    %c0_i32_63 = arith.constant 0 : i32
    %253 = vector.broadcast %c0_i32_63 : i32 to vector<1x1024xi32>
    %254 = arith.subi %230, %253 : vector<1x1024xi32>
    %255 = vector.broadcast %254 : vector<1x1024xi32> to vector<8x1024xi32>
    %256 = arith.cmpi eq, %2, %255 : vector<8x1024xi32>
    %257 = vector.shape_cast %221 : vector<1x1024xf32> to vector<1x1024xf32>
    %258 = vector.broadcast %257 : vector<1x1024xf32> to vector<8x1024xf32>
    %259 = arith.select %256, %258, %252 : vector<8x1024xi1>, vector<8x1024xf32>
    %c32 = arith.constant 32 : index
    %c0_64 = arith.constant 0 : index
    %260 = vector.load %arg4[%c32, %c0_64] : memref<224x1024xf32, #tpu.memory_space<vmem>>, vector<8x1024xf32>
    tpu.vector_store %arg4[%c32, %c0_64], %259 {strides = array<i32>} : memref<224x1024xf32, #tpu.memory_space<vmem>>, vector<8x1024xf32>,
    %c8_i32_65 = arith.constant 8 : i32
    %261 = vector.broadcast %c8_i32_65 : i32 to vector<1x1024xi32>
    %262 = arith.subi %200, %261 : vector<1x1024xi32>
    %263 = vector.broadcast %262 : vector<1x1024xi32> to vector<8x1024xi32>
    %264 = arith.cmpi eq, %2, %263 : vector<8x1024xi32>
    %cst_66 = arith.constant 0.000000e+00 : f32
    %265 = vector.shape_cast %191 : vector<1x1024xf32> to vector<1x1024xf32>
    %266 = vector.broadcast %265 : vector<1x1024xf32> to vector<8x1024xf32>
    %267 = vector.broadcast %cst_66 : f32 to vector<8x1024xf32>
    %268 = arith.select %264, %266, %267 : vector<8x1024xi1>, vector<8x1024xf32>
    %c8_i32_67 = arith.constant 8 : i32
    %269 = vector.broadcast %c8_i32_67 : i32 to vector<1x1024xi32>
    %270 = arith.subi %210, %269 : vector<1x1024xi32>
    %271 = vector.broadcast %270 : vector<1x1024xi32> to vector<8x1024xi32>
    %272 = arith.cmpi eq, %2, %271 : vector<8x1024xi32>
    %273 = vector.shape_cast %201 : vector<1x1024xf32> to vector<1x1024xf32>
    %274 = vector.broadcast %273 : vector<1x1024xf32> to vector<8x1024xf32>
    %275 = arith.select %272, %274, %268 : vector<8x1024xi1>, vector<8x1024xf32>
    %c8_i32_68 = arith.constant 8 : i32
    %276 = vector.broadcast %c8_i32_68 : i32 to vector<1x1024xi32>
    %277 = arith.subi %220, %276 : vector<1x1024xi32>
    %278 = vector.broadcast %277 : vector<1x1024xi32> to vector<8x1024xi32>
    %279 = arith.cmpi eq, %2, %278 : vector<8x1024xi32>
    %280 = vector.shape_cast %211 : vector<1x1024xf32> to vector<1x1024xf32>
    %281 = vector.broadcast %280 : vector<1x1024xf32> to vector<8x1024xf32>
    %282 = arith.select %279, %281, %275 : vector<8x1024xi1>, vector<8x1024xf32>
    %c8_i32_69 = arith.constant 8 : i32
    %283 = vector.broadcast %c8_i32_69 : i32 to vector<1x1024xi32>
    %284 = arith.subi %230, %283 : vector<1x1024xi32>
    %285 = vector.broadcast %284 : vector<1x1024xi32> to vector<8x1024xi32>
    %286 = arith.cmpi eq, %2, %285 : vector<8x1024xi32>
    %287 = vector.shape_cast %221 : vector<1x1024xf32> to vector<1x1024xf32>
    %288 = vector.broadcast %287 : vector<1x1024xf32> to vector<8x1024xf32>
    %289 = arith.select %286, %288, %282 : vector<8x1024xi1>, vector<8x1024xf32>
    %c40 = arith.constant 40 : index
    %c0_70 = arith.constant 0 : index
    %290 = vector.load %arg4[%c40, %c0_70] : memref<224x1024xf32, #tpu.memory_space<vmem>>, vector<8x1024xf32>
    tpu.vector_store %arg4[%c40, %c0_70], %289 {strides = array<i32>} : memref<224x1024xf32, #tpu.memory_space<vmem>>, vector<8x1024xf32>,
    %c16_i32_71 = arith.constant 16 : i32
    %291 = vector.broadcast %c16_i32_71 : i32 to vector<1x1024xi32>
    %292 = arith.subi %200, %291 : vector<1x1024xi32>
    %293 = vector.broadcast %292 : vector<1x1024xi32> to vector<8x1024xi32>
    %294 = arith.cmpi eq, %2, %293 : vector<8x1024xi32>
    %cst_72 = arith.constant 0.000000e+00 : f32
    %295 = vector.shape_cast %191 : vector<1x1024xf32> to vector<1x1024xf32>
    %296 = vector.broadcast %295 : vector<1x1024xf32> to vector<8x1024xf32>
    %297 = vector.broadcast %cst_72 : f32 to vector<8x1024xf32>
    %298 = arith.select %294, %296, %297 : vector<8x1024xi1>, vector<8x1024xf32>
    %c16_i32_73 = arith.constant 16 : i32
    %299 = vector.broadcast %c16_i32_73 : i32 to vector<1x1024xi32>
    %300 = arith.subi %210, %299 : vector<1x1024xi32>
    %301 = vector.broadcast %300 : vector<1x1024xi32> to vector<8x1024xi32>
    %302 = arith.cmpi eq, %2, %301 : vector<8x1024xi32>
    %303 = vector.shape_cast %201 : vector<1x1024xf32> to vector<1x1024xf32>
    %304 = vector.broadcast %303 : vector<1x1024xf32> to vector<8x1024xf32>
    %305 = arith.select %302, %304, %298 : vector<8x1024xi1>, vector<8x1024xf32>
    %c16_i32_74 = arith.constant 16 : i32
    %306 = vector.broadcast %c16_i32_74 : i32 to vector<1x1024xi32>
    %307 = arith.subi %220, %306 : vector<1x1024xi32>
    %308 = vector.broadcast %307 : vector<1x1024xi32> to vector<8x1024xi32>
    %309 = arith.cmpi eq, %2, %308 : vector<8x1024xi32>
    %310 = vector.shape_cast %211 : vector<1x1024xf32> to vector<1x1024xf32>
    %311 = vector.broadcast %310 : vector<1x1024xf32> to vector<8x1024xf32>
    %312 = arith.select %309, %311, %305 : vector<8x1024xi1>, vector<8x1024xf32>
    %c16_i32_75 = arith.constant 16 : i32
    %313 = vector.broadcast %c16_i32_75 : i32 to vector<1x1024xi32>
    %314 = arith.subi %230, %313 : vector<1x1024xi32>
    %315 = vector.broadcast %314 : vector<1x1024xi32> to vector<8x1024xi32>
    %316 = arith.cmpi eq, %2, %315 : vector<8x1024xi32>
    %317 = vector.shape_cast %221 : vector<1x1024xf32> to vector<1x1024xf32>
    %318 = vector.broadcast %317 : vector<1x1024xf32> to vector<8x1024xf32>
    %319 = arith.select %316, %318, %312 : vector<8x1024xi1>, vector<8x1024xf32>
    %c48 = arith.constant 48 : index
    %c0_76 = arith.constant 0 : index
    %320 = vector.load %arg4[%c48, %c0_76] : memref<224x1024xf32, #tpu.memory_space<vmem>>, vector<8x1024xf32>
    tpu.vector_store %arg4[%c48, %c0_76], %319 {strides = array<i32>} : memref<224x1024xf32, #tpu.memory_space<vmem>>, vector<8x1024xf32>,
    %c24_i32_77 = arith.constant 24 : i32
    %321 = vector.broadcast %c24_i32_77 : i32 to vector<1x1024xi32>
    %322 = arith.subi %200, %321 : vector<1x1024xi32>
    %323 = vector.broadcast %322 : vector<1x1024xi32> to vector<8x1024xi32>
    %324 = arith.cmpi eq, %2, %323 : vector<8x1024xi32>
    %cst_78 = arith.constant 0.000000e+00 : f32
    %325 = vector.shape_cast %191 : vector<1x1024xf32> to vector<1x1024xf32>
    %326 = vector.broadcast %325 : vector<1x1024xf32> to vector<8x1024xf32>
    %327 = vector.broadcast %cst_78 : f32 to vector<8x1024xf32>
    %328 = arith.select %324, %326, %327 : vector<8x1024xi1>, vector<8x1024xf32>
    %c24_i32_79 = arith.constant 24 : i32
    %329 = vector.broadcast %c24_i32_79 : i32 to vector<1x1024xi32>
    %330 = arith.subi %210, %329 : vector<1x1024xi32>
    %331 = vector.broadcast %330 : vector<1x1024xi32> to vector<8x1024xi32>
    %332 = arith.cmpi eq, %2, %331 : vector<8x1024xi32>
    %333 = vector.shape_cast %201 : vector<1x1024xf32> to vector<1x1024xf32>
    %334 = vector.broadcast %333 : vector<1x1024xf32> to vector<8x1024xf32>
    %335 = arith.select %332, %334, %328 : vector<8x1024xi1>, vector<8x1024xf32>
    %c24_i32_80 = arith.constant 24 : i32
    %336 = vector.broadcast %c24_i32_80 : i32 to vector<1x1024xi32>
    %337 = arith.subi %220, %336 : vector<1x1024xi32>
    %338 = vector.broadcast %337 : vector<1x1024xi32> to vector<8x1024xi32>
    %339 = arith.cmpi eq, %2, %338 : vector<8x1024xi32>
    %340 = vector.shape_cast %211 : vector<1x1024xf32> to vector<1x1024xf32>
    %341 = vector.broadcast %340 : vector<1x1024xf32> to vector<8x1024xf32>
    %342 = arith.select %339, %341, %335 : vector<8x1024xi1>, vector<8x1024xf32>
    %c24_i32_81 = arith.constant 24 : i32
    %343 = vector.broadcast %c24_i32_81 : i32 to vector<1x1024xi32>
    %344 = arith.subi %230, %343 : vector<1x1024xi32>
    %345 = vector.broadcast %344 : vector<1x1024xi32> to vector<8x1024xi32>
    %346 = arith.cmpi eq, %2, %345 : vector<8x1024xi32>
    %347 = vector.shape_cast %221 : vector<1x1024xf32> to vector<1x1024xf32>
    %348 = vector.broadcast %347 : vector<1x1024xf32> to vector<8x1024xf32>
    %349 = arith.select %346, %348, %342 : vector<8x1024xi1>, vector<8x1024xf32>
    %c56 = arith.constant 56 : index
    %c0_82 = arith.constant 0 : index
    %350 = vector.load %arg4[%c56, %c0_82] : memref<224x1024xf32, #tpu.memory_space<vmem>>, vector<8x1024xf32>
    tpu.vector_store %arg4[%c56, %c0_82], %349 {strides = array<i32>} : memref<224x1024xf32, #tpu.memory_space<vmem>>, vector<8x1024xf32>,
    %c32_i32 = arith.constant 32 : i32
    %351 = vector.broadcast %c32_i32 : i32 to vector<1x1024xi32>
    %352 = arith.subi %200, %351 : vector<1x1024xi32>
    %353 = vector.broadcast %352 : vector<1x1024xi32> to vector<8x1024xi32>
    %354 = arith.cmpi eq, %2, %353 : vector<8x1024xi32>
    %cst_83 = arith.constant 0.000000e+00 : f32
    %355 = vector.shape_cast %191 : vector<1x1024xf32> to vector<1x1024xf32>
    %356 = vector.broadcast %355 : vector<1x1024xf32> to vector<8x1024xf32>
    %357 = vector.broadcast %cst_83 : f32 to vector<8x1024xf32>
    %358 = arith.select %354, %356, %357 : vector<8x1024xi1>, vector<8x1024xf32>
    %c32_i32_84 = arith.constant 32 : i32
    %359 = vector.broadcast %c32_i32_84 : i32 to vector<1x1024xi32>
    %360 = arith.subi %210, %359 : vector<1x1024xi32>
    %361 = vector.broadcast %360 : vector<1x1024xi32> to vector<8x1024xi32>
    %362 = arith.cmpi eq, %2, %361 : vector<8x1024xi32>
    %363 = vector.shape_cast %201 : vector<1x1024xf32> to vector<1x1024xf32>
    %364 = vector.broadcast %363 : vector<1x1024xf32> to vector<8x1024xf32>
    %365 = arith.select %362, %364, %358 : vector<8x1024xi1>, vector<8x1024xf32>
    %c32_i32_85 = arith.constant 32 : i32
    %366 = vector.broadcast %c32_i32_85 : i32 to vector<1x1024xi32>
    %367 = arith.subi %220, %366 : vector<1x1024xi32>
    %368 = vector.broadcast %367 : vector<1x1024xi32> to vector<8x1024xi32>
    %369 = arith.cmpi eq, %2, %368 : vector<8x1024xi32>
    %370 = vector.shape_cast %211 : vector<1x1024xf32> to vector<1x1024xf32>
    %371 = vector.broadcast %370 : vector<1x1024xf32> to vector<8x1024xf32>
    %372 = arith.select %369, %371, %365 : vector<8x1024xi1>, vector<8x1024xf32>
    %c32_i32_86 = arith.constant 32 : i32
    %373 = vector.broadcast %c32_i32_86 : i32 to vector<1x1024xi32>
    %374 = arith.subi %230, %373 : vector<1x1024xi32>
    %375 = vector.broadcast %374 : vector<1x1024xi32> to vector<8x1024xi32>
    %376 = arith.cmpi eq, %2, %375 : vector<8x1024xi32>
    %377 = vector.shape_cast %221 : vector<1x1024xf32> to vector<1x1024xf32>
    %378 = vector.broadcast %377 : vector<1x1024xf32> to vector<8x1024xf32>
    %379 = arith.select %376, %378, %372 : vector<8x1024xi1>, vector<8x1024xf32>
    %c64 = arith.constant 64 : index
    %c0_87 = arith.constant 0 : index
    %380 = vector.load %arg4[%c64, %c0_87] : memref<224x1024xf32, #tpu.memory_space<vmem>>, vector<8x1024xf32>
    tpu.vector_store %arg4[%c64, %c0_87], %379 {strides = array<i32>} : memref<224x1024xf32, #tpu.memory_space<vmem>>, vector<8x1024xf32>,
    %c40_i32 = arith.constant 40 : i32
    %381 = vector.broadcast %c40_i32 : i32 to vector<1x1024xi32>
    %382 = arith.subi %200, %381 : vector<1x1024xi32>
    %383 = vector.broadcast %382 : vector<1x1024xi32> to vector<8x1024xi32>
    %384 = arith.cmpi eq, %2, %383 : vector<8x1024xi32>
    %cst_88 = arith.constant 0.000000e+00 : f32
    %385 = vector.shape_cast %191 : vector<1x1024xf32> to vector<1x1024xf32>
    %386 = vector.broadcast %385 : vector<1x1024xf32> to vector<8x1024xf32>
    %387 = vector.broadcast %cst_88 : f32 to vector<8x1024xf32>
    %388 = arith.select %384, %386, %387 : vector<8x1024xi1>, vector<8x1024xf32>
    %c40_i32_89 = arith.constant 40 : i32
    %389 = vector.broadcast %c40_i32_89 : i32 to vector<1x1024xi32>
    %390 = arith.subi %210, %389 : vector<1x1024xi32>
    %391 = vector.broadcast %390 : vector<1x1024xi32> to vector<8x1024xi32>
    %392 = arith.cmpi eq, %2, %391 : vector<8x1024xi32>
    %393 = vector.shape_cast %201 : vector<1x1024xf32> to vector<1x1024xf32>
    %394 = vector.broadcast %393 : vector<1x1024xf32> to vector<8x1024xf32>
    %395 = arith.select %392, %394, %388 : vector<8x1024xi1>, vector<8x1024xf32>
    %c40_i32_90 = arith.constant 40 : i32
    %396 = vector.broadcast %c40_i32_90 : i32 to vector<1x1024xi32>
    %397 = arith.subi %220, %396 : vector<1x1024xi32>
    %398 = vector.broadcast %397 : vector<1x1024xi32> to vector<8x1024xi32>
    %399 = arith.cmpi eq, %2, %398 : vector<8x1024xi32>
    %400 = vector.shape_cast %211 : vector<1x1024xf32> to vector<1x1024xf32>
    %401 = vector.broadcast %400 : vector<1x1024xf32> to vector<8x1024xf32>
    %402 = arith.select %399, %401, %395 : vector<8x1024xi1>, vector<8x1024xf32>
    %c40_i32_91 = arith.constant 40 : i32
    %403 = vector.broadcast %c40_i32_91 : i32 to vector<1x1024xi32>
    %404 = arith.subi %230, %403 : vector<1x1024xi32>
    %405 = vector.broadcast %404 : vector<1x1024xi32> to vector<8x1024xi32>
    %406 = arith.cmpi eq, %2, %405 : vector<8x1024xi32>
    %407 = vector.shape_cast %221 : vector<1x1024xf32> to vector<1x1024xf32>
    %408 = vector.broadcast %407 : vector<1x1024xf32> to vector<8x1024xf32>
    %409 = arith.select %406, %408, %402 : vector<8x1024xi1>, vector<8x1024xf32>
    %c72 = arith.constant 72 : index
    %c0_92 = arith.constant 0 : index
    %410 = vector.load %arg4[%c72, %c0_92] : memref<224x1024xf32, #tpu.memory_space<vmem>>, vector<8x1024xf32>
    tpu.vector_store %arg4[%c72, %c0_92], %409 {strides = array<i32>} : memref<224x1024xf32, #tpu.memory_space<vmem>>, vector<8x1024xf32>,
    %c48_i32 = arith.constant 48 : i32
    %411 = vector.broadcast %c48_i32 : i32 to vector<1x1024xi32>
    %412 = arith.subi %200, %411 : vector<1x1024xi32>
    %413 = vector.broadcast %412 : vector<1x1024xi32> to vector<8x1024xi32>
    %414 = arith.cmpi eq, %2, %413 : vector<8x1024xi32>
    %cst_93 = arith.constant 0.000000e+00 : f32
    %415 = vector.shape_cast %191 : vector<1x1024xf32> to vector<1x1024xf32>
    %416 = vector.broadcast %415 : vector<1x1024xf32> to vector<8x1024xf32>
    %417 = vector.broadcast %cst_93 : f32 to vector<8x1024xf32>
    %418 = arith.select %414, %416, %417 : vector<8x1024xi1>, vector<8x1024xf32>
    %c48_i32_94 = arith.constant 48 : i32
    %419 = vector.broadcast %c48_i32_94 : i32 to vector<1x1024xi32>
    %420 = arith.subi %210, %419 : vector<1x1024xi32>
    %421 = vector.broadcast %420 : vector<1x1024xi32> to vector<8x1024xi32>
    %422 = arith.cmpi eq, %2, %421 : vector<8x1024xi32>
    %423 = vector.shape_cast %201 : vector<1x1024xf32> to vector<1x1024xf32>
    %424 = vector.broadcast %423 : vector<1x1024xf32> to vector<8x1024xf32>
    %425 = arith.select %422, %424, %418 : vector<8x1024xi1>, vector<8x1024xf32>
    %c48_i32_95 = arith.constant 48 : i32
    %426 = vector.broadcast %c48_i32_95 : i32 to vector<1x1024xi32>
    %427 = arith.subi %220, %426 : vector<1x1024xi32>
    %428 = vector.broadcast %427 : vector<1x1024xi32> to vector<8x1024xi32>
    %429 = arith.cmpi eq, %2, %428 : vector<8x1024xi32>
    %430 = vector.shape_cast %211 : vector<1x1024xf32> to vector<1x1024xf32>
    %431 = vector.broadcast %430 : vector<1x1024xf32> to vector<8x1024xf32>
    %432 = arith.select %429, %431, %425 : vector<8x1024xi1>, vector<8x1024xf32>
    %c48_i32_96 = arith.constant 48 : i32
    %433 = vector.broadcast %c48_i32_96 : i32 to vector<1x1024xi32>
    %434 = arith.subi %230, %433 : vector<1x1024xi32>
    %435 = vector.broadcast %434 : vector<1x1024xi32> to vector<8x1024xi32>
    %436 = arith.cmpi eq, %2, %435 : vector<8x1024xi32>
    %437 = vector.shape_cast %221 : vector<1x1024xf32> to vector<1x1024xf32>
    %438 = vector.broadcast %437 : vector<1x1024xf32> to vector<8x1024xf32>
    %439 = arith.select %436, %438, %432 : vector<8x1024xi1>, vector<8x1024xf32>
    %c80 = arith.constant 80 : index
    %c0_97 = arith.constant 0 : index
    %440 = vector.load %arg4[%c80, %c0_97] : memref<224x1024xf32, #tpu.memory_space<vmem>>, vector<8x1024xf32>
    tpu.vector_store %arg4[%c80, %c0_97], %439 {strides = array<i32>} : memref<224x1024xf32, #tpu.memory_space<vmem>>, vector<8x1024xf32>,
    %c56_i32 = arith.constant 56 : i32
    %441 = vector.broadcast %c56_i32 : i32 to vector<1x1024xi32>
    %442 = arith.subi %200, %441 : vector<1x1024xi32>
    %443 = vector.broadcast %442 : vector<1x1024xi32> to vector<8x1024xi32>
    %444 = arith.cmpi eq, %2, %443 : vector<8x1024xi32>
    %cst_98 = arith.constant 0.000000e+00 : f32
    %445 = vector.shape_cast %191 : vector<1x1024xf32> to vector<1x1024xf32>
    %446 = vector.broadcast %445 : vector<1x1024xf32> to vector<8x1024xf32>
    %447 = vector.broadcast %cst_98 : f32 to vector<8x1024xf32>
    %448 = arith.select %444, %446, %447 : vector<8x1024xi1>, vector<8x1024xf32>
    %c56_i32_99 = arith.constant 56 : i32
    %449 = vector.broadcast %c56_i32_99 : i32 to vector<1x1024xi32>
    %450 = arith.subi %210, %449 : vector<1x1024xi32>
    %451 = vector.broadcast %450 : vector<1x1024xi32> to vector<8x1024xi32>
    %452 = arith.cmpi eq, %2, %451 : vector<8x1024xi32>
    %453 = vector.shape_cast %201 : vector<1x1024xf32> to vector<1x1024xf32>
    %454 = vector.broadcast %453 : vector<1x1024xf32> to vector<8x1024xf32>
    %455 = arith.select %452, %454, %448 : vector<8x1024xi1>, vector<8x1024xf32>
    %c56_i32_100 = arith.constant 56 : i32
    %456 = vector.broadcast %c56_i32_100 : i32 to vector<1x1024xi32>
    %457 = arith.subi %220, %456 : vector<1x1024xi32>
    %458 = vector.broadcast %457 : vector<1x1024xi32> to vector<8x1024xi32>
    %459 = arith.cmpi eq, %2, %458 : vector<8x1024xi32>
    %460 = vector.shape_cast %211 : vector<1x1024xf32> to vector<1x1024xf32>
    %461 = vector.broadcast %460 : vector<1x1024xf32> to vector<8x1024xf32>
    %462 = arith.select %459, %461, %455 : vector<8x1024xi1>, vector<8x1024xf32>
    %c56_i32_101 = arith.constant 56 : i32
    %463 = vector.broadcast %c56_i32_101 : i32 to vector<1x1024xi32>
    %464 = arith.subi %230, %463 : vector<1x1024xi32>
    %465 = vector.broadcast %464 : vector<1x1024xi32> to vector<8x1024xi32>
    %466 = arith.cmpi eq, %2, %465 : vector<8x1024xi32>
    %467 = vector.shape_cast %221 : vector<1x1024xf32> to vector<1x1024xf32>
    %468 = vector.broadcast %467 : vector<1x1024xf32> to vector<8x1024xf32>
    %469 = arith.select %466, %468, %462 : vector<8x1024xi1>, vector<8x1024xf32>
    %c88 = arith.constant 88 : index
    %c0_102 = arith.constant 0 : index
    %470 = vector.load %arg4[%c88, %c0_102] : memref<224x1024xf32, #tpu.memory_space<vmem>>, vector<8x1024xf32>
    tpu.vector_store %arg4[%c88, %c0_102], %469 {strides = array<i32>} : memref<224x1024xf32, #tpu.memory_space<vmem>>, vector<8x1024xf32>,
    %cst_103 = arith.constant 1.000000e+01 : f32
    %471 = vector.broadcast %cst_103 : f32 to vector<1x1024xf32>
    %472 = arith.mulf %0, %471 : vector<1x1024xf32>
    %473 = math.floor %472 : vector<1x1024xf32>
    %474 = arith.subf %472, %473 : vector<1x1024xf32>
    %475 = arith.fptosi %473 : vector<1x1024xf32> to vector<1x1024xi32>
    %cst_104 = arith.constant 1.000000e+00 : f32
    %476 = vector.broadcast %cst_104 : f32 to vector<1x1024xf32>
    %477 = arith.subf %476, %474 : vector<1x1024xf32>
    %cst_105 = arith.constant 1.000000e+01 : f32
    %478 = vector.broadcast %cst_105 : f32 to vector<1x1024xf32>
    %479 = arith.mulf %1, %478 : vector<1x1024xf32>
    %480 = math.floor %479 : vector<1x1024xf32>
    %481 = arith.subf %479, %480 : vector<1x1024xf32>
    %482 = arith.fptosi %480 : vector<1x1024xf32> to vector<1x1024xi32>
    %cst_106 = arith.constant 1.000000e+00 : f32
    %483 = vector.broadcast %cst_106 : f32 to vector<1x1024xf32>
    %484 = arith.subf %483, %481 : vector<1x1024xf32>
    %485 = arith.mulf %477, %484 : vector<1x1024xf32>
    %c0_i32_107 = arith.constant 0 : i32
    %486 = vector.broadcast %c0_i32_107 : i32 to vector<1x1024xi32>
    %487 = arith.addi %475, %486 : vector<1x1024xi32>
    %c1_i32_108 = arith.constant 1 : i32
    %488 = vector.broadcast %c1_i32_108 : i32 to vector<1x1024xi32>
    %489 = arith.muli %487, %488 : vector<1x1024xi32>
    %c0_i32_109 = arith.constant 0 : i32
    %490 = vector.broadcast %c0_i32_109 : i32 to vector<1x1024xi32>
    %491 = arith.addi %482, %490 : vector<1x1024xi32>
    %c19349663_i32 = arith.constant 19349663 : i32
    %492 = vector.broadcast %c19349663_i32 : i32 to vector<1x1024xi32>
    %493 = arith.muli %491, %492 : vector<1x1024xi32>
    %494 = arith.xori %489, %493 : vector<1x1024xi32>
    %c63_i32 = arith.constant 63 : i32
    %495 = vector.broadcast %c63_i32 : i32 to vector<1x1024xi32>
    %496 = arith.andi %494, %495 : vector<1x1024xi32>
    %497 = arith.mulf %477, %481 : vector<1x1024xf32>
    %c0_i32_110 = arith.constant 0 : i32
    %498 = vector.broadcast %c0_i32_110 : i32 to vector<1x1024xi32>
    %499 = arith.addi %475, %498 : vector<1x1024xi32>
    %c1_i32_111 = arith.constant 1 : i32
    %500 = vector.broadcast %c1_i32_111 : i32 to vector<1x1024xi32>
    %501 = arith.muli %499, %500 : vector<1x1024xi32>
    %c1_i32_112 = arith.constant 1 : i32
    %502 = vector.broadcast %c1_i32_112 : i32 to vector<1x1024xi32>
    %503 = arith.addi %482, %502 : vector<1x1024xi32>
    %c19349663_i32_113 = arith.constant 19349663 : i32
    %504 = vector.broadcast %c19349663_i32_113 : i32 to vector<1x1024xi32>
    %505 = arith.muli %503, %504 : vector<1x1024xi32>
    %506 = arith.xori %501, %505 : vector<1x1024xi32>
    %c63_i32_114 = arith.constant 63 : i32
    %507 = vector.broadcast %c63_i32_114 : i32 to vector<1x1024xi32>
    %508 = arith.andi %506, %507 : vector<1x1024xi32>
    %509 = arith.mulf %474, %484 : vector<1x1024xf32>
    %c1_i32_115 = arith.constant 1 : i32
    %510 = vector.broadcast %c1_i32_115 : i32 to vector<1x1024xi32>
    %511 = arith.addi %475, %510 : vector<1x1024xi32>
    %c1_i32_116 = arith.constant 1 : i32
    %512 = vector.broadcast %c1_i32_116 : i32 to vector<1x1024xi32>
    %513 = arith.muli %511, %512 : vector<1x1024xi32>
    %c0_i32_117 = arith.constant 0 : i32
    %514 = vector.broadcast %c0_i32_117 : i32 to vector<1x1024xi32>
    %515 = arith.addi %482, %514 : vector<1x1024xi32>
    %c19349663_i32_118 = arith.constant 19349663 : i32
    %516 = vector.broadcast %c19349663_i32_118 : i32 to vector<1x1024xi32>
    %517 = arith.muli %515, %516 : vector<1x1024xi32>
    %518 = arith.xori %513, %517 : vector<1x1024xi32>
    %c63_i32_119 = arith.constant 63 : i32
    %519 = vector.broadcast %c63_i32_119 : i32 to vector<1x1024xi32>
    %520 = arith.andi %518, %519 : vector<1x1024xi32>
    %521 = arith.mulf %474, %481 : vector<1x1024xf32>
    %c1_i32_120 = arith.constant 1 : i32
    %522 = vector.broadcast %c1_i32_120 : i32 to vector<1x1024xi32>
    %523 = arith.addi %475, %522 : vector<1x1024xi32>
    %c1_i32_121 = arith.constant 1 : i32
    %524 = vector.broadcast %c1_i32_121 : i32 to vector<1x1024xi32>
    %525 = arith.muli %523, %524 : vector<1x1024xi32>
    %c1_i32_122 = arith.constant 1 : i32
    %526 = vector.broadcast %c1_i32_122 : i32 to vector<1x1024xi32>
    %527 = arith.addi %482, %526 : vector<1x1024xi32>
    %c19349663_i32_123 = arith.constant 19349663 : i32
    %528 = vector.broadcast %c19349663_i32_123 : i32 to vector<1x1024xi32>
    %529 = arith.muli %527, %528 : vector<1x1024xi32>
    %530 = arith.xori %525, %529 : vector<1x1024xi32>
    %c63_i32_124 = arith.constant 63 : i32
    %531 = vector.broadcast %c63_i32_124 : i32 to vector<1x1024xi32>
    %532 = arith.andi %530, %531 : vector<1x1024xi32>
    %c0_i32_125 = arith.constant 0 : i32
    %533 = vector.broadcast %c0_i32_125 : i32 to vector<1x1024xi32>
    %534 = arith.subi %496, %533 : vector<1x1024xi32>
    %535 = vector.broadcast %534 : vector<1x1024xi32> to vector<8x1024xi32>
    %536 = arith.cmpi eq, %2, %535 : vector<8x1024xi32>
    %cst_126 = arith.constant 0.000000e+00 : f32
    %537 = vector.shape_cast %485 : vector<1x1024xf32> to vector<1x1024xf32>
    %538 = vector.broadcast %537 : vector<1x1024xf32> to vector<8x1024xf32>
    %539 = vector.broadcast %cst_126 : f32 to vector<8x1024xf32>
    %540 = arith.select %536, %538, %539 : vector<8x1024xi1>, vector<8x1024xf32>
    %c0_i32_127 = arith.constant 0 : i32
    %541 = vector.broadcast %c0_i32_127 : i32 to vector<1x1024xi32>
    %542 = arith.subi %508, %541 : vector<1x1024xi32>
    %543 = vector.broadcast %542 : vector<1x1024xi32> to vector<8x1024xi32>
    %544 = arith.cmpi eq, %2, %543 : vector<8x1024xi32>
    %cst_128 = arith.constant 0.000000e+00 : f32
    %545 = vector.shape_cast %497 : vector<1x1024xf32> to vector<1x1024xf32>
    %546 = vector.broadcast %545 : vector<1x1024xf32> to vector<8x1024xf32>
    %547 = vector.broadcast %cst_128 : f32 to vector<8x1024xf32>
    %548 = arith.select %544, %546, %547 : vector<8x1024xi1>, vector<8x1024xf32>
    %549 = arith.addf %540, %548 : vector<8x1024xf32>
    %c0_i32_129 = arith.constant 0 : i32
    %550 = vector.broadcast %c0_i32_129 : i32 to vector<1x1024xi32>
    %551 = arith.subi %520, %550 : vector<1x1024xi32>
    %552 = vector.broadcast %551 : vector<1x1024xi32> to vector<8x1024xi32>
    %553 = arith.cmpi eq, %2, %552 : vector<8x1024xi32>
    %cst_130 = arith.constant 0.000000e+00 : f32
    %554 = vector.shape_cast %509 : vector<1x1024xf32> to vector<1x1024xf32>
    %555 = vector.broadcast %554 : vector<1x1024xf32> to vector<8x1024xf32>
    %556 = vector.broadcast %cst_130 : f32 to vector<8x1024xf32>
    %557 = arith.select %553, %555, %556 : vector<8x1024xi1>, vector<8x1024xf32>
    %558 = arith.addf %549, %557 : vector<8x1024xf32>
    %c0_i32_131 = arith.constant 0 : i32
    %559 = vector.broadcast %c0_i32_131 : i32 to vector<1x1024xi32>
    %560 = arith.subi %532, %559 : vector<1x1024xi32>
    %561 = vector.broadcast %560 : vector<1x1024xi32> to vector<8x1024xi32>
    %562 = arith.cmpi eq, %2, %561 : vector<8x1024xi32>
    %cst_132 = arith.constant 0.000000e+00 : f32
    %563 = vector.shape_cast %521 : vector<1x1024xf32> to vector<1x1024xf32>
    %564 = vector.broadcast %563 : vector<1x1024xf32> to vector<8x1024xf32>
    %565 = vector.broadcast %cst_132 : f32 to vector<8x1024xf32>
    %566 = arith.select %562, %564, %565 : vector<8x1024xi1>, vector<8x1024xf32>
    %567 = arith.addf %558, %566 : vector<8x1024xf32>
    %c96 = arith.constant 96 : index
    %c0_133 = arith.constant 0 : index
    %568 = vector.load %arg4[%c96, %c0_133] : memref<224x1024xf32, #tpu.memory_space<vmem>>, vector<8x1024xf32>
    tpu.vector_store %arg4[%c96, %c0_133], %567 {strides = array<i32>} : memref<224x1024xf32, #tpu.memory_space<vmem>>, vector<8x1024xf32>,
    %c8_i32_134 = arith.constant 8 : i32
    %569 = vector.broadcast %c8_i32_134 : i32 to vector<1x1024xi32>
    %570 = arith.subi %496, %569 : vector<1x1024xi32>
    %571 = vector.broadcast %570 : vector<1x1024xi32> to vector<8x1024xi32>
    %572 = arith.cmpi eq, %2, %571 : vector<8x1024xi32>
    %cst_135 = arith.constant 0.000000e+00 : f32
    %573 = vector.shape_cast %485 : vector<1x1024xf32> to vector<1x1024xf32>
    %574 = vector.broadcast %573 : vector<1x1024xf32> to vector<8x1024xf32>
    %575 = vector.broadcast %cst_135 : f32 to vector<8x1024xf32>
    %576 = arith.select %572, %574, %575 : vector<8x1024xi1>, vector<8x1024xf32>
    %c8_i32_136 = arith.constant 8 : i32
    %577 = vector.broadcast %c8_i32_136 : i32 to vector<1x1024xi32>
    %578 = arith.subi %508, %577 : vector<1x1024xi32>
    %579 = vector.broadcast %578 : vector<1x1024xi32> to vector<8x1024xi32>
    %580 = arith.cmpi eq, %2, %579 : vector<8x1024xi32>
    %cst_137 = arith.constant 0.000000e+00 : f32
    %581 = vector.shape_cast %497 : vector<1x1024xf32> to vector<1x1024xf32>
    %582 = vector.broadcast %581 : vector<1x1024xf32> to vector<8x1024xf32>
    %583 = vector.broadcast %cst_137 : f32 to vector<8x1024xf32>
    %584 = arith.select %580, %582, %583 : vector<8x1024xi1>, vector<8x1024xf32>
    %585 = arith.addf %576, %584 : vector<8x1024xf32>
    %c8_i32_138 = arith.constant 8 : i32
    %586 = vector.broadcast %c8_i32_138 : i32 to vector<1x1024xi32>
    %587 = arith.subi %520, %586 : vector<1x1024xi32>
    %588 = vector.broadcast %587 : vector<1x1024xi32> to vector<8x1024xi32>
    %589 = arith.cmpi eq, %2, %588 : vector<8x1024xi32>
    %cst_139 = arith.constant 0.000000e+00 : f32
    %590 = vector.shape_cast %509 : vector<1x1024xf32> to vector<1x1024xf32>
    %591 = vector.broadcast %590 : vector<1x1024xf32> to vector<8x1024xf32>
    %592 = vector.broadcast %cst_139 : f32 to vector<8x1024xf32>
    %593 = arith.select %589, %591, %592 : vector<8x1024xi1>, vector<8x1024xf32>
    %594 = arith.addf %585, %593 : vector<8x1024xf32>
    %c8_i32_140 = arith.constant 8 : i32
    %595 = vector.broadcast %c8_i32_140 : i32 to vector<1x1024xi32>
    %596 = arith.subi %532, %595 : vector<1x1024xi32>
    %597 = vector.broadcast %596 : vector<1x1024xi32> to vector<8x1024xi32>
    %598 = arith.cmpi eq, %2, %597 : vector<8x1024xi32>
    %cst_141 = arith.constant 0.000000e+00 : f32
    %599 = vector.shape_cast %521 : vector<1x1024xf32> to vector<1x1024xf32>
    %600 = vector.broadcast %599 : vector<1x1024xf32> to vector<8x1024xf32>
    %601 = vector.broadcast %cst_141 : f32 to vector<8x1024xf32>
    %602 = arith.select %598, %600, %601 : vector<8x1024xi1>, vector<8x1024xf32>
    %603 = arith.addf %594, %602 : vector<8x1024xf32>
    %c104 = arith.constant 104 : index
    %c0_142 = arith.constant 0 : index
    %604 = vector.load %arg4[%c104, %c0_142] : memref<224x1024xf32, #tpu.memory_space<vmem>>, vector<8x1024xf32>
    tpu.vector_store %arg4[%c104, %c0_142], %603 {strides = array<i32>} : memref<224x1024xf32, #tpu.memory_space<vmem>>, vector<8x1024xf32>,
    %c16_i32_143 = arith.constant 16 : i32
    %605 = vector.broadcast %c16_i32_143 : i32 to vector<1x1024xi32>
    %606 = arith.subi %496, %605 : vector<1x1024xi32>
    %607 = vector.broadcast %606 : vector<1x1024xi32> to vector<8x1024xi32>
    %608 = arith.cmpi eq, %2, %607 : vector<8x1024xi32>
    %cst_144 = arith.constant 0.000000e+00 : f32
    %609 = vector.shape_cast %485 : vector<1x1024xf32> to vector<1x1024xf32>
    %610 = vector.broadcast %609 : vector<1x1024xf32> to vector<8x1024xf32>
    %611 = vector.broadcast %cst_144 : f32 to vector<8x1024xf32>
    %612 = arith.select %608, %610, %611 : vector<8x1024xi1>, vector<8x1024xf32>
    %c16_i32_145 = arith.constant 16 : i32
    %613 = vector.broadcast %c16_i32_145 : i32 to vector<1x1024xi32>
    %614 = arith.subi %508, %613 : vector<1x1024xi32>
    %615 = vector.broadcast %614 : vector<1x1024xi32> to vector<8x1024xi32>
    %616 = arith.cmpi eq, %2, %615 : vector<8x1024xi32>
    %cst_146 = arith.constant 0.000000e+00 : f32
    %617 = vector.shape_cast %497 : vector<1x1024xf32> to vector<1x1024xf32>
    %618 = vector.broadcast %617 : vector<1x1024xf32> to vector<8x1024xf32>
    %619 = vector.broadcast %cst_146 : f32 to vector<8x1024xf32>
    %620 = arith.select %616, %618, %619 : vector<8x1024xi1>, vector<8x1024xf32>
    %621 = arith.addf %612, %620 : vector<8x1024xf32>
    %c16_i32_147 = arith.constant 16 : i32
    %622 = vector.broadcast %c16_i32_147 : i32 to vector<1x1024xi32>
    %623 = arith.subi %520, %622 : vector<1x1024xi32>
    %624 = vector.broadcast %623 : vector<1x1024xi32> to vector<8x1024xi32>
    %625 = arith.cmpi eq, %2, %624 : vector<8x1024xi32>
    %cst_148 = arith.constant 0.000000e+00 : f32
    %626 = vector.shape_cast %509 : vector<1x1024xf32> to vector<1x1024xf32>
    %627 = vector.broadcast %626 : vector<1x1024xf32> to vector<8x1024xf32>
    %628 = vector.broadcast %cst_148 : f32 to vector<8x1024xf32>
    %629 = arith.select %625, %627, %628 : vector<8x1024xi1>, vector<8x1024xf32>
    %630 = arith.addf %621, %629 : vector<8x1024xf32>
    %c16_i32_149 = arith.constant 16 : i32
    %631 = vector.broadcast %c16_i32_149 : i32 to vector<1x1024xi32>
    %632 = arith.subi %532, %631 : vector<1x1024xi32>
    %633 = vector.broadcast %632 : vector<1x1024xi32> to vector<8x1024xi32>
    %634 = arith.cmpi eq, %2, %633 : vector<8x1024xi32>
    %cst_150 = arith.constant 0.000000e+00 : f32
    %635 = vector.shape_cast %521 : vector<1x1024xf32> to vector<1x1024xf32>
    %636 = vector.broadcast %635 : vector<1x1024xf32> to vector<8x1024xf32>
    %637 = vector.broadcast %cst_150 : f32 to vector<8x1024xf32>
    %638 = arith.select %634, %636, %637 : vector<8x1024xi1>, vector<8x1024xf32>
    %639 = arith.addf %630, %638 : vector<8x1024xf32>
    %c112 = arith.constant 112 : index
    %c0_151 = arith.constant 0 : index
    %640 = vector.load %arg4[%c112, %c0_151] : memref<224x1024xf32, #tpu.memory_space<vmem>>, vector<8x1024xf32>
    tpu.vector_store %arg4[%c112, %c0_151], %639 {strides = array<i32>} : memref<224x1024xf32, #tpu.memory_space<vmem>>, vector<8x1024xf32>,
    %c24_i32_152 = arith.constant 24 : i32
    %641 = vector.broadcast %c24_i32_152 : i32 to vector<1x1024xi32>
    %642 = arith.subi %496, %641 : vector<1x1024xi32>
    %643 = vector.broadcast %642 : vector<1x1024xi32> to vector<8x1024xi32>
    %644 = arith.cmpi eq, %2, %643 : vector<8x1024xi32>
    %cst_153 = arith.constant 0.000000e+00 : f32
    %645 = vector.shape_cast %485 : vector<1x1024xf32> to vector<1x1024xf32>
    %646 = vector.broadcast %645 : vector<1x1024xf32> to vector<8x1024xf32>
    %647 = vector.broadcast %cst_153 : f32 to vector<8x1024xf32>
    %648 = arith.select %644, %646, %647 : vector<8x1024xi1>, vector<8x1024xf32>
    %c24_i32_154 = arith.constant 24 : i32
    %649 = vector.broadcast %c24_i32_154 : i32 to vector<1x1024xi32>
    %650 = arith.subi %508, %649 : vector<1x1024xi32>
    %651 = vector.broadcast %650 : vector<1x1024xi32> to vector<8x1024xi32>
    %652 = arith.cmpi eq, %2, %651 : vector<8x1024xi32>
    %cst_155 = arith.constant 0.000000e+00 : f32
    %653 = vector.shape_cast %497 : vector<1x1024xf32> to vector<1x1024xf32>
    %654 = vector.broadcast %653 : vector<1x1024xf32> to vector<8x1024xf32>
    %655 = vector.broadcast %cst_155 : f32 to vector<8x1024xf32>
    %656 = arith.select %652, %654, %655 : vector<8x1024xi1>, vector<8x1024xf32>
    %657 = arith.addf %648, %656 : vector<8x1024xf32>
    %c24_i32_156 = arith.constant 24 : i32
    %658 = vector.broadcast %c24_i32_156 : i32 to vector<1x1024xi32>
    %659 = arith.subi %520, %658 : vector<1x1024xi32>
    %660 = vector.broadcast %659 : vector<1x1024xi32> to vector<8x1024xi32>
    %661 = arith.cmpi eq, %2, %660 : vector<8x1024xi32>
    %cst_157 = arith.constant 0.000000e+00 : f32
    %662 = vector.shape_cast %509 : vector<1x1024xf32> to vector<1x1024xf32>
    %663 = vector.broadcast %662 : vector<1x1024xf32> to vector<8x1024xf32>
    %664 = vector.broadcast %cst_157 : f32 to vector<8x1024xf32>
    %665 = arith.select %661, %663, %664 : vector<8x1024xi1>, vector<8x1024xf32>
    %666 = arith.addf %657, %665 : vector<8x1024xf32>
    %c24_i32_158 = arith.constant 24 : i32
    %667 = vector.broadcast %c24_i32_158 : i32 to vector<1x1024xi32>
    %668 = arith.subi %532, %667 : vector<1x1024xi32>
    %669 = vector.broadcast %668 : vector<1x1024xi32> to vector<8x1024xi32>
    %670 = arith.cmpi eq, %2, %669 : vector<8x1024xi32>
    %cst_159 = arith.constant 0.000000e+00 : f32
    %671 = vector.shape_cast %521 : vector<1x1024xf32> to vector<1x1024xf32>
    %672 = vector.broadcast %671 : vector<1x1024xf32> to vector<8x1024xf32>
    %673 = vector.broadcast %cst_159 : f32 to vector<8x1024xf32>
    %674 = arith.select %670, %672, %673 : vector<8x1024xi1>, vector<8x1024xf32>
    %675 = arith.addf %666, %674 : vector<8x1024xf32>
    %c120 = arith.constant 120 : index
    %c0_160 = arith.constant 0 : index
    %676 = vector.load %arg4[%c120, %c0_160] : memref<224x1024xf32, #tpu.memory_space<vmem>>, vector<8x1024xf32>
    tpu.vector_store %arg4[%c120, %c0_160], %675 {strides = array<i32>} : memref<224x1024xf32, #tpu.memory_space<vmem>>, vector<8x1024xf32>,
    %c32_i32_161 = arith.constant 32 : i32
    %677 = vector.broadcast %c32_i32_161 : i32 to vector<1x1024xi32>
    %678 = arith.subi %496, %677 : vector<1x1024xi32>
    %679 = vector.broadcast %678 : vector<1x1024xi32> to vector<8x1024xi32>
    %680 = arith.cmpi eq, %2, %679 : vector<8x1024xi32>
    %cst_162 = arith.constant 0.000000e+00 : f32
    %681 = vector.shape_cast %485 : vector<1x1024xf32> to vector<1x1024xf32>
    %682 = vector.broadcast %681 : vector<1x1024xf32> to vector<8x1024xf32>
    %683 = vector.broadcast %cst_162 : f32 to vector<8x1024xf32>
    %684 = arith.select %680, %682, %683 : vector<8x1024xi1>, vector<8x1024xf32>
    %c32_i32_163 = arith.constant 32 : i32
    %685 = vector.broadcast %c32_i32_163 : i32 to vector<1x1024xi32>
    %686 = arith.subi %508, %685 : vector<1x1024xi32>
    %687 = vector.broadcast %686 : vector<1x1024xi32> to vector<8x1024xi32>
    %688 = arith.cmpi eq, %2, %687 : vector<8x1024xi32>
    %cst_164 = arith.constant 0.000000e+00 : f32
    %689 = vector.shape_cast %497 : vector<1x1024xf32> to vector<1x1024xf32>
    %690 = vector.broadcast %689 : vector<1x1024xf32> to vector<8x1024xf32>
    %691 = vector.broadcast %cst_164 : f32 to vector<8x1024xf32>
    %692 = arith.select %688, %690, %691 : vector<8x1024xi1>, vector<8x1024xf32>
    %693 = arith.addf %684, %692 : vector<8x1024xf32>
    %c32_i32_165 = arith.constant 32 : i32
    %694 = vector.broadcast %c32_i32_165 : i32 to vector<1x1024xi32>
    %695 = arith.subi %520, %694 : vector<1x1024xi32>
    %696 = vector.broadcast %695 : vector<1x1024xi32> to vector<8x1024xi32>
    %697 = arith.cmpi eq, %2, %696 : vector<8x1024xi32>
    %cst_166 = arith.constant 0.000000e+00 : f32
    %698 = vector.shape_cast %509 : vector<1x1024xf32> to vector<1x1024xf32>
    %699 = vector.broadcast %698 : vector<1x1024xf32> to vector<8x1024xf32>
    %700 = vector.broadcast %cst_166 : f32 to vector<8x1024xf32>
    %701 = arith.select %697, %699, %700 : vector<8x1024xi1>, vector<8x1024xf32>
    %702 = arith.addf %693, %701 : vector<8x1024xf32>
    %c32_i32_167 = arith.constant 32 : i32
    %703 = vector.broadcast %c32_i32_167 : i32 to vector<1x1024xi32>
    %704 = arith.subi %532, %703 : vector<1x1024xi32>
    %705 = vector.broadcast %704 : vector<1x1024xi32> to vector<8x1024xi32>
    %706 = arith.cmpi eq, %2, %705 : vector<8x1024xi32>
    %cst_168 = arith.constant 0.000000e+00 : f32
    %707 = vector.shape_cast %521 : vector<1x1024xf32> to vector<1x1024xf32>
    %708 = vector.broadcast %707 : vector<1x1024xf32> to vector<8x1024xf32>
    %709 = vector.broadcast %cst_168 : f32 to vector<8x1024xf32>
    %710 = arith.select %706, %708, %709 : vector<8x1024xi1>, vector<8x1024xf32>
    %711 = arith.addf %702, %710 : vector<8x1024xf32>
    %c128 = arith.constant 128 : index
    %c0_169 = arith.constant 0 : index
    %712 = vector.load %arg4[%c128, %c0_169] : memref<224x1024xf32, #tpu.memory_space<vmem>>, vector<8x1024xf32>
    tpu.vector_store %arg4[%c128, %c0_169], %711 {strides = array<i32>} : memref<224x1024xf32, #tpu.memory_space<vmem>>, vector<8x1024xf32>,
    %c40_i32_170 = arith.constant 40 : i32
    %713 = vector.broadcast %c40_i32_170 : i32 to vector<1x1024xi32>
    %714 = arith.subi %496, %713 : vector<1x1024xi32>
    %715 = vector.broadcast %714 : vector<1x1024xi32> to vector<8x1024xi32>
    %716 = arith.cmpi eq, %2, %715 : vector<8x1024xi32>
    %cst_171 = arith.constant 0.000000e+00 : f32
    %717 = vector.shape_cast %485 : vector<1x1024xf32> to vector<1x1024xf32>
    %718 = vector.broadcast %717 : vector<1x1024xf32> to vector<8x1024xf32>
    %719 = vector.broadcast %cst_171 : f32 to vector<8x1024xf32>
    %720 = arith.select %716, %718, %719 : vector<8x1024xi1>, vector<8x1024xf32>
    %c40_i32_172 = arith.constant 40 : i32
    %721 = vector.broadcast %c40_i32_172 : i32 to vector<1x1024xi32>
    %722 = arith.subi %508, %721 : vector<1x1024xi32>
    %723 = vector.broadcast %722 : vector<1x1024xi32> to vector<8x1024xi32>
    %724 = arith.cmpi eq, %2, %723 : vector<8x1024xi32>
    %cst_173 = arith.constant 0.000000e+00 : f32
    %725 = vector.shape_cast %497 : vector<1x1024xf32> to vector<1x1024xf32>
    %726 = vector.broadcast %725 : vector<1x1024xf32> to vector<8x1024xf32>
    %727 = vector.broadcast %cst_173 : f32 to vector<8x1024xf32>
    %728 = arith.select %724, %726, %727 : vector<8x1024xi1>, vector<8x1024xf32>
    %729 = arith.addf %720, %728 : vector<8x1024xf32>
    %c40_i32_174 = arith.constant 40 : i32
    %730 = vector.broadcast %c40_i32_174 : i32 to vector<1x1024xi32>
    %731 = arith.subi %520, %730 : vector<1x1024xi32>
    %732 = vector.broadcast %731 : vector<1x1024xi32> to vector<8x1024xi32>
    %733 = arith.cmpi eq, %2, %732 : vector<8x1024xi32>
    %cst_175 = arith.constant 0.000000e+00 : f32
    %734 = vector.shape_cast %509 : vector<1x1024xf32> to vector<1x1024xf32>
    %735 = vector.broadcast %734 : vector<1x1024xf32> to vector<8x1024xf32>
    %736 = vector.broadcast %cst_175 : f32 to vector<8x1024xf32>
    %737 = arith.select %733, %735, %736 : vector<8x1024xi1>, vector<8x1024xf32>
    %738 = arith.addf %729, %737 : vector<8x1024xf32>
    %c40_i32_176 = arith.constant 40 : i32
    %739 = vector.broadcast %c40_i32_176 : i32 to vector<1x1024xi32>
    %740 = arith.subi %532, %739 : vector<1x1024xi32>
    %741 = vector.broadcast %740 : vector<1x1024xi32> to vector<8x1024xi32>
    %742 = arith.cmpi eq, %2, %741 : vector<8x1024xi32>
    %cst_177 = arith.constant 0.000000e+00 : f32
    %743 = vector.shape_cast %521 : vector<1x1024xf32> to vector<1x1024xf32>
    %744 = vector.broadcast %743 : vector<1x1024xf32> to vector<8x1024xf32>
    %745 = vector.broadcast %cst_177 : f32 to vector<8x1024xf32>
    %746 = arith.select %742, %744, %745 : vector<8x1024xi1>, vector<8x1024xf32>
    %747 = arith.addf %738, %746 : vector<8x1024xf32>
    %c136 = arith.constant 136 : index
    %c0_178 = arith.constant 0 : index
    %748 = vector.load %arg4[%c136, %c0_178] : memref<224x1024xf32, #tpu.memory_space<vmem>>, vector<8x1024xf32>
    tpu.vector_store %arg4[%c136, %c0_178], %747 {strides = array<i32>} : memref<224x1024xf32, #tpu.memory_space<vmem>>, vector<8x1024xf32>,
    %c48_i32_179 = arith.constant 48 : i32
    %749 = vector.broadcast %c48_i32_179 : i32 to vector<1x1024xi32>
    %750 = arith.subi %496, %749 : vector<1x1024xi32>
    %751 = vector.broadcast %750 : vector<1x1024xi32> to vector<8x1024xi32>
    %752 = arith.cmpi eq, %2, %751 : vector<8x1024xi32>
    %cst_180 = arith.constant 0.000000e+00 : f32
    %753 = vector.shape_cast %485 : vector<1x1024xf32> to vector<1x1024xf32>
    %754 = vector.broadcast %753 : vector<1x1024xf32> to vector<8x1024xf32>
    %755 = vector.broadcast %cst_180 : f32 to vector<8x1024xf32>
    %756 = arith.select %752, %754, %755 : vector<8x1024xi1>, vector<8x1024xf32>
    %c48_i32_181 = arith.constant 48 : i32
    %757 = vector.broadcast %c48_i32_181 : i32 to vector<1x1024xi32>
    %758 = arith.subi %508, %757 : vector<1x1024xi32>
    %759 = vector.broadcast %758 : vector<1x1024xi32> to vector<8x1024xi32>
    %760 = arith.cmpi eq, %2, %759 : vector<8x1024xi32>
    %cst_182 = arith.constant 0.000000e+00 : f32
    %761 = vector.shape_cast %497 : vector<1x1024xf32> to vector<1x1024xf32>
    %762 = vector.broadcast %761 : vector<1x1024xf32> to vector<8x1024xf32>
    %763 = vector.broadcast %cst_182 : f32 to vector<8x1024xf32>
    %764 = arith.select %760, %762, %763 : vector<8x1024xi1>, vector<8x1024xf32>
    %765 = arith.addf %756, %764 : vector<8x1024xf32>
    %c48_i32_183 = arith.constant 48 : i32
    %766 = vector.broadcast %c48_i32_183 : i32 to vector<1x1024xi32>
    %767 = arith.subi %520, %766 : vector<1x1024xi32>
    %768 = vector.broadcast %767 : vector<1x1024xi32> to vector<8x1024xi32>
    %769 = arith.cmpi eq, %2, %768 : vector<8x1024xi32>
    %cst_184 = arith.constant 0.000000e+00 : f32
    %770 = vector.shape_cast %509 : vector<1x1024xf32> to vector<1x1024xf32>
    %771 = vector.broadcast %770 : vector<1x1024xf32> to vector<8x1024xf32>
    %772 = vector.broadcast %cst_184 : f32 to vector<8x1024xf32>
    %773 = arith.select %769, %771, %772 : vector<8x1024xi1>, vector<8x1024xf32>
    %774 = arith.addf %765, %773 : vector<8x1024xf32>
    %c48_i32_185 = arith.constant 48 : i32
    %775 = vector.broadcast %c48_i32_185 : i32 to vector<1x1024xi32>
    %776 = arith.subi %532, %775 : vector<1x1024xi32>
    %777 = vector.broadcast %776 : vector<1x1024xi32> to vector<8x1024xi32>
    %778 = arith.cmpi eq, %2, %777 : vector<8x1024xi32>
    %cst_186 = arith.constant 0.000000e+00 : f32
    %779 = vector.shape_cast %521 : vector<1x1024xf32> to vector<1x1024xf32>
    %780 = vector.broadcast %779 : vector<1x1024xf32> to vector<8x1024xf32>
    %781 = vector.broadcast %cst_186 : f32 to vector<8x1024xf32>
    %782 = arith.select %778, %780, %781 : vector<8x1024xi1>, vector<8x1024xf32>
    %783 = arith.addf %774, %782 : vector<8x1024xf32>
    %c144 = arith.constant 144 : index
    %c0_187 = arith.constant 0 : index
    %784 = vector.load %arg4[%c144, %c0_187] : memref<224x1024xf32, #tpu.memory_space<vmem>>, vector<8x1024xf32>
    tpu.vector_store %arg4[%c144, %c0_187], %783 {strides = array<i32>} : memref<224x1024xf32, #tpu.memory_space<vmem>>, vector<8x1024xf32>,
    %c56_i32_188 = arith.constant 56 : i32
    %785 = vector.broadcast %c56_i32_188 : i32 to vector<1x1024xi32>
    %786 = arith.subi %496, %785 : vector<1x1024xi32>
    %787 = vector.broadcast %786 : vector<1x1024xi32> to vector<8x1024xi32>
    %788 = arith.cmpi eq, %2, %787 : vector<8x1024xi32>
    %cst_189 = arith.constant 0.000000e+00 : f32
    %789 = vector.shape_cast %485 : vector<1x1024xf32> to vector<1x1024xf32>
    %790 = vector.broadcast %789 : vector<1x1024xf32> to vector<8x1024xf32>
    %791 = vector.broadcast %cst_189 : f32 to vector<8x1024xf32>
    %792 = arith.select %788, %790, %791 : vector<8x1024xi1>, vector<8x1024xf32>
    %c56_i32_190 = arith.constant 56 : i32
    %793 = vector.broadcast %c56_i32_190 : i32 to vector<1x1024xi32>
    %794 = arith.subi %508, %793 : vector<1x1024xi32>
    %795 = vector.broadcast %794 : vector<1x1024xi32> to vector<8x1024xi32>
    %796 = arith.cmpi eq, %2, %795 : vector<8x1024xi32>
    %cst_191 = arith.constant 0.000000e+00 : f32
    %797 = vector.shape_cast %497 : vector<1x1024xf32> to vector<1x1024xf32>
    %798 = vector.broadcast %797 : vector<1x1024xf32> to vector<8x1024xf32>
    %799 = vector.broadcast %cst_191 : f32 to vector<8x1024xf32>
    %800 = arith.select %796, %798, %799 : vector<8x1024xi1>, vector<8x1024xf32>
    %801 = arith.addf %792, %800 : vector<8x1024xf32>
    %c56_i32_192 = arith.constant 56 : i32
    %802 = vector.broadcast %c56_i32_192 : i32 to vector<1x1024xi32>
    %803 = arith.subi %520, %802 : vector<1x1024xi32>
    %804 = vector.broadcast %803 : vector<1x1024xi32> to vector<8x1024xi32>
    %805 = arith.cmpi eq, %2, %804 : vector<8x1024xi32>
    %cst_193 = arith.constant 0.000000e+00 : f32
    %806 = vector.shape_cast %509 : vector<1x1024xf32> to vector<1x1024xf32>
    %807 = vector.broadcast %806 : vector<1x1024xf32> to vector<8x1024xf32>
    %808 = vector.broadcast %cst_193 : f32 to vector<8x1024xf32>
    %809 = arith.select %805, %807, %808 : vector<8x1024xi1>, vector<8x1024xf32>
    %810 = arith.addf %801, %809 : vector<8x1024xf32>
    %c56_i32_194 = arith.constant 56 : i32
    %811 = vector.broadcast %c56_i32_194 : i32 to vector<1x1024xi32>
    %812 = arith.subi %532, %811 : vector<1x1024xi32>
    %813 = vector.broadcast %812 : vector<1x1024xi32> to vector<8x1024xi32>
    %814 = arith.cmpi eq, %2, %813 : vector<8x1024xi32>
    %cst_195 = arith.constant 0.000000e+00 : f32
    %815 = vector.shape_cast %521 : vector<1x1024xf32> to vector<1x1024xf32>
    %816 = vector.broadcast %815 : vector<1x1024xf32> to vector<8x1024xf32>
    %817 = vector.broadcast %cst_195 : f32 to vector<8x1024xf32>
    %818 = arith.select %814, %816, %817 : vector<8x1024xi1>, vector<8x1024xf32>
    %819 = arith.addf %810, %818 : vector<8x1024xf32>
    %c152 = arith.constant 152 : index
    %c0_196 = arith.constant 0 : index
    %820 = vector.load %arg4[%c152, %c0_196] : memref<224x1024xf32, #tpu.memory_space<vmem>>, vector<8x1024xf32>
    tpu.vector_store %arg4[%c152, %c0_196], %819 {strides = array<i32>} : memref<224x1024xf32, #tpu.memory_space<vmem>>, vector<8x1024xf32>,
    %cst_197 = arith.constant 1.600000e+01 : f32
    %821 = vector.broadcast %cst_197 : f32 to vector<1x1024xf32>
    %822 = arith.mulf %0, %821 : vector<1x1024xf32>
    %823 = math.floor %822 : vector<1x1024xf32>
    %824 = arith.subf %822, %823 : vector<1x1024xf32>
    %825 = arith.fptosi %823 : vector<1x1024xf32> to vector<1x1024xi32>
    %cst_198 = arith.constant 1.000000e+00 : f32
    %826 = vector.broadcast %cst_198 : f32 to vector<1x1024xf32>
    %827 = arith.subf %826, %824 : vector<1x1024xf32>
    %cst_199 = arith.constant 1.600000e+01 : f32
    %828 = vector.broadcast %cst_199 : f32 to vector<1x1024xf32>
    %829 = arith.mulf %1, %828 : vector<1x1024xf32>
    %830 = math.floor %829 : vector<1x1024xf32>
    %831 = arith.subf %829, %830 : vector<1x1024xf32>
    %832 = arith.fptosi %830 : vector<1x1024xf32> to vector<1x1024xi32>
    %cst_200 = arith.constant 1.000000e+00 : f32
    %833 = vector.broadcast %cst_200 : f32 to vector<1x1024xf32>
    %834 = arith.subf %833, %831 : vector<1x1024xf32>
    %835 = arith.mulf %827, %834 : vector<1x1024xf32>
    %c0_i32_201 = arith.constant 0 : i32
    %836 = vector.broadcast %c0_i32_201 : i32 to vector<1x1024xi32>
    %837 = arith.addi %825, %836 : vector<1x1024xi32>
    %c1_i32_202 = arith.constant 1 : i32
    %838 = vector.broadcast %c1_i32_202 : i32 to vector<1x1024xi32>
    %839 = arith.muli %837, %838 : vector<1x1024xi32>
    %c0_i32_203 = arith.constant 0 : i32
    %840 = vector.broadcast %c0_i32_203 : i32 to vector<1x1024xi32>
    %841 = arith.addi %832, %840 : vector<1x1024xi32>
    %c19349663_i32_204 = arith.constant 19349663 : i32
    %842 = vector.broadcast %c19349663_i32_204 : i32 to vector<1x1024xi32>
    %843 = arith.muli %841, %842 : vector<1x1024xi32>
    %844 = arith.xori %839, %843 : vector<1x1024xi32>
    %c63_i32_205 = arith.constant 63 : i32
    %845 = vector.broadcast %c63_i32_205 : i32 to vector<1x1024xi32>
    %846 = arith.andi %844, %845 : vector<1x1024xi32>
    %847 = arith.mulf %827, %831 : vector<1x1024xf32>
    %c0_i32_206 = arith.constant 0 : i32
    %848 = vector.broadcast %c0_i32_206 : i32 to vector<1x1024xi32>
    %849 = arith.addi %825, %848 : vector<1x1024xi32>
    %c1_i32_207 = arith.constant 1 : i32
    %850 = vector.broadcast %c1_i32_207 : i32 to vector<1x1024xi32>
    %851 = arith.muli %849, %850 : vector<1x1024xi32>
    %c1_i32_208 = arith.constant 1 : i32
    %852 = vector.broadcast %c1_i32_208 : i32 to vector<1x1024xi32>
    %853 = arith.addi %832, %852 : vector<1x1024xi32>
    %c19349663_i32_209 = arith.constant 19349663 : i32
    %854 = vector.broadcast %c19349663_i32_209 : i32 to vector<1x1024xi32>
    %855 = arith.muli %853, %854 : vector<1x1024xi32>
    %856 = arith.xori %851, %855 : vector<1x1024xi32>
    %c63_i32_210 = arith.constant 63 : i32
    %857 = vector.broadcast %c63_i32_210 : i32 to vector<1x1024xi32>
    %858 = arith.andi %856, %857 : vector<1x1024xi32>
    %859 = arith.mulf %824, %834 : vector<1x1024xf32>
    %c1_i32_211 = arith.constant 1 : i32
    %860 = vector.broadcast %c1_i32_211 : i32 to vector<1x1024xi32>
    %861 = arith.addi %825, %860 : vector<1x1024xi32>
    %c1_i32_212 = arith.constant 1 : i32
    %862 = vector.broadcast %c1_i32_212 : i32 to vector<1x1024xi32>
    %863 = arith.muli %861, %862 : vector<1x1024xi32>
    %c0_i32_213 = arith.constant 0 : i32
    %864 = vector.broadcast %c0_i32_213 : i32 to vector<1x1024xi32>
    %865 = arith.addi %832, %864 : vector<1x1024xi32>
    %c19349663_i32_214 = arith.constant 19349663 : i32
    %866 = vector.broadcast %c19349663_i32_214 : i32 to vector<1x1024xi32>
    %867 = arith.muli %865, %866 : vector<1x1024xi32>
    %868 = arith.xori %863, %867 : vector<1x1024xi32>
    %c63_i32_215 = arith.constant 63 : i32
    %869 = vector.broadcast %c63_i32_215 : i32 to vector<1x1024xi32>
    %870 = arith.andi %868, %869 : vector<1x1024xi32>
    %871 = arith.mulf %824, %831 : vector<1x1024xf32>
    %c1_i32_216 = arith.constant 1 : i32
    %872 = vector.broadcast %c1_i32_216 : i32 to vector<1x1024xi32>
    %873 = arith.addi %825, %872 : vector<1x1024xi32>
    %c1_i32_217 = arith.constant 1 : i32
    %874 = vector.broadcast %c1_i32_217 : i32 to vector<1x1024xi32>
    %875 = arith.muli %873, %874 : vector<1x1024xi32>
    %c1_i32_218 = arith.constant 1 : i32
    %876 = vector.broadcast %c1_i32_218 : i32 to vector<1x1024xi32>
    %877 = arith.addi %832, %876 : vector<1x1024xi32>
    %c19349663_i32_219 = arith.constant 19349663 : i32
    %878 = vector.broadcast %c19349663_i32_219 : i32 to vector<1x1024xi32>
    %879 = arith.muli %877, %878 : vector<1x1024xi32>
    %880 = arith.xori %875, %879 : vector<1x1024xi32>
    %c63_i32_220 = arith.constant 63 : i32
    %881 = vector.broadcast %c63_i32_220 : i32 to vector<1x1024xi32>
    %882 = arith.andi %880, %881 : vector<1x1024xi32>
    %c0_i32_221 = arith.constant 0 : i32
    %883 = vector.broadcast %c0_i32_221 : i32 to vector<1x1024xi32>
    %884 = arith.subi %846, %883 : vector<1x1024xi32>
    %885 = vector.broadcast %884 : vector<1x1024xi32> to vector<8x1024xi32>
    %886 = arith.cmpi eq, %2, %885 : vector<8x1024xi32>
    %cst_222 = arith.constant 0.000000e+00 : f32
    %887 = vector.shape_cast %835 : vector<1x1024xf32> to vector<1x1024xf32>
    %888 = vector.broadcast %887 : vector<1x1024xf32> to vector<8x1024xf32>
    %889 = vector.broadcast %cst_222 : f32 to vector<8x1024xf32>
    %890 = arith.select %886, %888, %889 : vector<8x1024xi1>, vector<8x1024xf32>
    %c0_i32_223 = arith.constant 0 : i32
    %891 = vector.broadcast %c0_i32_223 : i32 to vector<1x1024xi32>
    %892 = arith.subi %858, %891 : vector<1x1024xi32>
    %893 = vector.broadcast %892 : vector<1x1024xi32> to vector<8x1024xi32>
    %894 = arith.cmpi eq, %2, %893 : vector<8x1024xi32>
    %cst_224 = arith.constant 0.000000e+00 : f32
    %895 = vector.shape_cast %847 : vector<1x1024xf32> to vector<1x1024xf32>
    %896 = vector.broadcast %895 : vector<1x1024xf32> to vector<8x1024xf32>
    %897 = vector.broadcast %cst_224 : f32 to vector<8x1024xf32>
    %898 = arith.select %894, %896, %897 : vector<8x1024xi1>, vector<8x1024xf32>
    %899 = arith.addf %890, %898 : vector<8x1024xf32>
    %c0_i32_225 = arith.constant 0 : i32
    %900 = vector.broadcast %c0_i32_225 : i32 to vector<1x1024xi32>
    %901 = arith.subi %870, %900 : vector<1x1024xi32>
    %902 = vector.broadcast %901 : vector<1x1024xi32> to vector<8x1024xi32>
    %903 = arith.cmpi eq, %2, %902 : vector<8x1024xi32>
    %cst_226 = arith.constant 0.000000e+00 : f32
    %904 = vector.shape_cast %859 : vector<1x1024xf32> to vector<1x1024xf32>
    %905 = vector.broadcast %904 : vector<1x1024xf32> to vector<8x1024xf32>
    %906 = vector.broadcast %cst_226 : f32 to vector<8x1024xf32>
    %907 = arith.select %903, %905, %906 : vector<8x1024xi1>, vector<8x1024xf32>
    %908 = arith.addf %899, %907 : vector<8x1024xf32>
    %c0_i32_227 = arith.constant 0 : i32
    %909 = vector.broadcast %c0_i32_227 : i32 to vector<1x1024xi32>
    %910 = arith.subi %882, %909 : vector<1x1024xi32>
    %911 = vector.broadcast %910 : vector<1x1024xi32> to vector<8x1024xi32>
    %912 = arith.cmpi eq, %2, %911 : vector<8x1024xi32>
    %cst_228 = arith.constant 0.000000e+00 : f32
    %913 = vector.shape_cast %871 : vector<1x1024xf32> to vector<1x1024xf32>
    %914 = vector.broadcast %913 : vector<1x1024xf32> to vector<8x1024xf32>
    %915 = vector.broadcast %cst_228 : f32 to vector<8x1024xf32>
    %916 = arith.select %912, %914, %915 : vector<8x1024xi1>, vector<8x1024xf32>
    %917 = arith.addf %908, %916 : vector<8x1024xf32>
    %c160 = arith.constant 160 : index
    %c0_229 = arith.constant 0 : index
    %918 = vector.load %arg4[%c160, %c0_229] : memref<224x1024xf32, #tpu.memory_space<vmem>>, vector<8x1024xf32>
    tpu.vector_store %arg4[%c160, %c0_229], %917 {strides = array<i32>} : memref<224x1024xf32, #tpu.memory_space<vmem>>, vector<8x1024xf32>,
    %c8_i32_230 = arith.constant 8 : i32
    %919 = vector.broadcast %c8_i32_230 : i32 to vector<1x1024xi32>
    %920 = arith.subi %846, %919 : vector<1x1024xi32>
    %921 = vector.broadcast %920 : vector<1x1024xi32> to vector<8x1024xi32>
    %922 = arith.cmpi eq, %2, %921 : vector<8x1024xi32>
    %cst_231 = arith.constant 0.000000e+00 : f32
    %923 = vector.shape_cast %835 : vector<1x1024xf32> to vector<1x1024xf32>
    %924 = vector.broadcast %923 : vector<1x1024xf32> to vector<8x1024xf32>
    %925 = vector.broadcast %cst_231 : f32 to vector<8x1024xf32>
    %926 = arith.select %922, %924, %925 : vector<8x1024xi1>, vector<8x1024xf32>
    %c8_i32_232 = arith.constant 8 : i32
    %927 = vector.broadcast %c8_i32_232 : i32 to vector<1x1024xi32>
    %928 = arith.subi %858, %927 : vector<1x1024xi32>
    %929 = vector.broadcast %928 : vector<1x1024xi32> to vector<8x1024xi32>
    %930 = arith.cmpi eq, %2, %929 : vector<8x1024xi32>
    %cst_233 = arith.constant 0.000000e+00 : f32
    %931 = vector.shape_cast %847 : vector<1x1024xf32> to vector<1x1024xf32>
    %932 = vector.broadcast %931 : vector<1x1024xf32> to vector<8x1024xf32>
    %933 = vector.broadcast %cst_233 : f32 to vector<8x1024xf32>
    %934 = arith.select %930, %932, %933 : vector<8x1024xi1>, vector<8x1024xf32>
    %935 = arith.addf %926, %934 : vector<8x1024xf32>
    %c8_i32_234 = arith.constant 8 : i32
    %936 = vector.broadcast %c8_i32_234 : i32 to vector<1x1024xi32>
    %937 = arith.subi %870, %936 : vector<1x1024xi32>
    %938 = vector.broadcast %937 : vector<1x1024xi32> to vector<8x1024xi32>
    %939 = arith.cmpi eq, %2, %938 : vector<8x1024xi32>
    %cst_235 = arith.constant 0.000000e+00 : f32
    %940 = vector.shape_cast %859 : vector<1x1024xf32> to vector<1x1024xf32>
    %941 = vector.broadcast %940 : vector<1x1024xf32> to vector<8x1024xf32>
    %942 = vector.broadcast %cst_235 : f32 to vector<8x1024xf32>
    %943 = arith.select %939, %941, %942 : vector<8x1024xi1>, vector<8x1024xf32>
    %944 = arith.addf %935, %943 : vector<8x1024xf32>
    %c8_i32_236 = arith.constant 8 : i32
    %945 = vector.broadcast %c8_i32_236 : i32 to vector<1x1024xi32>
    %946 = arith.subi %882, %945 : vector<1x1024xi32>
    %947 = vector.broadcast %946 : vector<1x1024xi32> to vector<8x1024xi32>
    %948 = arith.cmpi eq, %2, %947 : vector<8x1024xi32>
    %cst_237 = arith.constant 0.000000e+00 : f32
    %949 = vector.shape_cast %871 : vector<1x1024xf32> to vector<1x1024xf32>
    %950 = vector.broadcast %949 : vector<1x1024xf32> to vector<8x1024xf32>
    %951 = vector.broadcast %cst_237 : f32 to vector<8x1024xf32>
    %952 = arith.select %948, %950, %951 : vector<8x1024xi1>, vector<8x1024xf32>
    %953 = arith.addf %944, %952 : vector<8x1024xf32>
    %c168 = arith.constant 168 : index
    %c0_238 = arith.constant 0 : index
    %954 = vector.load %arg4[%c168, %c0_238] : memref<224x1024xf32, #tpu.memory_space<vmem>>, vector<8x1024xf32>
    tpu.vector_store %arg4[%c168, %c0_238], %953 {strides = array<i32>} : memref<224x1024xf32, #tpu.memory_space<vmem>>, vector<8x1024xf32>,
    %c16_i32_239 = arith.constant 16 : i32
    %955 = vector.broadcast %c16_i32_239 : i32 to vector<1x1024xi32>
    %956 = arith.subi %846, %955 : vector<1x1024xi32>
    %957 = vector.broadcast %956 : vector<1x1024xi32> to vector<8x1024xi32>
    %958 = arith.cmpi eq, %2, %957 : vector<8x1024xi32>
    %cst_240 = arith.constant 0.000000e+00 : f32
    %959 = vector.shape_cast %835 : vector<1x1024xf32> to vector<1x1024xf32>
    %960 = vector.broadcast %959 : vector<1x1024xf32> to vector<8x1024xf32>
    %961 = vector.broadcast %cst_240 : f32 to vector<8x1024xf32>
    %962 = arith.select %958, %960, %961 : vector<8x1024xi1>, vector<8x1024xf32>
    %c16_i32_241 = arith.constant 16 : i32
    %963 = vector.broadcast %c16_i32_241 : i32 to vector<1x1024xi32>
    %964 = arith.subi %858, %963 : vector<1x1024xi32>
    %965 = vector.broadcast %964 : vector<1x1024xi32> to vector<8x1024xi32>
    %966 = arith.cmpi eq, %2, %965 : vector<8x1024xi32>
    %cst_242 = arith.constant 0.000000e+00 : f32
    %967 = vector.shape_cast %847 : vector<1x1024xf32> to vector<1x1024xf32>
    %968 = vector.broadcast %967 : vector<1x1024xf32> to vector<8x1024xf32>
    %969 = vector.broadcast %cst_242 : f32 to vector<8x1024xf32>
    %970 = arith.select %966, %968, %969 : vector<8x1024xi1>, vector<8x1024xf32>
    %971 = arith.addf %962, %970 : vector<8x1024xf32>
    %c16_i32_243 = arith.constant 16 : i32
    %972 = vector.broadcast %c16_i32_243 : i32 to vector<1x1024xi32>
    %973 = arith.subi %870, %972 : vector<1x1024xi32>
    %974 = vector.broadcast %973 : vector<1x1024xi32> to vector<8x1024xi32>
    %975 = arith.cmpi eq, %2, %974 : vector<8x1024xi32>
    %cst_244 = arith.constant 0.000000e+00 : f32
    %976 = vector.shape_cast %859 : vector<1x1024xf32> to vector<1x1024xf32>
    %977 = vector.broadcast %976 : vector<1x1024xf32> to vector<8x1024xf32>
    %978 = vector.broadcast %cst_244 : f32 to vector<8x1024xf32>
    %979 = arith.select %975, %977, %978 : vector<8x1024xi1>, vector<8x1024xf32>
    %980 = arith.addf %971, %979 : vector<8x1024xf32>
    %c16_i32_245 = arith.constant 16 : i32
    %981 = vector.broadcast %c16_i32_245 : i32 to vector<1x1024xi32>
    %982 = arith.subi %882, %981 : vector<1x1024xi32>
    %983 = vector.broadcast %982 : vector<1x1024xi32> to vector<8x1024xi32>
    %984 = arith.cmpi eq, %2, %983 : vector<8x1024xi32>
    %cst_246 = arith.constant 0.000000e+00 : f32
    %985 = vector.shape_cast %871 : vector<1x1024xf32> to vector<1x1024xf32>
    %986 = vector.broadcast %985 : vector<1x1024xf32> to vector<8x1024xf32>
    %987 = vector.broadcast %cst_246 : f32 to vector<8x1024xf32>
    %988 = arith.select %984, %986, %987 : vector<8x1024xi1>, vector<8x1024xf32>
    %989 = arith.addf %980, %988 : vector<8x1024xf32>
    %c176 = arith.constant 176 : index
    %c0_247 = arith.constant 0 : index
    %990 = vector.load %arg4[%c176, %c0_247] : memref<224x1024xf32, #tpu.memory_space<vmem>>, vector<8x1024xf32>
    tpu.vector_store %arg4[%c176, %c0_247], %989 {strides = array<i32>} : memref<224x1024xf32, #tpu.memory_space<vmem>>, vector<8x1024xf32>,
    %c24_i32_248 = arith.constant 24 : i32
    %991 = vector.broadcast %c24_i32_248 : i32 to vector<1x1024xi32>
    %992 = arith.subi %846, %991 : vector<1x1024xi32>
    %993 = vector.broadcast %992 : vector<1x1024xi32> to vector<8x1024xi32>
    %994 = arith.cmpi eq, %2, %993 : vector<8x1024xi32>
    %cst_249 = arith.constant 0.000000e+00 : f32
    %995 = vector.shape_cast %835 : vector<1x1024xf32> to vector<1x1024xf32>
    %996 = vector.broadcast %995 : vector<1x1024xf32> to vector<8x1024xf32>
    %997 = vector.broadcast %cst_249 : f32 to vector<8x1024xf32>
    %998 = arith.select %994, %996, %997 : vector<8x1024xi1>, vector<8x1024xf32>
    %c24_i32_250 = arith.constant 24 : i32
    %999 = vector.broadcast %c24_i32_250 : i32 to vector<1x1024xi32>
    %1000 = arith.subi %858, %999 : vector<1x1024xi32>
    %1001 = vector.broadcast %1000 : vector<1x1024xi32> to vector<8x1024xi32>
    %1002 = arith.cmpi eq, %2, %1001 : vector<8x1024xi32>
    %cst_251 = arith.constant 0.000000e+00 : f32
    %1003 = vector.shape_cast %847 : vector<1x1024xf32> to vector<1x1024xf32>
    %1004 = vector.broadcast %1003 : vector<1x1024xf32> to vector<8x1024xf32>
    %1005 = vector.broadcast %cst_251 : f32 to vector<8x1024xf32>
    %1006 = arith.select %1002, %1004, %1005 : vector<8x1024xi1>, vector<8x1024xf32>
    %1007 = arith.addf %998, %1006 : vector<8x1024xf32>
    %c24_i32_252 = arith.constant 24 : i32
    %1008 = vector.broadcast %c24_i32_252 : i32 to vector<1x1024xi32>
    %1009 = arith.subi %870, %1008 : vector<1x1024xi32>
    %1010 = vector.broadcast %1009 : vector<1x1024xi32> to vector<8x1024xi32>
    %1011 = arith.cmpi eq, %2, %1010 : vector<8x1024xi32>
    %cst_253 = arith.constant 0.000000e+00 : f32
    %1012 = vector.shape_cast %859 : vector<1x1024xf32> to vector<1x1024xf32>
    %1013 = vector.broadcast %1012 : vector<1x1024xf32> to vector<8x1024xf32>
    %1014 = vector.broadcast %cst_253 : f32 to vector<8x1024xf32>
    %1015 = arith.select %1011, %1013, %1014 : vector<8x1024xi1>, vector<8x1024xf32>
    %1016 = arith.addf %1007, %1015 : vector<8x1024xf32>
    %c24_i32_254 = arith.constant 24 : i32
    %1017 = vector.broadcast %c24_i32_254 : i32 to vector<1x1024xi32>
    %1018 = arith.subi %882, %1017 : vector<1x1024xi32>
    %1019 = vector.broadcast %1018 : vector<1x1024xi32> to vector<8x1024xi32>
    %1020 = arith.cmpi eq, %2, %1019 : vector<8x1024xi32>
    %cst_255 = arith.constant 0.000000e+00 : f32
    %1021 = vector.shape_cast %871 : vector<1x1024xf32> to vector<1x1024xf32>
    %1022 = vector.broadcast %1021 : vector<1x1024xf32> to vector<8x1024xf32>
    %1023 = vector.broadcast %cst_255 : f32 to vector<8x1024xf32>
    %1024 = arith.select %1020, %1022, %1023 : vector<8x1024xi1>, vector<8x1024xf32>
    %1025 = arith.addf %1016, %1024 : vector<8x1024xf32>
    %c184 = arith.constant 184 : index
    %c0_256 = arith.constant 0 : index
    %1026 = vector.load %arg4[%c184, %c0_256] : memref<224x1024xf32, #tpu.memory_space<vmem>>, vector<8x1024xf32>
    tpu.vector_store %arg4[%c184, %c0_256], %1025 {strides = array<i32>} : memref<224x1024xf32, #tpu.memory_space<vmem>>, vector<8x1024xf32>,
    %c32_i32_257 = arith.constant 32 : i32
    %1027 = vector.broadcast %c32_i32_257 : i32 to vector<1x1024xi32>
    %1028 = arith.subi %846, %1027 : vector<1x1024xi32>
    %1029 = vector.broadcast %1028 : vector<1x1024xi32> to vector<8x1024xi32>
    %1030 = arith.cmpi eq, %2, %1029 : vector<8x1024xi32>
    %cst_258 = arith.constant 0.000000e+00 : f32
    %1031 = vector.shape_cast %835 : vector<1x1024xf32> to vector<1x1024xf32>
    %1032 = vector.broadcast %1031 : vector<1x1024xf32> to vector<8x1024xf32>
    %1033 = vector.broadcast %cst_258 : f32 to vector<8x1024xf32>
    %1034 = arith.select %1030, %1032, %1033 : vector<8x1024xi1>, vector<8x1024xf32>
    %c32_i32_259 = arith.constant 32 : i32
    %1035 = vector.broadcast %c32_i32_259 : i32 to vector<1x1024xi32>
    %1036 = arith.subi %858, %1035 : vector<1x1024xi32>
    %1037 = vector.broadcast %1036 : vector<1x1024xi32> to vector<8x1024xi32>
    %1038 = arith.cmpi eq, %2, %1037 : vector<8x1024xi32>
    %cst_260 = arith.constant 0.000000e+00 : f32
    %1039 = vector.shape_cast %847 : vector<1x1024xf32> to vector<1x1024xf32>
    %1040 = vector.broadcast %1039 : vector<1x1024xf32> to vector<8x1024xf32>
    %1041 = vector.broadcast %cst_260 : f32 to vector<8x1024xf32>
    %1042 = arith.select %1038, %1040, %1041 : vector<8x1024xi1>, vector<8x1024xf32>
    %1043 = arith.addf %1034, %1042 : vector<8x1024xf32>
    %c32_i32_261 = arith.constant 32 : i32
    %1044 = vector.broadcast %c32_i32_261 : i32 to vector<1x1024xi32>
    %1045 = arith.subi %870, %1044 : vector<1x1024xi32>
    %1046 = vector.broadcast %1045 : vector<1x1024xi32> to vector<8x1024xi32>
    %1047 = arith.cmpi eq, %2, %1046 : vector<8x1024xi32>
    %cst_262 = arith.constant 0.000000e+00 : f32
    %1048 = vector.shape_cast %859 : vector<1x1024xf32> to vector<1x1024xf32>
    %1049 = vector.broadcast %1048 : vector<1x1024xf32> to vector<8x1024xf32>
    %1050 = vector.broadcast %cst_262 : f32 to vector<8x1024xf32>
    %1051 = arith.select %1047, %1049, %1050 : vector<8x1024xi1>, vector<8x1024xf32>
    %1052 = arith.addf %1043, %1051 : vector<8x1024xf32>
    %c32_i32_263 = arith.constant 32 : i32
    %1053 = vector.broadcast %c32_i32_263 : i32 to vector<1x1024xi32>
    %1054 = arith.subi %882, %1053 : vector<1x1024xi32>
    %1055 = vector.broadcast %1054 : vector<1x1024xi32> to vector<8x1024xi32>
    %1056 = arith.cmpi eq, %2, %1055 : vector<8x1024xi32>
    %cst_264 = arith.constant 0.000000e+00 : f32
    %1057 = vector.shape_cast %871 : vector<1x1024xf32> to vector<1x1024xf32>
    %1058 = vector.broadcast %1057 : vector<1x1024xf32> to vector<8x1024xf32>
    %1059 = vector.broadcast %cst_264 : f32 to vector<8x1024xf32>
    %1060 = arith.select %1056, %1058, %1059 : vector<8x1024xi1>, vector<8x1024xf32>
    %1061 = arith.addf %1052, %1060 : vector<8x1024xf32>
    %c192 = arith.constant 192 : index
    %c0_265 = arith.constant 0 : index
    %1062 = vector.load %arg4[%c192, %c0_265] : memref<224x1024xf32, #tpu.memory_space<vmem>>, vector<8x1024xf32>
    tpu.vector_store %arg4[%c192, %c0_265], %1061 {strides = array<i32>} : memref<224x1024xf32, #tpu.memory_space<vmem>>, vector<8x1024xf32>,
    %c40_i32_266 = arith.constant 40 : i32
    %1063 = vector.broadcast %c40_i32_266 : i32 to vector<1x1024xi32>
    %1064 = arith.subi %846, %1063 : vector<1x1024xi32>
    %1065 = vector.broadcast %1064 : vector<1x1024xi32> to vector<8x1024xi32>
    %1066 = arith.cmpi eq, %2, %1065 : vector<8x1024xi32>
    %cst_267 = arith.constant 0.000000e+00 : f32
    %1067 = vector.shape_cast %835 : vector<1x1024xf32> to vector<1x1024xf32>
    %1068 = vector.broadcast %1067 : vector<1x1024xf32> to vector<8x1024xf32>
    %1069 = vector.broadcast %cst_267 : f32 to vector<8x1024xf32>
    %1070 = arith.select %1066, %1068, %1069 : vector<8x1024xi1>, vector<8x1024xf32>
    %c40_i32_268 = arith.constant 40 : i32
    %1071 = vector.broadcast %c40_i32_268 : i32 to vector<1x1024xi32>
    %1072 = arith.subi %858, %1071 : vector<1x1024xi32>
    %1073 = vector.broadcast %1072 : vector<1x1024xi32> to vector<8x1024xi32>
    %1074 = arith.cmpi eq, %2, %1073 : vector<8x1024xi32>
    %cst_269 = arith.constant 0.000000e+00 : f32
    %1075 = vector.shape_cast %847 : vector<1x1024xf32> to vector<1x1024xf32>
    %1076 = vector.broadcast %1075 : vector<1x1024xf32> to vector<8x1024xf32>
    %1077 = vector.broadcast %cst_269 : f32 to vector<8x1024xf32>
    %1078 = arith.select %1074, %1076, %1077 : vector<8x1024xi1>, vector<8x1024xf32>
    %1079 = arith.addf %1070, %1078 : vector<8x1024xf32>
    %c40_i32_270 = arith.constant 40 : i32
    %1080 = vector.broadcast %c40_i32_270 : i32 to vector<1x1024xi32>
    %1081 = arith.subi %870, %1080 : vector<1x1024xi32>
    %1082 = vector.broadcast %1081 : vector<1x1024xi32> to vector<8x1024xi32>
    %1083 = arith.cmpi eq, %2, %1082 : vector<8x1024xi32>
    %cst_271 = arith.constant 0.000000e+00 : f32
    %1084 = vector.shape_cast %859 : vector<1x1024xf32> to vector<1x1024xf32>
    %1085 = vector.broadcast %1084 : vector<1x1024xf32> to vector<8x1024xf32>
    %1086 = vector.broadcast %cst_271 : f32 to vector<8x1024xf32>
    %1087 = arith.select %1083, %1085, %1086 : vector<8x1024xi1>, vector<8x1024xf32>
    %1088 = arith.addf %1079, %1087 : vector<8x1024xf32>
    %c40_i32_272 = arith.constant 40 : i32
    %1089 = vector.broadcast %c40_i32_272 : i32 to vector<1x1024xi32>
    %1090 = arith.subi %882, %1089 : vector<1x1024xi32>
    %1091 = vector.broadcast %1090 : vector<1x1024xi32> to vector<8x1024xi32>
    %1092 = arith.cmpi eq, %2, %1091 : vector<8x1024xi32>
    %cst_273 = arith.constant 0.000000e+00 : f32
    %1093 = vector.shape_cast %871 : vector<1x1024xf32> to vector<1x1024xf32>
    %1094 = vector.broadcast %1093 : vector<1x1024xf32> to vector<8x1024xf32>
    %1095 = vector.broadcast %cst_273 : f32 to vector<8x1024xf32>
    %1096 = arith.select %1092, %1094, %1095 : vector<8x1024xi1>, vector<8x1024xf32>
    %1097 = arith.addf %1088, %1096 : vector<8x1024xf32>
    %c200 = arith.constant 200 : index
    %c0_274 = arith.constant 0 : index
    %1098 = vector.load %arg4[%c200, %c0_274] : memref<224x1024xf32, #tpu.memory_space<vmem>>, vector<8x1024xf32>
    tpu.vector_store %arg4[%c200, %c0_274], %1097 {strides = array<i32>} : memref<224x1024xf32, #tpu.memory_space<vmem>>, vector<8x1024xf32>,
    %c48_i32_275 = arith.constant 48 : i32
    %1099 = vector.broadcast %c48_i32_275 : i32 to vector<1x1024xi32>
    %1100 = arith.subi %846, %1099 : vector<1x1024xi32>
    %1101 = vector.broadcast %1100 : vector<1x1024xi32> to vector<8x1024xi32>
    %1102 = arith.cmpi eq, %2, %1101 : vector<8x1024xi32>
    %cst_276 = arith.constant 0.000000e+00 : f32
    %1103 = vector.shape_cast %835 : vector<1x1024xf32> to vector<1x1024xf32>
    %1104 = vector.broadcast %1103 : vector<1x1024xf32> to vector<8x1024xf32>
    %1105 = vector.broadcast %cst_276 : f32 to vector<8x1024xf32>
    %1106 = arith.select %1102, %1104, %1105 : vector<8x1024xi1>, vector<8x1024xf32>
    %c48_i32_277 = arith.constant 48 : i32
    %1107 = vector.broadcast %c48_i32_277 : i32 to vector<1x1024xi32>
    %1108 = arith.subi %858, %1107 : vector<1x1024xi32>
    %1109 = vector.broadcast %1108 : vector<1x1024xi32> to vector<8x1024xi32>
    %1110 = arith.cmpi eq, %2, %1109 : vector<8x1024xi32>
    %cst_278 = arith.constant 0.000000e+00 : f32
    %1111 = vector.shape_cast %847 : vector<1x1024xf32> to vector<1x1024xf32>
    %1112 = vector.broadcast %1111 : vector<1x1024xf32> to vector<8x1024xf32>
    %1113 = vector.broadcast %cst_278 : f32 to vector<8x1024xf32>
    %1114 = arith.select %1110, %1112, %1113 : vector<8x1024xi1>, vector<8x1024xf32>
    %1115 = arith.addf %1106, %1114 : vector<8x1024xf32>
    %c48_i32_279 = arith.constant 48 : i32
    %1116 = vector.broadcast %c48_i32_279 : i32 to vector<1x1024xi32>
    %1117 = arith.subi %870, %1116 : vector<1x1024xi32>
    %1118 = vector.broadcast %1117 : vector<1x1024xi32> to vector<8x1024xi32>
    %1119 = arith.cmpi eq, %2, %1118 : vector<8x1024xi32>
    %cst_280 = arith.constant 0.000000e+00 : f32
    %1120 = vector.shape_cast %859 : vector<1x1024xf32> to vector<1x1024xf32>
    %1121 = vector.broadcast %1120 : vector<1x1024xf32> to vector<8x1024xf32>
    %1122 = vector.broadcast %cst_280 : f32 to vector<8x1024xf32>
    %1123 = arith.select %1119, %1121, %1122 : vector<8x1024xi1>, vector<8x1024xf32>
    %1124 = arith.addf %1115, %1123 : vector<8x1024xf32>
    %c48_i32_281 = arith.constant 48 : i32
    %1125 = vector.broadcast %c48_i32_281 : i32 to vector<1x1024xi32>
    %1126 = arith.subi %882, %1125 : vector<1x1024xi32>
    %1127 = vector.broadcast %1126 : vector<1x1024xi32> to vector<8x1024xi32>
    %1128 = arith.cmpi eq, %2, %1127 : vector<8x1024xi32>
    %cst_282 = arith.constant 0.000000e+00 : f32
    %1129 = vector.shape_cast %871 : vector<1x1024xf32> to vector<1x1024xf32>
    %1130 = vector.broadcast %1129 : vector<1x1024xf32> to vector<8x1024xf32>
    %1131 = vector.broadcast %cst_282 : f32 to vector<8x1024xf32>
    %1132 = arith.select %1128, %1130, %1131 : vector<8x1024xi1>, vector<8x1024xf32>
    %1133 = arith.addf %1124, %1132 : vector<8x1024xf32>
    %c208 = arith.constant 208 : index
    %c0_283 = arith.constant 0 : index
    %1134 = vector.load %arg4[%c208, %c0_283] : memref<224x1024xf32, #tpu.memory_space<vmem>>, vector<8x1024xf32>
    tpu.vector_store %arg4[%c208, %c0_283], %1133 {strides = array<i32>} : memref<224x1024xf32, #tpu.memory_space<vmem>>, vector<8x1024xf32>,
    %c56_i32_284 = arith.constant 56 : i32
    %1135 = vector.broadcast %c56_i32_284 : i32 to vector<1x1024xi32>
    %1136 = arith.subi %846, %1135 : vector<1x1024xi32>
    %1137 = vector.broadcast %1136 : vector<1x1024xi32> to vector<8x1024xi32>
    %1138 = arith.cmpi eq, %2, %1137 : vector<8x1024xi32>
    %cst_285 = arith.constant 0.000000e+00 : f32
    %1139 = vector.shape_cast %835 : vector<1x1024xf32> to vector<1x1024xf32>
    %1140 = vector.broadcast %1139 : vector<1x1024xf32> to vector<8x1024xf32>
    %1141 = vector.broadcast %cst_285 : f32 to vector<8x1024xf32>
    %1142 = arith.select %1138, %1140, %1141 : vector<8x1024xi1>, vector<8x1024xf32>
    %c56_i32_286 = arith.constant 56 : i32
    %1143 = vector.broadcast %c56_i32_286 : i32 to vector<1x1024xi32>
    %1144 = arith.subi %858, %1143 : vector<1x1024xi32>
    %1145 = vector.broadcast %1144 : vector<1x1024xi32> to vector<8x1024xi32>
    %1146 = arith.cmpi eq, %2, %1145 : vector<8x1024xi32>
    %cst_287 = arith.constant 0.000000e+00 : f32
    %1147 = vector.shape_cast %847 : vector<1x1024xf32> to vector<1x1024xf32>
    %1148 = vector.broadcast %1147 : vector<1x1024xf32> to vector<8x1024xf32>
    %1149 = vector.broadcast %cst_287 : f32 to vector<8x1024xf32>
    %1150 = arith.select %1146, %1148, %1149 : vector<8x1024xi1>, vector<8x1024xf32>
    %1151 = arith.addf %1142, %1150 : vector<8x1024xf32>
    %c56_i32_288 = arith.constant 56 : i32
    %1152 = vector.broadcast %c56_i32_288 : i32 to vector<1x1024xi32>
    %1153 = arith.subi %870, %1152 : vector<1x1024xi32>
    %1154 = vector.broadcast %1153 : vector<1x1024xi32> to vector<8x1024xi32>
    %1155 = arith.cmpi eq, %2, %1154 : vector<8x1024xi32>
    %cst_289 = arith.constant 0.000000e+00 : f32
    %1156 = vector.shape_cast %859 : vector<1x1024xf32> to vector<1x1024xf32>
    %1157 = vector.broadcast %1156 : vector<1x1024xf32> to vector<8x1024xf32>
    %1158 = vector.broadcast %cst_289 : f32 to vector<8x1024xf32>
    %1159 = arith.select %1155, %1157, %1158 : vector<8x1024xi1>, vector<8x1024xf32>
    %1160 = arith.addf %1151, %1159 : vector<8x1024xf32>
    %c56_i32_290 = arith.constant 56 : i32
    %1161 = vector.broadcast %c56_i32_290 : i32 to vector<1x1024xi32>
    %1162 = arith.subi %882, %1161 : vector<1x1024xi32>
    %1163 = vector.broadcast %1162 : vector<1x1024xi32> to vector<8x1024xi32>
    %1164 = arith.cmpi eq, %2, %1163 : vector<8x1024xi32>
    %cst_291 = arith.constant 0.000000e+00 : f32
    %1165 = vector.shape_cast %871 : vector<1x1024xf32> to vector<1x1024xf32>
    %1166 = vector.broadcast %1165 : vector<1x1024xf32> to vector<8x1024xf32>
    %1167 = vector.broadcast %cst_291 : f32 to vector<8x1024xf32>
    %1168 = arith.select %1164, %1166, %1167 : vector<8x1024xi1>, vector<8x1024xf32>
    %1169 = arith.addf %1160, %1168 : vector<8x1024xf32>
    %c216 = arith.constant 216 : index
    %c0_292 = arith.constant 0 : index
    %1170 = vector.load %arg4[%c216, %c0_292] : memref<224x1024xf32, #tpu.memory_space<vmem>>, vector<8x1024xf32>
    tpu.vector_store %arg4[%c216, %c0_292], %1169 {strides = array<i32>} : memref<224x1024xf32, #tpu.memory_space<vmem>>, vector<8x1024xf32>,
    %c0_293 = arith.constant 0 : index
    %c0_294 = arith.constant 0 : index
    %1171 = vector.load %arg2[%c0_293, %c0_294] : memref<8x224xbf16, #tpu.memory_space<vmem>>, vector<8x224xbf16>
    %c0_295 = arith.constant 0 : index
    %c0_296 = arith.constant 0 : index
    %1172 = vector.load %arg4[%c0_295, %c0_296] : memref<224x1024xf32, #tpu.memory_space<vmem>>, vector<224x1024xf32>
    %1173 = arith.truncf %1172 : vector<224x1024xf32> to vector<224x1024xbf16>
    %cst_297 = arith.constant dense<0.000000e+00> : vector<8x1024xf32>
    %1174 = tpu.matmul %1171, %1173, %cst_297 {dimension_numbers = #tpu.dot_dimension_numbers<[1], [0], [0], [1], [0, 0, 1, 1], [], []>} : vector<8x224xbf16>, vector<224x1024xbf16>, vector<8x1024xf32> -> vector<8x1024xf32>
    %c0_298 = arith.constant 0 : index
    %c0_299 = arith.constant 0 : index
    %1175 = vector.load %arg3[%c0_298, %c0_299] : memref<8x1024xf32, #tpu.memory_space<vmem>>, vector<8x1024xf32>
    tpu.vector_store %arg3[%c0_298, %c0_299], %1174 {strides = array<i32>} : memref<8x1024xf32, #tpu.memory_space<vmem>>, vector<8x1024xf32>,
    return
  }
  func.func @transform_0(%arg0: i32) -> (i32, i32) {
    %c0_i32 = arith.constant 0 : i32
    %c0_i32_0 = arith.constant 0 : i32
    return %c0_i32, %arg0 : i32, i32
  }
  func.func @transform_1(%arg0: i32) -> (i32, i32) {
    %c0_i32 = arith.constant 0 : i32
    %c0_i32_0 = arith.constant 0 : i32
    %c0_i32_1 = arith.constant 0 : i32
    return %c0_i32, %c0_i32_0 : i32, i32
  }
  func.func @transform_2(%arg0: i32) -> (i32, i32) {
    %c0_i32 = arith.constant 0 : i32
    %c0_i32_0 = arith.constant 0 : i32
    return %c0_i32, %arg0 : i32, i32
  }
}

</mosaic_0001>

<llo_original>
// kernel: tpu_custom_call.1
$region0: #{tpu_custom_call.1}
  #allocation0 [shape = 'u32[]', space=smem, size = 0x4, offset = 0x4, fixed_abs, tag = 'smem constant byte address 0x4 - core index']
  #allocation1 [shape = 'u32[144,128]{1,0:T(1,128)}', space=vmem, size = 0x12000, scoped, tag = 'internal scratch']
  #allocation2 [shape = 'f32[224,1024]{1,0:T(8,128)}', space=vmem, size = 0xe0000, scoped, tag = 'scratch operand']
  %s0 = inlined_call_operand.hbm [shape: f32[2,16384], index: 0, kind: input, shape index: {}]
  %s1 = inlined_call_operand.hbm [shape: bf16[8,224], index: 1, kind: input, shape index: {}]
  %s2 = inlined_call_operand.hbm [shape: f32[8,16384], index: 2, kind: output, shape index: {}]
  %s3 = sld [smem:[#allocation0]]
  $region49: #{tpu_custom_call.1} parent=0
    _
  %s5 = ssub.s32 1, %s3
  %s6 = scalar_select 0, %s5, %s3
  $region1: #{tpu_custom_call.1} parent=0
    #allocation3 [shape = 'u8[16384]{0}', space=vmem, size = 0x4000, scoped, tag = 'input window, operand 0']
    #allocation4 [shape = 's32[2]{0}', space=sflag, size = 0x8, scoped, tag = 'scoped memory for tpu_custom_call.1']
    #allocation5 [shape = 's32[2]{0}', space=sflag, size = 0x8, scoped, tag = 'scoped memory for tpu_custom_call.1']
    #allocation6 [shape = 'u8[4096]{0}', space=vmem, size = 0x1000, scoped, tag = 'input window, operand 1, single buffered']
    #allocation7 [shape = 's32[1]{0}', space=sflag, size = 0x4, scoped, tag = 'scoped memory for tpu_custom_call.1']
    #allocation8 [shape = 'u8[65536]{0}', space=vmem, size = 0x10000, scoped, tag = 'output window, operand 0']
    %7 = vsyncpa [#allocation4], 0
    %s8 = scalar_lea.sflag [#allocation4], 1
    %9 = vsyncpa %s8, 0
    %10 = vsyncpa [#allocation7], 0
    %11 = vsyncpa [#allocation5], 0
    %s12 = scalar_lea.sflag [#allocation5], 1
    %13 = vsyncpa %s12, 0
    loop: start=0, step=1, limit=18
    $region2: #{tpu_custom_call.1} parent=1 // loop_pre_header
      _
    $region3: #{tpu_custom_call.1} parent=1 // loop_header
      %s15 = sphi 0, %s19
      %p16 = scmp.ge.s32.totalorder %s15, 18
      %s25 = sphi 0, %s27
      %s28 = sphi 0, %s25
      %s29 = sphi 0, %s28
      %s45 = sphi 0, %s29
      %s49 = sphi 0, %s49
      %s51 = sphi 0, %s49
      %s52 = sphi 0, %s51
      %s66 = sphi 0, %s52
      %s72 = sphi 0, %s74
      %s75 = sphi 0, %s72
      %s76 = sphi 0, %s75
      %s92 = sphi 0, %s76
    $region4: #{tpu_custom_call.1} parent=1 // loop_header_branch
      %18 = sbr.rel (%p16) target = $region8
    $region5: #{tpu_custom_call.1} parent=1 // loop_body
      %s20 = ssub.s32 %s15, 1
      %s21 = ssub.s32 %s15, 2
      %s22 = sadd.s32 %s15, 1
      %s23 = ssub.s32 %s15, %s22
      %p24 = scmp.eq.s32.totalorder %s23, 0
      %s26 = sadd.s32 %s25, 1
      %s27 = scalar_select %p24, %s25, %s26
      %p30 = pneg %p24
      %p31 = scmp.eq.s32.totalorder %s15, 15
      %p32 = por %p30, %p31
      %p33 = scmp.ne.s32.totalorder %s25, %s28
      %p34 = scmp.eq.s32.totalorder %s15, 0
      %p35 = por %p33, %p34
      %p36 = scmp.ne.s32.totalorder %s25, %s28
      %p37 = scmp.eq.s32.totalorder %s20, 15
      %p38 = por %p36, %p37
      %p39 = scmp.ne.s32.totalorder %s28, %s29
      %p40 = scmp.eq.s32.totalorder %s20, 0
      %p41 = por %p39, %p40
      %p42 = scmp.ne.s32.totalorder %s28, %s29
      %p43 = scmp.eq.s32.totalorder %s21, 15
      %p44 = por %p42, %p43
      %p46 = scmp.ne.s32.totalorder %s29, %s45
      %p47 = scmp.eq.s32.totalorder %s21, 0
      %p48 = por %p46, %p47
      %s50 = sadd.s32 %s49, 1
      %p53 = scmp.eq.s32.totalorder %s15, 15
      %p54 = scmp.ne.s32.totalorder %s49, %s51
      %p55 = scmp.eq.s32.totalorder %s15, 0
      %p56 = por %p54, %p55
      %p57 = scmp.ne.s32.totalorder %s49, %s51
      %p58 = scmp.eq.s32.totalorder %s20, 15
      %p59 = por %p57, %p58
      %p60 = scmp.ne.s32.totalorder %s51, %s52
      %p61 = scmp.eq.s32.totalorder %s20, 0
      %p62 = por %p60, %p61
      %p63 = scmp.ne.s32.totalorder %s51, %s52
      %p64 = scmp.eq.s32.totalorder %s21, 15
      %p65 = por %p63, %p64
      %p67 = scmp.ne.s32.totalorder %s52, %s66
      %p68 = scmp.eq.s32.totalorder %s21, 0
      %p69 = por %p67, %p68
      %s70 = ssub.s32 %s15, %s22
      %p71 = scmp.eq.s32.totalorder %s70, 0
      %s73 = sadd.s32 %s72, 1
      %s74 = scalar_select %p71, %s72, %s73
      %p77 = pneg %p71
      %p78 = scmp.eq.s32.totalorder %s15, 15
      %p79 = por %p77, %p78
      %p80 = scmp.ne.s32.totalorder %s72, %s75
      %p81 = scmp.eq.s32.totalorder %s15, 0
      %p82 = por %p80, %p81
      %p83 = scmp.ne.s32.totalorder %s72, %s75
      %p84 = scmp.eq.s32.totalorder %s20, 15
      %p85 = por %p83, %p84
      %p86 = scmp.ne.s32.totalorder %s75, %s76
      %p87 = scmp.eq.s32.totalorder %s20, 0
      %p88 = por %p86, %p87
      %p89 = scmp.ne.s32.totalorder %s75, %s76
      %p90 = scmp.eq.s32.totalorder %s21, 15
      %p91 = por %p89, %p90
      %p93 = scmp.ne.s32.totalorder %s76, %s92
      %p94 = scmp.eq.s32.totalorder %s21, 0
      %p95 = por %p93, %p94
      %p96 = scmp.le.s32.totalorder 1, %s15
      %p97 = scmp.lt.s32.totalorder %s15, 17
      %p98 = pnand %p96, %p97
      %p99 = pneg %p98
      // Predicated region
      $region9: #{tpu_custom_call.1} parent=5 // pred_check
        _
      $region10: #{tpu_custom_call.1} parent=5 // pred_check_branch
        %101 = sbr.rel (%p98) target = $region12
      $region11: #{tpu_custom_call.1} parent=5 // pred_region
        %s102 = ssub.s32 %s15, 1
        // Predicated region
        $region13: #{tpu_custom_call.1} parent=11 // pred_check
          %p103 = pneg %p62
        $region14: #{tpu_custom_call.1} parent=11 // pred_check_branch
          %105 = sbr.rel (%p103) target = $region16
        $region15: #{tpu_custom_call.1} parent=11 // pred_region
          %s107 = ssub.s32 128, 128
          %108 = vsyncadd [#allocation7], %s107
          %s110 = sshll.u32 [#allocation6], 4
          %s111 = int_to_ptr.vmem [resolvable:$true] %s110
          %113 = dma.hbm_to_vmem [thread:$0]  %s1, 128, %s111, [#allocation7]
        $region16: #{tpu_custom_call.1} parent=11 // pred_fallthru
          _
      $region12: #{tpu_custom_call.1} parent=5 // pred_fallthru
        _
      %p114 = scmp.lt.s32.totalorder %s15, 16
      // Predicated region
      $region17: #{tpu_custom_call.1} parent=5 // pred_check
        %p115 = pneg %p114
      $region18: #{tpu_custom_call.1} parent=5 // pred_check_branch
        %117 = sbr.rel (%p115) target = $region20
      $region19: #{tpu_custom_call.1} parent=5 // pred_region
        // Predicated region
        $region21: #{tpu_custom_call.1} parent=19 // pred_check
          %p118 = pneg %p35
        $region22: #{tpu_custom_call.1} parent=19 // pred_check_branch
          %120 = sbr.rel (%p118) target = $region24
        $region23: #{tpu_custom_call.1} parent=19 // pred_region
          %s121 = sand.u32 %s25, 1
          %s122 = scalar_lea.sflag [#allocation4], %s121
          %s123 = sand.u32 %s25, 1
          %s124 = smul.addr %s123, 16
          %s125 = scalar_lea.vmem [#allocation3], %s124
          %s126 = smul.u32 8, %s15
          %s128 = ssub.s32 256, 256
          %129 = vsyncadd %s122, %s128
          %s130 = smul.addr %s126, 32
          %s131 = scalar_lea.hbm %s0, %s130
          %s133 = sshll.u32 %s125, 4
          %s134 = int_to_ptr.vmem [resolvable:$true] %s133
          %136 = dma.hbm_to_vmem [thread:$0]  %s131, 256, %s134, %s122
        $region24: #{tpu_custom_call.1} parent=19 // pred_fallthru
          _
      $region20: #{tpu_custom_call.1} parent=5 // pred_fallthru
        _
      %p137 = scmp.le.s32.totalorder 1, %s15
      %p138 = scmp.lt.s32.totalorder %s15, 17
      %p139 = pnand %p137, %p138
      %p140 = pneg %p139
      // Predicated region
      $region25: #{tpu_custom_call.1} parent=5 // pred_check
        _
      $region26: #{tpu_custom_call.1} parent=5 // pred_check_branch
        %142 = sbr.rel (%p139) target = $region28
      $region27: #{tpu_custom_call.1} parent=5 // pred_region
        %s143 = ssub.s32 %s15, 1
        %s144 = sand.u32 %s28, 1
        %s145 = scalar_lea.sflag [#allocation4], %s144
        %s146 = sand.u32 %s28, 1
        %s147 = smul.addr %s146, 16
        %s148 = scalar_lea.vmem [#allocation3], %s147
        // Predicated region
        $region29: #{tpu_custom_call.1} parent=27 // pred_check
          %p149 = pneg %p41
        $region30: #{tpu_custom_call.1} parent=27 // pred_check_branch
          %151 = sbr.rel (%p149) target = $region32
        $region31: #{tpu_custom_call.1} parent=27 // pred_region
          %152 = dma.done %s145, 256
        $region32: #{tpu_custom_call.1} parent=27 // pred_fallthru
          _
        // Predicated region
        $region33: #{tpu_custom_call.1} parent=27 // pred_check
          %p153 = pneg %p62
        $region34: #{tpu_custom_call.1} parent=27 // pred_check_branch
          %155 = sbr.rel (%p153) target = $region36
        $region35: #{tpu_custom_call.1} parent=27 // pred_region
          %156 = dma.done [#allocation7], 128
        $region36: #{tpu_custom_call.1} parent=27 // pred_fallthru
          _
        %s157 = sand.u32 %s28, 1
        %s158 = scalar_lea.sflag [#allocation4], %s157
        %s159 = sand.u32 %s28, 1
        %s160 = smul.addr %s159, 16
        %s161 = scalar_lea.vmem [#allocation3], %s160
        %p162 = pneg %p41
        %p163 = pneg %p38
        %p164 = pneg %p62
        %p165 = pneg %p59
        %p166 = pneg %p88
        %p167 = pneg %p85
        %s168 = sand.u32 %s75, 1
        %s169 = scalar_lea.sflag [#allocation5], %s168
        %s170 = sand.u32 %s75, 1
        %s171 = smul.addr %s170, 64
        %s172 = scalar_lea.vmem [#allocation8], %s171
        %s173 = smul.u32 8, %s20
        %s174 = smul.u32 8, %s20
        %v176 = vld [vmem:[%s148] ss:$2 sm:$0xff]
        %s177 = scalar_lea.vmem %s148, 1 [#allocation3]
        %v178 = vld [vmem:[%s177] ss:$2 sm:$0xff]
        %v179 = vlaneseq
        %v180 = vshrl.u32 %v179, 7
        %v181 = vmul.f32 %v176, 4.0
        %v182 = vfloor.f32 %v181
        %v183 = vsub.f32 %v181, %v182
        %v184 = vcvt.f32.s32.to.zero.pseudo %v182
        %v185 = vsub.f32 1.0, %v183
        %v186 = vmul.f32 %v178, 4.0
        %v187 = vfloor.f32 %v186
        %v188 = vsub.f32 %v186, %v187
        %v189 = vcvt.f32.s32.to.zero.pseudo %v187
        %v190 = vsub.f32 1.0, %v188
        %v191 = vmul.f32 %v185, %v190
        %v192 = vmul.u32 %v189, 5
        %v193 = vadd.s32 %v184, %v192
        %v194 = vmul.f32 %v185, %v188
        %v195 = vadd.s32 %v189, 1
        %v196 = vmul.u32 %v195, 5
        %v197 = vadd.s32 %v184, %v196
        %v198 = vmul.f32 %v183, %v190
        %v199 = vadd.s32 %v184, 1
        %v200 = vadd.s32 %v199, %v192
        %v201 = vmul.f32 %v183, %v188
        %v202 = vadd.s32 %v199, %v196
        %v203 = vlaneseq
        %v204 = vshrl.u32 %v203, 7
        %v205 = vsub.s32 0, %v204
        %v206 = vrot.slane %v193, %v205
        %v207 = vlaneseq
        %v208 = vshrl.u32 %v207, 7
        %v209 = vsub.s32 1, %v208
        %v210 = vrot.slane %v193, %v209
        %v211 = vlaneseq
        %v212 = vshrl.u32 %v211, 7
        %v213 = vsub.s32 2, %v212
        %v214 = vrot.slane %v193, %v213
        %v215 = vlaneseq
        %v216 = vshrl.u32 %v215, 7
        %v217 = vsub.s32 3, %v216
        %v218 = vrot.slane %v193, %v217
        %v219 = vlaneseq
        %v220 = vshrl.u32 %v219, 7
        %v221 = vsub.s32 4, %v220
        %v222 = vrot.slane %v193, %v221
        %v223 = vlaneseq
        %v224 = vshrl.u32 %v223, 7
        %v225 = vsub.s32 5, %v224
        %v226 = vrot.slane %v193, %v225
        %v227 = vlaneseq
        %v228 = vshrl.u32 %v227, 7
        %v229 = vsub.s32 6, %v228
        %v230 = vrot.slane %v193, %v229
        %v231 = vlaneseq
        %v232 = vshrl.u32 %v231, 7
        %v233 = vsub.s32 7, %v232
        %v234 = vrot.slane %v193, %v233
        %vm235 = vcmp.eq.s32.totalorder %v180, %v206
        %vm236 = vcmp.eq.s32.totalorder %v180, %v210
        %vm237 = vcmp.eq.s32.totalorder %v180, %v214
        %vm238 = vcmp.eq.s32.totalorder %v180, %v218
        %vm239 = vcmp.eq.s32.totalorder %v180, %v222
        %vm240 = vcmp.eq.s32.totalorder %v180, %v226
        %vm241 = vcmp.eq.s32.totalorder %v180, %v230
        %vm242 = vcmp.eq.s32.totalorder %v180, %v234
        %v244 = vlaneseq
        %v245 = vshrl.u32 %v244, 7
        %v246 = vsub.s32 0, %v245
        %v247 = vrot.slane %v191, %v246
        %v248 = vlaneseq
        %v249 = vshrl.u32 %v248, 7
        %v250 = vsub.s32 1, %v249
        %v251 = vrot.slane %v191, %v250
        %v252 = vlaneseq
        %v253 = vshrl.u32 %v252, 7
        %v254 = vsub.s32 2, %v253
        %v255 = vrot.slane %v191, %v254
        %v256 = vlaneseq
        %v257 = vshrl.u32 %v256, 7
        %v258 = vsub.s32 3, %v257
        %v259 = vrot.slane %v191, %v258
        %v260 = vlaneseq
        %v261 = vshrl.u32 %v260, 7
        %v262 = vsub.s32 4, %v261
        %v263 = vrot.slane %v191, %v262
        %v264 = vlaneseq
        %v265 = vshrl.u32 %v264, 7
        %v266 = vsub.s32 5, %v265
        %v267 = vrot.slane %v191, %v266
        %v268 = vlaneseq
        %v269 = vshrl.u32 %v268, 7
        %v270 = vsub.s32 6, %v269
        %v271 = vrot.slane %v191, %v270
        %v272 = vlaneseq
        %v273 = vshrl.u32 %v272, 7
        %v274 = vsub.s32 7, %v273
        %v275 = vrot.slane %v191, %v274
        %v284 = vsel %vm235, %v247, 0.0
        %v285 = vsel %vm236, %v251, 0.0
        %v286 = vsel %vm237, %v255, 0.0
        %v287 = vsel %vm238, %v259, 0.0
        %v288 = vsel %vm239, %v263, 0.0
        %v289 = vsel %vm240, %v267, 0.0
        %v290 = vsel %vm241, %v271, 0.0
        %v291 = vsel %vm242, %v275, 0.0
        %v292 = vlaneseq
        %v293 = vshrl.u32 %v292, 7
        %v294 = vsub.s32 0, %v293
        %v295 = vrot.slane %v197, %v294
        %v296 = vlaneseq
        %v297 = vshrl.u32 %v296, 7
        %v298 = vsub.s32 1, %v297
        %v299 = vrot.slane %v197, %v298
        %v300 = vlaneseq
        %v301 = vshrl.u32 %v300, 7
        %v302 = vsub.s32 2, %v301
        %v303 = vrot.slane %v197, %v302
        %v304 = vlaneseq
        %v305 = vshrl.u32 %v304, 7
        %v306 = vsub.s32 3, %v305
        %v307 = vrot.slane %v197, %v306
        %v308 = vlaneseq
        %v309 = vshrl.u32 %v308, 7
        %v310 = vsub.s32 4, %v309
        %v311 = vrot.slane %v197, %v310
        %v312 = vlaneseq
        %v313 = vshrl.u32 %v312, 7
        %v314 = vsub.s32 5, %v313
        %v315 = vrot.slane %v197, %v314
        %v316 = vlaneseq
        %v317 = vshrl.u32 %v316, 7
        %v318 = vsub.s32 6, %v317
        %v319 = vrot.slane %v197, %v318
        %v320 = vlaneseq
        %v321 = vshrl.u32 %v320, 7
        %v322 = vsub.s32 7, %v321
        %v323 = vrot.slane %v197, %v322
        %vm324 = vcmp.eq.s32.totalorder %v180, %v295
        %vm325 = vcmp.eq.s32.totalorder %v180, %v299
        %vm326 = vcmp.eq.s32.totalorder %v180, %v303
        %vm327 = vcmp.eq.s32.totalorder %v180, %v307
        %vm328 = vcmp.eq.s32.totalorder %v180, %v311
        %vm329 = vcmp.eq.s32.totalorder %v180, %v315
        %vm330 = vcmp.eq.s32.totalorder %v180, %v319
        %vm331 = vcmp.eq.s32.totalorder %v180, %v323
        %v333 = vlaneseq
        %v334 = vshrl.u32 %v333, 7
        %v335 = vsub.s32 0, %v334
        %v336 = vrot.slane %v194, %v335
        %v337 = vlaneseq
        %v338 = vshrl.u32 %v337, 7
        %v339 = vsub.s32 1, %v338
        %v340 = vrot.slane %v194, %v339
        %v341 = vlaneseq
        %v342 = vshrl.u32 %v341, 7
        %v343 = vsub.s32 2, %v342
        %v344 = vrot.slane %v194, %v343
        %v345 = vlaneseq
        %v346 = vshrl.u32 %v345, 7
        %v347 = vsub.s32 3, %v346
        %v348 = vrot.slane %v194, %v347
        %v349 = vlaneseq
        %v350 = vshrl.u32 %v349, 7
        %v351 = vsub.s32 4, %v350
        %v352 = vrot.slane %v194, %v351
        %v353 = vlaneseq
        %v354 = vshrl.u32 %v353, 7
        %v355 = vsub.s32 5, %v354
        %v356 = vrot.slane %v194, %v355
        %v357 = vlaneseq
        %v358 = vshrl.u32 %v357, 7
        %v359 = vsub.s32 6, %v358
        %v360 = vrot.slane %v194, %v359
        %v361 = vlaneseq
        %v362 = vshrl.u32 %v361, 7
        %v363 = vsub.s32 7, %v362
        %v364 = vrot.slane %v194, %v363
        %v373 = vsel %vm324, %v336, %v284
        %v374 = vsel %vm325, %v340, %v285
        %v375 = vsel %vm326, %v344, %v286
        %v376 = vsel %vm327, %v348, %v287
        %v377 = vsel %vm328, %v352, %v288
        %v378 = vsel %vm329, %v356, %v289
        %v379 = vsel %vm330, %v360, %v290
        %v380 = vsel %vm331, %v364, %v291
        %v381 = vlaneseq
        %v382 = vshrl.u32 %v381, 7
        %v383 = vsub.s32 0, %v382
        %v384 = vrot.slane %v200, %v383
        %v385 = vlaneseq
        %v386 = vshrl.u32 %v385, 7
        %v387 = vsub.s32 1, %v386
        %v388 = vrot.slane %v200, %v387
        %v389 = vlaneseq
        %v390 = vshrl.u32 %v389, 7
        %v391 = vsub.s32 2, %v390
        %v392 = vrot.slane %v200, %v391
        %v393 = vlaneseq
        %v394 = vshrl.u32 %v393, 7
        %v395 = vsub.s32 3, %v394
        %v396 = vrot.slane %v200, %v395
        %v397 = vlaneseq
        %v398 = vshrl.u32 %v397, 7
        %v399 = vsub.s32 4, %v398
        %v400 = vrot.slane %v200, %v399
        %v401 = vlaneseq
        %v402 = vshrl.u32 %v401, 7
        %v403 = vsub.s32 5, %v402
        %v404 = vrot.slane %v200, %v403
        %v405 = vlaneseq
        %v406 = vshrl.u32 %v405, 7
        %v407 = vsub.s32 6, %v406
        %v408 = vrot.slane %v200, %v407
        %v409 = vlaneseq
        %v410 = vshrl.u32 %v409, 7
        %v411 = vsub.s32 7, %v410
        %v412 = vrot.slane %v200, %v411
        %vm413 = vcmp.eq.s32.totalorder %v180, %v384
        %vm414 = vcmp.eq.s32.totalorder %v180, %v388
        %vm415 = vcmp.eq.s32.totalorder %v180, %v392
        %vm416 = vcmp.eq.s32.totalorder %v180, %v396
        %vm417 = vcmp.eq.s32.totalorder %v180, %v400
        %vm418 = vcmp.eq.s32.totalorder %v180, %v404
        %vm419 = vcmp.eq.s32.totalorder %v180, %v408
        %vm420 = vcmp.eq.s32.totalorder %v180, %v412
        %v422 = vlaneseq
        %v423 = vshrl.u32 %v422, 7
        %v424 = vsub.s32 0, %v423
        %v425 = vrot.slane %v198, %v424
        %v426 = vlaneseq
        %v427 = vshrl.u32 %v426, 7
        %v428 = vsub.s32 1, %v427
        %v429 = vrot.slane %v198, %v428
        %v430 = vlaneseq
        %v431 = vshrl.u32 %v430, 7
        %v432 = vsub.s32 2, %v431
        %v433 = vrot.slane %v198, %v432
        %v434 = vlaneseq
        %v435 = vshrl.u32 %v434, 7
        %v436 = vsub.s32 3, %v435
        %v437 = vrot.slane %v198, %v436
        %v438 = vlaneseq
        %v439 = vshrl.u32 %v438, 7
        %v440 = vsub.s32 4, %v439
        %v441 = vrot.slane %v198, %v440
        %v442 = vlaneseq
        %v443 = vshrl.u32 %v442, 7
        %v444 = vsub.s32 5, %v443
        %v445 = vrot.slane %v198, %v444
        %v446 = vlaneseq
        %v447 = vshrl.u32 %v446, 7
        %v448 = vsub.s32 6, %v447
        %v449 = vrot.slane %v198, %v448
        %v450 = vlaneseq
        %v451 = vshrl.u32 %v450, 7
        %v452 = vsub.s32 7, %v451
        %v453 = vrot.slane %v198, %v452
        %v462 = vsel %vm413, %v425, %v373
        %v463 = vsel %vm414, %v429, %v374
        %v464 = vsel %vm415, %v433, %v375
        %v465 = vsel %vm416, %v437, %v376
        %v466 = vsel %vm417, %v441, %v377
        %v467 = vsel %vm418, %v445, %v378
        %v468 = vsel %vm419, %v449, %v379
        %v469 = vsel %vm420, %v453, %v380
        %v470 = vlaneseq
        %v471 = vshrl.u32 %v470, 7
        %v472 = vsub.s32 0, %v471
        %v473 = vrot.slane %v202, %v472
        %v474 = vlaneseq
        %v475 = vshrl.u32 %v474, 7
        %v476 = vsub.s32 1, %v475
        %v477 = vrot.slane %v202, %v476
        %v478 = vlaneseq
        %v479 = vshrl.u32 %v478, 7
        %v480 = vsub.s32 2, %v479
        %v481 = vrot.slane %v202, %v480
        %v482 = vlaneseq
        %v483 = vshrl.u32 %v482, 7
        %v484 = vsub.s32 3, %v483
        %v485 = vrot.slane %v202, %v484
        %v486 = vlaneseq
        %v487 = vshrl.u32 %v486, 7
        %v488 = vsub.s32 4, %v487
        %v489 = vrot.slane %v202, %v488
        %v490 = vlaneseq
        %v491 = vshrl.u32 %v490, 7
        %v492 = vsub.s32 5, %v491
        %v493 = vrot.slane %v202, %v492
        %v494 = vlaneseq
        %v495 = vshrl.u32 %v494, 7
        %v496 = vsub.s32 6, %v495
        %v497 = vrot.slane %v202, %v496
        %v498 = vlaneseq
        %v499 = vshrl.u32 %v498, 7
        %v500 = vsub.s32 7, %v499
        %v501 = vrot.slane %v202, %v500
        %vm502 = vcmp.eq.s32.totalorder %v180, %v473
        %vm503 = vcmp.eq.s32.totalorder %v180, %v477
        %vm504 = vcmp.eq.s32.totalorder %v180, %v481
        %vm505 = vcmp.eq.s32.totalorder %v180, %v485
        %vm506 = vcmp.eq.s32.totalorder %v180, %v489
        %vm507 = vcmp.eq.s32.totalorder %v180, %v493
        %vm508 = vcmp.eq.s32.totalorder %v180, %v497
        %vm509 = vcmp.eq.s32.totalorder %v180, %v501
        %v511 = vlaneseq
        %v512 = vshrl.u32 %v511, 7
        %v513 = vsub.s32 0, %v512
        %v514 = vrot.slane %v201, %v513
        %v515 = vlaneseq
        %v516 = vshrl.u32 %v515, 7
        %v517 = vsub.s32 1, %v516
        %v518 = vrot.slane %v201, %v517
        %v519 = vlaneseq
        %v520 = vshrl.u32 %v519, 7
        %v521 = vsub.s32 2, %v520
        %v522 = vrot.slane %v201, %v521
        %v523 = vlaneseq
        %v524 = vshrl.u32 %v523, 7
        %v525 = vsub.s32 3, %v524
        %v526 = vrot.slane %v201, %v525
        %v527 = vlaneseq
        %v528 = vshrl.u32 %v527, 7
        %v529 = vsub.s32 4, %v528
        %v530 = vrot.slane %v201, %v529
        %v531 = vlaneseq
        %v532 = vshrl.u32 %v531, 7
        %v533 = vsub.s32 5, %v532
        %v534 = vrot.slane %v201, %v533
        %v535 = vlaneseq
        %v536 = vshrl.u32 %v535, 7
        %v537 = vsub.s32 6, %v536
        %v538 = vrot.slane %v201, %v537
        %v539 = vlaneseq
        %v540 = vshrl.u32 %v539, 7
        %v541 = vsub.s32 7, %v540
        %v542 = vrot.slane %v201, %v541
        %v551 = vsel %vm502, %v514, %v462
        %v552 = vsel %vm503, %v518, %v463
        %v553 = vsel %vm504, %v522, %v464
        %v554 = vsel %vm505, %v526, %v465
        %v555 = vsel %vm506, %v530, %v466
        %v556 = vsel %vm507, %v534, %v467
        %v557 = vsel %vm508, %v538, %v468
        %v558 = vsel %vm509, %v542, %v469
        %559 = vst [vmem:[#allocation2] sm:$0xff] %v551
        %560 = vst [vmem:[#allocation2 + $0x8] sm:$0xff] %v552
        %561 = vst [vmem:[#allocation2 + $0x10] sm:$0xff] %v553
        %562 = vst [vmem:[#allocation2 + $0x18] sm:$0xff] %v554
        %563 = vst [vmem:[#allocation2 + $0x20] sm:$0xff] %v555
        %564 = vst [vmem:[#allocation2 + $0x28] sm:$0xff] %v556
        %565 = vst [vmem:[#allocation2 + $0x30] sm:$0xff] %v557
        %566 = vst [vmem:[#allocation2 + $0x38] sm:$0xff] %v558
        %v567 = vsub.s32 %v193, 8
        %v568 = vlaneseq
        %v569 = vshrl.u32 %v568, 7
        %v570 = vsub.s32 0, %v569
        %v571 = vrot.slane %v567, %v570
        %v572 = vlaneseq
        %v573 = vshrl.u32 %v572, 7
        %v574 = vsub.s32 1, %v573
        %v575 = vrot.slane %v567, %v574
        %v576 = vlaneseq
        %v577 = vshrl.u32 %v576, 7
        %v578 = vsub.s32 2, %v577
        %v579 = vrot.slane %v567, %v578
        %v580 = vlaneseq
        %v581 = vshrl.u32 %v580, 7
        %v582 = vsub.s32 3, %v581
        %v583 = vrot.slane %v567, %v582
        %v584 = vlaneseq
        %v585 = vshrl.u32 %v584, 7
        %v586 = vsub.s32 4, %v585
        %v587 = vrot.slane %v567, %v586
        %v588 = vlaneseq
        %v589 = vshrl.u32 %v588, 7
        %v590 = vsub.s32 5, %v589
        %v591 = vrot.slane %v567, %v590
        %v592 = vlaneseq
        %v593 = vshrl.u32 %v592, 7
        %v594 = vsub.s32 6, %v593
        %v595 = vrot.slane %v567, %v594
        %v596 = vlaneseq
        %v597 = vshrl.u32 %v596, 7
        %v598 = vsub.s32 7, %v597
        %v599 = vrot.slane %v567, %v598
        %vm600 = vcmp.eq.s32.totalorder %v180, %v571
        %vm601 = vcmp.eq.s32.totalorder %v180, %v575
        %vm602 = vcmp.eq.s32.totalorder %v180, %v579
        %vm603 = vcmp.eq.s32.totalorder %v180, %v583
        %vm604 = vcmp.eq.s32.totalorder %v180, %v587
        %vm605 = vcmp.eq.s32.totalorder %v180, %v591
        %vm606 = vcmp.eq.s32.totalorder %v180, %v595
        %vm607 = vcmp.eq.s32.totalorder %v180, %v599
        %v608 = vsel %vm600, %v247, 0.0
        %v609 = vsel %vm601, %v251, 0.0
        %v610 = vsel %vm602, %v255, 0.0
        %v611 = vsel %vm603, %v259, 0.0
        %v612 = vsel %vm604, %v263, 0.0
        %v613 = vsel %vm605, %v267, 0.0
        %v614 = vsel %vm606, %v271, 0.0
        %v615 = vsel %vm607, %v275, 0.0
        %v616 = vsub.s32 %v197, 8
        %v617 = vlaneseq
        %v618 = vshrl.u32 %v617, 7
        %v619 = vsub.s32 0, %v618
        %v620 = vrot.slane %v616, %v619
        %v621 = vlaneseq
        %v622 = vshrl.u32 %v621, 7
        %v623 = vsub.s32 1, %v622
        %v624 = vrot.slane %v616, %v623
        %v625 = vlaneseq
        %v626 = vshrl.u32 %v625, 7
        %v627 = vsub.s32 2, %v626
        %v628 = vrot.slane %v616, %v627
        %v629 = vlaneseq
        %v630 = vshrl.u32 %v629, 7
        %v631 = vsub.s32 3, %v630
        %v632 = vrot.slane %v616, %v631
        %v633 = vlaneseq
        %v634 = vshrl.u32 %v633, 7
        %v635 = vsub.s32 4, %v634
        %v636 = vrot.slane %v616, %v635
        %v637 = vlaneseq
        %v638 = vshrl.u32 %v637, 7
        %v639 = vsub.s32 5, %v638
        %v640 = vrot.slane %v616, %v639
        %v641 = vlaneseq
        %v642 = vshrl.u32 %v641, 7
        %v643 = vsub.s32 6, %v642
        %v644 = vrot.slane %v616, %v643
        %v645 = vlaneseq
        %v646 = vshrl.u32 %v645, 7
        %v647 = vsub.s32 7, %v646
        %v648 = vrot.slane %v616, %v647
        %vm649 = vcmp.eq.s32.totalorder %v180, %v620
        %vm650 = vcmp.eq.s32.totalorder %v180, %v624
        %vm651 = vcmp.eq.s32.totalorder %v180, %v628
        %vm652 = vcmp.eq.s32.totalorder %v180, %v632
        %vm653 = vcmp.eq.s32.totalorder %v180, %v636
        %vm654 = vcmp.eq.s32.totalorder %v180, %v640
        %vm655 = vcmp.eq.s32.totalorder %v180, %v644
        %vm656 = vcmp.eq.s32.totalorder %v180, %v648
        %v657 = vsel %vm649, %v336, %v608
        %v658 = vsel %vm650, %v340, %v609
        %v659 = vsel %vm651, %v344, %v610
        %v660 = vsel %vm652, %v348, %v611
        %v661 = vsel %vm653, %v352, %v612
        %v662 = vsel %vm654, %v356, %v613
        %v663 = vsel %vm655, %v360, %v614
        %v664 = vsel %vm656, %v364, %v615
        %v665 = vsub.s32 %v200, 8
        %v666 = vlaneseq
        %v667 = vshrl.u32 %v666, 7
        %v668 = vsub.s32 0, %v667
        %v669 = vrot.slane %v665, %v668
        %v670 = vlaneseq
        %v671 = vshrl.u32 %v670, 7
        %v672 = vsub.s32 1, %v671
        %v673 = vrot.slane %v665, %v672
        %v674 = vlaneseq
        %v675 = vshrl.u32 %v674, 7
        %v676 = vsub.s32 2, %v675
        %v677 = vrot.slane %v665, %v676
        %v678 = vlaneseq
        %v679 = vshrl.u32 %v678, 7
        %v680 = vsub.s32 3, %v679
        %v681 = vrot.slane %v665, %v680
        %v682 = vlaneseq
        %v683 = vshrl.u32 %v682, 7
        %v684 = vsub.s32 4, %v683
        %v685 = vrot.slane %v665, %v684
        %v686 = vlaneseq
        %v687 = vshrl.u32 %v686, 7
        %v688 = vsub.s32 5, %v687
        %v689 = vrot.slane %v665, %v688
        %v690 = vlaneseq
        %v691 = vshrl.u32 %v690, 7
        %v692 = vsub.s32 6, %v691
        %v693 = vrot.slane %v665, %v692
        %v694 = vlaneseq
        %v695 = vshrl.u32 %v694, 7
        %v696 = vsub.s32 7, %v695
        %v697 = vrot.slane %v665, %v696
        %vm698 = vcmp.eq.s32.totalorder %v180, %v669
        %vm699 = vcmp.eq.s32.totalorder %v180, %v673
        %vm700 = vcmp.eq.s32.totalorder %v180, %v677
        %vm701 = vcmp.eq.s32.totalorder %v180, %v681
        %vm702 = vcmp.eq.s32.totalorder %v180, %v685
        %vm703 = vcmp.eq.s32.totalorder %v180, %v689
        %vm704 = vcmp.eq.s32.totalorder %v180, %v693
        %vm705 = vcmp.eq.s32.totalorder %v180, %v697
        %v706 = vsel %vm698, %v425, %v657
        %v707 = vsel %vm699, %v429, %v658
        %v708 = vsel %vm700, %v433, %v659
        %v709 = vsel %vm701, %v437, %v660
        %v710 = vsel %vm702, %v441, %v661
        %v711 = vsel %vm703, %v445, %v662
        %v712 = vsel %vm704, %v449, %v663
        %v713 = vsel %vm705, %v453, %v664
        %v714 = vsub.s32 %v202, 8
        %v715 = vlaneseq
        %v716 = vshrl.u32 %v715, 7
        %v717 = vsub.s32 0, %v716
        %v718 = vrot.slane %v714, %v717
        %v719 = vlaneseq
        %v720 = vshrl.u32 %v719, 7
        %v721 = vsub.s32 1, %v720
        %v722 = vrot.slane %v714, %v721
        %v723 = vlaneseq
        %v724 = vshrl.u32 %v723, 7
        %v725 = vsub.s32 2, %v724
        %v726 = vrot.slane %v714, %v725
        %v727 = vlaneseq
        %v728 = vshrl.u32 %v727, 7
        %v729 = vsub.s32 3, %v728
        %v730 = vrot.slane %v714, %v729
        %v731 = vlaneseq
        %v732 = vshrl.u32 %v731, 7
        %v733 = vsub.s32 4, %v732
        %v734 = vrot.slane %v714, %v733
        %v735 = vlaneseq
        %v736 = vshrl.u32 %v735, 7
        %v737 = vsub.s32 5, %v736
        %v738 = vrot.slane %v714, %v737
        %v739 = vlaneseq
        %v740 = vshrl.u32 %v739, 7
        %v741 = vsub.s32 6, %v740
        %v742 = vrot.slane %v714, %v741
        %v743 = vlaneseq
        %v744 = vshrl.u32 %v743, 7
        %v745 = vsub.s32 7, %v744
        %v746 = vrot.slane %v714, %v745
        %vm747 = vcmp.eq.s32.totalorder %v180, %v718
        %vm748 = vcmp.eq.s32.totalorder %v180, %v722
        %vm749 = vcmp.eq.s32.totalorder %v180, %v726
        %vm750 = vcmp.eq.s32.totalorder %v180, %v730
        %vm751 = vcmp.eq.s32.totalorder %v180, %v734
        %vm752 = vcmp.eq.s32.totalorder %v180, %v738
        %vm753 = vcmp.eq.s32.totalorder %v180, %v742
        %vm754 = vcmp.eq.s32.totalorder %v180, %v746
        %v755 = vsel %vm747, %v514, %v706
        %v756 = vsel %vm748, %v518, %v707
        %v757 = vsel %vm749, %v522, %v708
        %v758 = vsel %vm750, %v526, %v709
        %v759 = vsel %vm751, %v530, %v710
        %v760 = vsel %vm752, %v534, %v711
        %v761 = vsel %vm753, %v538, %v712
        %v762 = vsel %vm754, %v542, %v713
        %763 = vst [vmem:[#allocation2 + $0x40] sm:$0xff] %v755
        %764 = vst [vmem:[#allocation2 + $0x48] sm:$0xff] %v756
        %765 = vst [vmem:[#allocation2 + $0x50] sm:$0xff] %v757
        %766 = vst [vmem:[#allocation2 + $0x58] sm:$0xff] %v758
        %767 = vst [vmem:[#allocation2 + $0x60] sm:$0xff] %v759
        %768 = vst [vmem:[#allocation2 + $0x68] sm:$0xff] %v760
        %769 = vst [vmem:[#allocation2 + $0x70] sm:$0xff] %v761
        %770 = vst [vmem:[#allocation2 + $0x78] sm:$0xff] %v762
        %v771 = vsub.s32 %v193, 16
        %v772 = vlaneseq
        %v773 = vshrl.u32 %v772, 7
        %v774 = vsub.s32 0, %v773
        %v775 = vrot.slane %v771, %v774
        %v776 = vlaneseq
        %v777 = vshrl.u32 %v776, 7
        %v778 = vsub.s32 1, %v777
        %v779 = vrot.slane %v771, %v778
        %v780 = vlaneseq
        %v781 = vshrl.u32 %v780, 7
        %v782 = vsub.s32 2, %v781
        %v783 = vrot.slane %v771, %v782
        %v784 = vlaneseq
        %v785 = vshrl.u32 %v784, 7
        %v786 = vsub.s32 3, %v785
        %v787 = vrot.slane %v771, %v786
        %v788 = vlaneseq
        %v789 = vshrl.u32 %v788, 7
        %v790 = vsub.s32 4, %v789
        %v791 = vrot.slane %v771, %v790
        %v792 = vlaneseq
        %v793 = vshrl.u32 %v792, 7
        %v794 = vsub.s32 5, %v793
        %v795 = vrot.slane %v771, %v794
        %v796 = vlaneseq
        %v797 = vshrl.u32 %v796, 7
        %v798 = vsub.s32 6, %v797
        %v799 = vrot.slane %v771, %v798
        %v800 = vlaneseq
        %v801 = vshrl.u32 %v800, 7
        %v802 = vsub.s32 7, %v801
        %v803 = vrot.slane %v771, %v802
        %vm804 = vcmp.eq.s32.totalorder %v180, %v775
        %vm805 = vcmp.eq.s32.totalorder %v180, %v779
        %vm806 = vcmp.eq.s32.totalorder %v180, %v783
        %vm807 = vcmp.eq.s32.totalorder %v180, %v787
        %vm808 = vcmp.eq.s32.totalorder %v180, %v791
        %vm809 = vcmp.eq.s32.totalorder %v180, %v795
        %vm810 = vcmp.eq.s32.totalorder %v180, %v799
        %vm811 = vcmp.eq.s32.totalorder %v180, %v803
        %v812 = vsel %vm804, %v247, 0.0
        %v813 = vsel %vm805, %v251, 0.0
        %v814 = vsel %vm806, %v255, 0.0
        %v815 = vsel %vm807, %v259, 0.0
        %v816 = vsel %vm808, %v263, 0.0
        %v817 = vsel %vm809, %v267, 0.0
        %v818 = vsel %vm810, %v271, 0.0
        %v819 = vsel %vm811, %v275, 0.0
        %v820 = vsub.s32 %v197, 16
        %v821 = vlaneseq
        %v822 = vshrl.u32 %v821, 7
        %v823 = vsub.s32 0, %v822
        %v824 = vrot.slane %v820, %v823
        %v825 = vlaneseq
        %v826 = vshrl.u32 %v825, 7
        %v827 = vsub.s32 1, %v826
        %v828 = vrot.slane %v820, %v827
        %v829 = vlaneseq
        %v830 = vshrl.u32 %v829, 7
        %v831 = vsub.s32 2, %v830
        %v832 = vrot.slane %v820, %v831
        %v833 = vlaneseq
        %v834 = vshrl.u32 %v833, 7
        %v835 = vsub.s32 3, %v834
        %v836 = vrot.slane %v820, %v835
        %v837 = vlaneseq
        %v838 = vshrl.u32 %v837, 7
        %v839 = vsub.s32 4, %v838
        %v840 = vrot.slane %v820, %v839
        %v841 = vlaneseq
        %v842 = vshrl.u32 %v841, 7
        %v843 = vsub.s32 5, %v842
        %v844 = vrot.slane %v820, %v843
        %v845 = vlaneseq
        %v846 = vshrl.u32 %v845, 7
        %v847 = vsub.s32 6, %v846
        %v848 = vrot.slane %v820, %v847
        %v849 = vlaneseq
        %v850 = vshrl.u32 %v849, 7
        %v851 = vsub.s32 7, %v850
        %v852 = vrot.slane %v820, %v851
        %vm853 = vcmp.eq.s32.totalorder %v180, %v824
        %vm854 = vcmp.eq.s32.totalorder %v180, %v828
        %vm855 = vcmp.eq.s32.totalorder %v180, %v832
        %vm856 = vcmp.eq.s32.totalorder %v180, %v836
        %vm857 = vcmp.eq.s32.totalorder %v180, %v840
        %vm858 = vcmp.eq.s32.totalorder %v180, %v844
        %vm859 = vcmp.eq.s32.totalorder %v180, %v848
        %vm860 = vcmp.eq.s32.totalorder %v180, %v852
        %v861 = vsel %vm853, %v336, %v812
        %v862 = vsel %vm854, %v340, %v813
        %v863 = vsel %vm855, %v344, %v814
        %v864 = vsel %vm856, %v348, %v815
        %v865 = vsel %vm857, %v352, %v816
        %v866 = vsel %vm858, %v356, %v817
        %v867 = vsel %vm859, %v360, %v818
        %v868 = vsel %vm860, %v364, %v819
        %v869 = vsub.s32 %v200, 16
        %v870 = vlaneseq
        %v871 = vshrl.u32 %v870, 7
        %v872 = vsub.s32 0, %v871
        %v873 = vrot.slane %v869, %v872
        %v874 = vlaneseq
        %v875 = vshrl.u32 %v874, 7
        %v876 = vsub.s32 1, %v875
        %v877 = vrot.slane %v869, %v876
        %v878 = vlaneseq
        %v879 = vshrl.u32 %v878, 7
        %v880 = vsub.s32 2, %v879
        %v881 = vrot.slane %v869, %v880
        %v882 = vlaneseq
        %v883 = vshrl.u32 %v882, 7
        %v884 = vsub.s32 3, %v883
        %v885 = vrot.slane %v869, %v884
        %v886 = vlaneseq
        %v887 = vshrl.u32 %v886, 7
        %v888 = vsub.s32 4, %v887
        %v889 = vrot.slane %v869, %v888
        %v890 = vlaneseq
        %v891 = vshrl.u32 %v890, 7
        %v892 = vsub.s32 5, %v891
        %v893 = vrot.slane %v869, %v892
        %v894 = vlaneseq
        %v895 = vshrl.u32 %v894, 7
        %v896 = vsub.s32 6, %v895
        %v897 = vrot.slane %v869, %v896
        %v898 = vlaneseq
        %v899 = vshrl.u32 %v898, 7
        %v900 = vsub.s32 7, %v899
        %v901 = vrot.slane %v869, %v900
        %vm902 = vcmp.eq.s32.totalorder %v180, %v873
        %vm903 = vcmp.eq.s32.totalorder %v180, %v877
        %vm904 = vcmp.eq.s32.totalorder %v180, %v881
        %vm905 = vcmp.eq.s32.totalorder %v180, %v885
        %vm906 = vcmp.eq.s32.totalorder %v180, %v889
        %vm907 = vcmp.eq.s32.totalorder %v180, %v893
        %vm908 = vcmp.eq.s32.totalorder %v180, %v897
        %vm909 = vcmp.eq.s32.totalorder %v180, %v901
        %v910 = vsel %vm902, %v425, %v861
        %v911 = vsel %vm903, %v429, %v862
        %v912 = vsel %vm904, %v433, %v863
        %v913 = vsel %vm905, %v437, %v864
        %v914 = vsel %vm906, %v441, %v865
        %v915 = vsel %vm907, %v445, %v866
        %v916 = vsel %vm908, %v449, %v867
        %v917 = vsel %vm909, %v453, %v868
        %v918 = vsub.s32 %v202, 16
        %v919 = vlaneseq
        %v920 = vshrl.u32 %v919, 7
        %v921 = vsub.s32 0, %v920
        %v922 = vrot.slane %v918, %v921
        %v923 = vlaneseq
        %v924 = vshrl.u32 %v923, 7
        %v925 = vsub.s32 1, %v924
        %v926 = vrot.slane %v918, %v925
        %v927 = vlaneseq
        %v928 = vshrl.u32 %v927, 7
        %v929 = vsub.s32 2, %v928
        %v930 = vrot.slane %v918, %v929
        %v931 = vlaneseq
        %v932 = vshrl.u32 %v931, 7
        %v933 = vsub.s32 3, %v932
        %v934 = vrot.slane %v918, %v933
        %v935 = vlaneseq
        %v936 = vshrl.u32 %v935, 7
        %v937 = vsub.s32 4, %v936
        %v938 = vrot.slane %v918, %v937
        %v939 = vlaneseq
        %v940 = vshrl.u32 %v939, 7
        %v941 = vsub.s32 5, %v940
        %v942 = vrot.slane %v918, %v941
        %v943 = vlaneseq
        %v944 = vshrl.u32 %v943, 7
        %v945 = vsub.s32 6, %v944
        %v946 = vrot.slane %v918, %v945
        %v947 = vlaneseq
        %v948 = vshrl.u32 %v947, 7
        %v949 = vsub.s32 7, %v948
        %v950 = vrot.slane %v918, %v949
        %vm951 = vcmp.eq.s32.totalorder %v180, %v922
        %vm952 = vcmp.eq.s32.totalorder %v180, %v926
        %vm953 = vcmp.eq.s32.totalorder %v180, %v930
        %vm954 = vcmp.eq.s32.totalorder %v180, %v934
        %vm955 = vcmp.eq.s32.totalorder %v180, %v938
        %vm956 = vcmp.eq.s32.totalorder %v180, %v942
        %vm957 = vcmp.eq.s32.totalorder %v180, %v946
        %vm958 = vcmp.eq.s32.totalorder %v180, %v950
        %v959 = vsel %vm951, %v514, %v910
        %v960 = vsel %vm952, %v518, %v911
        %v961 = vsel %vm953, %v522, %v912
        %v962 = vsel %vm954, %v526, %v913
        %v963 = vsel %vm955, %v530, %v914
        %v964 = vsel %vm956, %v534, %v915
        %v965 = vsel %vm957, %v538, %v916
        %v966 = vsel %vm958, %v542, %v917
        %967 = vst [vmem:[#allocation2 + $0x80] sm:$0xff] %v959
        %968 = vst [vmem:[#allocation2 + $0x88] sm:$0xff] %v960
        %969 = vst [vmem:[#allocation2 + $0x90] sm:$0xff] %v961
        %970 = vst [vmem:[#allocation2 + $0x98] sm:$0xff] %v962
        %971 = vst [vmem:[#allocation2 + $0xa0] sm:$0xff] %v963
        %972 = vst [vmem:[#allocation2 + $0xa8] sm:$0xff] %v964
        %973 = vst [vmem:[#allocation2 + $0xb0] sm:$0xff] %v965
        %974 = vst [vmem:[#allocation2 + $0xb8] sm:$0xff] %v966
        %v975 = vsub.s32 %v193, 24
        %v976 = vlaneseq
        %v977 = vshrl.u32 %v976, 7
        %v978 = vsub.s32 0, %v977
        %v979 = vrot.slane %v975, %v978
        %v980 = vlaneseq
        %v981 = vshrl.u32 %v980, 7
        %v982 = vsub.s32 1, %v981
        %v983 = vrot.slane %v975, %v982
        %v984 = vlaneseq
        %v985 = vshrl.u32 %v984, 7
        %v986 = vsub.s32 2, %v985
        %v987 = vrot.slane %v975, %v986
        %v988 = vlaneseq
        %v989 = vshrl.u32 %v988, 7
        %v990 = vsub.s32 3, %v989
        %v991 = vrot.slane %v975, %v990
        %v992 = vlaneseq
        %v993 = vshrl.u32 %v992, 7
        %v994 = vsub.s32 4, %v993
        %v995 = vrot.slane %v975, %v994
        %v996 = vlaneseq
        %v997 = vshrl.u32 %v996, 7
        %v998 = vsub.s32 5, %v997
        %v999 = vrot.slane %v975, %v998
        %v1000 = vlaneseq
        %v1001 = vshrl.u32 %v1000, 7
        %v1002 = vsub.s32 6, %v1001
        %v1003 = vrot.slane %v975, %v1002
        %v1004 = vlaneseq
        %v1005 = vshrl.u32 %v1004, 7
        %v1006 = vsub.s32 7, %v1005
        %v1007 = vrot.slane %v975, %v1006
        %vm1008 = vcmp.eq.s32.totalorder %v180, %v979
        %vm1009 = vcmp.eq.s32.totalorder %v180, %v983
        %vm1010 = vcmp.eq.s32.totalorder %v180, %v987
        %vm1011 = vcmp.eq.s32.totalorder %v180, %v991
        %vm1012 = vcmp.eq.s32.totalorder %v180, %v995
        %vm1013 = vcmp.eq.s32.totalorder %v180, %v999
        %vm1014 = vcmp.eq.s32.totalorder %v180, %v1003
        %vm1015 = vcmp.eq.s32.totalorder %v180, %v1007
        %v1016 = vsel %vm1008, %v247, 0.0
        %v1017 = vsel %vm1009, %v251, 0.0
        %v1018 = vsel %vm1010, %v255, 0.0
        %v1019 = vsel %vm1011, %v259, 0.0
        %v1020 = vsel %vm1012, %v263, 0.0
        %v1021 = vsel %vm1013, %v267, 0.0
        %v1022 = vsel %vm1014, %v271, 0.0
        %v1023 = vsel %vm1015, %v275, 0.0
        %v1024 = vsub.s32 %v197, 24
        %v1025 = vlaneseq
        %v1026 = vshrl.u32 %v1025, 7
        %v1027 = vsub.s32 0, %v1026
        %v1028 = vrot.slane %v1024, %v1027
        %v1029 = vlaneseq
        %v1030 = vshrl.u32 %v1029, 7
        %v1031 = vsub.s32 1, %v1030
        %v1032 = vrot.slane %v1024, %v1031
        %v1033 = vlaneseq
        %v1034 = vshrl.u32 %v1033, 7
        %v1035 = vsub.s32 2, %v1034
        %v1036 = vrot.slane %v1024, %v1035
        %v1037 = vlaneseq
        %v1038 = vshrl.u32 %v1037, 7
        %v1039 = vsub.s32 3, %v1038
        %v1040 = vrot.slane %v1024, %v1039
        %v1041 = vlaneseq
        %v1042 = vshrl.u32 %v1041, 7
        %v1043 = vsub.s32 4, %v1042
        %v1044 = vrot.slane %v1024, %v1043
        %v1045 = vlaneseq
        %v1046 = vshrl.u32 %v1045, 7
        %v1047 = vsub.s32 5, %v1046
        %v1048 = vrot.slane %v1024, %v1047
        %v1049 = vlaneseq
        %v1050 = vshrl.u32 %v1049, 7
        %v1051 = vsub.s32 6, %v1050
        %v1052 = vrot.slane %v1024, %v1051
        %v1053 = vlaneseq
        %v1054 = vshrl.u32 %v1053, 7
        %v1055 = vsub.s32 7, %v1054
        %v1056 = vrot.slane %v1024, %v1055
        %vm1057 = vcmp.eq.s32.totalorder %v180, %v1028
        %vm1058 = vcmp.eq.s32.totalorder %v180, %v1032
        %vm1059 = vcmp.eq.s32.totalorder %v180, %v1036
        %vm1060 = vcmp.eq.s32.totalorder %v180, %v1040
        %vm1061 = vcmp.eq.s32.totalorder %v180, %v1044
        %vm1062 = vcmp.eq.s32.totalorder %v180, %v1048
        %vm1063 = vcmp.eq.s32.totalorder %v180, %v1052
        %vm1064 = vcmp.eq.s32.totalorder %v180, %v1056
        %v1065 = vsel %vm1057, %v336, %v1016
        %v1066 = vsel %vm1058, %v340, %v1017
        %v1067 = vsel %vm1059, %v344, %v1018
        %v1068 = vsel %vm1060, %v348, %v1019
        %v1069 = vsel %vm1061, %v352, %v1020
        %v1070 = vsel %vm1062, %v356, %v1021
        %v1071 = vsel %vm1063, %v360, %v1022
        %v1072 = vsel %vm1064, %v364, %v1023
        %v1073 = vsub.s32 %v200, 24
        %v1074 = vlaneseq
        %v1075 = vshrl.u32 %v1074, 7
        %v1076 = vsub.s32 0, %v1075
        %v1077 = vrot.slane %v1073, %v1076
        %v1078 = vlaneseq
        %v1079 = vshrl.u32 %v1078, 7
        %v1080 = vsub.s32 1, %v1079
        %v1081 = vrot.slane %v1073, %v1080
        %v1082 = vlaneseq
        %v1083 = vshrl.u32 %v1082, 7
        %v1084 = vsub.s32 2, %v1083
        %v1085 = vrot.slane %v1073, %v1084
        %v1086 = vlaneseq
        %v1087 = vshrl.u32 %v1086, 7
        %v1088 = vsub.s32 3, %v1087
        %v1089 = vrot.slane %v1073, %v1088
        %v1090 = vlaneseq
        %v1091 = vshrl.u32 %v1090, 7
        %v1092 = vsub.s32 4, %v1091
        %v1093 = vrot.slane %v1073, %v1092
        %v1094 = vlaneseq
        %v1095 = vshrl.u32 %v1094, 7
        %v1096 = vsub.s32 5, %v1095
        %v1097 = vrot.slane %v1073, %v1096
        %v1098 = vlaneseq
        %v1099 = vshrl.u32 %v1098, 7
        %v1100 = vsub.s32 6, %v1099
        %v1101 = vrot.slane %v1073, %v1100
        %v1102 = vlaneseq
        %v1103 = vshrl.u32 %v1102, 7
        %v1104 = vsub.s32 7, %v1103
        %v1105 = vrot.slane %v1073, %v1104
        %vm1106 = vcmp.eq.s32.totalorder %v180, %v1077
        %vm1107 = vcmp.eq.s32.totalorder %v180, %v1081
        %vm1108 = vcmp.eq.s32.totalorder %v180, %v1085
        %vm1109 = vcmp.eq.s32.totalorder %v180, %v1089
        %vm1110 = vcmp.eq.s32.totalorder %v180, %v1093
        %vm1111 = vcmp.eq.s32.totalorder %v180, %v1097
        %vm1112 = vcmp.eq.s32.totalorder %v180, %v1101
        %vm1113 = vcmp.eq.s32.totalorder %v180, %v1105
        %v1114 = vsel %vm1106, %v425, %v1065
        %v1115 = vsel %vm1107, %v429, %v1066
        %v1116 = vsel %vm1108, %v433, %v1067
        %v1117 = vsel %vm1109, %v437, %v1068
        %v1118 = vsel %vm1110, %v441, %v1069
        %v1119 = vsel %vm1111, %v445, %v1070
        %v1120 = vsel %vm1112, %v449, %v1071
        %v1121 = vsel %vm1113, %v453, %v1072
        %v1122 = vsub.s32 %v202, 24
        %v1123 = vlaneseq
        %v1124 = vshrl.u32 %v1123, 7
        %v1125 = vsub.s32 0, %v1124
        %v1126 = vrot.slane %v1122, %v1125
        %v1127 = vlaneseq
        %v1128 = vshrl.u32 %v1127, 7
        %v1129 = vsub.s32 1, %v1128
        %v1130 = vrot.slane %v1122, %v1129
        %v1131 = vlaneseq
        %v1132 = vshrl.u32 %v1131, 7
        %v1133 = vsub.s32 2, %v1132
        %v1134 = vrot.slane %v1122, %v1133
        %v1135 = vlaneseq
        %v1136 = vshrl.u32 %v1135, 7
        %v1137 = vsub.s32 3, %v1136
        %v1138 = vrot.slane %v1122, %v1137
        %v1139 = vlaneseq
        %v1140 = vshrl.u32 %v1139, 7
        %v1141 = vsub.s32 4, %v1140
        %v1142 = vrot.slane %v1122, %v1141
        %v1143 = vlaneseq
        %v1144 = vshrl.u32 %v1143, 7
        %v1145 = vsub.s32 5, %v1144
        %v1146 = vrot.slane %v1122, %v1145
        %v1147 = vlaneseq
        %v1148 = vshrl.u32 %v1147, 7
        %v1149 = vsub.s32 6, %v1148
        %v1150 = vrot.slane %v1122, %v1149
        %v1151 = vlaneseq
        %v1152 = vshrl.u32 %v1151, 7
        %v1153 = vsub.s32 7, %v1152
        %v1154 = vrot.slane %v1122, %v1153
        %vm1155 = vcmp.eq.s32.totalorder %v180, %v1126
        %vm1156 = vcmp.eq.s32.totalorder %v180, %v1130
        %vm1157 = vcmp.eq.s32.totalorder %v180, %v1134
        %vm1158 = vcmp.eq.s32.totalorder %v180, %v1138
        %vm1159 = vcmp.eq.s32.totalorder %v180, %v1142
        %vm1160 = vcmp.eq.s32.totalorder %v180, %v1146
        %vm1161 = vcmp.eq.s32.totalorder %v180, %v1150
        %vm1162 = vcmp.eq.s32.totalorder %v180, %v1154
        %v1163 = vsel %vm1155, %v514, %v1114
        %v1164 = vsel %vm1156, %v518, %v1115
        %v1165 = vsel %vm1157, %v522, %v1116
        %v1166 = vsel %vm1158, %v526, %v1117
        %v1167 = vsel %vm1159, %v530, %v1118
        %v1168 = vsel %vm1160, %v534, %v1119
        %v1169 = vsel %vm1161, %v538, %v1120
        %v1170 = vsel %vm1162, %v542, %v1121
        %1171 = vst [vmem:[#allocation2 + $0xc0] sm:$0xff] %v1163
        %1172 = vst [vmem:[#allocation2 + $0xc8] sm:$0xff] %v1164
        %1173 = vst [vmem:[#allocation2 + $0xd0] sm:$0xff] %v1165
        %1174 = vst [vmem:[#allocation2 + $0xd8] sm:$0xff] %v1166
        %1175 = vst [vmem:[#allocation2 + $0xe0] sm:$0xff] %v1167
        %1176 = vst [vmem:[#allocation2 + $0xe8] sm:$0xff] %v1168
        %1177 = vst [vmem:[#allocation2 + $0xf0] sm:$0xff] %v1169
        %1178 = vst [vmem:[#allocation2 + $0xf8] sm:$0xff] %v1170
        %v1179 = vmul.f32 %v176, 6.0
        %v1180 = vfloor.f32 %v1179
        %v1181 = vsub.f32 %v1179, %v1180
        %v1182 = vcvt.f32.s32.to.zero.pseudo %v1180
        %v1183 = vsub.f32 1.0, %v1181
        %v1184 = vmul.f32 %v178, 6.0
        %v1185 = vfloor.f32 %v1184
        %v1186 = vsub.f32 %v1184, %v1185
        %v1187 = vcvt.f32.s32.to.zero.pseudo %v1185
        %v1188 = vsub.f32 1.0, %v1186
        %v1189 = vmul.f32 %v1183, %v1188
        %v1190 = vmul.u32 %v1187, 7
        %v1191 = vadd.s32 %v1182, %v1190
        %v1192 = vmul.f32 %v1183, %v1186
        %v1193 = vadd.s32 %v1187, 1
        %v1194 = vmul.u32 %v1193, 7
        %v1195 = vadd.s32 %v1182, %v1194
        %v1196 = vmul.f32 %v1181, %v1188
        %v1197 = vadd.s32 %v1182, 1
        %v1198 = vadd.s32 %v1197, %v1190
        %v1199 = vmul.f32 %v1181, %v1186
        %v1200 = vadd.s32 %v1197, %v1194
        %v1201 = vlaneseq
        %v1202 = vshrl.u32 %v1201, 7
        %v1203 = vsub.s32 0, %v1202
        %v1204 = vrot.slane %v1191, %v1203
        %v1205 = vlaneseq
        %v1206 = vshrl.u32 %v1205, 7
        %v1207 = vsub.s32 1, %v1206
        %v1208 = vrot.slane %v1191, %v1207
        %v1209 = vlaneseq
        %v1210 = vshrl.u32 %v1209, 7
        %v1211 = vsub.s32 2, %v1210
        %v1212 = vrot.slane %v1191, %v1211
        %v1213 = vlaneseq
        %v1214 = vshrl.u32 %v1213, 7
        %v1215 = vsub.s32 3, %v1214
        %v1216 = vrot.slane %v1191, %v1215
        %v1217 = vlaneseq
        %v1218 = vshrl.u32 %v1217, 7
        %v1219 = vsub.s32 4, %v1218
        %v1220 = vrot.slane %v1191, %v1219
        %v1221 = vlaneseq
        %v1222 = vshrl.u32 %v1221, 7
        %v1223 = vsub.s32 5, %v1222
        %v1224 = vrot.slane %v1191, %v1223
        %v1225 = vlaneseq
        %v1226 = vshrl.u32 %v1225, 7
        %v1227 = vsub.s32 6, %v1226
        %v1228 = vrot.slane %v1191, %v1227
        %v1229 = vlaneseq
        %v1230 = vshrl.u32 %v1229, 7
        %v1231 = vsub.s32 7, %v1230
        %v1232 = vrot.slane %v1191, %v1231
        %vm1233 = vcmp.eq.s32.totalorder %v180, %v1204
        %vm1234 = vcmp.eq.s32.totalorder %v180, %v1208
        %vm1235 = vcmp.eq.s32.totalorder %v180, %v1212
        %vm1236 = vcmp.eq.s32.totalorder %v180, %v1216
        %vm1237 = vcmp.eq.s32.totalorder %v180, %v1220
        %vm1238 = vcmp.eq.s32.totalorder %v180, %v1224
        %vm1239 = vcmp.eq.s32.totalorder %v180, %v1228
        %vm1240 = vcmp.eq.s32.totalorder %v180, %v1232
        %v1242 = vlaneseq
        %v1243 = vshrl.u32 %v1242, 7
        %v1244 = vsub.s32 0, %v1243
        %v1245 = vrot.slane %v1189, %v1244
        %v1246 = vlaneseq
        %v1247 = vshrl.u32 %v1246, 7
        %v1248 = vsub.s32 1, %v1247
        %v1249 = vrot.slane %v1189, %v1248
        %v1250 = vlaneseq
        %v1251 = vshrl.u32 %v1250, 7
        %v1252 = vsub.s32 2, %v1251
        %v1253 = vrot.slane %v1189, %v1252
        %v1254 = vlaneseq
        %v1255 = vshrl.u32 %v1254, 7
        %v1256 = vsub.s32 3, %v1255
        %v1257 = vrot.slane %v1189, %v1256
        %v1258 = vlaneseq
        %v1259 = vshrl.u32 %v1258, 7
        %v1260 = vsub.s32 4, %v1259
        %v1261 = vrot.slane %v1189, %v1260
        %v1262 = vlaneseq
        %v1263 = vshrl.u32 %v1262, 7
        %v1264 = vsub.s32 5, %v1263
        %v1265 = vrot.slane %v1189, %v1264
        %v1266 = vlaneseq
        %v1267 = vshrl.u32 %v1266, 7
        %v1268 = vsub.s32 6, %v1267
        %v1269 = vrot.slane %v1189, %v1268
        %v1270 = vlaneseq
        %v1271 = vshrl.u32 %v1270, 7
        %v1272 = vsub.s32 7, %v1271
        %v1273 = vrot.slane %v1189, %v1272
        %v1282 = vsel %vm1233, %v1245, 0.0
        %v1283 = vsel %vm1234, %v1249, 0.0
        %v1284 = vsel %vm1235, %v1253, 0.0
        %v1285 = vsel %vm1236, %v1257, 0.0
        %v1286 = vsel %vm1237, %v1261, 0.0
        %v1287 = vsel %vm1238, %v1265, 0.0
        %v1288 = vsel %vm1239, %v1269, 0.0
        %v1289 = vsel %vm1240, %v1273, 0.0
        %v1290 = vlaneseq
        %v1291 = vshrl.u32 %v1290, 7
        %v1292 = vsub.s32 0, %v1291
        %v1293 = vrot.slane %v1195, %v1292
        %v1294 = vlaneseq
        %v1295 = vshrl.u32 %v1294, 7
        %v1296 = vsub.s32 1, %v1295
        %v1297 = vrot.slane %v1195, %v1296
        %v1298 = vlaneseq
        %v1299 = vshrl.u32 %v1298, 7
        %v1300 = vsub.s32 2, %v1299
        %v1301 = vrot.slane %v1195, %v1300
        %v1302 = vlaneseq
        %v1303 = vshrl.u32 %v1302, 7
        %v1304 = vsub.s32 3, %v1303
        %v1305 = vrot.slane %v1195, %v1304
        %v1306 = vlaneseq
        %v1307 = vshrl.u32 %v1306, 7
        %v1308 = vsub.s32 4, %v1307
        %v1309 = vrot.slane %v1195, %v1308
        %v1310 = vlaneseq
        %v1311 = vshrl.u32 %v1310, 7
        %v1312 = vsub.s32 5, %v1311
        %v1313 = vrot.slane %v1195, %v1312
        %v1314 = vlaneseq
        %v1315 = vshrl.u32 %v1314, 7
        %v1316 = vsub.s32 6, %v1315
        %v1317 = vrot.slane %v1195, %v1316
        %v1318 = vlaneseq
        %v1319 = vshrl.u32 %v1318, 7
        %v1320 = vsub.s32 7, %v1319
        %v1321 = vrot.slane %v1195, %v1320
        %vm1322 = vcmp.eq.s32.totalorder %v180, %v1293
        %vm1323 = vcmp.eq.s32.totalorder %v180, %v1297
        %vm1324 = vcmp.eq.s32.totalorder %v180, %v1301
        %vm1325 = vcmp.eq.s32.totalorder %v180, %v1305
        %vm1326 = vcmp.eq.s32.totalorder %v180, %v1309
        %vm1327 = vcmp.eq.s32.totalorder %v180, %v1313
        %vm1328 = vcmp.eq.s32.totalorder %v180, %v1317
        %vm1329 = vcmp.eq.s32.totalorder %v180, %v1321
        %v1331 = vlaneseq
        %v1332 = vshrl.u32 %v1331, 7
        %v1333 = vsub.s32 0, %v1332
        %v1334 = vrot.slane %v1192, %v1333
        %v1335 = vlaneseq
        %v1336 = vshrl.u32 %v1335, 7
        %v1337 = vsub.s32 1, %v1336
        %v1338 = vrot.slane %v1192, %v1337
        %v1339 = vlaneseq
        %v1340 = vshrl.u32 %v1339, 7
        %v1341 = vsub.s32 2, %v1340
        %v1342 = vrot.slane %v1192, %v1341
        %v1343 = vlaneseq
        %v1344 = vshrl.u32 %v1343, 7
        %v1345 = vsub.s32 3, %v1344
        %v1346 = vrot.slane %v1192, %v1345
        %v1347 = vlaneseq
        %v1348 = vshrl.u32 %v1347, 7
        %v1349 = vsub.s32 4, %v1348
        %v1350 = vrot.slane %v1192, %v1349
        %v1351 = vlaneseq
        %v1352 = vshrl.u32 %v1351, 7
        %v1353 = vsub.s32 5, %v1352
        %v1354 = vrot.slane %v1192, %v1353
        %v1355 = vlaneseq
        %v1356 = vshrl.u32 %v1355, 7
        %v1357 = vsub.s32 6, %v1356
        %v1358 = vrot.slane %v1192, %v1357
        %v1359 = vlaneseq
        %v1360 = vshrl.u32 %v1359, 7
        %v1361 = vsub.s32 7, %v1360
        %v1362 = vrot.slane %v1192, %v1361
        %v1371 = vsel %vm1322, %v1334, %v1282
        %v1372 = vsel %vm1323, %v1338, %v1283
        %v1373 = vsel %vm1324, %v1342, %v1284
        %v1374 = vsel %vm1325, %v1346, %v1285
        %v1375 = vsel %vm1326, %v1350, %v1286
        %v1376 = vsel %vm1327, %v1354, %v1287
        %v1377 = vsel %vm1328, %v1358, %v1288
        %v1378 = vsel %vm1329, %v1362, %v1289
        %v1379 = vlaneseq
        %v1380 = vshrl.u32 %v1379, 7
        %v1381 = vsub.s32 0, %v1380
        %v1382 = vrot.slane %v1198, %v1381
        %v1383 = vlaneseq
        %v1384 = vshrl.u32 %v1383, 7
        %v1385 = vsub.s32 1, %v1384
        %v1386 = vrot.slane %v1198, %v1385
        %v1387 = vlaneseq
        %v1388 = vshrl.u32 %v1387, 7
        %v1389 = vsub.s32 2, %v1388
        %v1390 = vrot.slane %v1198, %v1389
        %v1391 = vlaneseq
        %v1392 = vshrl.u32 %v1391, 7
        %v1393 = vsub.s32 3, %v1392
        %v1394 = vrot.slane %v1198, %v1393
        %v1395 = vlaneseq
        %v1396 = vshrl.u32 %v1395, 7
        %v1397 = vsub.s32 4, %v1396
        %v1398 = vrot.slane %v1198, %v1397
        %v1399 = vlaneseq
        %v1400 = vshrl.u32 %v1399, 7
        %v1401 = vsub.s32 5, %v1400
        %v1402 = vrot.slane %v1198, %v1401
        %v1403 = vlaneseq
        %v1404 = vshrl.u32 %v1403, 7
        %v1405 = vsub.s32 6, %v1404
        %v1406 = vrot.slane %v1198, %v1405
        %v1407 = vlaneseq
        %v1408 = vshrl.u32 %v1407, 7
        %v1409 = vsub.s32 7, %v1408
        %v1410 = vrot.slane %v1198, %v1409
        %vm1411 = vcmp.eq.s32.totalorder %v180, %v1382
        %vm1412 = vcmp.eq.s32.totalorder %v180, %v1386
        %vm1413 = vcmp.eq.s32.totalorder %v180, %v1390
        %vm1414 = vcmp.eq.s32.totalorder %v180, %v1394
        %vm1415 = vcmp.eq.s32.totalorder %v180, %v1398
        %vm1416 = vcmp.eq.s32.totalorder %v180, %v1402
        %vm1417 = vcmp.eq.s32.totalorder %v180, %v1406
        %vm1418 = vcmp.eq.s32.totalorder %v180, %v1410
        %v1420 = vlaneseq
        %v1421 = vshrl.u32 %v1420, 7
        %v1422 = vsub.s32 0, %v1421
        %v1423 = vrot.slane %v1196, %v1422
        %v1424 = vlaneseq
        %v1425 = vshrl.u32 %v1424, 7
        %v1426 = vsub.s32 1, %v1425
        %v1427 = vrot.slane %v1196, %v1426
        %v1428 = vlaneseq
        %v1429 = vshrl.u32 %v1428, 7
        %v1430 = vsub.s32 2, %v1429
        %v1431 = vrot.slane %v1196, %v1430
        %v1432 = vlaneseq
        %v1433 = vshrl.u32 %v1432, 7
        %v1434 = vsub.s32 3, %v1433
        %v1435 = vrot.slane %v1196, %v1434
        %v1436 = vlaneseq
        %v1437 = vshrl.u32 %v1436, 7
        %v1438 = vsub.s32 4, %v1437
        %v1439 = vrot.slane %v1196, %v1438
        %v1440 = vlaneseq
        %v1441 = vshrl.u32 %v1440, 7
        %v1442 = vsub.s32 5, %v1441
        %v1443 = vrot.slane %v1196, %v1442
        %v1444 = vlaneseq
        %v1445 = vshrl.u32 %v1444, 7
        %v1446 = vsub.s32 6, %v1445
        %v1447 = vrot.slane %v1196, %v1446
        %v1448 = vlaneseq
        %v1449 = vshrl.u32 %v1448, 7
        %v1450 = vsub.s32 7, %v1449
        %v1451 = vrot.slane %v1196, %v1450
        %v1460 = vsel %vm1411, %v1423, %v1371
        %v1461 = vsel %vm1412, %v1427, %v1372
        %v1462 = vsel %vm1413, %v1431, %v1373
        %v1463 = vsel %vm1414, %v1435, %v1374
        %v1464 = vsel %vm1415, %v1439, %v1375
        %v1465 = vsel %vm1416, %v1443, %v1376
        %v1466 = vsel %vm1417, %v1447, %v1377
        %v1467 = vsel %vm1418, %v1451, %v1378
        %v1468 = vlaneseq
        %v1469 = vshrl.u32 %v1468, 7
        %v1470 = vsub.s32 0, %v1469
        %v1471 = vrot.slane %v1200, %v1470
        %v1472 = vlaneseq
        %v1473 = vshrl.u32 %v1472, 7
        %v1474 = vsub.s32 1, %v1473
        %v1475 = vrot.slane %v1200, %v1474
        %v1476 = vlaneseq
        %v1477 = vshrl.u32 %v1476, 7
        %v1478 = vsub.s32 2, %v1477
        %v1479 = vrot.slane %v1200, %v1478
        %v1480 = vlaneseq
        %v1481 = vshrl.u32 %v1480, 7
        %v1482 = vsub.s32 3, %v1481
        %v1483 = vrot.slane %v1200, %v1482
        %v1484 = vlaneseq
        %v1485 = vshrl.u32 %v1484, 7
        %v1486 = vsub.s32 4, %v1485
        %v1487 = vrot.slane %v1200, %v1486
        %v1488 = vlaneseq
        %v1489 = vshrl.u32 %v1488, 7
        %v1490 = vsub.s32 5, %v1489
        %v1491 = vrot.slane %v1200, %v1490
        %v1492 = vlaneseq
        %v1493 = vshrl.u32 %v1492, 7
        %v1494 = vsub.s32 6, %v1493
        %v1495 = vrot.slane %v1200, %v1494
        %v1496 = vlaneseq
        %v1497 = vshrl.u32 %v1496, 7
        %v1498 = vsub.s32 7, %v1497
        %v1499 = vrot.slane %v1200, %v1498
        %vm1500 = vcmp.eq.s32.totalorder %v180, %v1471
        %vm1501 = vcmp.eq.s32.totalorder %v180, %v1475
        %vm1502 = vcmp.eq.s32.totalorder %v180, %v1479
        %vm1503 = vcmp.eq.s32.totalorder %v180, %v1483
        %vm1504 = vcmp.eq.s32.totalorder %v180, %v1487
        %vm1505 = vcmp.eq.s32.totalorder %v180, %v1491
        %vm1506 = vcmp.eq.s32.totalorder %v180, %v1495
        %vm1507 = vcmp.eq.s32.totalorder %v180, %v1499
        %v1509 = vlaneseq
        %v1510 = vshrl.u32 %v1509, 7
        %v1511 = vsub.s32 0, %v1510
        %v1512 = vrot.slane %v1199, %v1511
        %v1513 = vlaneseq
        %v1514 = vshrl.u32 %v1513, 7
        %v1515 = vsub.s32 1, %v1514
        %v1516 = vrot.slane %v1199, %v1515
        %v1517 = vlaneseq
        %v1518 = vshrl.u32 %v1517, 7
        %v1519 = vsub.s32 2, %v1518
        %v1520 = vrot.slane %v1199, %v1519
        %v1521 = vlaneseq
        %v1522 = vshrl.u32 %v1521, 7
        %v1523 = vsub.s32 3, %v1522
        %v1524 = vrot.slane %v1199, %v1523
        %v1525 = vlaneseq
        %v1526 = vshrl.u32 %v1525, 7
        %v1527 = vsub.s32 4, %v1526
        %v1528 = vrot.slane %v1199, %v1527
        %v1529 = vlaneseq
        %v1530 = vshrl.u32 %v1529, 7
        %v1531 = vsub.s32 5, %v1530
        %v1532 = vrot.slane %v1199, %v1531
        %v1533 = vlaneseq
        %v1534 = vshrl.u32 %v1533, 7
        %v1535 = vsub.s32 6, %v1534
        %v1536 = vrot.slane %v1199, %v1535
        %v1537 = vlaneseq
        %v1538 = vshrl.u32 %v1537, 7
        %v1539 = vsub.s32 7, %v1538
        %v1540 = vrot.slane %v1199, %v1539
        %v1549 = vsel %vm1500, %v1512, %v1460
        %v1550 = vsel %vm1501, %v1516, %v1461
        %v1551 = vsel %vm1502, %v1520, %v1462
        %v1552 = vsel %vm1503, %v1524, %v1463
        %v1553 = vsel %vm1504, %v1528, %v1464
        %v1554 = vsel %vm1505, %v1532, %v1465
        %v1555 = vsel %vm1506, %v1536, %v1466
        %v1556 = vsel %vm1507, %v1540, %v1467
        %1557 = vst [vmem:[#allocation2 + $0x100] sm:$0xff] %v1549
        %1558 = vst [vmem:[#allocation2 + $0x108] sm:$0xff] %v1550
        %1559 = vst [vmem:[#allocation2 + $0x110] sm:$0xff] %v1551
        %1560 = vst [vmem:[#allocation2 + $0x118] sm:$0xff] %v1552
        %1561 = vst [vmem:[#allocation2 + $0x120] sm:$0xff] %v1553
        %1562 = vst [vmem:[#allocation2 + $0x128] sm:$0xff] %v1554
        %1563 = vst [vmem:[#allocation2 + $0x130] sm:$0xff] %v1555
        %1564 = vst [vmem:[#allocation2 + $0x138] sm:$0xff] %v1556
        %v1565 = vsub.s32 %v1191, 8
        %v1566 = vlaneseq
        %v1567 = vshrl.u32 %v1566, 7
        %v1568 = vsub.s32 0, %v1567
        %v1569 = vrot.slane %v1565, %v1568
        %v1570 = vlaneseq
        %v1571 = vshrl.u32 %v1570, 7
        %v1572 = vsub.s32 1, %v1571
        %v1573 = vrot.slane %v1565, %v1572
        %v1574 = vlaneseq
        %v1575 = vshrl.u32 %v1574, 7
        %v1576 = vsub.s32 2, %v1575
        %v1577 = vrot.slane %v1565, %v1576
        %v1578 = vlaneseq
        %v1579 = vshrl.u32 %v1578, 7
        %v1580 = vsub.s32 3, %v1579
        %v1581 = vrot.slane %v1565, %v1580
        %v1582 = vlaneseq
        %v1583 = vshrl.u32 %v1582, 7
        %v1584 = vsub.s32 4, %v1583
        %v1585 = vrot.slane %v1565, %v1584
        %v1586 = vlaneseq
        %v1587 = vshrl.u32 %v1586, 7
        %v1588 = vsub.s32 5, %v1587
        %v1589 = vrot.slane %v1565, %v1588
        %v1590 = vlaneseq
        %v1591 = vshrl.u32 %v1590, 7
        %v1592 = vsub.s32 6, %v1591
        %v1593 = vrot.slane %v1565, %v1592
        %v1594 = vlaneseq
        %v1595 = vshrl.u32 %v1594, 7
        %v1596 = vsub.s32 7, %v1595
        %v1597 = vrot.slane %v1565, %v1596
        %vm1598 = vcmp.eq.s32.totalorder %v180, %v1569
        %vm1599 = vcmp.eq.s32.totalorder %v180, %v1573
        %vm1600 = vcmp.eq.s32.totalorder %v180, %v1577
        %vm1601 = vcmp.eq.s32.totalorder %v180, %v1581
        %vm1602 = vcmp.eq.s32.totalorder %v180, %v1585
        %vm1603 = vcmp.eq.s32.totalorder %v180, %v1589
        %vm1604 = vcmp.eq.s32.totalorder %v180, %v1593
        %vm1605 = vcmp.eq.s32.totalorder %v180, %v1597
        %v1606 = vsel %vm1598, %v1245, 0.0
        %v1607 = vsel %vm1599, %v1249, 0.0
        %v1608 = vsel %vm1600, %v1253, 0.0
        %v1609 = vsel %vm1601, %v1257, 0.0
        %v1610 = vsel %vm1602, %v1261, 0.0
        %v1611 = vsel %vm1603, %v1265, 0.0
        %v1612 = vsel %vm1604, %v1269, 0.0
        %v1613 = vsel %vm1605, %v1273, 0.0
        %v1614 = vsub.s32 %v1195, 8
        %v1615 = vlaneseq
        %v1616 = vshrl.u32 %v1615, 7
        %v1617 = vsub.s32 0, %v1616
        %v1618 = vrot.slane %v1614, %v1617
        %v1619 = vlaneseq
        %v1620 = vshrl.u32 %v1619, 7
        %v1621 = vsub.s32 1, %v1620
        %v1622 = vrot.slane %v1614, %v1621
        %v1623 = vlaneseq
        %v1624 = vshrl.u32 %v1623, 7
        %v1625 = vsub.s32 2, %v1624
        %v1626 = vrot.slane %v1614, %v1625
        %v1627 = vlaneseq
        %v1628 = vshrl.u32 %v1627, 7
        %v1629 = vsub.s32 3, %v1628
        %v1630 = vrot.slane %v1614, %v1629
        %v1631 = vlaneseq
        %v1632 = vshrl.u32 %v1631, 7
        %v1633 = vsub.s32 4, %v1632
        %v1634 = vrot.slane %v1614, %v1633
        %v1635 = vlaneseq
        %v1636 = vshrl.u32 %v1635, 7
        %v1637 = vsub.s32 5, %v1636
        %v1638 = vrot.slane %v1614, %v1637
        %v1639 = vlaneseq
        %v1640 = vshrl.u32 %v1639, 7
        %v1641 = vsub.s32 6, %v1640
        %v1642 = vrot.slane %v1614, %v1641
        %v1643 = vlaneseq
        %v1644 = vshrl.u32 %v1643, 7
        %v1645 = vsub.s32 7, %v1644
        %v1646 = vrot.slane %v1614, %v1645
        %vm1647 = vcmp.eq.s32.totalorder %v180, %v1618
        %vm1648 = vcmp.eq.s32.totalorder %v180, %v1622
        %vm1649 = vcmp.eq.s32.totalorder %v180, %v1626
        %vm1650 = vcmp.eq.s32.totalorder %v180, %v1630
        %vm1651 = vcmp.eq.s32.totalorder %v180, %v1634
        %vm1652 = vcmp.eq.s32.totalorder %v180, %v1638
        %vm1653 = vcmp.eq.s32.totalorder %v180, %v1642
        %vm1654 = vcmp.eq.s32.totalorder %v180, %v1646
        %v1655 = vsel %vm1647, %v1334, %v1606
        %v1656 = vsel %vm1648, %v1338, %v1607
        %v1657 = vsel %vm1649, %v1342, %v1608
        %v1658 = vsel %vm1650, %v1346, %v1609
        %v1659 = vsel %vm1651, %v1350, %v1610
        %v1660 = vsel %vm1652, %v1354, %v1611
        %v1661 = vsel %vm1653, %v1358, %v1612
        %v1662 = vsel %vm1654, %v1362, %v1613
        %v1663 = vsub.s32 %v1198, 8
        %v1664 = vlaneseq
        %v1665 = vshrl.u32 %v1664, 7
        %v1666 = vsub.s32 0, %v1665
        %v1667 = vrot.slane %v1663, %v1666
        %v1668 = vlaneseq
        %v1669 = vshrl.u32 %v1668, 7
        %v1670 = vsub.s32 1, %v1669
        %v1671 = vrot.slane %v1663, %v1670
        %v1672 = vlaneseq
        %v1673 = vshrl.u32 %v1672, 7
        %v1674 = vsub.s32 2, %v1673
        %v1675 = vrot.slane %v1663, %v1674
        %v1676 = vlaneseq
        %v1677 = vshrl.u32 %v1676, 7
        %v1678 = vsub.s32 3, %v1677
        %v1679 = vrot.slane %v1663, %v1678
        %v1680 = vlaneseq
        %v1681 = vshrl.u32 %v1680, 7
        %v1682 = vsub.s32 4, %v1681
        %v1683 = vrot.slane %v1663, %v1682
        %v1684 = vlaneseq
        %v1685 = vshrl.u32 %v1684, 7
        %v1686 = vsub.s32 5, %v1685
        %v1687 = vrot.slane %v1663, %v1686
        %v1688 = vlaneseq
        %v1689 = vshrl.u32 %v1688, 7
        %v1690 = vsub.s32 6, %v1689
        %v1691 = vrot.slane %v1663, %v1690
        %v1692 = vlaneseq
        %v1693 = vshrl.u32 %v1692, 7
        %v1694 = vsub.s32 7, %v1693
        %v1695 = vrot.slane %v1663, %v1694
        %vm1696 = vcmp.eq.s32.totalorder %v180, %v1667
        %vm1697 = vcmp.eq.s32.totalorder %v180, %v1671
        %vm1698 = vcmp.eq.s32.totalorder %v180, %v1675
        %vm1699 = vcmp.eq.s32.totalorder %v180, %v1679
        %vm1700 = vcmp.eq.s32.totalorder %v180, %v1683
        %vm1701 = vcmp.eq.s32.totalorder %v180, %v1687
        %vm1702 = vcmp.eq.s32.totalorder %v180, %v1691
        %vm1703 = vcmp.eq.s32.totalorder %v180, %v1695
        %v1704 = vsel %vm1696, %v1423, %v1655
        %v1705 = vsel %vm1697, %v1427, %v1656
        %v1706 = vsel %vm1698, %v1431, %v1657
        %v1707 = vsel %vm1699, %v1435, %v1658
        %v1708 = vsel %vm1700, %v1439, %v1659
        %v1709 = vsel %vm1701, %v1443, %v1660
        %v1710 = vsel %vm1702, %v1447, %v1661
        %v1711 = vsel %vm1703, %v1451, %v1662
        %v1712 = vsub.s32 %v1200, 8
        %v1713 = vlaneseq
        %v1714 = vshrl.u32 %v1713, 7
        %v1715 = vsub.s32 0, %v1714
        %v1716 = vrot.slane %v1712, %v1715
        %v1717 = vlaneseq
        %v1718 = vshrl.u32 %v1717, 7
        %v1719 = vsub.s32 1, %v1718
        %v1720 = vrot.slane %v1712, %v1719
        %v1721 = vlaneseq
        %v1722 = vshrl.u32 %v1721, 7
        %v1723 = vsub.s32 2, %v1722
        %v1724 = vrot.slane %v1712, %v1723
        %v1725 = vlaneseq
        %v1726 = vshrl.u32 %v1725, 7
        %v1727 = vsub.s32 3, %v1726
        %v1728 = vrot.slane %v1712, %v1727
        %v1729 = vlaneseq
        %v1730 = vshrl.u32 %v1729, 7
        %v1731 = vsub.s32 4, %v1730
        %v1732 = vrot.slane %v1712, %v1731
        %v1733 = vlaneseq
        %v1734 = vshrl.u32 %v1733, 7
        %v1735 = vsub.s32 5, %v1734
        %v1736 = vrot.slane %v1712, %v1735
        %v1737 = vlaneseq
        %v1738 = vshrl.u32 %v1737, 7
        %v1739 = vsub.s32 6, %v1738
        %v1740 = vrot.slane %v1712, %v1739
        %v1741 = vlaneseq
        %v1742 = vshrl.u32 %v1741, 7
        %v1743 = vsub.s32 7, %v1742
        %v1744 = vrot.slane %v1712, %v1743
        %vm1745 = vcmp.eq.s32.totalorder %v180, %v1716
        %vm1746 = vcmp.eq.s32.totalorder %v180, %v1720
        %vm1747 = vcmp.eq.s32.totalorder %v180, %v1724
        %vm1748 = vcmp.eq.s32.totalorder %v180, %v1728
        %vm1749 = vcmp.eq.s32.totalorder %v180, %v1732
        %vm1750 = vcmp.eq.s32.totalorder %v180, %v1736
        %vm1751 = vcmp.eq.s32.totalorder %v180, %v1740
        %vm1752 = vcmp.eq.s32.totalorder %v180, %v1744
        %v1753 = vsel %vm1745, %v1512, %v1704
        %v1754 = vsel %vm1746, %v1516, %v1705
        %v1755 = vsel %vm1747, %v1520, %v1706
        %v1756 = vsel %vm1748, %v1524, %v1707
        %v1757 = vsel %vm1749, %v1528, %v1708
        %v1758 = vsel %vm1750, %v1532, %v1709
        %v1759 = vsel %vm1751, %v1536, %v1710
        %v1760 = vsel %vm1752, %v1540, %v1711
        %1761 = vst [vmem:[#allocation2 + $0x140] sm:$0xff] %v1753
        %1762 = vst [vmem:[#allocation2 + $0x148] sm:$0xff] %v1754
        %1763 = vst [vmem:[#allocation2 + $0x150] sm:$0xff] %v1755
        %1764 = vst [vmem:[#allocation2 + $0x158] sm:$0xff] %v1756
        %1765 = vst [vmem:[#allocation2 + $0x160] sm:$0xff] %v1757
        %1766 = vst [vmem:[#allocation2 + $0x168] sm:$0xff] %v1758
        %1767 = vst [vmem:[#allocation2 + $0x170] sm:$0xff] %v1759
        %1768 = vst [vmem:[#allocation2 + $0x178] sm:$0xff] %v1760
        %v1769 = vsub.s32 %v1191, 16
        %v1770 = vlaneseq
        %v1771 = vshrl.u32 %v1770, 7
        %v1772 = vsub.s32 0, %v1771
        %v1773 = vrot.slane %v1769, %v1772
        %v1774 = vlaneseq
        %v1775 = vshrl.u32 %v1774, 7
        %v1776 = vsub.s32 1, %v1775
        %v1777 = vrot.slane %v1769, %v1776
        %v1778 = vlaneseq
        %v1779 = vshrl.u32 %v1778, 7
        %v1780 = vsub.s32 2, %v1779
        %v1781 = vrot.slane %v1769, %v1780
        %v1782 = vlaneseq
        %v1783 = vshrl.u32 %v1782, 7
        %v1784 = vsub.s32 3, %v1783
        %v1785 = vrot.slane %v1769, %v1784
        %v1786 = vlaneseq
        %v1787 = vshrl.u32 %v1786, 7
        %v1788 = vsub.s32 4, %v1787
        %v1789 = vrot.slane %v1769, %v1788
        %v1790 = vlaneseq
        %v1791 = vshrl.u32 %v1790, 7
        %v1792 = vsub.s32 5, %v1791
        %v1793 = vrot.slane %v1769, %v1792
        %v1794 = vlaneseq
        %v1795 = vshrl.u32 %v1794, 7
        %v1796 = vsub.s32 6, %v1795
        %v1797 = vrot.slane %v1769, %v1796
        %v1798 = vlaneseq
        %v1799 = vshrl.u32 %v1798, 7
        %v1800 = vsub.s32 7, %v1799
        %v1801 = vrot.slane %v1769, %v1800
        %vm1802 = vcmp.eq.s32.totalorder %v180, %v1773
        %vm1803 = vcmp.eq.s32.totalorder %v180, %v1777
        %vm1804 = vcmp.eq.s32.totalorder %v180, %v1781
        %vm1805 = vcmp.eq.s32.totalorder %v180, %v1785
        %vm1806 = vcmp.eq.s32.totalorder %v180, %v1789
        %vm1807 = vcmp.eq.s32.totalorder %v180, %v1793
        %vm1808 = vcmp.eq.s32.totalorder %v180, %v1797
        %vm1809 = vcmp.eq.s32.totalorder %v180, %v1801
        %v1810 = vsel %vm1802, %v1245, 0.0
        %v1811 = vsel %vm1803, %v1249, 0.0
        %v1812 = vsel %vm1804, %v1253, 0.0
        %v1813 = vsel %vm1805, %v1257, 0.0
        %v1814 = vsel %vm1806, %v1261, 0.0
        %v1815 = vsel %vm1807, %v1265, 0.0
        %v1816 = vsel %vm1808, %v1269, 0.0
        %v1817 = vsel %vm1809, %v1273, 0.0
        %v1818 = vsub.s32 %v1195, 16
        %v1819 = vlaneseq
        %v1820 = vshrl.u32 %v1819, 7
        %v1821 = vsub.s32 0, %v1820
        %v1822 = vrot.slane %v1818, %v1821
        %v1823 = vlaneseq
        %v1824 = vshrl.u32 %v1823, 7
        %v1825 = vsub.s32 1, %v1824
        %v1826 = vrot.slane %v1818, %v1825
        %v1827 = vlaneseq
        %v1828 = vshrl.u32 %v1827, 7
        %v1829 = vsub.s32 2, %v1828
        %v1830 = vrot.slane %v1818, %v1829
        %v1831 = vlaneseq
        %v1832 = vshrl.u32 %v1831, 7
        %v1833 = vsub.s32 3, %v1832
        %v1834 = vrot.slane %v1818, %v1833
        %v1835 = vlaneseq
        %v1836 = vshrl.u32 %v1835, 7
        %v1837 = vsub.s32 4, %v1836
        %v1838 = vrot.slane %v1818, %v1837
        %v1839 = vlaneseq
        %v1840 = vshrl.u32 %v1839, 7
        %v1841 = vsub.s32 5, %v1840
        %v1842 = vrot.slane %v1818, %v1841
        %v1843 = vlaneseq
        %v1844 = vshrl.u32 %v1843, 7
        %v1845 = vsub.s32 6, %v1844
        %v1846 = vrot.slane %v1818, %v1845
        %v1847 = vlaneseq
        %v1848 = vshrl.u32 %v1847, 7
        %v1849 = vsub.s32 7, %v1848
        %v1850 = vrot.slane %v1818, %v1849
        %vm1851 = vcmp.eq.s32.totalorder %v180, %v1822
        %vm1852 = vcmp.eq.s32.totalorder %v180, %v1826
        %vm1853 = vcmp.eq.s32.totalorder %v180, %v1830
        %vm1854 = vcmp.eq.s32.totalorder %v180, %v1834
        %vm1855 = vcmp.eq.s32.totalorder %v180, %v1838
        %vm1856 = vcmp.eq.s32.totalorder %v180, %v1842
        %vm1857 = vcmp.eq.s32.totalorder %v180, %v1846
        %vm1858 = vcmp.eq.s32.totalorder %v180, %v1850
        %v1859 = vsel %vm1851, %v1334, %v1810
        %v1860 = vsel %vm1852, %v1338, %v1811
        %v1861 = vsel %vm1853, %v1342, %v1812
        %v1862 = vsel %vm1854, %v1346, %v1813
        %v1863 = vsel %vm1855, %v1350, %v1814
        %v1864 = vsel %vm1856, %v1354, %v1815
        %v1865 = vsel %vm1857, %v1358, %v1816
        %v1866 = vsel %vm1858, %v1362, %v1817
        %v1867 = vsub.s32 %v1198, 16
        %v1868 = vlaneseq
        %v1869 = vshrl.u32 %v1868, 7
        %v1870 = vsub.s32 0, %v1869
        %v1871 = vrot.slane %v1867, %v1870
        %v1872 = vlaneseq
        %v1873 = vshrl.u32 %v1872, 7
        %v1874 = vsub.s32 1, %v1873
        %v1875 = vrot.slane %v1867, %v1874
        %v1876 = vlaneseq
        %v1877 = vshrl.u32 %v1876, 7
        %v1878 = vsub.s32 2, %v1877
        %v1879 = vrot.slane %v1867, %v1878
        %v1880 = vlaneseq
        %v1881 = vshrl.u32 %v1880, 7
        %v1882 = vsub.s32 3, %v1881
        %v1883 = vrot.slane %v1867, %v1882
        %v1884 = vlaneseq
        %v1885 = vshrl.u32 %v1884, 7
        %v1886 = vsub.s32 4, %v1885
        %v1887 = vrot.slane %v1867, %v1886
        %v1888 = vlaneseq
        %v1889 = vshrl.u32 %v1888, 7
        %v1890 = vsub.s32 5, %v1889
        %v1891 = vrot.slane %v1867, %v1890
        %v1892 = vlaneseq
        %v1893 = vshrl.u32 %v1892, 7
        %v1894 = vsub.s32 6, %v1893
        %v1895 = vrot.slane %v1867, %v1894
        %v1896 = vlaneseq
        %v1897 = vshrl.u32 %v1896, 7
        %v1898 = vsub.s32 7, %v1897
        %v1899 = vrot.slane %v1867, %v1898
        %vm1900 = vcmp.eq.s32.totalorder %v180, %v1871
        %vm1901 = vcmp.eq.s32.totalorder %v180, %v1875
        %vm1902 = vcmp.eq.s32.totalorder %v180, %v1879
        %vm1903 = vcmp.eq.s32.totalorder %v180, %v1883
        %vm1904 = vcmp.eq.s32.totalorder %v180, %v1887
        %vm1905 = vcmp.eq.s32.totalorder %v180, %v1891
        %vm1906 = vcmp.eq.s32.totalorder %v180, %v1895
        %vm1907 = vcmp.eq.s32.totalorder %v180, %v1899
        %v1908 = vsel %vm1900, %v1423, %v1859
        %v1909 = vsel %vm1901, %v1427, %v1860
        %v1910 = vsel %vm1902, %v1431, %v1861
        %v1911 = vsel %vm1903, %v1435, %v1862
        %v1912 = vsel %vm1904, %v1439, %v1863
        %v1913 = vsel %vm1905, %v1443, %v1864
        %v1914 = vsel %vm1906, %v1447, %v1865
        %v1915 = vsel %vm1907, %v1451, %v1866
        %v1916 = vsub.s32 %v1200, 16
        %v1917 = vlaneseq
        %v1918 = vshrl.u32 %v1917, 7
        %v1919 = vsub.s32 0, %v1918
        %v1920 = vrot.slane %v1916, %v1919
        %v1921 = vlaneseq
        %v1922 = vshrl.u32 %v1921, 7
        %v1923 = vsub.s32 1, %v1922
        %v1924 = vrot.slane %v1916, %v1923
        %v1925 = vlaneseq
        %v1926 = vshrl.u32 %v1925, 7
        %v1927 = vsub.s32 2, %v1926
        %v1928 = vrot.slane %v1916, %v1927
        %v1929 = vlaneseq
        %v1930 = vshrl.u32 %v1929, 7
        %v1931 = vsub.s32 3, %v1930
        %v1932 = vrot.slane %v1916, %v1931
        %v1933 = vlaneseq
        %v1934 = vshrl.u32 %v1933, 7
        %v1935 = vsub.s32 4, %v1934
        %v1936 = vrot.slane %v1916, %v1935
        %v1937 = vlaneseq
        %v1938 = vshrl.u32 %v1937, 7
        %v1939 = vsub.s32 5, %v1938
        %v1940 = vrot.slane %v1916, %v1939
        %v1941 = vlaneseq
        %v1942 = vshrl.u32 %v1941, 7
        %v1943 = vsub.s32 6, %v1942
        %v1944 = vrot.slane %v1916, %v1943
        %v1945 = vlaneseq
        %v1946 = vshrl.u32 %v1945, 7
        %v1947 = vsub.s32 7, %v1946
        %v1948 = vrot.slane %v1916, %v1947
        %vm1949 = vcmp.eq.s32.totalorder %v180, %v1920
        %vm1950 = vcmp.eq.s32.totalorder %v180, %v1924
        %vm1951 = vcmp.eq.s32.totalorder %v180, %v1928
        %vm1952 = vcmp.eq.s32.totalorder %v180, %v1932
        %vm1953 = vcmp.eq.s32.totalorder %v180, %v1936
        %vm1954 = vcmp.eq.s32.totalorder %v180, %v1940
        %vm1955 = vcmp.eq.s32.totalorder %v180, %v1944
        %vm1956 = vcmp.eq.s32.totalorder %v180, %v1948
        %v1957 = vsel %vm1949, %v1512, %v1908
        %v1958 = vsel %vm1950, %v1516, %v1909
        %v1959 = vsel %vm1951, %v1520, %v1910
        %v1960 = vsel %vm1952, %v1524, %v1911
        %v1961 = vsel %vm1953, %v1528, %v1912
        %v1962 = vsel %vm1954, %v1532, %v1913
        %v1963 = vsel %vm1955, %v1536, %v1914
        %v1964 = vsel %vm1956, %v1540, %v1915
        %1965 = vst [vmem:[#allocation2 + $0x180] sm:$0xff] %v1957
        %1966 = vst [vmem:[#allocation2 + $0x188] sm:$0xff] %v1958
        %1967 = vst [vmem:[#allocation2 + $0x190] sm:$0xff] %v1959
        %1968 = vst [vmem:[#allocation2 + $0x198] sm:$0xff] %v1960
        %1969 = vst [vmem:[#allocation2 + $0x1a0] sm:$0xff] %v1961
        %1970 = vst [vmem:[#allocation2 + $0x1a8] sm:$0xff] %v1962
        %1971 = vst [vmem:[#allocation2 + $0x1b0] sm:$0xff] %v1963
        %1972 = vst [vmem:[#allocation2 + $0x1b8] sm:$0xff] %v1964
        %v1973 = vsub.s32 %v1191, 24
        %v1974 = vlaneseq
        %v1975 = vshrl.u32 %v1974, 7
        %v1976 = vsub.s32 0, %v1975
        %v1977 = vrot.slane %v1973, %v1976
        %v1978 = vlaneseq
        %v1979 = vshrl.u32 %v1978, 7
        %v1980 = vsub.s32 1, %v1979
        %v1981 = vrot.slane %v1973, %v1980
        %v1982 = vlaneseq
        %v1983 = vshrl.u32 %v1982, 7
        %v1984 = vsub.s32 2, %v1983
        %v1985 = vrot.slane %v1973, %v1984
        %v1986 = vlaneseq
        %v1987 = vshrl.u32 %v1986, 7
        %v1988 = vsub.s32 3, %v1987
        %v1989 = vrot.slane %v1973, %v1988
        %v1990 = vlaneseq
        %v1991 = vshrl.u32 %v1990, 7
        %v1992 = vsub.s32 4, %v1991
        %v1993 = vrot.slane %v1973, %v1992
        %v1994 = vlaneseq
        %v1995 = vshrl.u32 %v1994, 7
        %v1996 = vsub.s32 5, %v1995
        %v1997 = vrot.slane %v1973, %v1996
        %v1998 = vlaneseq
        %v1999 = vshrl.u32 %v1998, 7
        %v2000 = vsub.s32 6, %v1999
        %v2001 = vrot.slane %v1973, %v2000
        %v2002 = vlaneseq
        %v2003 = vshrl.u32 %v2002, 7
        %v2004 = vsub.s32 7, %v2003
        %v2005 = vrot.slane %v1973, %v2004
        %vm2006 = vcmp.eq.s32.totalorder %v180, %v1977
        %vm2007 = vcmp.eq.s32.totalorder %v180, %v1981
        %vm2008 = vcmp.eq.s32.totalorder %v180, %v1985
        %vm2009 = vcmp.eq.s32.totalorder %v180, %v1989
        %vm2010 = vcmp.eq.s32.totalorder %v180, %v1993
        %vm2011 = vcmp.eq.s32.totalorder %v180, %v1997
        %vm2012 = vcmp.eq.s32.totalorder %v180, %v2001
        %vm2013 = vcmp.eq.s32.totalorder %v180, %v2005
        %v2014 = vsel %vm2006, %v1245, 0.0
        %v2015 = vsel %vm2007, %v1249, 0.0
        %v2016 = vsel %vm2008, %v1253, 0.0
        %v2017 = vsel %vm2009, %v1257, 0.0
        %v2018 = vsel %vm2010, %v1261, 0.0
        %v2019 = vsel %vm2011, %v1265, 0.0
        %v2020 = vsel %vm2012, %v1269, 0.0
        %v2021 = vsel %vm2013, %v1273, 0.0
        %v2022 = vsub.s32 %v1195, 24
        %v2023 = vlaneseq
        %v2024 = vshrl.u32 %v2023, 7
        %v2025 = vsub.s32 0, %v2024
        %v2026 = vrot.slane %v2022, %v2025
        %v2027 = vlaneseq
        %v2028 = vshrl.u32 %v2027, 7
        %v2029 = vsub.s32 1, %v2028
        %v2030 = vrot.slane %v2022, %v2029
        %v2031 = vlaneseq
        %v2032 = vshrl.u32 %v2031, 7
        %v2033 = vsub.s32 2, %v2032
        %v2034 = vrot.slane %v2022, %v2033
        %v2035 = vlaneseq
        %v2036 = vshrl.u32 %v2035, 7
        %v2037 = vsub.s32 3, %v2036
        %v2038 = vrot.slane %v2022, %v2037
        %v2039 = vlaneseq
        %v2040 = vshrl.u32 %v2039, 7
        %v2041 = vsub.s32 4, %v2040
        %v2042 = vrot.slane %v2022, %v2041
        %v2043 = vlaneseq
        %v2044 = vshrl.u32 %v2043, 7
        %v2045 = vsub.s32 5, %v2044
        %v2046 = vrot.slane %v2022, %v2045
        %v2047 = vlaneseq
        %v2048 = vshrl.u32 %v2047, 7
        %v2049 = vsub.s32 6, %v2048
        %v2050 = vrot.slane %v2022, %v2049
        %v2051 = vlaneseq
        %v2052 = vshrl.u32 %v2051, 7
        %v2053 = vsub.s32 7, %v2052
        %v2054 = vrot.slane %v2022, %v2053
        %vm2055 = vcmp.eq.s32.totalorder %v180, %v2026
        %vm2056 = vcmp.eq.s32.totalorder %v180, %v2030
        %vm2057 = vcmp.eq.s32.totalorder %v180, %v2034
        %vm2058 = vcmp.eq.s32.totalorder %v180, %v2038
        %vm2059 = vcmp.eq.s32.totalorder %v180, %v2042
        %vm2060 = vcmp.eq.s32.totalorder %v180, %v2046
        %vm2061 = vcmp.eq.s32.totalorder %v180, %v2050
        %vm2062 = vcmp.eq.s32.totalorder %v180, %v2054
        %v2063 = vsel %vm2055, %v1334, %v2014
        %v2064 = vsel %vm2056, %v1338, %v2015
        %v2065 = vsel %vm2057, %v1342, %v2016
        %v2066 = vsel %vm2058, %v1346, %v2017
        %v2067 = vsel %vm2059, %v1350, %v2018
        %v2068 = vsel %vm2060, %v1354, %v2019
        %v2069 = vsel %vm2061, %v1358, %v2020
        %v2070 = vsel %vm2062, %v1362, %v2021
        %v2071 = vsub.s32 %v1198, 24
        %v2072 = vlaneseq
        %v2073 = vshrl.u32 %v2072, 7
        %v2074 = vsub.s32 0, %v2073
        %v2075 = vrot.slane %v2071, %v2074
        %v2076 = vlaneseq
        %v2077 = vshrl.u32 %v2076, 7
        %v2078 = vsub.s32 1, %v2077
        %v2079 = vrot.slane %v2071, %v2078
        %v2080 = vlaneseq
        %v2081 = vshrl.u32 %v2080, 7
        %v2082 = vsub.s32 2, %v2081
        %v2083 = vrot.slane %v2071, %v2082
        %v2084 = vlaneseq
        %v2085 = vshrl.u32 %v2084, 7
        %v2086 = vsub.s32 3, %v2085
        %v2087 = vrot.slane %v2071, %v2086
        %v2088 = vlaneseq
        %v2089 = vshrl.u32 %v2088, 7
        %v2090 = vsub.s32 4, %v2089
        %v2091 = vrot.slane %v2071, %v2090
        %v2092 = vlaneseq
        %v2093 = vshrl.u32 %v2092, 7
        %v2094 = vsub.s32 5, %v2093
        %v2095 = vrot.slane %v2071, %v2094
        %v2096 = vlaneseq
        %v2097 = vshrl.u32 %v2096, 7
        %v2098 = vsub.s32 6, %v2097
        %v2099 = vrot.slane %v2071, %v2098
        %v2100 = vlaneseq
        %v2101 = vshrl.u32 %v2100, 7
        %v2102 = vsub.s32 7, %v2101
        %v2103 = vrot.slane %v2071, %v2102
        %vm2104 = vcmp.eq.s32.totalorder %v180, %v2075
        %vm2105 = vcmp.eq.s32.totalorder %v180, %v2079
        %vm2106 = vcmp.eq.s32.totalorder %v180, %v2083
        %vm2107 = vcmp.eq.s32.totalorder %v180, %v2087
        %vm2108 = vcmp.eq.s32.totalorder %v180, %v2091
        %vm2109 = vcmp.eq.s32.totalorder %v180, %v2095
        %vm2110 = vcmp.eq.s32.totalorder %v180, %v2099
        %vm2111 = vcmp.eq.s32.totalorder %v180, %v2103
        %v2112 = vsel %vm2104, %v1423, %v2063
        %v2113 = vsel %vm2105, %v1427, %v2064
        %v2114 = vsel %vm2106, %v1431, %v2065
        %v2115 = vsel %vm2107, %v1435, %v2066
        %v2116 = vsel %vm2108, %v1439, %v2067
        %v2117 = vsel %vm2109, %v1443, %v2068
        %v2118 = vsel %vm2110, %v1447, %v2069
        %v2119 = vsel %vm2111, %v1451, %v2070
        %v2120 = vsub.s32 %v1200, 24
        %v2121 = vlaneseq
        %v2122 = vshrl.u32 %v2121, 7
        %v2123 = vsub.s32 0, %v2122
        %v2124 = vrot.slane %v2120, %v2123
        %v2125 = vlaneseq
        %v2126 = vshrl.u32 %v2125, 7
        %v2127 = vsub.s32 1, %v2126
        %v2128 = vrot.slane %v2120, %v2127
        %v2129 = vlaneseq
        %v2130 = vshrl.u32 %v2129, 7
        %v2131 = vsub.s32 2, %v2130
        %v2132 = vrot.slane %v2120, %v2131
        %v2133 = vlaneseq
        %v2134 = vshrl.u32 %v2133, 7
        %v2135 = vsub.s32 3, %v2134
        %v2136 = vrot.slane %v2120, %v2135
        %v2137 = vlaneseq
        %v2138 = vshrl.u32 %v2137, 7
        %v2139 = vsub.s32 4, %v2138
        %v2140 = vrot.slane %v2120, %v2139
        %v2141 = vlaneseq
        %v2142 = vshrl.u32 %v2141, 7
        %v2143 = vsub.s32 5, %v2142
        %v2144 = vrot.slane %v2120, %v2143
        %v2145 = vlaneseq
        %v2146 = vshrl.u32 %v2145, 7
        %v2147 = vsub.s32 6, %v2146
        %v2148 = vrot.slane %v2120, %v2147
        %v2149 = vlaneseq
        %v2150 = vshrl.u32 %v2149, 7
        %v2151 = vsub.s32 7, %v2150
        %v2152 = vrot.slane %v2120, %v2151
        %vm2153 = vcmp.eq.s32.totalorder %v180, %v2124
        %vm2154 = vcmp.eq.s32.totalorder %v180, %v2128
        %vm2155 = vcmp.eq.s32.totalorder %v180, %v2132
        %vm2156 = vcmp.eq.s32.totalorder %v180, %v2136
        %vm2157 = vcmp.eq.s32.totalorder %v180, %v2140
        %vm2158 = vcmp.eq.s32.totalorder %v180, %v2144
        %vm2159 = vcmp.eq.s32.totalorder %v180, %v2148
        %vm2160 = vcmp.eq.s32.totalorder %v180, %v2152
        %v2161 = vsel %vm2153, %v1512, %v2112
        %v2162 = vsel %vm2154, %v1516, %v2113
        %v2163 = vsel %vm2155, %v1520, %v2114
        %v2164 = vsel %vm2156, %v1524, %v2115
        %v2165 = vsel %vm2157, %v1528, %v2116
        %v2166 = vsel %vm2158, %v1532, %v2117
        %v2167 = vsel %vm2159, %v1536, %v2118
        %v2168 = vsel %vm2160, %v1540, %v2119
        %2169 = vst [vmem:[#allocation2 + $0x1c0] sm:$0xff] %v2161
        %2170 = vst [vmem:[#allocation2 + $0x1c8] sm:$0xff] %v2162
        %2171 = vst [vmem:[#allocation2 + $0x1d0] sm:$0xff] %v2163
        %2172 = vst [vmem:[#allocation2 + $0x1d8] sm:$0xff] %v2164
        %2173 = vst [vmem:[#allocation2 + $0x1e0] sm:$0xff] %v2165
        %2174 = vst [vmem:[#allocation2 + $0x1e8] sm:$0xff] %v2166
        %2175 = vst [vmem:[#allocation2 + $0x1f0] sm:$0xff] %v2167
        %2176 = vst [vmem:[#allocation2 + $0x1f8] sm:$0xff] %v2168
        %v2177 = vsub.s32 %v1191, 32
        %v2178 = vlaneseq
        %v2179 = vshrl.u32 %v2178, 7
        %v2180 = vsub.s32 0, %v2179
        %v2181 = vrot.slane %v2177, %v2180
        %v2182 = vlaneseq
        %v2183 = vshrl.u32 %v2182, 7
        %v2184 = vsub.s32 1, %v2183
        %v2185 = vrot.slane %v2177, %v2184
        %v2186 = vlaneseq
        %v2187 = vshrl.u32 %v2186, 7
        %v2188 = vsub.s32 2, %v2187
        %v2189 = vrot.slane %v2177, %v2188
        %v2190 = vlaneseq
        %v2191 = vshrl.u32 %v2190, 7
        %v2192 = vsub.s32 3, %v2191
        %v2193 = vrot.slane %v2177, %v2192
        %v2194 = vlaneseq
        %v2195 = vshrl.u32 %v2194, 7
        %v2196 = vsub.s32 4, %v2195
        %v2197 = vrot.slane %v2177, %v2196
        %v2198 = vlaneseq
        %v2199 = vshrl.u32 %v2198, 7
        %v2200 = vsub.s32 5, %v2199
        %v2201 = vrot.slane %v2177, %v2200
        %v2202 = vlaneseq
        %v2203 = vshrl.u32 %v2202, 7
        %v2204 = vsub.s32 6, %v2203
        %v2205 = vrot.slane %v2177, %v2204
        %v2206 = vlaneseq
        %v2207 = vshrl.u32 %v2206, 7
        %v2208 = vsub.s32 7, %v2207
        %v2209 = vrot.slane %v2177, %v2208
        %vm2210 = vcmp.eq.s32.totalorder %v180, %v2181
        %vm2211 = vcmp.eq.s32.totalorder %v180, %v2185
        %vm2212 = vcmp.eq.s32.totalorder %v180, %v2189
        %vm2213 = vcmp.eq.s32.totalorder %v180, %v2193
        %vm2214 = vcmp.eq.s32.totalorder %v180, %v2197
        %vm2215 = vcmp.eq.s32.totalorder %v180, %v2201
        %vm2216 = vcmp.eq.s32.totalorder %v180, %v2205
        %vm2217 = vcmp.eq.s32.totalorder %v180, %v2209
        %v2218 = vsel %vm2210, %v1245, 0.0
        %v2219 = vsel %vm2211, %v1249, 0.0
        %v2220 = vsel %vm2212, %v1253, 0.0
        %v2221 = vsel %vm2213, %v1257, 0.0
        %v2222 = vsel %vm2214, %v1261, 0.0
        %v2223 = vsel %vm2215, %v1265, 0.0
        %v2224 = vsel %vm2216, %v1269, 0.0
        %v2225 = vsel %vm2217, %v1273, 0.0
        %v2226 = vsub.s32 %v1195, 32
        %v2227 = vlaneseq
        %v2228 = vshrl.u32 %v2227, 7
        %v2229 = vsub.s32 0, %v2228
        %v2230 = vrot.slane %v2226, %v2229
        %v2231 = vlaneseq
        %v2232 = vshrl.u32 %v2231, 7
        %v2233 = vsub.s32 1, %v2232
        %v2234 = vrot.slane %v2226, %v2233
        %v2235 = vlaneseq
        %v2236 = vshrl.u32 %v2235, 7
        %v2237 = vsub.s32 2, %v2236
        %v2238 = vrot.slane %v2226, %v2237
        %v2239 = vlaneseq
        %v2240 = vshrl.u32 %v2239, 7
        %v2241 = vsub.s32 3, %v2240
        %v2242 = vrot.slane %v2226, %v2241
        %v2243 = vlaneseq
        %v2244 = vshrl.u32 %v2243, 7
        %v2245 = vsub.s32 4, %v2244
        %v2246 = vrot.slane %v2226, %v2245
        %v2247 = vlaneseq
        %v2248 = vshrl.u32 %v2247, 7
        %v2249 = vsub.s32 5, %v2248
        %v2250 = vrot.slane %v2226, %v2249
        %v2251 = vlaneseq
        %v2252 = vshrl.u32 %v2251, 7
        %v2253 = vsub.s32 6, %v2252
        %v2254 = vrot.slane %v2226, %v2253
        %v2255 = vlaneseq
        %v2256 = vshrl.u32 %v2255, 7
        %v2257 = vsub.s32 7, %v2256
        %v2258 = vrot.slane %v2226, %v2257
        %vm2259 = vcmp.eq.s32.totalorder %v180, %v2230
        %vm2260 = vcmp.eq.s32.totalorder %v180, %v2234
        %vm2261 = vcmp.eq.s32.totalorder %v180, %v2238
        %vm2262 = vcmp.eq.s32.totalorder %v180, %v2242
        %vm2263 = vcmp.eq.s32.totalorder %v180, %v2246
        %vm2264 = vcmp.eq.s32.totalorder %v180, %v2250
        %vm2265 = vcmp.eq.s32.totalorder %v180, %v2254
        %vm2266 = vcmp.eq.s32.totalorder %v180, %v2258
        %v2267 = vsel %vm2259, %v1334, %v2218
        %v2268 = vsel %vm2260, %v1338, %v2219
        %v2269 = vsel %vm2261, %v1342, %v2220
        %v2270 = vsel %vm2262, %v1346, %v2221
        %v2271 = vsel %vm2263, %v1350, %v2222
        %v2272 = vsel %vm2264, %v1354, %v2223
        %v2273 = vsel %vm2265, %v1358, %v2224
        %v2274 = vsel %vm2266, %v1362, %v2225
        %v2275 = vsub.s32 %v1198, 32
        %v2276 = vlaneseq
        %v2277 = vshrl.u32 %v2276, 7
        %v2278 = vsub.s32 0, %v2277
        %v2279 = vrot.slane %v2275, %v2278
        %v2280 = vlaneseq
        %v2281 = vshrl.u32 %v2280, 7
        %v2282 = vsub.s32 1, %v2281
        %v2283 = vrot.slane %v2275, %v2282
        %v2284 = vlaneseq
        %v2285 = vshrl.u32 %v2284, 7
        %v2286 = vsub.s32 2, %v2285
        %v2287 = vrot.slane %v2275, %v2286
        %v2288 = vlaneseq
        %v2289 = vshrl.u32 %v2288, 7
        %v2290 = vsub.s32 3, %v2289
        %v2291 = vrot.slane %v2275, %v2290
        %v2292 = vlaneseq
        %v2293 = vshrl.u32 %v2292, 7
        %v2294 = vsub.s32 4, %v2293
        %v2295 = vrot.slane %v2275, %v2294
        %v2296 = vlaneseq
        %v2297 = vshrl.u32 %v2296, 7
        %v2298 = vsub.s32 5, %v2297
        %v2299 = vrot.slane %v2275, %v2298
        %v2300 = vlaneseq
        %v2301 = vshrl.u32 %v2300, 7
        %v2302 = vsub.s32 6, %v2301
        %v2303 = vrot.slane %v2275, %v2302
        %v2304 = vlaneseq
        %v2305 = vshrl.u32 %v2304, 7
        %v2306 = vsub.s32 7, %v2305
        %v2307 = vrot.slane %v2275, %v2306
        %vm2308 = vcmp.eq.s32.totalorder %v180, %v2279
        %vm2309 = vcmp.eq.s32.totalorder %v180, %v2283
        %vm2310 = vcmp.eq.s32.totalorder %v180, %v2287
        %vm2311 = vcmp.eq.s32.totalorder %v180, %v2291
        %vm2312 = vcmp.eq.s32.totalorder %v180, %v2295
        %vm2313 = vcmp.eq.s32.totalorder %v180, %v2299
        %vm2314 = vcmp.eq.s32.totalorder %v180, %v2303
        %vm2315 = vcmp.eq.s32.totalorder %v180, %v2307
        %v2316 = vsel %vm2308, %v1423, %v2267
        %v2317 = vsel %vm2309, %v1427, %v2268
        %v2318 = vsel %vm2310, %v1431, %v2269
        %v2319 = vsel %vm2311, %v1435, %v2270
        %v2320 = vsel %vm2312, %v1439, %v2271
        %v2321 = vsel %vm2313, %v1443, %v2272
        %v2322 = vsel %vm2314, %v1447, %v2273
        %v2323 = vsel %vm2315, %v1451, %v2274
        %v2324 = vsub.s32 %v1200, 32
        %v2325 = vlaneseq
        %v2326 = vshrl.u32 %v2325, 7
        %v2327 = vsub.s32 0, %v2326
        %v2328 = vrot.slane %v2324, %v2327
        %v2329 = vlaneseq
        %v2330 = vshrl.u32 %v2329, 7
        %v2331 = vsub.s32 1, %v2330
        %v2332 = vrot.slane %v2324, %v2331
        %v2333 = vlaneseq
        %v2334 = vshrl.u32 %v2333, 7
        %v2335 = vsub.s32 2, %v2334
        %v2336 = vrot.slane %v2324, %v2335
        %v2337 = vlaneseq
        %v2338 = vshrl.u32 %v2337, 7
        %v2339 = vsub.s32 3, %v2338
        %v2340 = vrot.slane %v2324, %v2339
        %v2341 = vlaneseq
        %v2342 = vshrl.u32 %v2341, 7
        %v2343 = vsub.s32 4, %v2342
        %v2344 = vrot.slane %v2324, %v2343
        %v2345 = vlaneseq
        %v2346 = vshrl.u32 %v2345, 7
        %v2347 = vsub.s32 5, %v2346
        %v2348 = vrot.slane %v2324, %v2347
        %v2349 = vlaneseq
        %v2350 = vshrl.u32 %v2349, 7
        %v2351 = vsub.s32 6, %v2350
        %v2352 = vrot.slane %v2324, %v2351
        %v2353 = vlaneseq
        %v2354 = vshrl.u32 %v2353, 7
        %v2355 = vsub.s32 7, %v2354
        %v2356 = vrot.slane %v2324, %v2355
        %vm2357 = vcmp.eq.s32.totalorder %v180, %v2328
        %vm2358 = vcmp.eq.s32.totalorder %v180, %v2332
        %vm2359 = vcmp.eq.s32.totalorder %v180, %v2336
        %vm2360 = vcmp.eq.s32.totalorder %v180, %v2340
        %vm2361 = vcmp.eq.s32.totalorder %v180, %v2344
        %vm2362 = vcmp.eq.s32.totalorder %v180, %v2348
        %vm2363 = vcmp.eq.s32.totalorder %v180, %v2352
        %vm2364 = vcmp.eq.s32.totalorder %v180, %v2356
        %v2365 = vsel %vm2357, %v1512, %v2316
        %v2366 = vsel %vm2358, %v1516, %v2317
        %v2367 = vsel %vm2359, %v1520, %v2318
        %v2368 = vsel %vm2360, %v1524, %v2319
        %v2369 = vsel %vm2361, %v1528, %v2320
        %v2370 = vsel %vm2362, %v1532, %v2321
        %v2371 = vsel %vm2363, %v1536, %v2322
        %v2372 = vsel %vm2364, %v1540, %v2323
        %2373 = vst [vmem:[#allocation2 + $0x200] sm:$0xff] %v2365
        %2374 = vst [vmem:[#allocation2 + $0x208] sm:$0xff] %v2366
        %2375 = vst [vmem:[#allocation2 + $0x210] sm:$0xff] %v2367
        %2376 = vst [vmem:[#allocation2 + $0x218] sm:$0xff] %v2368
        %2377 = vst [vmem:[#allocation2 + $0x220] sm:$0xff] %v2369
        %2378 = vst [vmem:[#allocation2 + $0x228] sm:$0xff] %v2370
        %2379 = vst [vmem:[#allocation2 + $0x230] sm:$0xff] %v2371
        %2380 = vst [vmem:[#allocation2 + $0x238] sm:$0xff] %v2372
        %v2381 = vsub.s32 %v1191, 40
        %v2382 = vlaneseq
        %v2383 = vshrl.u32 %v2382, 7
        %v2384 = vsub.s32 0, %v2383
        %v2385 = vrot.slane %v2381, %v2384
        %v2386 = vlaneseq
        %v2387 = vshrl.u32 %v2386, 7
        %v2388 = vsub.s32 1, %v2387
        %v2389 = vrot.slane %v2381, %v2388
        %v2390 = vlaneseq
        %v2391 = vshrl.u32 %v2390, 7
        %v2392 = vsub.s32 2, %v2391
        %v2393 = vrot.slane %v2381, %v2392
        %v2394 = vlaneseq
        %v2395 = vshrl.u32 %v2394, 7
        %v2396 = vsub.s32 3, %v2395
        %v2397 = vrot.slane %v2381, %v2396
        %v2398 = vlaneseq
        %v2399 = vshrl.u32 %v2398, 7
        %v2400 = vsub.s32 4, %v2399
        %v2401 = vrot.slane %v2381, %v2400
        %v2402 = vlaneseq
        %v2403 = vshrl.u32 %v2402, 7
        %v2404 = vsub.s32 5, %v2403
        %v2405 = vrot.slane %v2381, %v2404
        %v2406 = vlaneseq
        %v2407 = vshrl.u32 %v2406, 7
        %v2408 = vsub.s32 6, %v2407
        %v2409 = vrot.slane %v2381, %v2408
        %v2410 = vlaneseq
        %v2411 = vshrl.u32 %v2410, 7
        %v2412 = vsub.s32 7, %v2411
        %v2413 = vrot.slane %v2381, %v2412
        %vm2414 = vcmp.eq.s32.totalorder %v180, %v2385
        %vm2415 = vcmp.eq.s32.totalorder %v180, %v2389
        %vm2416 = vcmp.eq.s32.totalorder %v180, %v2393
        %vm2417 = vcmp.eq.s32.totalorder %v180, %v2397
        %vm2418 = vcmp.eq.s32.totalorder %v180, %v2401
        %vm2419 = vcmp.eq.s32.totalorder %v180, %v2405
        %vm2420 = vcmp.eq.s32.totalorder %v180, %v2409
        %vm2421 = vcmp.eq.s32.totalorder %v180, %v2413
        %v2422 = vsel %vm2414, %v1245, 0.0
        %v2423 = vsel %vm2415, %v1249, 0.0
        %v2424 = vsel %vm2416, %v1253, 0.0
        %v2425 = vsel %vm2417, %v1257, 0.0
        %v2426 = vsel %vm2418, %v1261, 0.0
        %v2427 = vsel %vm2419, %v1265, 0.0
        %v2428 = vsel %vm2420, %v1269, 0.0
        %v2429 = vsel %vm2421, %v1273, 0.0
        %v2430 = vsub.s32 %v1195, 40
        %v2431 = vlaneseq
        %v2432 = vshrl.u32 %v2431, 7
        %v2433 = vsub.s32 0, %v2432
        %v2434 = vrot.slane %v2430, %v2433
        %v2435 = vlaneseq
        %v2436 = vshrl.u32 %v2435, 7
        %v2437 = vsub.s32 1, %v2436
        %v2438 = vrot.slane %v2430, %v2437
        %v2439 = vlaneseq
        %v2440 = vshrl.u32 %v2439, 7
        %v2441 = vsub.s32 2, %v2440
        %v2442 = vrot.slane %v2430, %v2441
        %v2443 = vlaneseq
        %v2444 = vshrl.u32 %v2443, 7
        %v2445 = vsub.s32 3, %v2444
        %v2446 = vrot.slane %v2430, %v2445
        %v2447 = vlaneseq
        %v2448 = vshrl.u32 %v2447, 7
        %v2449 = vsub.s32 4, %v2448
        %v2450 = vrot.slane %v2430, %v2449
        %v2451 = vlaneseq
        %v2452 = vshrl.u32 %v2451, 7
        %v2453 = vsub.s32 5, %v2452
        %v2454 = vrot.slane %v2430, %v2453
        %v2455 = vlaneseq
        %v2456 = vshrl.u32 %v2455, 7
        %v2457 = vsub.s32 6, %v2456
        %v2458 = vrot.slane %v2430, %v2457
        %v2459 = vlaneseq
        %v2460 = vshrl.u32 %v2459, 7
        %v2461 = vsub.s32 7, %v2460
        %v2462 = vrot.slane %v2430, %v2461
        %vm2463 = vcmp.eq.s32.totalorder %v180, %v2434
        %vm2464 = vcmp.eq.s32.totalorder %v180, %v2438
        %vm2465 = vcmp.eq.s32.totalorder %v180, %v2442
        %vm2466 = vcmp.eq.s32.totalorder %v180, %v2446
        %vm2467 = vcmp.eq.s32.totalorder %v180, %v2450
        %vm2468 = vcmp.eq.s32.totalorder %v180, %v2454
        %vm2469 = vcmp.eq.s32.totalorder %v180, %v2458
        %vm2470 = vcmp.eq.s32.totalorder %v180, %v2462
        %v2471 = vsel %vm2463, %v1334, %v2422
        %v2472 = vsel %vm2464, %v1338, %v2423
        %v2473 = vsel %vm2465, %v1342, %v2424
        %v2474 = vsel %vm2466, %v1346, %v2425
        %v2475 = vsel %vm2467, %v1350, %v2426
        %v2476 = vsel %vm2468, %v1354, %v2427
        %v2477 = vsel %vm2469, %v1358, %v2428
        %v2478 = vsel %vm2470, %v1362, %v2429
        %v2479 = vsub.s32 %v1198, 40
        %v2480 = vlaneseq
        %v2481 = vshrl.u32 %v2480, 7
        %v2482 = vsub.s32 0, %v2481
        %v2483 = vrot.slane %v2479, %v2482
        %v2484 = vlaneseq
        %v2485 = vshrl.u32 %v2484, 7
        %v2486 = vsub.s32 1, %v2485
        %v2487 = vrot.slane %v2479, %v2486
        %v2488 = vlaneseq
        %v2489 = vshrl.u32 %v2488, 7
        %v2490 = vsub.s32 2, %v2489
        %v2491 = vrot.slane %v2479, %v2490
        %v2492 = vlaneseq
        %v2493 = vshrl.u32 %v2492, 7
        %v2494 = vsub.s32 3, %v2493
        %v2495 = vrot.slane %v2479, %v2494
        %v2496 = vlaneseq
        %v2497 = vshrl.u32 %v2496, 7
        %v2498 = vsub.s32 4, %v2497
        %v2499 = vrot.slane %v2479, %v2498
        %v2500 = vlaneseq
        %v2501 = vshrl.u32 %v2500, 7
        %v2502 = vsub.s32 5, %v2501
        %v2503 = vrot.slane %v2479, %v2502
        %v2504 = vlaneseq
        %v2505 = vshrl.u32 %v2504, 7
        %v2506 = vsub.s32 6, %v2505
        %v2507 = vrot.slane %v2479, %v2506
        %v2508 = vlaneseq
        %v2509 = vshrl.u32 %v2508, 7
        %v2510 = vsub.s32 7, %v2509
        %v2511 = vrot.slane %v2479, %v2510
        %vm2512 = vcmp.eq.s32.totalorder %v180, %v2483
        %vm2513 = vcmp.eq.s32.totalorder %v180, %v2487
        %vm2514 = vcmp.eq.s32.totalorder %v180, %v2491
        %vm2515 = vcmp.eq.s32.totalorder %v180, %v2495
        %vm2516 = vcmp.eq.s32.totalorder %v180, %v2499
        %vm2517 = vcmp.eq.s32.totalorder %v180, %v2503
        %vm2518 = vcmp.eq.s32.totalorder %v180, %v2507
        %vm2519 = vcmp.eq.s32.totalorder %v180, %v2511
        %v2520 = vsel %vm2512, %v1423, %v2471
        %v2521 = vsel %vm2513, %v1427, %v2472
        %v2522 = vsel %vm2514, %v1431, %v2473
        %v2523 = vsel %vm2515, %v1435, %v2474
        %v2524 = vsel %vm2516, %v1439, %v2475
        %v2525 = vsel %vm2517, %v1443, %v2476
        %v2526 = vsel %vm2518, %v1447, %v2477
        %v2527 = vsel %vm2519, %v1451, %v2478
        %v2528 = vsub.s32 %v1200, 40
        %v2529 = vlaneseq
        %v2530 = vshrl.u32 %v2529, 7
        %v2531 = vsub.s32 0, %v2530
        %v2532 = vrot.slane %v2528, %v2531
        %v2533 = vlaneseq
        %v2534 = vshrl.u32 %v2533, 7
        %v2535 = vsub.s32 1, %v2534
        %v2536 = vrot.slane %v2528, %v2535
        %v2537 = vlaneseq
        %v2538 = vshrl.u32 %v2537, 7
        %v2539 = vsub.s32 2, %v2538
        %v2540 = vrot.slane %v2528, %v2539
        %v2541 = vlaneseq
        %v2542 = vshrl.u32 %v2541, 7
        %v2543 = vsub.s32 3, %v2542
        %v2544 = vrot.slane %v2528, %v2543
        %v2545 = vlaneseq
        %v2546 = vshrl.u32 %v2545, 7
        %v2547 = vsub.s32 4, %v2546
        %v2548 = vrot.slane %v2528, %v2547
        %v2549 = vlaneseq
        %v2550 = vshrl.u32 %v2549, 7
        %v2551 = vsub.s32 5, %v2550
        %v2552 = vrot.slane %v2528, %v2551
        %v2553 = vlaneseq
        %v2554 = vshrl.u32 %v2553, 7
        %v2555 = vsub.s32 6, %v2554
        %v2556 = vrot.slane %v2528, %v2555
        %v2557 = vlaneseq
        %v2558 = vshrl.u32 %v2557, 7
        %v2559 = vsub.s32 7, %v2558
        %v2560 = vrot.slane %v2528, %v2559
        %vm2561 = vcmp.eq.s32.totalorder %v180, %v2532
        %vm2562 = vcmp.eq.s32.totalorder %v180, %v2536
        %vm2563 = vcmp.eq.s32.totalorder %v180, %v2540
        %vm2564 = vcmp.eq.s32.totalorder %v180, %v2544
        %vm2565 = vcmp.eq.s32.totalorder %v180, %v2548
        %vm2566 = vcmp.eq.s32.totalorder %v180, %v2552
        %vm2567 = vcmp.eq.s32.totalorder %v180, %v2556
        %vm2568 = vcmp.eq.s32.totalorder %v180, %v2560
        %v2569 = vsel %vm2561, %v1512, %v2520
        %v2570 = vsel %vm2562, %v1516, %v2521
        %v2571 = vsel %vm2563, %v1520, %v2522
        %v2572 = vsel %vm2564, %v1524, %v2523
        %v2573 = vsel %vm2565, %v1528, %v2524
        %v2574 = vsel %vm2566, %v1532, %v2525
        %v2575 = vsel %vm2567, %v1536, %v2526
        %v2576 = vsel %vm2568, %v1540, %v2527
        %2577 = vst [vmem:[#allocation2 + $0x240] sm:$0xff] %v2569
        %2578 = vst [vmem:[#allocation2 + $0x248] sm:$0xff] %v2570
        %2579 = vst [vmem:[#allocation2 + $0x250] sm:$0xff] %v2571
        %2580 = vst [vmem:[#allocation2 + $0x258] sm:$0xff] %v2572
        %2581 = vst [vmem:[#allocation2 + $0x260] sm:$0xff] %v2573
        %2582 = vst [vmem:[#allocation2 + $0x268] sm:$0xff] %v2574
        %2583 = vst [vmem:[#allocation2 + $0x270] sm:$0xff] %v2575
        %2584 = vst [vmem:[#allocation2 + $0x278] sm:$0xff] %v2576
        %v2585 = vsub.s32 %v1191, 48
        %v2586 = vlaneseq
        %v2587 = vshrl.u32 %v2586, 7
        %v2588 = vsub.s32 0, %v2587
        %v2589 = vrot.slane %v2585, %v2588
        %v2590 = vlaneseq
        %v2591 = vshrl.u32 %v2590, 7
        %v2592 = vsub.s32 1, %v2591
        %v2593 = vrot.slane %v2585, %v2592
        %v2594 = vlaneseq
        %v2595 = vshrl.u32 %v2594, 7
        %v2596 = vsub.s32 2, %v2595
        %v2597 = vrot.slane %v2585, %v2596
        %v2598 = vlaneseq
        %v2599 = vshrl.u32 %v2598, 7
        %v2600 = vsub.s32 3, %v2599
        %v2601 = vrot.slane %v2585, %v2600
        %v2602 = vlaneseq
        %v2603 = vshrl.u32 %v2602, 7
        %v2604 = vsub.s32 4, %v2603
        %v2605 = vrot.slane %v2585, %v2604
        %v2606 = vlaneseq
        %v2607 = vshrl.u32 %v2606, 7
        %v2608 = vsub.s32 5, %v2607
        %v2609 = vrot.slane %v2585, %v2608
        %v2610 = vlaneseq
        %v2611 = vshrl.u32 %v2610, 7
        %v2612 = vsub.s32 6, %v2611
        %v2613 = vrot.slane %v2585, %v2612
        %v2614 = vlaneseq
        %v2615 = vshrl.u32 %v2614, 7
        %v2616 = vsub.s32 7, %v2615
        %v2617 = vrot.slane %v2585, %v2616
        %vm2618 = vcmp.eq.s32.totalorder %v180, %v2589
        %vm2619 = vcmp.eq.s32.totalorder %v180, %v2593
        %vm2620 = vcmp.eq.s32.totalorder %v180, %v2597
        %vm2621 = vcmp.eq.s32.totalorder %v180, %v2601
        %vm2622 = vcmp.eq.s32.totalorder %v180, %v2605
        %vm2623 = vcmp.eq.s32.totalorder %v180, %v2609
        %vm2624 = vcmp.eq.s32.totalorder %v180, %v2613
        %vm2625 = vcmp.eq.s32.totalorder %v180, %v2617
        %v2626 = vsel %vm2618, %v1245, 0.0
        %v2627 = vsel %vm2619, %v1249, 0.0
        %v2628 = vsel %vm2620, %v1253, 0.0
        %v2629 = vsel %vm2621, %v1257, 0.0
        %v2630 = vsel %vm2622, %v1261, 0.0
        %v2631 = vsel %vm2623, %v1265, 0.0
        %v2632 = vsel %vm2624, %v1269, 0.0
        %v2633 = vsel %vm2625, %v1273, 0.0
        %v2634 = vsub.s32 %v1195, 48
        %v2635 = vlaneseq
        %v2636 = vshrl.u32 %v2635, 7
        %v2637 = vsub.s32 0, %v2636
        %v2638 = vrot.slane %v2634, %v2637
        %v2639 = vlaneseq
        %v2640 = vshrl.u32 %v2639, 7
        %v2641 = vsub.s32 1, %v2640
        %v2642 = vrot.slane %v2634, %v2641
        %v2643 = vlaneseq
        %v2644 = vshrl.u32 %v2643, 7
        %v2645 = vsub.s32 2, %v2644
        %v2646 = vrot.slane %v2634, %v2645
        %v2647 = vlaneseq
        %v2648 = vshrl.u32 %v2647, 7
        %v2649 = vsub.s32 3, %v2648
        %v2650 = vrot.slane %v2634, %v2649
        %v2651 = vlaneseq
        %v2652 = vshrl.u32 %v2651, 7
        %v2653 = vsub.s32 4, %v2652
        %v2654 = vrot.slane %v2634, %v2653
        %v2655 = vlaneseq
        %v2656 = vshrl.u32 %v2655, 7
        %v2657 = vsub.s32 5, %v2656
        %v2658 = vrot.slane %v2634, %v2657
        %v2659 = vlaneseq
        %v2660 = vshrl.u32 %v2659, 7
        %v2661 = vsub.s32 6, %v2660
        %v2662 = vrot.slane %v2634, %v2661
        %v2663 = vlaneseq
        %v2664 = vshrl.u32 %v2663, 7
        %v2665 = vsub.s32 7, %v2664
        %v2666 = vrot.slane %v2634, %v2665
        %vm2667 = vcmp.eq.s32.totalorder %v180, %v2638
        %vm2668 = vcmp.eq.s32.totalorder %v180, %v2642
        %vm2669 = vcmp.eq.s32.totalorder %v180, %v2646
        %vm2670 = vcmp.eq.s32.totalorder %v180, %v2650
        %vm2671 = vcmp.eq.s32.totalorder %v180, %v2654
        %vm2672 = vcmp.eq.s32.totalorder %v180, %v2658
        %vm2673 = vcmp.eq.s32.totalorder %v180, %v2662
        %vm2674 = vcmp.eq.s32.totalorder %v180, %v2666
        %v2675 = vsel %vm2667, %v1334, %v2626
        %v2676 = vsel %vm2668, %v1338, %v2627
        %v2677 = vsel %vm2669, %v1342, %v2628
        %v2678 = vsel %vm2670, %v1346, %v2629
        %v2679 = vsel %vm2671, %v1350, %v2630
        %v2680 = vsel %vm2672, %v1354, %v2631
        %v2681 = vsel %vm2673, %v1358, %v2632
        %v2682 = vsel %vm2674, %v1362, %v2633
        %v2683 = vsub.s32 %v1198, 48
        %v2684 = vlaneseq
        %v2685 = vshrl.u32 %v2684, 7
        %v2686 = vsub.s32 0, %v2685
        %v2687 = vrot.slane %v2683, %v2686
        %v2688 = vlaneseq
        %v2689 = vshrl.u32 %v2688, 7
        %v2690 = vsub.s32 1, %v2689
        %v2691 = vrot.slane %v2683, %v2690
        %v2692 = vlaneseq
        %v2693 = vshrl.u32 %v2692, 7
        %v2694 = vsub.s32 2, %v2693
        %v2695 = vrot.slane %v2683, %v2694
        %v2696 = vlaneseq
        %v2697 = vshrl.u32 %v2696, 7
        %v2698 = vsub.s32 3, %v2697
        %v2699 = vrot.slane %v2683, %v2698
        %v2700 = vlaneseq
        %v2701 = vshrl.u32 %v2700, 7
        %v2702 = vsub.s32 4, %v2701
        %v2703 = vrot.slane %v2683, %v2702
        %v2704 = vlaneseq
        %v2705 = vshrl.u32 %v2704, 7
        %v2706 = vsub.s32 5, %v2705
        %v2707 = vrot.slane %v2683, %v2706
        %v2708 = vlaneseq
        %v2709 = vshrl.u32 %v2708, 7
        %v2710 = vsub.s32 6, %v2709
        %v2711 = vrot.slane %v2683, %v2710
        %v2712 = vlaneseq
        %v2713 = vshrl.u32 %v2712, 7
        %v2714 = vsub.s32 7, %v2713
        %v2715 = vrot.slane %v2683, %v2714
        %vm2716 = vcmp.eq.s32.totalorder %v180, %v2687
        %vm2717 = vcmp.eq.s32.totalorder %v180, %v2691
        %vm2718 = vcmp.eq.s32.totalorder %v180, %v2695
        %vm2719 = vcmp.eq.s32.totalorder %v180, %v2699
        %vm2720 = vcmp.eq.s32.totalorder %v180, %v2703
        %vm2721 = vcmp.eq.s32.totalorder %v180, %v2707
        %vm2722 = vcmp.eq.s32.totalorder %v180, %v2711
        %vm2723 = vcmp.eq.s32.totalorder %v180, %v2715
        %v2724 = vsel %vm2716, %v1423, %v2675
        %v2725 = vsel %vm2717, %v1427, %v2676
        %v2726 = vsel %vm2718, %v1431, %v2677
        %v2727 = vsel %vm2719, %v1435, %v2678
        %v2728 = vsel %vm2720, %v1439, %v2679
        %v2729 = vsel %vm2721, %v1443, %v2680
        %v2730 = vsel %vm2722, %v1447, %v2681
        %v2731 = vsel %vm2723, %v1451, %v2682
        %v2732 = vsub.s32 %v1200, 48
        %v2733 = vlaneseq
        %v2734 = vshrl.u32 %v2733, 7
        %v2735 = vsub.s32 0, %v2734
        %v2736 = vrot.slane %v2732, %v2735
        %v2737 = vlaneseq
        %v2738 = vshrl.u32 %v2737, 7
        %v2739 = vsub.s32 1, %v2738
        %v2740 = vrot.slane %v2732, %v2739
        %v2741 = vlaneseq
        %v2742 = vshrl.u32 %v2741, 7
        %v2743 = vsub.s32 2, %v2742
        %v2744 = vrot.slane %v2732, %v2743
        %v2745 = vlaneseq
        %v2746 = vshrl.u32 %v2745, 7
        %v2747 = vsub.s32 3, %v2746
        %v2748 = vrot.slane %v2732, %v2747
        %v2749 = vlaneseq
        %v2750 = vshrl.u32 %v2749, 7
        %v2751 = vsub.s32 4, %v2750
        %v2752 = vrot.slane %v2732, %v2751
        %v2753 = vlaneseq
        %v2754 = vshrl.u32 %v2753, 7
        %v2755 = vsub.s32 5, %v2754
        %v2756 = vrot.slane %v2732, %v2755
        %v2757 = vlaneseq
        %v2758 = vshrl.u32 %v2757, 7
        %v2759 = vsub.s32 6, %v2758
        %v2760 = vrot.slane %v2732, %v2759
        %v2761 = vlaneseq
        %v2762 = vshrl.u32 %v2761, 7
        %v2763 = vsub.s32 7, %v2762
        %v2764 = vrot.slane %v2732, %v2763
        %vm2765 = vcmp.eq.s32.totalorder %v180, %v2736
        %vm2766 = vcmp.eq.s32.totalorder %v180, %v2740
        %vm2767 = vcmp.eq.s32.totalorder %v180, %v2744
        %vm2768 = vcmp.eq.s32.totalorder %v180, %v2748
        %vm2769 = vcmp.eq.s32.totalorder %v180, %v2752
        %vm2770 = vcmp.eq.s32.totalorder %v180, %v2756
        %vm2771 = vcmp.eq.s32.totalorder %v180, %v2760
        %vm2772 = vcmp.eq.s32.totalorder %v180, %v2764
        %v2773 = vsel %vm2765, %v1512, %v2724
        %v2774 = vsel %vm2766, %v1516, %v2725
        %v2775 = vsel %vm2767, %v1520, %v2726
        %v2776 = vsel %vm2768, %v1524, %v2727
        %v2777 = vsel %vm2769, %v1528, %v2728
        %v2778 = vsel %vm2770, %v1532, %v2729
        %v2779 = vsel %vm2771, %v1536, %v2730
        %v2780 = vsel %vm2772, %v1540, %v2731
        %2781 = vst [vmem:[#allocation2 + $0x280] sm:$0xff] %v2773
        %2782 = vst [vmem:[#allocation2 + $0x288] sm:$0xff] %v2774
        %2783 = vst [vmem:[#allocation2 + $0x290] sm:$0xff] %v2775
        %2784 = vst [vmem:[#allocation2 + $0x298] sm:$0xff] %v2776
        %2785 = vst [vmem:[#allocation2 + $0x2a0] sm:$0xff] %v2777
        %2786 = vst [vmem:[#allocation2 + $0x2a8] sm:$0xff] %v2778
        %2787 = vst [vmem:[#allocation2 + $0x2b0] sm:$0xff] %v2779
        %2788 = vst [vmem:[#allocation2 + $0x2b8] sm:$0xff] %v2780
        %v2789 = vsub.s32 %v1191, 56
        %v2790 = vlaneseq
        %v2791 = vshrl.u32 %v2790, 7
        %v2792 = vsub.s32 0, %v2791
        %v2793 = vrot.slane %v2789, %v2792
        %v2794 = vlaneseq
        %v2795 = vshrl.u32 %v2794, 7
        %v2796 = vsub.s32 1, %v2795
        %v2797 = vrot.slane %v2789, %v2796
        %v2798 = vlaneseq
        %v2799 = vshrl.u32 %v2798, 7
        %v2800 = vsub.s32 2, %v2799
        %v2801 = vrot.slane %v2789, %v2800
        %v2802 = vlaneseq
        %v2803 = vshrl.u32 %v2802, 7
        %v2804 = vsub.s32 3, %v2803
        %v2805 = vrot.slane %v2789, %v2804
        %v2806 = vlaneseq
        %v2807 = vshrl.u32 %v2806, 7
        %v2808 = vsub.s32 4, %v2807
        %v2809 = vrot.slane %v2789, %v2808
        %v2810 = vlaneseq
        %v2811 = vshrl.u32 %v2810, 7
        %v2812 = vsub.s32 5, %v2811
        %v2813 = vrot.slane %v2789, %v2812
        %v2814 = vlaneseq
        %v2815 = vshrl.u32 %v2814, 7
        %v2816 = vsub.s32 6, %v2815
        %v2817 = vrot.slane %v2789, %v2816
        %v2818 = vlaneseq
        %v2819 = vshrl.u32 %v2818, 7
        %v2820 = vsub.s32 7, %v2819
        %v2821 = vrot.slane %v2789, %v2820
        %vm2822 = vcmp.eq.s32.totalorder %v180, %v2793
        %vm2823 = vcmp.eq.s32.totalorder %v180, %v2797
        %vm2824 = vcmp.eq.s32.totalorder %v180, %v2801
        %vm2825 = vcmp.eq.s32.totalorder %v180, %v2805
        %vm2826 = vcmp.eq.s32.totalorder %v180, %v2809
        %vm2827 = vcmp.eq.s32.totalorder %v180, %v2813
        %vm2828 = vcmp.eq.s32.totalorder %v180, %v2817
        %vm2829 = vcmp.eq.s32.totalorder %v180, %v2821
        %v2830 = vsel %vm2822, %v1245, 0.0
        %v2831 = vsel %vm2823, %v1249, 0.0
        %v2832 = vsel %vm2824, %v1253, 0.0
        %v2833 = vsel %vm2825, %v1257, 0.0
        %v2834 = vsel %vm2826, %v1261, 0.0
        %v2835 = vsel %vm2827, %v1265, 0.0
        %v2836 = vsel %vm2828, %v1269, 0.0
        %v2837 = vsel %vm2829, %v1273, 0.0
        %v2838 = vsub.s32 %v1195, 56
        %v2839 = vlaneseq
        %v2840 = vshrl.u32 %v2839, 7
        %v2841 = vsub.s32 0, %v2840
        %v2842 = vrot.slane %v2838, %v2841
        %v2843 = vlaneseq
        %v2844 = vshrl.u32 %v2843, 7
        %v2845 = vsub.s32 1, %v2844
        %v2846 = vrot.slane %v2838, %v2845
        %v2847 = vlaneseq
        %v2848 = vshrl.u32 %v2847, 7
        %v2849 = vsub.s32 2, %v2848
        %v2850 = vrot.slane %v2838, %v2849
        %v2851 = vlaneseq
        %v2852 = vshrl.u32 %v2851, 7
        %v2853 = vsub.s32 3, %v2852
        %v2854 = vrot.slane %v2838, %v2853
        %v2855 = vlaneseq
        %v2856 = vshrl.u32 %v2855, 7
        %v2857 = vsub.s32 4, %v2856
        %v2858 = vrot.slane %v2838, %v2857
        %v2859 = vlaneseq
        %v2860 = vshrl.u32 %v2859, 7
        %v2861 = vsub.s32 5, %v2860
        %v2862 = vrot.slane %v2838, %v2861
        %v2863 = vlaneseq
        %v2864 = vshrl.u32 %v2863, 7
        %v2865 = vsub.s32 6, %v2864
        %v2866 = vrot.slane %v2838, %v2865
        %v2867 = vlaneseq
        %v2868 = vshrl.u32 %v2867, 7
        %v2869 = vsub.s32 7, %v2868
        %v2870 = vrot.slane %v2838, %v2869
        %vm2871 = vcmp.eq.s32.totalorder %v180, %v2842
        %vm2872 = vcmp.eq.s32.totalorder %v180, %v2846
        %vm2873 = vcmp.eq.s32.totalorder %v180, %v2850
        %vm2874 = vcmp.eq.s32.totalorder %v180, %v2854
        %vm2875 = vcmp.eq.s32.totalorder %v180, %v2858
        %vm2876 = vcmp.eq.s32.totalorder %v180, %v2862
        %vm2877 = vcmp.eq.s32.totalorder %v180, %v2866
        %vm2878 = vcmp.eq.s32.totalorder %v180, %v2870
        %v2879 = vsel %vm2871, %v1334, %v2830
        %v2880 = vsel %vm2872, %v1338, %v2831
        %v2881 = vsel %vm2873, %v1342, %v2832
        %v2882 = vsel %vm2874, %v1346, %v2833
        %v2883 = vsel %vm2875, %v1350, %v2834
        %v2884 = vsel %vm2876, %v1354, %v2835
        %v2885 = vsel %vm2877, %v1358, %v2836
        %v2886 = vsel %vm2878, %v1362, %v2837
        %v2887 = vsub.s32 %v1198, 56
        %v2888 = vlaneseq
        %v2889 = vshrl.u32 %v2888, 7
        %v2890 = vsub.s32 0, %v2889
        %v2891 = vrot.slane %v2887, %v2890
        %v2892 = vlaneseq
        %v2893 = vshrl.u32 %v2892, 7
        %v2894 = vsub.s32 1, %v2893
        %v2895 = vrot.slane %v2887, %v2894
        %v2896 = vlaneseq
        %v2897 = vshrl.u32 %v2896, 7
        %v2898 = vsub.s32 2, %v2897
        %v2899 = vrot.slane %v2887, %v2898
        %v2900 = vlaneseq
        %v2901 = vshrl.u32 %v2900, 7
        %v2902 = vsub.s32 3, %v2901
        %v2903 = vrot.slane %v2887, %v2902
        %v2904 = vlaneseq
        %v2905 = vshrl.u32 %v2904, 7
        %v2906 = vsub.s32 4, %v2905
        %v2907 = vrot.slane %v2887, %v2906
        %v2908 = vlaneseq
        %v2909 = vshrl.u32 %v2908, 7
        %v2910 = vsub.s32 5, %v2909
        %v2911 = vrot.slane %v2887, %v2910
        %v2912 = vlaneseq
        %v2913 = vshrl.u32 %v2912, 7
        %v2914 = vsub.s32 6, %v2913
        %v2915 = vrot.slane %v2887, %v2914
        %v2916 = vlaneseq
        %v2917 = vshrl.u32 %v2916, 7
        %v2918 = vsub.s32 7, %v2917
        %v2919 = vrot.slane %v2887, %v2918
        %vm2920 = vcmp.eq.s32.totalorder %v180, %v2891
        %vm2921 = vcmp.eq.s32.totalorder %v180, %v2895
        %vm2922 = vcmp.eq.s32.totalorder %v180, %v2899
        %vm2923 = vcmp.eq.s32.totalorder %v180, %v2903
        %vm2924 = vcmp.eq.s32.totalorder %v180, %v2907
        %vm2925 = vcmp.eq.s32.totalorder %v180, %v2911
        %vm2926 = vcmp.eq.s32.totalorder %v180, %v2915
        %vm2927 = vcmp.eq.s32.totalorder %v180, %v2919
        %v2928 = vsel %vm2920, %v1423, %v2879
        %v2929 = vsel %vm2921, %v1427, %v2880
        %v2930 = vsel %vm2922, %v1431, %v2881
        %v2931 = vsel %vm2923, %v1435, %v2882
        %v2932 = vsel %vm2924, %v1439, %v2883
        %v2933 = vsel %vm2925, %v1443, %v2884
        %v2934 = vsel %vm2926, %v1447, %v2885
        %v2935 = vsel %vm2927, %v1451, %v2886
        %v2936 = vsub.s32 %v1200, 56
        %v2937 = vlaneseq
        %v2938 = vshrl.u32 %v2937, 7
        %v2939 = vsub.s32 0, %v2938
        %v2940 = vrot.slane %v2936, %v2939
        %v2941 = vlaneseq
        %v2942 = vshrl.u32 %v2941, 7
        %v2943 = vsub.s32 1, %v2942
        %v2944 = vrot.slane %v2936, %v2943
        %v2945 = vlaneseq
        %v2946 = vshrl.u32 %v2945, 7
        %v2947 = vsub.s32 2, %v2946
        %v2948 = vrot.slane %v2936, %v2947
        %v2949 = vlaneseq
        %v2950 = vshrl.u32 %v2949, 7
        %v2951 = vsub.s32 3, %v2950
        %v2952 = vrot.slane %v2936, %v2951
        %v2953 = vlaneseq
        %v2954 = vshrl.u32 %v2953, 7
        %v2955 = vsub.s32 4, %v2954
        %v2956 = vrot.slane %v2936, %v2955
        %v2957 = vlaneseq
        %v2958 = vshrl.u32 %v2957, 7
        %v2959 = vsub.s32 5, %v2958
        %v2960 = vrot.slane %v2936, %v2959
        %v2961 = vlaneseq
        %v2962 = vshrl.u32 %v2961, 7
        %v2963 = vsub.s32 6, %v2962
        %v2964 = vrot.slane %v2936, %v2963
        %v2965 = vlaneseq
        %v2966 = vshrl.u32 %v2965, 7
        %v2967 = vsub.s32 7, %v2966
        %v2968 = vrot.slane %v2936, %v2967
        %vm2969 = vcmp.eq.s32.totalorder %v180, %v2940
        %vm2970 = vcmp.eq.s32.totalorder %v180, %v2944
        %vm2971 = vcmp.eq.s32.totalorder %v180, %v2948
        %vm2972 = vcmp.eq.s32.totalorder %v180, %v2952
        %vm2973 = vcmp.eq.s32.totalorder %v180, %v2956
        %vm2974 = vcmp.eq.s32.totalorder %v180, %v2960
        %vm2975 = vcmp.eq.s32.totalorder %v180, %v2964
        %vm2976 = vcmp.eq.s32.totalorder %v180, %v2968
        %v2977 = vsel %vm2969, %v1512, %v2928
        %v2978 = vsel %vm2970, %v1516, %v2929
        %v2979 = vsel %vm2971, %v1520, %v2930
        %v2980 = vsel %vm2972, %v1524, %v2931
        %v2981 = vsel %vm2973, %v1528, %v2932
        %v2982 = vsel %vm2974, %v1532, %v2933
        %v2983 = vsel %vm2975, %v1536, %v2934
        %v2984 = vsel %vm2976, %v1540, %v2935
        %2985 = vst [vmem:[#allocation2 + $0x2c0] sm:$0xff] %v2977
        %2986 = vst [vmem:[#allocation2 + $0x2c8] sm:$0xff] %v2978
        %2987 = vst [vmem:[#allocation2 + $0x2d0] sm:$0xff] %v2979
        %2988 = vst [vmem:[#allocation2 + $0x2d8] sm:$0xff] %v2980
        %2989 = vst [vmem:[#allocation2 + $0x2e0] sm:$0xff] %v2981
        %2990 = vst [vmem:[#allocation2 + $0x2e8] sm:$0xff] %v2982
        %2991 = vst [vmem:[#allocation2 + $0x2f0] sm:$0xff] %v2983
        %2992 = vst [vmem:[#allocation2 + $0x2f8] sm:$0xff] %v2984
        %v2993 = vmul.f32 %v176, 10.0
        %v2994 = vfloor.f32 %v2993
        %v2995 = vsub.f32 %v2993, %v2994
        %v2996 = vcvt.f32.s32.to.zero.pseudo %v2994
        %v2997 = vsub.f32 1.0, %v2995
        %v2998 = vmul.f32 %v178, 10.0
        %v2999 = vfloor.f32 %v2998
        %v3000 = vsub.f32 %v2998, %v2999
        %v3001 = vcvt.f32.s32.to.zero.pseudo %v2999
        %v3002 = vsub.f32 1.0, %v3000
        %v3003 = vmul.f32 %v2997, %v3002
        %v3004 = vmul.u32 %v3001, 19349663
        %v3005 = vxor.u32 %v2996, %v3004
        %v3006 = vand.u32 %v3005, 63
        %v3007 = vmul.f32 %v2997, %v3000
        %v3008 = vadd.s32 %v3001, 1
        %v3009 = vmul.u32 %v3008, 19349663
        %v3010 = vxor.u32 %v2996, %v3009
        %v3011 = vand.u32 %v3010, 63
        %v3012 = vmul.f32 %v2995, %v3002
        %v3013 = vadd.s32 %v2996, 1
        %v3014 = vxor.u32 %v3013, %v3004
        %v3015 = vand.u32 %v3014, 63
        %v3016 = vmul.f32 %v2995, %v3000
        %v3017 = vxor.u32 %v3013, %v3009
        %v3018 = vand.u32 %v3017, 63
        %v3019 = vlaneseq
        %v3020 = vshrl.u32 %v3019, 7
        %v3021 = vsub.s32 0, %v3020
        %v3022 = vrot.slane %v3006, %v3021
        %v3023 = vlaneseq
        %v3024 = vshrl.u32 %v3023, 7
        %v3025 = vsub.s32 1, %v3024
        %v3026 = vrot.slane %v3006, %v3025
        %v3027 = vlaneseq
        %v3028 = vshrl.u32 %v3027, 7
        %v3029 = vsub.s32 2, %v3028
        %v3030 = vrot.slane %v3006, %v3029
        %v3031 = vlaneseq
        %v3032 = vshrl.u32 %v3031, 7
        %v3033 = vsub.s32 3, %v3032
        %v3034 = vrot.slane %v3006, %v3033
        %v3035 = vlaneseq
        %v3036 = vshrl.u32 %v3035, 7
        %v3037 = vsub.s32 4, %v3036
        %v3038 = vrot.slane %v3006, %v3037
        %v3039 = vlaneseq
        %v3040 = vshrl.u32 %v3039, 7
        %v3041 = vsub.s32 5, %v3040
        %v3042 = vrot.slane %v3006, %v3041
        %v3043 = vlaneseq
        %v3044 = vshrl.u32 %v3043, 7
        %v3045 = vsub.s32 6, %v3044
        %v3046 = vrot.slane %v3006, %v3045
        %v3047 = vlaneseq
        %v3048 = vshrl.u32 %v3047, 7
        %v3049 = vsub.s32 7, %v3048
        %v3050 = vrot.slane %v3006, %v3049
        %vm3051 = vcmp.eq.s32.totalorder %v180, %v3022
        %vm3052 = vcmp.eq.s32.totalorder %v180, %v3026
        %vm3053 = vcmp.eq.s32.totalorder %v180, %v3030
        %vm3054 = vcmp.eq.s32.totalorder %v180, %v3034
        %vm3055 = vcmp.eq.s32.totalorder %v180, %v3038
        %vm3056 = vcmp.eq.s32.totalorder %v180, %v3042
        %vm3057 = vcmp.eq.s32.totalorder %v180, %v3046
        %vm3058 = vcmp.eq.s32.totalorder %v180, %v3050
        %v3060 = vlaneseq
        %v3061 = vshrl.u32 %v3060, 7
        %v3062 = vsub.s32 0, %v3061
        %v3063 = vrot.slane %v3003, %v3062
        %v3064 = vlaneseq
        %v3065 = vshrl.u32 %v3064, 7
        %v3066 = vsub.s32 1, %v3065
        %v3067 = vrot.slane %v3003, %v3066
        %v3068 = vlaneseq
        %v3069 = vshrl.u32 %v3068, 7
        %v3070 = vsub.s32 2, %v3069
        %v3071 = vrot.slane %v3003, %v3070
        %v3072 = vlaneseq
        %v3073 = vshrl.u32 %v3072, 7
        %v3074 = vsub.s32 3, %v3073
        %v3075 = vrot.slane %v3003, %v3074
        %v3076 = vlaneseq
        %v3077 = vshrl.u32 %v3076, 7
        %v3078 = vsub.s32 4, %v3077
        %v3079 = vrot.slane %v3003, %v3078
        %v3080 = vlaneseq
        %v3081 = vshrl.u32 %v3080, 7
        %v3082 = vsub.s32 5, %v3081
        %v3083 = vrot.slane %v3003, %v3082
        %v3084 = vlaneseq
        %v3085 = vshrl.u32 %v3084, 7
        %v3086 = vsub.s32 6, %v3085
        %v3087 = vrot.slane %v3003, %v3086
        %v3088 = vlaneseq
        %v3089 = vshrl.u32 %v3088, 7
        %v3090 = vsub.s32 7, %v3089
        %v3091 = vrot.slane %v3003, %v3090
        %v3100 = vsel %vm3051, %v3063, 0.0
        %v3101 = vsel %vm3052, %v3067, 0.0
        %v3102 = vsel %vm3053, %v3071, 0.0
        %v3103 = vsel %vm3054, %v3075, 0.0
        %v3104 = vsel %vm3055, %v3079, 0.0
        %v3105 = vsel %vm3056, %v3083, 0.0
        %v3106 = vsel %vm3057, %v3087, 0.0
        %v3107 = vsel %vm3058, %v3091, 0.0
        %v3108 = vlaneseq
        %v3109 = vshrl.u32 %v3108, 7
        %v3110 = vsub.s32 0, %v3109
        %v3111 = vrot.slane %v3011, %v3110
        %v3112 = vlaneseq
        %v3113 = vshrl.u32 %v3112, 7
        %v3114 = vsub.s32 1, %v3113
        %v3115 = vrot.slane %v3011, %v3114
        %v3116 = vlaneseq
        %v3117 = vshrl.u32 %v3116, 7
        %v3118 = vsub.s32 2, %v3117
        %v3119 = vrot.slane %v3011, %v3118
        %v3120 = vlaneseq
        %v3121 = vshrl.u32 %v3120, 7
        %v3122 = vsub.s32 3, %v3121
        %v3123 = vrot.slane %v3011, %v3122
        %v3124 = vlaneseq
        %v3125 = vshrl.u32 %v3124, 7
        %v3126 = vsub.s32 4, %v3125
        %v3127 = vrot.slane %v3011, %v3126
        %v3128 = vlaneseq
        %v3129 = vshrl.u32 %v3128, 7
        %v3130 = vsub.s32 5, %v3129
        %v3131 = vrot.slane %v3011, %v3130
        %v3132 = vlaneseq
        %v3133 = vshrl.u32 %v3132, 7
        %v3134 = vsub.s32 6, %v3133
        %v3135 = vrot.slane %v3011, %v3134
        %v3136 = vlaneseq
        %v3137 = vshrl.u32 %v3136, 7
        %v3138 = vsub.s32 7, %v3137
        %v3139 = vrot.slane %v3011, %v3138
        %vm3140 = vcmp.eq.s32.totalorder %v180, %v3111
        %vm3141 = vcmp.eq.s32.totalorder %v180, %v3115
        %vm3142 = vcmp.eq.s32.totalorder %v180, %v3119
        %vm3143 = vcmp.eq.s32.totalorder %v180, %v3123
        %vm3144 = vcmp.eq.s32.totalorder %v180, %v3127
        %vm3145 = vcmp.eq.s32.totalorder %v180, %v3131
        %vm3146 = vcmp.eq.s32.totalorder %v180, %v3135
        %vm3147 = vcmp.eq.s32.totalorder %v180, %v3139
        %v3149 = vlaneseq
        %v3150 = vshrl.u32 %v3149, 7
        %v3151 = vsub.s32 0, %v3150
        %v3152 = vrot.slane %v3007, %v3151
        %v3153 = vlaneseq
        %v3154 = vshrl.u32 %v3153, 7
        %v3155 = vsub.s32 1, %v3154
        %v3156 = vrot.slane %v3007, %v3155
        %v3157 = vlaneseq
        %v3158 = vshrl.u32 %v3157, 7
        %v3159 = vsub.s32 2, %v3158
        %v3160 = vrot.slane %v3007, %v3159
        %v3161 = vlaneseq
        %v3162 = vshrl.u32 %v3161, 7
        %v3163 = vsub.s32 3, %v3162
        %v3164 = vrot.slane %v3007, %v3163
        %v3165 = vlaneseq
        %v3166 = vshrl.u32 %v3165, 7
        %v3167 = vsub.s32 4, %v3166
        %v3168 = vrot.slane %v3007, %v3167
        %v3169 = vlaneseq
        %v3170 = vshrl.u32 %v3169, 7
        %v3171 = vsub.s32 5, %v3170
        %v3172 = vrot.slane %v3007, %v3171
        %v3173 = vlaneseq
        %v3174 = vshrl.u32 %v3173, 7
        %v3175 = vsub.s32 6, %v3174
        %v3176 = vrot.slane %v3007, %v3175
        %v3177 = vlaneseq
        %v3178 = vshrl.u32 %v3177, 7
        %v3179 = vsub.s32 7, %v3178
        %v3180 = vrot.slane %v3007, %v3179
        %v3189 = vsel %vm3140, %v3152, 0.0
        %v3190 = vsel %vm3141, %v3156, 0.0
        %v3191 = vsel %vm3142, %v3160, 0.0
        %v3192 = vsel %vm3143, %v3164, 0.0
        %v3193 = vsel %vm3144, %v3168, 0.0
        %v3194 = vsel %vm3145, %v3172, 0.0
        %v3195 = vsel %vm3146, %v3176, 0.0
        %v3196 = vsel %vm3147, %v3180, 0.0
        %v3197 = vadd.f32 %v3100, %v3189
        %v3198 = vadd.f32 %v3101, %v3190
        %v3199 = vadd.f32 %v3102, %v3191
        %v3200 = vadd.f32 %v3103, %v3192
        %v3201 = vadd.f32 %v3104, %v3193
        %v3202 = vadd.f32 %v3105, %v3194
        %v3203 = vadd.f32 %v3106, %v3195
        %v3204 = vadd.f32 %v3107, %v3196
        %v3205 = vlaneseq
        %v3206 = vshrl.u32 %v3205, 7
        %v3207 = vsub.s32 0, %v3206
        %v3208 = vrot.slane %v3015, %v3207
        %v3209 = vlaneseq
        %v3210 = vshrl.u32 %v3209, 7
        %v3211 = vsub.s32 1, %v3210
        %v3212 = vrot.slane %v3015, %v3211
        %v3213 = vlaneseq
        %v3214 = vshrl.u32 %v3213, 7
        %v3215 = vsub.s32 2, %v3214
        %v3216 = vrot.slane %v3015, %v3215
        %v3217 = vlaneseq
        %v3218 = vshrl.u32 %v3217, 7
        %v3219 = vsub.s32 3, %v3218
        %v3220 = vrot.slane %v3015, %v3219
        %v3221 = vlaneseq
        %v3222 = vshrl.u32 %v3221, 7
        %v3223 = vsub.s32 4, %v3222
        %v3224 = vrot.slane %v3015, %v3223
        %v3225 = vlaneseq
        %v3226 = vshrl.u32 %v3225, 7
        %v3227 = vsub.s32 5, %v3226
        %v3228 = vrot.slane %v3015, %v3227
        %v3229 = vlaneseq
        %v3230 = vshrl.u32 %v3229, 7
        %v3231 = vsub.s32 6, %v3230
        %v3232 = vrot.slane %v3015, %v3231
        %v3233 = vlaneseq
        %v3234 = vshrl.u32 %v3233, 7
        %v3235 = vsub.s32 7, %v3234
        %v3236 = vrot.slane %v3015, %v3235
        %vm3237 = vcmp.eq.s32.totalorder %v180, %v3208
        %vm3238 = vcmp.eq.s32.totalorder %v180, %v3212
        %vm3239 = vcmp.eq.s32.totalorder %v180, %v3216
        %vm3240 = vcmp.eq.s32.totalorder %v180, %v3220
        %vm3241 = vcmp.eq.s32.totalorder %v180, %v3224
        %vm3242 = vcmp.eq.s32.totalorder %v180, %v3228
        %vm3243 = vcmp.eq.s32.totalorder %v180, %v3232
        %vm3244 = vcmp.eq.s32.totalorder %v180, %v3236
        %v3246 = vlaneseq
        %v3247 = vshrl.u32 %v3246, 7
        %v3248 = vsub.s32 0, %v3247
        %v3249 = vrot.slane %v3012, %v3248
        %v3250 = vlaneseq
        %v3251 = vshrl.u32 %v3250, 7
        %v3252 = vsub.s32 1, %v3251
        %v3253 = vrot.slane %v3012, %v3252
        %v3254 = vlaneseq
        %v3255 = vshrl.u32 %v3254, 7
        %v3256 = vsub.s32 2, %v3255
        %v3257 = vrot.slane %v3012, %v3256
        %v3258 = vlaneseq
        %v3259 = vshrl.u32 %v3258, 7
        %v3260 = vsub.s32 3, %v3259
        %v3261 = vrot.slane %v3012, %v3260
        %v3262 = vlaneseq
        %v3263 = vshrl.u32 %v3262, 7
        %v3264 = vsub.s32 4, %v3263
        %v3265 = vrot.slane %v3012, %v3264
        %v3266 = vlaneseq
        %v3267 = vshrl.u32 %v3266, 7
        %v3268 = vsub.s32 5, %v3267
        %v3269 = vrot.slane %v3012, %v3268
        %v3270 = vlaneseq
        %v3271 = vshrl.u32 %v3270, 7
        %v3272 = vsub.s32 6, %v3271
        %v3273 = vrot.slane %v3012, %v3272
        %v3274 = vlaneseq
        %v3275 = vshrl.u32 %v3274, 7
        %v3276 = vsub.s32 7, %v3275
        %v3277 = vrot.slane %v3012, %v3276
        %v3286 = vsel %vm3237, %v3249, 0.0
        %v3287 = vsel %vm3238, %v3253, 0.0
        %v3288 = vsel %vm3239, %v3257, 0.0
        %v3289 = vsel %vm3240, %v3261, 0.0
        %v3290 = vsel %vm3241, %v3265, 0.0
        %v3291 = vsel %vm3242, %v3269, 0.0
        %v3292 = vsel %vm3243, %v3273, 0.0
        %v3293 = vsel %vm3244, %v3277, 0.0
        %v3294 = vadd.f32 %v3197, %v3286
        %v3295 = vadd.f32 %v3198, %v3287
        %v3296 = vadd.f32 %v3199, %v3288
        %v3297 = vadd.f32 %v3200, %v3289
        %v3298 = vadd.f32 %v3201, %v3290
        %v3299 = vadd.f32 %v3202, %v3291
        %v3300 = vadd.f32 %v3203, %v3292
        %v3301 = vadd.f32 %v3204, %v3293
        %v3302 = vlaneseq
        %v3303 = vshrl.u32 %v3302, 7
        %v3304 = vsub.s32 0, %v3303
        %v3305 = vrot.slane %v3018, %v3304
        %v3306 = vlaneseq
        %v3307 = vshrl.u32 %v3306, 7
        %v3308 = vsub.s32 1, %v3307
        %v3309 = vrot.slane %v3018, %v3308
        %v3310 = vlaneseq
        %v3311 = vshrl.u32 %v3310, 7
        %v3312 = vsub.s32 2, %v3311
        %v3313 = vrot.slane %v3018, %v3312
        %v3314 = vlaneseq
        %v3315 = vshrl.u32 %v3314, 7
        %v3316 = vsub.s32 3, %v3315
        %v3317 = vrot.slane %v3018, %v3316
        %v3318 = vlaneseq
        %v3319 = vshrl.u32 %v3318, 7
        %v3320 = vsub.s32 4, %v3319
        %v3321 = vrot.slane %v3018, %v3320
        %v3322 = vlaneseq
        %v3323 = vshrl.u32 %v3322, 7
        %v3324 = vsub.s32 5, %v3323
        %v3325 = vrot.slane %v3018, %v3324
        %v3326 = vlaneseq
        %v3327 = vshrl.u32 %v3326, 7
        %v3328 = vsub.s32 6, %v3327
        %v3329 = vrot.slane %v3018, %v3328
        %v3330 = vlaneseq
        %v3331 = vshrl.u32 %v3330, 7
        %v3332 = vsub.s32 7, %v3331
        %v3333 = vrot.slane %v3018, %v3332
        %vm3334 = vcmp.eq.s32.totalorder %v180, %v3305
        %vm3335 = vcmp.eq.s32.totalorder %v180, %v3309
        %vm3336 = vcmp.eq.s32.totalorder %v180, %v3313
        %vm3337 = vcmp.eq.s32.totalorder %v180, %v3317
        %vm3338 = vcmp.eq.s32.totalorder %v180, %v3321
        %vm3339 = vcmp.eq.s32.totalorder %v180, %v3325
        %vm3340 = vcmp.eq.s32.totalorder %v180, %v3329
        %vm3341 = vcmp.eq.s32.totalorder %v180, %v3333
        %v3343 = vlaneseq
        %v3344 = vshrl.u32 %v3343, 7
        %v3345 = vsub.s32 0, %v3344
        %v3346 = vrot.slane %v3016, %v3345
        %v3347 = vlaneseq
        %v3348 = vshrl.u32 %v3347, 7
        %v3349 = vsub.s32 1, %v3348
        %v3350 = vrot.slane %v3016, %v3349
        %v3351 = vlaneseq
        %v3352 = vshrl.u32 %v3351, 7
        %v3353 = vsub.s32 2, %v3352
        %v3354 = vrot.slane %v3016, %v3353
        %v3355 = vlaneseq
        %v3356 = vshrl.u32 %v3355, 7
        %v3357 = vsub.s32 3, %v3356
        %v3358 = vrot.slane %v3016, %v3357
        %v3359 = vlaneseq
        %v3360 = vshrl.u32 %v3359, 7
        %v3361 = vsub.s32 4, %v3360
        %v3362 = vrot.slane %v3016, %v3361
        %v3363 = vlaneseq
        %v3364 = vshrl.u32 %v3363, 7
        %v3365 = vsub.s32 5, %v3364
        %v3366 = vrot.slane %v3016, %v3365
        %v3367 = vlaneseq
        %v3368 = vshrl.u32 %v3367, 7
        %v3369 = vsub.s32 6, %v3368
        %v3370 = vrot.slane %v3016, %v3369
        %v3371 = vlaneseq
        %v3372 = vshrl.u32 %v3371, 7
        %v3373 = vsub.s32 7, %v3372
        %v3374 = vrot.slane %v3016, %v3373
        %v3383 = vsel %vm3334, %v3346, 0.0
        %v3384 = vsel %vm3335, %v3350, 0.0
        %v3385 = vsel %vm3336, %v3354, 0.0
        %v3386 = vsel %vm3337, %v3358, 0.0
        %v3387 = vsel %vm3338, %v3362, 0.0
        %v3388 = vsel %vm3339, %v3366, 0.0
        %v3389 = vsel %vm3340, %v3370, 0.0
        %v3390 = vsel %vm3341, %v3374, 0.0
        %v3391 = vadd.f32 %v3294, %v3383
        %v3392 = vadd.f32 %v3295, %v3384
        %v3393 = vadd.f32 %v3296, %v3385
        %v3394 = vadd.f32 %v3297, %v3386
        %v3395 = vadd.f32 %v3298, %v3387
        %v3396 = vadd.f32 %v3299, %v3388
        %v3397 = vadd.f32 %v3300, %v3389
        %v3398 = vadd.f32 %v3301, %v3390
        %3399 = vst [vmem:[#allocation2 + $0x300] sm:$0xff] %v3391
        %3400 = vst [vmem:[#allocation2 + $0x308] sm:$0xff] %v3392
        %3401 = vst [vmem:[#allocation2 + $0x310] sm:$0xff] %v3393
        %3402 = vst [vmem:[#allocation2 + $0x318] sm:$0xff] %v3394
        %3403 = vst [vmem:[#allocation2 + $0x320] sm:$0xff] %v3395
        %3404 = vst [vmem:[#allocation2 + $0x328] sm:$0xff] %v3396
        %3405 = vst [vmem:[#allocation2 + $0x330] sm:$0xff] %v3397
        %3406 = vst [vmem:[#allocation2 + $0x338] sm:$0xff] %v3398
        %v3407 = vsub.s32 %v3006, 8
        %v3408 = vlaneseq
        %v3409 = vshrl.u32 %v3408, 7
        %v3410 = vsub.s32 0, %v3409
        %v3411 = vrot.slane %v3407, %v3410
        %v3412 = vlaneseq
        %v3413 = vshrl.u32 %v3412, 7
        %v3414 = vsub.s32 1, %v3413
        %v3415 = vrot.slane %v3407, %v3414
        %v3416 = vlaneseq
        %v3417 = vshrl.u32 %v3416, 7
        %v3418 = vsub.s32 2, %v3417
        %v3419 = vrot.slane %v3407, %v3418
        %v3420 = vlaneseq
        %v3421 = vshrl.u32 %v3420, 7
        %v3422 = vsub.s32 3, %v3421
        %v3423 = vrot.slane %v3407, %v3422
        %v3424 = vlaneseq
        %v3425 = vshrl.u32 %v3424, 7
        %v3426 = vsub.s32 4, %v3425
        %v3427 = vrot.slane %v3407, %v3426
        %v3428 = vlaneseq
        %v3429 = vshrl.u32 %v3428, 7
        %v3430 = vsub.s32 5, %v3429
        %v3431 = vrot.slane %v3407, %v3430
        %v3432 = vlaneseq
        %v3433 = vshrl.u32 %v3432, 7
        %v3434 = vsub.s32 6, %v3433
        %v3435 = vrot.slane %v3407, %v3434
        %v3436 = vlaneseq
        %v3437 = vshrl.u32 %v3436, 7
        %v3438 = vsub.s32 7, %v3437
        %v3439 = vrot.slane %v3407, %v3438
        %vm3440 = vcmp.eq.s32.totalorder %v180, %v3411
        %vm3441 = vcmp.eq.s32.totalorder %v180, %v3415
        %vm3442 = vcmp.eq.s32.totalorder %v180, %v3419
        %vm3443 = vcmp.eq.s32.totalorder %v180, %v3423
        %vm3444 = vcmp.eq.s32.totalorder %v180, %v3427
        %vm3445 = vcmp.eq.s32.totalorder %v180, %v3431
        %vm3446 = vcmp.eq.s32.totalorder %v180, %v3435
        %vm3447 = vcmp.eq.s32.totalorder %v180, %v3439
        %v3448 = vsel %vm3440, %v3063, 0.0
        %v3449 = vsel %vm3441, %v3067, 0.0
        %v3450 = vsel %vm3442, %v3071, 0.0
        %v3451 = vsel %vm3443, %v3075, 0.0
        %v3452 = vsel %vm3444, %v3079, 0.0
        %v3453 = vsel %vm3445, %v3083, 0.0
        %v3454 = vsel %vm3446, %v3087, 0.0
        %v3455 = vsel %vm3447, %v3091, 0.0
        %v3456 = vsub.s32 %v3011, 8
        %v3457 = vlaneseq
        %v3458 = vshrl.u32 %v3457, 7
        %v3459 = vsub.s32 0, %v3458
        %v3460 = vrot.slane %v3456, %v3459
        %v3461 = vlaneseq
        %v3462 = vshrl.u32 %v3461, 7
        %v3463 = vsub.s32 1, %v3462
        %v3464 = vrot.slane %v3456, %v3463
        %v3465 = vlaneseq
        %v3466 = vshrl.u32 %v3465, 7
        %v3467 = vsub.s32 2, %v3466
        %v3468 = vrot.slane %v3456, %v3467
        %v3469 = vlaneseq
        %v3470 = vshrl.u32 %v3469, 7
        %v3471 = vsub.s32 3, %v3470
        %v3472 = vrot.slane %v3456, %v3471
        %v3473 = vlaneseq
        %v3474 = vshrl.u32 %v3473, 7
        %v3475 = vsub.s32 4, %v3474
        %v3476 = vrot.slane %v3456, %v3475
        %v3477 = vlaneseq
        %v3478 = vshrl.u32 %v3477, 7
        %v3479 = vsub.s32 5, %v3478
        %v3480 = vrot.slane %v3456, %v3479
        %v3481 = vlaneseq
        %v3482 = vshrl.u32 %v3481, 7
        %v3483 = vsub.s32 6, %v3482
        %v3484 = vrot.slane %v3456, %v3483
        %v3485 = vlaneseq
        %v3486 = vshrl.u32 %v3485, 7
        %v3487 = vsub.s32 7, %v3486
        %v3488 = vrot.slane %v3456, %v3487
        %vm3489 = vcmp.eq.s32.totalorder %v180, %v3460
        %vm3490 = vcmp.eq.s32.totalorder %v180, %v3464
        %vm3491 = vcmp.eq.s32.totalorder %v180, %v3468
        %vm3492 = vcmp.eq.s32.totalorder %v180, %v3472
        %vm3493 = vcmp.eq.s32.totalorder %v180, %v3476
        %vm3494 = vcmp.eq.s32.totalorder %v180, %v3480
        %vm3495 = vcmp.eq.s32.totalorder %v180, %v3484
        %vm3496 = vcmp.eq.s32.totalorder %v180, %v3488
        %v3497 = vsel %vm3489, %v3152, 0.0
        %v3498 = vsel %vm3490, %v3156, 0.0
        %v3499 = vsel %vm3491, %v3160, 0.0
        %v3500 = vsel %vm3492, %v3164, 0.0
        %v3501 = vsel %vm3493, %v3168, 0.0
        %v3502 = vsel %vm3494, %v3172, 0.0
        %v3503 = vsel %vm3495, %v3176, 0.0
        %v3504 = vsel %vm3496, %v3180, 0.0
        %v3505 = vadd.f32 %v3448, %v3497
        %v3506 = vadd.f32 %v3449, %v3498
        %v3507 = vadd.f32 %v3450, %v3499
        %v3508 = vadd.f32 %v3451, %v3500
        %v3509 = vadd.f32 %v3452, %v3501
        %v3510 = vadd.f32 %v3453, %v3502
        %v3511 = vadd.f32 %v3454, %v3503
        %v3512 = vadd.f32 %v3455, %v3504
        %v3513 = vsub.s32 %v3015, 8
        %v3514 = vlaneseq
        %v3515 = vshrl.u32 %v3514, 7
        %v3516 = vsub.s32 0, %v3515
        %v3517 = vrot.slane %v3513, %v3516
        %v3518 = vlaneseq
        %v3519 = vshrl.u32 %v3518, 7
        %v3520 = vsub.s32 1, %v3519
        %v3521 = vrot.slane %v3513, %v3520
        %v3522 = vlaneseq
        %v3523 = vshrl.u32 %v3522, 7
        %v3524 = vsub.s32 2, %v3523
        %v3525 = vrot.slane %v3513, %v3524
        %v3526 = vlaneseq
        %v3527 = vshrl.u32 %v3526, 7
        %v3528 = vsub.s32 3, %v3527
        %v3529 = vrot.slane %v3513, %v3528
        %v3530 = vlaneseq
        %v3531 = vshrl.u32 %v3530, 7
        %v3532 = vsub.s32 4, %v3531
        %v3533 = vrot.slane %v3513, %v3532
        %v3534 = vlaneseq
        %v3535 = vshrl.u32 %v3534, 7
        %v3536 = vsub.s32 5, %v3535
        %v3537 = vrot.slane %v3513, %v3536
        %v3538 = vlaneseq
        %v3539 = vshrl.u32 %v3538, 7
        %v3540 = vsub.s32 6, %v3539
        %v3541 = vrot.slane %v3513, %v3540
        %v3542 = vlaneseq
        %v3543 = vshrl.u32 %v3542, 7
        %v3544 = vsub.s32 7, %v3543
        %v3545 = vrot.slane %v3513, %v3544
        %vm3546 = vcmp.eq.s32.totalorder %v180, %v3517
        %vm3547 = vcmp.eq.s32.totalorder %v180, %v3521
        %vm3548 = vcmp.eq.s32.totalorder %v180, %v3525
        %vm3549 = vcmp.eq.s32.totalorder %v180, %v3529
        %vm3550 = vcmp.eq.s32.totalorder %v180, %v3533
        %vm3551 = vcmp.eq.s32.totalorder %v180, %v3537
        %vm3552 = vcmp.eq.s32.totalorder %v180, %v3541
        %vm3553 = vcmp.eq.s32.totalorder %v180, %v3545
        %v3554 = vsel %vm3546, %v3249, 0.0
        %v3555 = vsel %vm3547, %v3253, 0.0
        %v3556 = vsel %vm3548, %v3257, 0.0
        %v3557 = vsel %vm3549, %v3261, 0.0
        %v3558 = vsel %vm3550, %v3265, 0.0
        %v3559 = vsel %vm3551, %v3269, 0.0
        %v3560 = vsel %vm3552, %v3273, 0.0
        %v3561 = vsel %vm3553, %v3277, 0.0
        %v3562 = vadd.f32 %v3505, %v3554
        %v3563 = vadd.f32 %v3506, %v3555
        %v3564 = vadd.f32 %v3507, %v3556
        %v3565 = vadd.f32 %v3508, %v3557
        %v3566 = vadd.f32 %v3509, %v3558
        %v3567 = vadd.f32 %v3510, %v3559
        %v3568 = vadd.f32 %v3511, %v3560
        %v3569 = vadd.f32 %v3512, %v3561
        %v3570 = vsub.s32 %v3018, 8
        %v3571 = vlaneseq
        %v3572 = vshrl.u32 %v3571, 7
        %v3573 = vsub.s32 0, %v3572
        %v3574 = vrot.slane %v3570, %v3573
        %v3575 = vlaneseq
        %v3576 = vshrl.u32 %v3575, 7
        %v3577 = vsub.s32 1, %v3576
        %v3578 = vrot.slane %v3570, %v3577
        %v3579 = vlaneseq
        %v3580 = vshrl.u32 %v3579, 7
        %v3581 = vsub.s32 2, %v3580
        %v3582 = vrot.slane %v3570, %v3581
        %v3583 = vlaneseq
        %v3584 = vshrl.u32 %v3583, 7
        %v3585 = vsub.s32 3, %v3584
        %v3586 = vrot.slane %v3570, %v3585
        %v3587 = vlaneseq
        %v3588 = vshrl.u32 %v3587, 7
        %v3589 = vsub.s32 4, %v3588
        %v3590 = vrot.slane %v3570, %v3589
        %v3591 = vlaneseq
        %v3592 = vshrl.u32 %v3591, 7
        %v3593 = vsub.s32 5, %v3592
        %v3594 = vrot.slane %v3570, %v3593
        %v3595 = vlaneseq
        %v3596 = vshrl.u32 %v3595, 7
        %v3597 = vsub.s32 6, %v3596
        %v3598 = vrot.slane %v3570, %v3597
        %v3599 = vlaneseq
        %v3600 = vshrl.u32 %v3599, 7
        %v3601 = vsub.s32 7, %v3600
        %v3602 = vrot.slane %v3570, %v3601
        %vm3603 = vcmp.eq.s32.totalorder %v180, %v3574
        %vm3604 = vcmp.eq.s32.totalorder %v180, %v3578
        %vm3605 = vcmp.eq.s32.totalorder %v180, %v3582
        %vm3606 = vcmp.eq.s32.totalorder %v180, %v3586
        %vm3607 = vcmp.eq.s32.totalorder %v180, %v3590
        %vm3608 = vcmp.eq.s32.totalorder %v180, %v3594
        %vm3609 = vcmp.eq.s32.totalorder %v180, %v3598
        %vm3610 = vcmp.eq.s32.totalorder %v180, %v3602
        %v3611 = vsel %vm3603, %v3346, 0.0
        %v3612 = vsel %vm3604, %v3350, 0.0
        %v3613 = vsel %vm3605, %v3354, 0.0
        %v3614 = vsel %vm3606, %v3358, 0.0
        %v3615 = vsel %vm3607, %v3362, 0.0
        %v3616 = vsel %vm3608, %v3366, 0.0
        %v3617 = vsel %vm3609, %v3370, 0.0
        %v3618 = vsel %vm3610, %v3374, 0.0
        %v3619 = vadd.f32 %v3562, %v3611
        %v3620 = vadd.f32 %v3563, %v3612
        %v3621 = vadd.f32 %v3564, %v3613
        %v3622 = vadd.f32 %v3565, %v3614
        %v3623 = vadd.f32 %v3566, %v3615
        %v3624 = vadd.f32 %v3567, %v3616
        %v3625 = vadd.f32 %v3568, %v3617
        %v3626 = vadd.f32 %v3569, %v3618
        %3627 = vst [vmem:[#allocation2 + $0x340] sm:$0xff] %v3619
        %3628 = vst [vmem:[#allocation2 + $0x348] sm:$0xff] %v3620
        %3629 = vst [vmem:[#allocation2 + $0x350] sm:$0xff] %v3621
        %3630 = vst [vmem:[#allocation2 + $0x358] sm:$0xff] %v3622
        %3631 = vst [vmem:[#allocation2 + $0x360] sm:$0xff] %v3623
        %3632 = vst [vmem:[#allocation2 + $0x368] sm:$0xff] %v3624
        %3633 = vst [vmem:[#allocation2 + $0x370] sm:$0xff] %v3625
        %3634 = vst [vmem:[#allocation2 + $0x378] sm:$0xff] %v3626
        %v3635 = vsub.s32 %v3006, 16
        %v3636 = vlaneseq
        %v3637 = vshrl.u32 %v3636, 7
        %v3638 = vsub.s32 0, %v3637
        %v3639 = vrot.slane %v3635, %v3638
        %v3640 = vlaneseq
        %v3641 = vshrl.u32 %v3640, 7
        %v3642 = vsub.s32 1, %v3641
        %v3643 = vrot.slane %v3635, %v3642
        %v3644 = vlaneseq
        %v3645 = vshrl.u32 %v3644, 7
        %v3646 = vsub.s32 2, %v3645
        %v3647 = vrot.slane %v3635, %v3646
        %v3648 = vlaneseq
        %v3649 = vshrl.u32 %v3648, 7
        %v3650 = vsub.s32 3, %v3649
        %v3651 = vrot.slane %v3635, %v3650
        %v3652 = vlaneseq
        %v3653 = vshrl.u32 %v3652, 7
        %v3654 = vsub.s32 4, %v3653
        %v3655 = vrot.slane %v3635, %v3654
        %v3656 = vlaneseq
        %v3657 = vshrl.u32 %v3656, 7
        %v3658 = vsub.s32 5, %v3657
        %v3659 = vrot.slane %v3635, %v3658
        %v3660 = vlaneseq
        %v3661 = vshrl.u32 %v3660, 7
        %v3662 = vsub.s32 6, %v3661
        %v3663 = vrot.slane %v3635, %v3662
        %v3664 = vlaneseq
        %v3665 = vshrl.u32 %v3664, 7
        %v3666 = vsub.s32 7, %v3665
        %v3667 = vrot.slane %v3635, %v3666
        %vm3668 = vcmp.eq.s32.totalorder %v180, %v3639
        %vm3669 = vcmp.eq.s32.totalorder %v180, %v3643
        %vm3670 = vcmp.eq.s32.totalorder %v180, %v3647
        %vm3671 = vcmp.eq.s32.totalorder %v180, %v3651
        %vm3672 = vcmp.eq.s32.totalorder %v180, %v3655
        %vm3673 = vcmp.eq.s32.totalorder %v180, %v3659
        %vm3674 = vcmp.eq.s32.totalorder %v180, %v3663
        %vm3675 = vcmp.eq.s32.totalorder %v180, %v3667
        %v3676 = vsel %vm3668, %v3063, 0.0
        %v3677 = vsel %vm3669, %v3067, 0.0
        %v3678 = vsel %vm3670, %v3071, 0.0
        %v3679 = vsel %vm3671, %v3075, 0.0
        %v3680 = vsel %vm3672, %v3079, 0.0
        %v3681 = vsel %vm3673, %v3083, 0.0
        %v3682 = vsel %vm3674, %v3087, 0.0
        %v3683 = vsel %vm3675, %v3091, 0.0
        %v3684 = vsub.s32 %v3011, 16
        %v3685 = vlaneseq
        %v3686 = vshrl.u32 %v3685, 7
        %v3687 = vsub.s32 0, %v3686
        %v3688 = vrot.slane %v3684, %v3687
        %v3689 = vlaneseq
        %v3690 = vshrl.u32 %v3689, 7
        %v3691 = vsub.s32 1, %v3690
        %v3692 = vrot.slane %v3684, %v3691
        %v3693 = vlaneseq
        %v3694 = vshrl.u32 %v3693, 7
        %v3695 = vsub.s32 2, %v3694
        %v3696 = vrot.slane %v3684, %v3695
        %v3697 = vlaneseq
        %v3698 = vshrl.u32 %v3697, 7
        %v3699 = vsub.s32 3, %v3698
        %v3700 = vrot.slane %v3684, %v3699
        %v3701 = vlaneseq
        %v3702 = vshrl.u32 %v3701, 7
        %v3703 = vsub.s32 4, %v3702
        %v3704 = vrot.slane %v3684, %v3703
        %v3705 = vlaneseq
        %v3706 = vshrl.u32 %v3705, 7
        %v3707 = vsub.s32 5, %v3706
        %v3708 = vrot.slane %v3684, %v3707
        %v3709 = vlaneseq
        %v3710 = vshrl.u32 %v3709, 7
        %v3711 = vsub.s32 6, %v3710
        %v3712 = vrot.slane %v3684, %v3711
        %v3713 = vlaneseq
        %v3714 = vshrl.u32 %v3713, 7
        %v3715 = vsub.s32 7, %v3714
        %v3716 = vrot.slane %v3684, %v3715
        %vm3717 = vcmp.eq.s32.totalorder %v180, %v3688
        %vm3718 = vcmp.eq.s32.totalorder %v180, %v3692
        %vm3719 = vcmp.eq.s32.totalorder %v180, %v3696
        %vm3720 = vcmp.eq.s32.totalorder %v180, %v3700
        %vm3721 = vcmp.eq.s32.totalorder %v180, %v3704
        %vm3722 = vcmp.eq.s32.totalorder %v180, %v3708
        %vm3723 = vcmp.eq.s32.totalorder %v180, %v3712
        %vm3724 = vcmp.eq.s32.totalorder %v180, %v3716
        %v3725 = vsel %vm3717, %v3152, 0.0
        %v3726 = vsel %vm3718, %v3156, 0.0
        %v3727 = vsel %vm3719, %v3160, 0.0
        %v3728 = vsel %vm3720, %v3164, 0.0
        %v3729 = vsel %vm3721, %v3168, 0.0
        %v3730 = vsel %vm3722, %v3172, 0.0
        %v3731 = vsel %vm3723, %v3176, 0.0
        %v3732 = vsel %vm3724, %v3180, 0.0
        %v3733 = vadd.f32 %v3676, %v3725
        %v3734 = vadd.f32 %v3677, %v3726
        %v3735 = vadd.f32 %v3678, %v3727
        %v3736 = vadd.f32 %v3679, %v3728
        %v3737 = vadd.f32 %v3680, %v3729
        %v3738 = vadd.f32 %v3681, %v3730
        %v3739 = vadd.f32 %v3682, %v3731
        %v3740 = vadd.f32 %v3683, %v3732
        %v3741 = vsub.s32 %v3015, 16
        %v3742 = vlaneseq
        %v3743 = vshrl.u32 %v3742, 7
        %v3744 = vsub.s32 0, %v3743
        %v3745 = vrot.slane %v3741, %v3744
        %v3746 = vlaneseq
        %v3747 = vshrl.u32 %v3746, 7
        %v3748 = vsub.s32 1, %v3747
        %v3749 = vrot.slane %v3741, %v3748
        %v3750 = vlaneseq
        %v3751 = vshrl.u32 %v3750, 7
        %v3752 = vsub.s32 2, %v3751
        %v3753 = vrot.slane %v3741, %v3752
        %v3754 = vlaneseq
        %v3755 = vshrl.u32 %v3754, 7
        %v3756 = vsub.s32 3, %v3755
        %v3757 = vrot.slane %v3741, %v3756
        %v3758 = vlaneseq
        %v3759 = vshrl.u32 %v3758, 7
        %v3760 = vsub.s32 4, %v3759
        %v3761 = vrot.slane %v3741, %v3760
        %v3762 = vlaneseq
        %v3763 = vshrl.u32 %v3762, 7
        %v3764 = vsub.s32 5, %v3763
        %v3765 = vrot.slane %v3741, %v3764
        %v3766 = vlaneseq
        %v3767 = vshrl.u32 %v3766, 7
        %v3768 = vsub.s32 6, %v3767
        %v3769 = vrot.slane %v3741, %v3768
        %v3770 = vlaneseq
        %v3771 = vshrl.u32 %v3770, 7
        %v3772 = vsub.s32 7, %v3771
        %v3773 = vrot.slane %v3741, %v3772
        %vm3774 = vcmp.eq.s32.totalorder %v180, %v3745
        %vm3775 = vcmp.eq.s32.totalorder %v180, %v3749
        %vm3776 = vcmp.eq.s32.totalorder %v180, %v3753
        %vm3777 = vcmp.eq.s32.totalorder %v180, %v3757
        %vm3778 = vcmp.eq.s32.totalorder %v180, %v3761
        %vm3779 = vcmp.eq.s32.totalorder %v180, %v3765
        %vm3780 = vcmp.eq.s32.totalorder %v180, %v3769
        %vm3781 = vcmp.eq.s32.totalorder %v180, %v3773
        %v3782 = vsel %vm3774, %v3249, 0.0
        %v3783 = vsel %vm3775, %v3253, 0.0
        %v3784 = vsel %vm3776, %v3257, 0.0
        %v3785 = vsel %vm3777, %v3261, 0.0
        %v3786 = vsel %vm3778, %v3265, 0.0
        %v3787 = vsel %vm3779, %v3269, 0.0
        %v3788 = vsel %vm3780, %v3273, 0.0
        %v3789 = vsel %vm3781, %v3277, 0.0
        %v3790 = vadd.f32 %v3733, %v3782
        %v3791 = vadd.f32 %v3734, %v3783
        %v3792 = vadd.f32 %v3735, %v3784
        %v3793 = vadd.f32 %v3736, %v3785
        %v3794 = vadd.f32 %v3737, %v3786
        %v3795 = vadd.f32 %v3738, %v3787
        %v3796 = vadd.f32 %v3739, %v3788
        %v3797 = vadd.f32 %v3740, %v3789
        %v3798 = vsub.s32 %v3018, 16
        %v3799 = vlaneseq
        %v3800 = vshrl.u32 %v3799, 7
        %v3801 = vsub.s32 0, %v3800
        %v3802 = vrot.slane %v3798, %v3801
        %v3803 = vlaneseq
        %v3804 = vshrl.u32 %v3803, 7
        %v3805 = vsub.s32 1, %v3804
        %v3806 = vrot.slane %v3798, %v3805
        %v3807 = vlaneseq
        %v3808 = vshrl.u32 %v3807, 7
        %v3809 = vsub.s32 2, %v3808
        %v3810 = vrot.slane %v3798, %v3809
        %v3811 = vlaneseq
        %v3812 = vshrl.u32 %v3811, 7
        %v3813 = vsub.s32 3, %v3812
        %v3814 = vrot.slane %v3798, %v3813
        %v3815 = vlaneseq
        %v3816 = vshrl.u32 %v3815, 7
        %v3817 = vsub.s32 4, %v3816
        %v3818 = vrot.slane %v3798, %v3817
        %v3819 = vlaneseq
        %v3820 = vshrl.u32 %v3819, 7
        %v3821 = vsub.s32 5, %v3820
        %v3822 = vrot.slane %v3798, %v3821
        %v3823 = vlaneseq
        %v3824 = vshrl.u32 %v3823, 7
        %v3825 = vsub.s32 6, %v3824
        %v3826 = vrot.slane %v3798, %v3825
        %v3827 = vlaneseq
        %v3828 = vshrl.u32 %v3827, 7
        %v3829 = vsub.s32 7, %v3828
        %v3830 = vrot.slane %v3798, %v3829
        %vm3831 = vcmp.eq.s32.totalorder %v180, %v3802
        %vm3832 = vcmp.eq.s32.totalorder %v180, %v3806
        %vm3833 = vcmp.eq.s32.totalorder %v180, %v3810
        %vm3834 = vcmp.eq.s32.totalorder %v180, %v3814
        %vm3835 = vcmp.eq.s32.totalorder %v180, %v3818
        %vm3836 = vcmp.eq.s32.totalorder %v180, %v3822
        %vm3837 = vcmp.eq.s32.totalorder %v180, %v3826
        %vm3838 = vcmp.eq.s32.totalorder %v180, %v3830
        %v3839 = vsel %vm3831, %v3346, 0.0
        %v3840 = vsel %vm3832, %v3350, 0.0
        %v3841 = vsel %vm3833, %v3354, 0.0
        %v3842 = vsel %vm3834, %v3358, 0.0
        %v3843 = vsel %vm3835, %v3362, 0.0
        %v3844 = vsel %vm3836, %v3366, 0.0
        %v3845 = vsel %vm3837, %v3370, 0.0
        %v3846 = vsel %vm3838, %v3374, 0.0
        %v3847 = vadd.f32 %v3790, %v3839
        %v3848 = vadd.f32 %v3791, %v3840
        %v3849 = vadd.f32 %v3792, %v3841
        %v3850 = vadd.f32 %v3793, %v3842
        %v3851 = vadd.f32 %v3794, %v3843
        %v3852 = vadd.f32 %v3795, %v3844
        %v3853 = vadd.f32 %v3796, %v3845
        %v3854 = vadd.f32 %v3797, %v3846
        %3855 = vst [vmem:[#allocation2 + $0x380] sm:$0xff] %v3847
        %3856 = vst [vmem:[#allocation2 + $0x388] sm:$0xff] %v3848
        %3857 = vst [vmem:[#allocation2 + $0x390] sm:$0xff] %v3849
        %3858 = vst [vmem:[#allocation2 + $0x398] sm:$0xff] %v3850
        %3859 = vst [vmem:[#allocation2 + $0x3a0] sm:$0xff] %v3851
        %3860 = vst [vmem:[#allocation2 + $0x3a8] sm:$0xff] %v3852
        %3861 = vst [vmem:[#allocation2 + $0x3b0] sm:$0xff] %v3853
        %3862 = vst [vmem:[#allocation2 + $0x3b8] sm:$0xff] %v3854
        %v3863 = vsub.s32 %v3006, 24
        %v3864 = vlaneseq
        %v3865 = vshrl.u32 %v3864, 7
        %v3866 = vsub.s32 0, %v3865
        %v3867 = vrot.slane %v3863, %v3866
        %v3868 = vlaneseq
        %v3869 = vshrl.u32 %v3868, 7
        %v3870 = vsub.s32 1, %v3869
        %v3871 = vrot.slane %v3863, %v3870
        %v3872 = vlaneseq
        %v3873 = vshrl.u32 %v3872, 7
        %v3874 = vsub.s32 2, %v3873
        %v3875 = vrot.slane %v3863, %v3874
        %v3876 = vlaneseq
        %v3877 = vshrl.u32 %v3876, 7
        %v3878 = vsub.s32 3, %v3877
        %v3879 = vrot.slane %v3863, %v3878
        %v3880 = vlaneseq
        %v3881 = vshrl.u32 %v3880, 7
        %v3882 = vsub.s32 4, %v3881
        %v3883 = vrot.slane %v3863, %v3882
        %v3884 = vlaneseq
        %v3885 = vshrl.u32 %v3884, 7
        %v3886 = vsub.s32 5, %v3885
        %v3887 = vrot.slane %v3863, %v3886
        %v3888 = vlaneseq
        %v3889 = vshrl.u32 %v3888, 7
        %v3890 = vsub.s32 6, %v3889
        %v3891 = vrot.slane %v3863, %v3890
        %v3892 = vlaneseq
        %v3893 = vshrl.u32 %v3892, 7
        %v3894 = vsub.s32 7, %v3893
        %v3895 = vrot.slane %v3863, %v3894
        %vm3896 = vcmp.eq.s32.totalorder %v180, %v3867
        %vm3897 = vcmp.eq.s32.totalorder %v180, %v3871
        %vm3898 = vcmp.eq.s32.totalorder %v180, %v3875
        %vm3899 = vcmp.eq.s32.totalorder %v180, %v3879
        %vm3900 = vcmp.eq.s32.totalorder %v180, %v3883
        %vm3901 = vcmp.eq.s32.totalorder %v180, %v3887
        %vm3902 = vcmp.eq.s32.totalorder %v180, %v3891
        %vm3903 = vcmp.eq.s32.totalorder %v180, %v3895
        %v3904 = vsel %vm3896, %v3063, 0.0
        %v3905 = vsel %vm3897, %v3067, 0.0
        %v3906 = vsel %vm3898, %v3071, 0.0
        %v3907 = vsel %vm3899, %v3075, 0.0
        %v3908 = vsel %vm3900, %v3079, 0.0
        %v3909 = vsel %vm3901, %v3083, 0.0
        %v3910 = vsel %vm3902, %v3087, 0.0
        %v3911 = vsel %vm3903, %v3091, 0.0
        %v3912 = vsub.s32 %v3011, 24
        %v3913 = vlaneseq
        %v3914 = vshrl.u32 %v3913, 7
        %v3915 = vsub.s32 0, %v3914
        %v3916 = vrot.slane %v3912, %v3915
        %v3917 = vlaneseq
        %v3918 = vshrl.u32 %v3917, 7
        %v3919 = vsub.s32 1, %v3918
        %v3920 = vrot.slane %v3912, %v3919
        %v3921 = vlaneseq
        %v3922 = vshrl.u32 %v3921, 7
        %v3923 = vsub.s32 2, %v3922
        %v3924 = vrot.slane %v3912, %v3923
        %v3925 = vlaneseq
        %v3926 = vshrl.u32 %v3925, 7
        %v3927 = vsub.s32 3, %v3926
        %v3928 = vrot.slane %v3912, %v3927
        %v3929 = vlaneseq
        %v3930 = vshrl.u32 %v3929, 7
        %v3931 = vsub.s32 4, %v3930
        %v3932 = vrot.slane %v3912, %v3931
        %v3933 = vlaneseq
        %v3934 = vshrl.u32 %v3933, 7
        %v3935 = vsub.s32 5, %v3934
        %v3936 = vrot.slane %v3912, %v3935
        %v3937 = vlaneseq
        %v3938 = vshrl.u32 %v3937, 7
        %v3939 = vsub.s32 6, %v3938
        %v3940 = vrot.slane %v3912, %v3939
        %v3941 = vlaneseq
        %v3942 = vshrl.u32 %v3941, 7
        %v3943 = vsub.s32 7, %v3942
        %v3944 = vrot.slane %v3912, %v3943
        %vm3945 = vcmp.eq.s32.totalorder %v180, %v3916
        %vm3946 = vcmp.eq.s32.totalorder %v180, %v3920
        %vm3947 = vcmp.eq.s32.totalorder %v180, %v3924
        %vm3948 = vcmp.eq.s32.totalorder %v180, %v3928
        %vm3949 = vcmp.eq.s32.totalorder %v180, %v3932
        %vm3950 = vcmp.eq.s32.totalorder %v180, %v3936
        %vm3951 = vcmp.eq.s32.totalorder %v180, %v3940
        %vm3952 = vcmp.eq.s32.totalorder %v180, %v3944
        %v3953 = vsel %vm3945, %v3152, 0.0
        %v3954 = vsel %vm3946, %v3156, 0.0
        %v3955 = vsel %vm3947, %v3160, 0.0
        %v3956 = vsel %vm3948, %v3164, 0.0
        %v3957 = vsel %vm3949, %v3168, 0.0
        %v3958 = vsel %vm3950, %v3172, 0.0
        %v3959 = vsel %vm3951, %v3176, 0.0
        %v3960 = vsel %vm3952, %v3180, 0.0
        %v3961 = vadd.f32 %v3904, %v3953
        %v3962 = vadd.f32 %v3905, %v3954
        %v3963 = vadd.f32 %v3906, %v3955
        %v3964 = vadd.f32 %v3907, %v3956
        %v3965 = vadd.f32 %v3908, %v3957
        %v3966 = vadd.f32 %v3909, %v3958
        %v3967 = vadd.f32 %v3910, %v3959
        %v3968 = vadd.f32 %v3911, %v3960
        %v3969 = vsub.s32 %v3015, 24
        %v3970 = vlaneseq
        %v3971 = vshrl.u32 %v3970, 7
        %v3972 = vsub.s32 0, %v3971
        %v3973 = vrot.slane %v3969, %v3972
        %v3974 = vlaneseq
        %v3975 = vshrl.u32 %v3974, 7
        %v3976 = vsub.s32 1, %v3975
        %v3977 = vrot.slane %v3969, %v3976
        %v3978 = vlaneseq
        %v3979 = vshrl.u32 %v3978, 7
        %v3980 = vsub.s32 2, %v3979
        %v3981 = vrot.slane %v3969, %v3980
        %v3982 = vlaneseq
        %v3983 = vshrl.u32 %v3982, 7
        %v3984 = vsub.s32 3, %v3983
        %v3985 = vrot.slane %v3969, %v3984
        %v3986 = vlaneseq
        %v3987 = vshrl.u32 %v3986, 7
        %v3988 = vsub.s32 4, %v3987
        %v3989 = vrot.slane %v3969, %v3988
        %v3990 = vlaneseq
        %v3991 = vshrl.u32 %v3990, 7
        %v3992 = vsub.s32 5, %v3991
        %v3993 = vrot.slane %v3969, %v3992
        %v3994 = vlaneseq
        %v3995 = vshrl.u32 %v3994, 7
        %v3996 = vsub.s32 6, %v3995
        %v3997 = vrot.slane %v3969, %v3996
        %v3998 = vlaneseq
        %v3999 = vshrl.u32 %v3998, 7
        %v4000 = vsub.s32 7, %v3999
        %v4001 = vrot.slane %v3969, %v4000
        %vm4002 = vcmp.eq.s32.totalorder %v180, %v3973
        %vm4003 = vcmp.eq.s32.totalorder %v180, %v3977
        %vm4004 = vcmp.eq.s32.totalorder %v180, %v3981
        %vm4005 = vcmp.eq.s32.totalorder %v180, %v3985
        %vm4006 = vcmp.eq.s32.totalorder %v180, %v3989
        %vm4007 = vcmp.eq.s32.totalorder %v180, %v3993
        %vm4008 = vcmp.eq.s32.totalorder %v180, %v3997
        %vm4009 = vcmp.eq.s32.totalorder %v180, %v4001
        %v4010 = vsel %vm4002, %v3249, 0.0
        %v4011 = vsel %vm4003, %v3253, 0.0
        %v4012 = vsel %vm4004, %v3257, 0.0
        %v4013 = vsel %vm4005, %v3261, 0.0
        %v4014 = vsel %vm4006, %v3265, 0.0
        %v4015 = vsel %vm4007, %v3269, 0.0
        %v4016 = vsel %vm4008, %v3273, 0.0
        %v4017 = vsel %vm4009, %v3277, 0.0
        %v4018 = vadd.f32 %v3961, %v4010
        %v4019 = vadd.f32 %v3962, %v4011
        %v4020 = vadd.f32 %v3963, %v4012
        %v4021 = vadd.f32 %v3964, %v4013
        %v4022 = vadd.f32 %v3965, %v4014
        %v4023 = vadd.f32 %v3966, %v4015
        %v4024 = vadd.f32 %v3967, %v4016
        %v4025 = vadd.f32 %v3968, %v4017
        %v4026 = vsub.s32 %v3018, 24
        %v4027 = vlaneseq
        %v4028 = vshrl.u32 %v4027, 7
        %v4029 = vsub.s32 0, %v4028
        %v4030 = vrot.slane %v4026, %v4029
        %v4031 = vlaneseq
        %v4032 = vshrl.u32 %v4031, 7
        %v4033 = vsub.s32 1, %v4032
        %v4034 = vrot.slane %v4026, %v4033
        %v4035 = vlaneseq
        %v4036 = vshrl.u32 %v4035, 7
        %v4037 = vsub.s32 2, %v4036
        %v4038 = vrot.slane %v4026, %v4037
        %v4039 = vlaneseq
        %v4040 = vshrl.u32 %v4039, 7
        %v4041 = vsub.s32 3, %v4040
        %v4042 = vrot.slane %v4026, %v4041
        %v4043 = vlaneseq
        %v4044 = vshrl.u32 %v4043, 7
        %v4045 = vsub.s32 4, %v4044
        %v4046 = vrot.slane %v4026, %v4045
        %v4047 = vlaneseq
        %v4048 = vshrl.u32 %v4047, 7
        %v4049 = vsub.s32 5, %v4048
        %v4050 = vrot.slane %v4026, %v4049
        %v4051 = vlaneseq
        %v4052 = vshrl.u32 %v4051, 7
        %v4053 = vsub.s32 6, %v4052
        %v4054 = vrot.slane %v4026, %v4053
        %v4055 = vlaneseq
        %v4056 = vshrl.u32 %v4055, 7
        %v4057 = vsub.s32 7, %v4056
        %v4058 = vrot.slane %v4026, %v4057
        %vm4059 = vcmp.eq.s32.totalorder %v180, %v4030
        %vm4060 = vcmp.eq.s32.totalorder %v180, %v4034
        %vm4061 = vcmp.eq.s32.totalorder %v180, %v4038
        %vm4062 = vcmp.eq.s32.totalorder %v180, %v4042
        %vm4063 = vcmp.eq.s32.totalorder %v180, %v4046
        %vm4064 = vcmp.eq.s32.totalorder %v180, %v4050
        %vm4065 = vcmp.eq.s32.totalorder %v180, %v4054
        %vm4066 = vcmp.eq.s32.totalorder %v180, %v4058
        %v4067 = vsel %vm4059, %v3346, 0.0
        %v4068 = vsel %vm4060, %v3350, 0.0
        %v4069 = vsel %vm4061, %v3354, 0.0
        %v4070 = vsel %vm4062, %v3358, 0.0
        %v4071 = vsel %vm4063, %v3362, 0.0
        %v4072 = vsel %vm4064, %v3366, 0.0
        %v4073 = vsel %vm4065, %v3370, 0.0
        %v4074 = vsel %vm4066, %v3374, 0.0
        %v4075 = vadd.f32 %v4018, %v4067
        %v4076 = vadd.f32 %v4019, %v4068
        %v4077 = vadd.f32 %v4020, %v4069
        %v4078 = vadd.f32 %v4021, %v4070
        %v4079 = vadd.f32 %v4022, %v4071
        %v4080 = vadd.f32 %v4023, %v4072
        %v4081 = vadd.f32 %v4024, %v4073
        %v4082 = vadd.f32 %v4025, %v4074
        %4083 = vst [vmem:[#allocation2 + $0x3c0] sm:$0xff] %v4075
        %4084 = vst [vmem:[#allocation2 + $0x3c8] sm:$0xff] %v4076
        %4085 = vst [vmem:[#allocation2 + $0x3d0] sm:$0xff] %v4077
        %4086 = vst [vmem:[#allocation2 + $0x3d8] sm:$0xff] %v4078
        %4087 = vst [vmem:[#allocation2 + $0x3e0] sm:$0xff] %v4079
        %4088 = vst [vmem:[#allocation2 + $0x3e8] sm:$0xff] %v4080
        %4089 = vst [vmem:[#allocation2 + $0x3f0] sm:$0xff] %v4081
        %4090 = vst [vmem:[#allocation2 + $0x3f8] sm:$0xff] %v4082
        %v4091 = vsub.s32 %v3006, 32
        %v4092 = vlaneseq
        %v4093 = vshrl.u32 %v4092, 7
        %v4094 = vsub.s32 0, %v4093
        %v4095 = vrot.slane %v4091, %v4094
        %v4096 = vlaneseq
        %v4097 = vshrl.u32 %v4096, 7
        %v4098 = vsub.s32 1, %v4097
        %v4099 = vrot.slane %v4091, %v4098
        %v4100 = vlaneseq
        %v4101 = vshrl.u32 %v4100, 7
        %v4102 = vsub.s32 2, %v4101
        %v4103 = vrot.slane %v4091, %v4102
        %v4104 = vlaneseq
        %v4105 = vshrl.u32 %v4104, 7
        %v4106 = vsub.s32 3, %v4105
        %v4107 = vrot.slane %v4091, %v4106
        %v4108 = vlaneseq
        %v4109 = vshrl.u32 %v4108, 7
        %v4110 = vsub.s32 4, %v4109
        %v4111 = vrot.slane %v4091, %v4110
        %v4112 = vlaneseq
        %v4113 = vshrl.u32 %v4112, 7
        %v4114 = vsub.s32 5, %v4113
        %v4115 = vrot.slane %v4091, %v4114
        %v4116 = vlaneseq
        %v4117 = vshrl.u32 %v4116, 7
        %v4118 = vsub.s32 6, %v4117
        %v4119 = vrot.slane %v4091, %v4118
        %v4120 = vlaneseq
        %v4121 = vshrl.u32 %v4120, 7
        %v4122 = vsub.s32 7, %v4121
        %v4123 = vrot.slane %v4091, %v4122
        %vm4124 = vcmp.eq.s32.totalorder %v180, %v4095
        %vm4125 = vcmp.eq.s32.totalorder %v180, %v4099
        %vm4126 = vcmp.eq.s32.totalorder %v180, %v4103
        %vm4127 = vcmp.eq.s32.totalorder %v180, %v4107
        %vm4128 = vcmp.eq.s32.totalorder %v180, %v4111
        %vm4129 = vcmp.eq.s32.totalorder %v180, %v4115
        %vm4130 = vcmp.eq.s32.totalorder %v180, %v4119
        %vm4131 = vcmp.eq.s32.totalorder %v180, %v4123
        %v4132 = vsel %vm4124, %v3063, 0.0
        %v4133 = vsel %vm4125, %v3067, 0.0
        %v4134 = vsel %vm4126, %v3071, 0.0
        %v4135 = vsel %vm4127, %v3075, 0.0
        %v4136 = vsel %vm4128, %v3079, 0.0
        %v4137 = vsel %vm4129, %v3083, 0.0
        %v4138 = vsel %vm4130, %v3087, 0.0
        %v4139 = vsel %vm4131, %v3091, 0.0
        %v4140 = vsub.s32 %v3011, 32
        %v4141 = vlaneseq
        %v4142 = vshrl.u32 %v4141, 7
        %v4143 = vsub.s32 0, %v4142
        %v4144 = vrot.slane %v4140, %v4143
        %v4145 = vlaneseq
        %v4146 = vshrl.u32 %v4145, 7
        %v4147 = vsub.s32 1, %v4146
        %v4148 = vrot.slane %v4140, %v4147
        %v4149 = vlaneseq
        %v4150 = vshrl.u32 %v4149, 7
        %v4151 = vsub.s32 2, %v4150
        %v4152 = vrot.slane %v4140, %v4151
        %v4153 = vlaneseq
        %v4154 = vshrl.u32 %v4153, 7
        %v4155 = vsub.s32 3, %v4154
        %v4156 = vrot.slane %v4140, %v4155
        %v4157 = vlaneseq
        %v4158 = vshrl.u32 %v4157, 7
        %v4159 = vsub.s32 4, %v4158
        %v4160 = vrot.slane %v4140, %v4159
        %v4161 = vlaneseq
        %v4162 = vshrl.u32 %v4161, 7
        %v4163 = vsub.s32 5, %v4162
        %v4164 = vrot.slane %v4140, %v4163
        %v4165 = vlaneseq
        %v4166 = vshrl.u32 %v4165, 7
        %v4167 = vsub.s32 6, %v4166
        %v4168 = vrot.slane %v4140, %v4167
        %v4169 = vlaneseq
        %v4170 = vshrl.u32 %v4169, 7
        %v4171 = vsub.s32 7, %v4170
        %v4172 = vrot.slane %v4140, %v4171
        %vm4173 = vcmp.eq.s32.totalorder %v180, %v4144
        %vm4174 = vcmp.eq.s32.totalorder %v180, %v4148
        %vm4175 = vcmp.eq.s32.totalorder %v180, %v4152
        %vm4176 = vcmp.eq.s32.totalorder %v180, %v4156
        %vm4177 = vcmp.eq.s32.totalorder %v180, %v4160
        %vm4178 = vcmp.eq.s32.totalorder %v180, %v4164
        %vm4179 = vcmp.eq.s32.totalorder %v180, %v4168
        %vm4180 = vcmp.eq.s32.totalorder %v180, %v4172
        %v4181 = vsel %vm4173, %v3152, 0.0
        %v4182 = vsel %vm4174, %v3156, 0.0
        %v4183 = vsel %vm4175, %v3160, 0.0
        %v4184 = vsel %vm4176, %v3164, 0.0
        %v4185 = vsel %vm4177, %v3168, 0.0
        %v4186 = vsel %vm4178, %v3172, 0.0
        %v4187 = vsel %vm4179, %v3176, 0.0
        %v4188 = vsel %vm4180, %v3180, 0.0
        %v4189 = vadd.f32 %v4132, %v4181
        %v4190 = vadd.f32 %v4133, %v4182
        %v4191 = vadd.f32 %v4134, %v4183
        %v4192 = vadd.f32 %v4135, %v4184
        %v4193 = vadd.f32 %v4136, %v4185
        %v4194 = vadd.f32 %v4137, %v4186
        %v4195 = vadd.f32 %v4138, %v4187
        %v4196 = vadd.f32 %v4139, %v4188
        %v4197 = vsub.s32 %v3015, 32
        %v4198 = vlaneseq
        %v4199 = vshrl.u32 %v4198, 7
        %v4200 = vsub.s32 0, %v4199
        %v4201 = vrot.slane %v4197, %v4200
        %v4202 = vlaneseq
        %v4203 = vshrl.u32 %v4202, 7
        %v4204 = vsub.s32 1, %v4203
        %v4205 = vrot.slane %v4197, %v4204
        %v4206 = vlaneseq
        %v4207 = vshrl.u32 %v4206, 7
        %v4208 = vsub.s32 2, %v4207
        %v4209 = vrot.slane %v4197, %v4208
        %v4210 = vlaneseq
        %v4211 = vshrl.u32 %v4210, 7
        %v4212 = vsub.s32 3, %v4211
        %v4213 = vrot.slane %v4197, %v4212
        %v4214 = vlaneseq
        %v4215 = vshrl.u32 %v4214, 7
        %v4216 = vsub.s32 4, %v4215
        %v4217 = vrot.slane %v4197, %v4216
        %v4218 = vlaneseq
        %v4219 = vshrl.u32 %v4218, 7
        %v4220 = vsub.s32 5, %v4219
        %v4221 = vrot.slane %v4197, %v4220
        %v4222 = vlaneseq
        %v4223 = vshrl.u32 %v4222, 7
        %v4224 = vsub.s32 6, %v4223
        %v4225 = vrot.slane %v4197, %v4224
        %v4226 = vlaneseq
        %v4227 = vshrl.u32 %v4226, 7
        %v4228 = vsub.s32 7, %v4227
        %v4229 = vrot.slane %v4197, %v4228
        %vm4230 = vcmp.eq.s32.totalorder %v180, %v4201
        %vm4231 = vcmp.eq.s32.totalorder %v180, %v4205
        %vm4232 = vcmp.eq.s32.totalorder %v180, %v4209
        %vm4233 = vcmp.eq.s32.totalorder %v180, %v4213
        %vm4234 = vcmp.eq.s32.totalorder %v180, %v4217
        %vm4235 = vcmp.eq.s32.totalorder %v180, %v4221
        %vm4236 = vcmp.eq.s32.totalorder %v180, %v4225
        %vm4237 = vcmp.eq.s32.totalorder %v180, %v4229
        %v4238 = vsel %vm4230, %v3249, 0.0
        %v4239 = vsel %vm4231, %v3253, 0.0
        %v4240 = vsel %vm4232, %v3257, 0.0
        %v4241 = vsel %vm4233, %v3261, 0.0
        %v4242 = vsel %vm4234, %v3265, 0.0
        %v4243 = vsel %vm4235, %v3269, 0.0
        %v4244 = vsel %vm4236, %v3273, 0.0
        %v4245 = vsel %vm4237, %v3277, 0.0
        %v4246 = vadd.f32 %v4189, %v4238
        %v4247 = vadd.f32 %v4190, %v4239
        %v4248 = vadd.f32 %v4191, %v4240
        %v4249 = vadd.f32 %v4192, %v4241
        %v4250 = vadd.f32 %v4193, %v4242
        %v4251 = vadd.f32 %v4194, %v4243
        %v4252 = vadd.f32 %v4195, %v4244
        %v4253 = vadd.f32 %v4196, %v4245
        %v4254 = vsub.s32 %v3018, 32
        %v4255 = vlaneseq
        %v4256 = vshrl.u32 %v4255, 7
        %v4257 = vsub.s32 0, %v4256
        %v4258 = vrot.slane %v4254, %v4257
        %v4259 = vlaneseq
        %v4260 = vshrl.u32 %v4259, 7
        %v4261 = vsub.s32 1, %v4260
        %v4262 = vrot.slane %v4254, %v4261
        %v4263 = vlaneseq
        %v4264 = vshrl.u32 %v4263, 7
        %v4265 = vsub.s32 2, %v4264
        %v4266 = vrot.slane %v4254, %v4265
        %v4267 = vlaneseq
        %v4268 = vshrl.u32 %v4267, 7
        %v4269 = vsub.s32 3, %v4268
        %v4270 = vrot.slane %v4254, %v4269
        %v4271 = vlaneseq
        %v4272 = vshrl.u32 %v4271, 7
        %v4273 = vsub.s32 4, %v4272
        %v4274 = vrot.slane %v4254, %v4273
        %v4275 = vlaneseq
        %v4276 = vshrl.u32 %v4275, 7
        %v4277 = vsub.s32 5, %v4276
        %v4278 = vrot.slane %v4254, %v4277
        %v4279 = vlaneseq
        %v4280 = vshrl.u32 %v4279, 7
        %v4281 = vsub.s32 6, %v4280
        %v4282 = vrot.slane %v4254, %v4281
        %v4283 = vlaneseq
        %v4284 = vshrl.u32 %v4283, 7
        %v4285 = vsub.s32 7, %v4284
        %v4286 = vrot.slane %v4254, %v4285
        %vm4287 = vcmp.eq.s32.totalorder %v180, %v4258
        %vm4288 = vcmp.eq.s32.totalorder %v180, %v4262
        %vm4289 = vcmp.eq.s32.totalorder %v180, %v4266
        %vm4290 = vcmp.eq.s32.totalorder %v180, %v4270
        %vm4291 = vcmp.eq.s32.totalorder %v180, %v4274
        %vm4292 = vcmp.eq.s32.totalorder %v180, %v4278
        %vm4293 = vcmp.eq.s32.totalorder %v180, %v4282
        %vm4294 = vcmp.eq.s32.totalorder %v180, %v4286
        %v4295 = vsel %vm4287, %v3346, 0.0
        %v4296 = vsel %vm4288, %v3350, 0.0
        %v4297 = vsel %vm4289, %v3354, 0.0
        %v4298 = vsel %vm4290, %v3358, 0.0
        %v4299 = vsel %vm4291, %v3362, 0.0
        %v4300 = vsel %vm4292, %v3366, 0.0
        %v4301 = vsel %vm4293, %v3370, 0.0
        %v4302 = vsel %vm4294, %v3374, 0.0
        %v4303 = vadd.f32 %v4246, %v4295
        %v4304 = vadd.f32 %v4247, %v4296
        %v4305 = vadd.f32 %v4248, %v4297
        %v4306 = vadd.f32 %v4249, %v4298
        %v4307 = vadd.f32 %v4250, %v4299
        %v4308 = vadd.f32 %v4251, %v4300
        %v4309 = vadd.f32 %v4252, %v4301
        %v4310 = vadd.f32 %v4253, %v4302
        %4311 = vst [vmem:[#allocation2 + $0x400] sm:$0xff] %v4303
        %4312 = vst [vmem:[#allocation2 + $0x408] sm:$0xff] %v4304
        %4313 = vst [vmem:[#allocation2 + $0x410] sm:$0xff] %v4305
        %4314 = vst [vmem:[#allocation2 + $0x418] sm:$0xff] %v4306
        %4315 = vst [vmem:[#allocation2 + $0x420] sm:$0xff] %v4307
        %4316 = vst [vmem:[#allocation2 + $0x428] sm:$0xff] %v4308
        %4317 = vst [vmem:[#allocation2 + $0x430] sm:$0xff] %v4309
        %4318 = vst [vmem:[#allocation2 + $0x438] sm:$0xff] %v4310
        %v4319 = vsub.s32 %v3006, 40
        %v4320 = vlaneseq
        %v4321 = vshrl.u32 %v4320, 7
        %v4322 = vsub.s32 0, %v4321
        %v4323 = vrot.slane %v4319, %v4322
        %v4324 = vlaneseq
        %v4325 = vshrl.u32 %v4324, 7
        %v4326 = vsub.s32 1, %v4325
        %v4327 = vrot.slane %v4319, %v4326
        %v4328 = vlaneseq
        %v4329 = vshrl.u32 %v4328, 7
        %v4330 = vsub.s32 2, %v4329
        %v4331 = vrot.slane %v4319, %v4330
        %v4332 = vlaneseq
        %v4333 = vshrl.u32 %v4332, 7
        %v4334 = vsub.s32 3, %v4333
        %v4335 = vrot.slane %v4319, %v4334
        %v4336 = vlaneseq
        %v4337 = vshrl.u32 %v4336, 7
        %v4338 = vsub.s32 4, %v4337
        %v4339 = vrot.slane %v4319, %v4338
        %v4340 = vlaneseq
        %v4341 = vshrl.u32 %v4340, 7
        %v4342 = vsub.s32 5, %v4341
        %v4343 = vrot.slane %v4319, %v4342
        %v4344 = vlaneseq
        %v4345 = vshrl.u32 %v4344, 7
        %v4346 = vsub.s32 6, %v4345
        %v4347 = vrot.slane %v4319, %v4346
        %v4348 = vlaneseq
        %v4349 = vshrl.u32 %v4348, 7
        %v4350 = vsub.s32 7, %v4349
        %v4351 = vrot.slane %v4319, %v4350
        %vm4352 = vcmp.eq.s32.totalorder %v180, %v4323
        %vm4353 = vcmp.eq.s32.totalorder %v180, %v4327
        %vm4354 = vcmp.eq.s32.totalorder %v180, %v4331
        %vm4355 = vcmp.eq.s32.totalorder %v180, %v4335
        %vm4356 = vcmp.eq.s32.totalorder %v180, %v4339
        %vm4357 = vcmp.eq.s32.totalorder %v180, %v4343
        %vm4358 = vcmp.eq.s32.totalorder %v180, %v4347
        %vm4359 = vcmp.eq.s32.totalorder %v180, %v4351
        %v4360 = vsel %vm4352, %v3063, 0.0
        %v4361 = vsel %vm4353, %v3067, 0.0
        %v4362 = vsel %vm4354, %v3071, 0.0
        %v4363 = vsel %vm4355, %v3075, 0.0
        %v4364 = vsel %vm4356, %v3079, 0.0
        %v4365 = vsel %vm4357, %v3083, 0.0
        %v4366 = vsel %vm4358, %v3087, 0.0
        %v4367 = vsel %vm4359, %v3091, 0.0
        %v4368 = vsub.s32 %v3011, 40
        %v4369 = vlaneseq
        %v4370 = vshrl.u32 %v4369, 7
        %v4371 = vsub.s32 0, %v4370
        %v4372 = vrot.slane %v4368, %v4371
        %v4373 = vlaneseq
        %v4374 = vshrl.u32 %v4373, 7
        %v4375 = vsub.s32 1, %v4374
        %v4376 = vrot.slane %v4368, %v4375
        %v4377 = vlaneseq
        %v4378 = vshrl.u32 %v4377, 7
        %v4379 = vsub.s32 2, %v4378
        %v4380 = vrot.slane %v4368, %v4379
        %v4381 = vlaneseq
        %v4382 = vshrl.u32 %v4381, 7
        %v4383 = vsub.s32 3, %v4382
        %v4384 = vrot.slane %v4368, %v4383
        %v4385 = vlaneseq
        %v4386 = vshrl.u32 %v4385, 7
        %v4387 = vsub.s32 4, %v4386
        %v4388 = vrot.slane %v4368, %v4387
        %v4389 = vlaneseq
        %v4390 = vshrl.u32 %v4389, 7
        %v4391 = vsub.s32 5, %v4390
        %v4392 = vrot.slane %v4368, %v4391
        %v4393 = vlaneseq
        %v4394 = vshrl.u32 %v4393, 7
        %v4395 = vsub.s32 6, %v4394
        %v4396 = vrot.slane %v4368, %v4395
        %v4397 = vlaneseq
        %v4398 = vshrl.u32 %v4397, 7
        %v4399 = vsub.s32 7, %v4398
        %v4400 = vrot.slane %v4368, %v4399
        %vm4401 = vcmp.eq.s32.totalorder %v180, %v4372
        %vm4402 = vcmp.eq.s32.totalorder %v180, %v4376
        %vm4403 = vcmp.eq.s32.totalorder %v180, %v4380
        %vm4404 = vcmp.eq.s32.totalorder %v180, %v4384
        %vm4405 = vcmp.eq.s32.totalorder %v180, %v4388
        %vm4406 = vcmp.eq.s32.totalorder %v180, %v4392
        %vm4407 = vcmp.eq.s32.totalorder %v180, %v4396
        %vm4408 = vcmp.eq.s32.totalorder %v180, %v4400
        %v4409 = vsel %vm4401, %v3152, 0.0
        %v4410 = vsel %vm4402, %v3156, 0.0
        %v4411 = vsel %vm4403, %v3160, 0.0
        %v4412 = vsel %vm4404, %v3164, 0.0
        %v4413 = vsel %vm4405, %v3168, 0.0
        %v4414 = vsel %vm4406, %v3172, 0.0
        %v4415 = vsel %vm4407, %v3176, 0.0
        %v4416 = vsel %vm4408, %v3180, 0.0
        %v4417 = vadd.f32 %v4360, %v4409
        %v4418 = vadd.f32 %v4361, %v4410
        %v4419 = vadd.f32 %v4362, %v4411
        %v4420 = vadd.f32 %v4363, %v4412
        %v4421 = vadd.f32 %v4364, %v4413
        %v4422 = vadd.f32 %v4365, %v4414
        %v4423 = vadd.f32 %v4366, %v4415
        %v4424 = vadd.f32 %v4367, %v4416
        %v4425 = vsub.s32 %v3015, 40
        %v4426 = vlaneseq
        %v4427 = vshrl.u32 %v4426, 7
        %v4428 = vsub.s32 0, %v4427
        %v4429 = vrot.slane %v4425, %v4428
        %v4430 = vlaneseq
        %v4431 = vshrl.u32 %v4430, 7
        %v4432 = vsub.s32 1, %v4431
        %v4433 = vrot.slane %v4425, %v4432
        %v4434 = vlaneseq
        %v4435 = vshrl.u32 %v4434, 7
        %v4436 = vsub.s32 2, %v4435
        %v4437 = vrot.slane %v4425, %v4436
        %v4438 = vlaneseq
        %v4439 = vshrl.u32 %v4438, 7
        %v4440 = vsub.s32 3, %v4439
        %v4441 = vrot.slane %v4425, %v4440
        %v4442 = vlaneseq
        %v4443 = vshrl.u32 %v4442, 7
        %v4444 = vsub.s32 4, %v4443
        %v4445 = vrot.slane %v4425, %v4444
        %v4446 = vlaneseq
        %v4447 = vshrl.u32 %v4446, 7
        %v4448 = vsub.s32 5, %v4447
        %v4449 = vrot.slane %v4425, %v4448
        %v4450 = vlaneseq
        %v4451 = vshrl.u32 %v4450, 7
        %v4452 = vsub.s32 6, %v4451
        %v4453 = vrot.slane %v4425, %v4452
        %v4454 = vlaneseq
        %v4455 = vshrl.u32 %v4454, 7
        %v4456 = vsub.s32 7, %v4455
        %v4457 = vrot.slane %v4425, %v4456
        %vm4458 = vcmp.eq.s32.totalorder %v180, %v4429
        %vm4459 = vcmp.eq.s32.totalorder %v180, %v4433
        %vm4460 = vcmp.eq.s32.totalorder %v180, %v4437
        %vm4461 = vcmp.eq.s32.totalorder %v180, %v4441
        %vm4462 = vcmp.eq.s32.totalorder %v180, %v4445
        %vm4463 = vcmp.eq.s32.totalorder %v180, %v4449
        %vm4464 = vcmp.eq.s32.totalorder %v180, %v4453
        %vm4465 = vcmp.eq.s32.totalorder %v180, %v4457
        %v4466 = vsel %vm4458, %v3249, 0.0
        %v4467 = vsel %vm4459, %v3253, 0.0
        %v4468 = vsel %vm4460, %v3257, 0.0
        %v4469 = vsel %vm4461, %v3261, 0.0
        %v4470 = vsel %vm4462, %v3265, 0.0
        %v4471 = vsel %vm4463, %v3269, 0.0
        %v4472 = vsel %vm4464, %v3273, 0.0
        %v4473 = vsel %vm4465, %v3277, 0.0
        %v4474 = vadd.f32 %v4417, %v4466
        %v4475 = vadd.f32 %v4418, %v4467
        %v4476 = vadd.f32 %v4419, %v4468
        %v4477 = vadd.f32 %v4420, %v4469
        %v4478 = vadd.f32 %v4421, %v4470
        %v4479 = vadd.f32 %v4422, %v4471
        %v4480 = vadd.f32 %v4423, %v4472
        %v4481 = vadd.f32 %v4424, %v4473
        %v4482 = vsub.s32 %v3018, 40
        %v4483 = vlaneseq
        %v4484 = vshrl.u32 %v4483, 7
        %v4485 = vsub.s32 0, %v4484
        %v4486 = vrot.slane %v4482, %v4485
        %v4487 = vlaneseq
        %v4488 = vshrl.u32 %v4487, 7
        %v4489 = vsub.s32 1, %v4488
        %v4490 = vrot.slane %v4482, %v4489
        %v4491 = vlaneseq
        %v4492 = vshrl.u32 %v4491, 7
        %v4493 = vsub.s32 2, %v4492
        %v4494 = vrot.slane %v4482, %v4493
        %v4495 = vlaneseq
        %v4496 = vshrl.u32 %v4495, 7
        %v4497 = vsub.s32 3, %v4496
        %v4498 = vrot.slane %v4482, %v4497
        %v4499 = vlaneseq
        %v4500 = vshrl.u32 %v4499, 7
        %v4501 = vsub.s32 4, %v4500
        %v4502 = vrot.slane %v4482, %v4501
        %v4503 = vlaneseq
        %v4504 = vshrl.u32 %v4503, 7
        %v4505 = vsub.s32 5, %v4504
        %v4506 = vrot.slane %v4482, %v4505
        %v4507 = vlaneseq
        %v4508 = vshrl.u32 %v4507, 7
        %v4509 = vsub.s32 6, %v4508
        %v4510 = vrot.slane %v4482, %v4509
        %v4511 = vlaneseq
        %v4512 = vshrl.u32 %v4511, 7
        %v4513 = vsub.s32 7, %v4512
        %v4514 = vrot.slane %v4482, %v4513
        %vm4515 = vcmp.eq.s32.totalorder %v180, %v4486
        %vm4516 = vcmp.eq.s32.totalorder %v180, %v4490
        %vm4517 = vcmp.eq.s32.totalorder %v180, %v4494
        %vm4518 = vcmp.eq.s32.totalorder %v180, %v4498
        %vm4519 = vcmp.eq.s32.totalorder %v180, %v4502
        %vm4520 = vcmp.eq.s32.totalorder %v180, %v4506
        %vm4521 = vcmp.eq.s32.totalorder %v180, %v4510
        %vm4522 = vcmp.eq.s32.totalorder %v180, %v4514
        %v4523 = vsel %vm4515, %v3346, 0.0
        %v4524 = vsel %vm4516, %v3350, 0.0
        %v4525 = vsel %vm4517, %v3354, 0.0
        %v4526 = vsel %vm4518, %v3358, 0.0
        %v4527 = vsel %vm4519, %v3362, 0.0
        %v4528 = vsel %vm4520, %v3366, 0.0
        %v4529 = vsel %vm4521, %v3370, 0.0
        %v4530 = vsel %vm4522, %v3374, 0.0
        %v4531 = vadd.f32 %v4474, %v4523
        %v4532 = vadd.f32 %v4475, %v4524
        %v4533 = vadd.f32 %v4476, %v4525
        %v4534 = vadd.f32 %v4477, %v4526
        %v4535 = vadd.f32 %v4478, %v4527
        %v4536 = vadd.f32 %v4479, %v4528
        %v4537 = vadd.f32 %v4480, %v4529
        %v4538 = vadd.f32 %v4481, %v4530
        %4539 = vst [vmem:[#allocation2 + $0x440] sm:$0xff] %v4531
        %4540 = vst [vmem:[#allocation2 + $0x448] sm:$0xff] %v4532
        %4541 = vst [vmem:[#allocation2 + $0x450] sm:$0xff] %v4533
        %4542 = vst [vmem:[#allocation2 + $0x458] sm:$0xff] %v4534
        %4543 = vst [vmem:[#allocation2 + $0x460] sm:$0xff] %v4535
        %4544 = vst [vmem:[#allocation2 + $0x468] sm:$0xff] %v4536
        %4545 = vst [vmem:[#allocation2 + $0x470] sm:$0xff] %v4537
        %4546 = vst [vmem:[#allocation2 + $0x478] sm:$0xff] %v4538
        %v4547 = vsub.s32 %v3006, 48
        %v4548 = vlaneseq
        %v4549 = vshrl.u32 %v4548, 7
        %v4550 = vsub.s32 0, %v4549
        %v4551 = vrot.slane %v4547, %v4550
        %v4552 = vlaneseq
        %v4553 = vshrl.u32 %v4552, 7
        %v4554 = vsub.s32 1, %v4553
        %v4555 = vrot.slane %v4547, %v4554
        %v4556 = vlaneseq
        %v4557 = vshrl.u32 %v4556, 7
        %v4558 = vsub.s32 2, %v4557
        %v4559 = vrot.slane %v4547, %v4558
        %v4560 = vlaneseq
        %v4561 = vshrl.u32 %v4560, 7
        %v4562 = vsub.s32 3, %v4561
        %v4563 = vrot.slane %v4547, %v4562
        %v4564 = vlaneseq
        %v4565 = vshrl.u32 %v4564, 7
        %v4566 = vsub.s32 4, %v4565
        %v4567 = vrot.slane %v4547, %v4566
        %v4568 = vlaneseq
        %v4569 = vshrl.u32 %v4568, 7
        %v4570 = vsub.s32 5, %v4569
        %v4571 = vrot.slane %v4547, %v4570
        %v4572 = vlaneseq
        %v4573 = vshrl.u32 %v4572, 7
        %v4574 = vsub.s32 6, %v4573
        %v4575 = vrot.slane %v4547, %v4574
        %v4576 = vlaneseq
        %v4577 = vshrl.u32 %v4576, 7
        %v4578 = vsub.s32 7, %v4577
        %v4579 = vrot.slane %v4547, %v4578
        %vm4580 = vcmp.eq.s32.totalorder %v180, %v4551
        %vm4581 = vcmp.eq.s32.totalorder %v180, %v4555
        %vm4582 = vcmp.eq.s32.totalorder %v180, %v4559
        %vm4583 = vcmp.eq.s32.totalorder %v180, %v4563
        %vm4584 = vcmp.eq.s32.totalorder %v180, %v4567
        %vm4585 = vcmp.eq.s32.totalorder %v180, %v4571
        %vm4586 = vcmp.eq.s32.totalorder %v180, %v4575
        %vm4587 = vcmp.eq.s32.totalorder %v180, %v4579
        %v4588 = vsel %vm4580, %v3063, 0.0
        %v4589 = vsel %vm4581, %v3067, 0.0
        %v4590 = vsel %vm4582, %v3071, 0.0
        %v4591 = vsel %vm4583, %v3075, 0.0
        %v4592 = vsel %vm4584, %v3079, 0.0
        %v4593 = vsel %vm4585, %v3083, 0.0
        %v4594 = vsel %vm4586, %v3087, 0.0
        %v4595 = vsel %vm4587, %v3091, 0.0
        %v4596 = vsub.s32 %v3011, 48
        %v4597 = vlaneseq
        %v4598 = vshrl.u32 %v4597, 7
        %v4599 = vsub.s32 0, %v4598
        %v4600 = vrot.slane %v4596, %v4599
        %v4601 = vlaneseq
        %v4602 = vshrl.u32 %v4601, 7
        %v4603 = vsub.s32 1, %v4602
        %v4604 = vrot.slane %v4596, %v4603
        %v4605 = vlaneseq
        %v4606 = vshrl.u32 %v4605, 7
        %v4607 = vsub.s32 2, %v4606
        %v4608 = vrot.slane %v4596, %v4607
        %v4609 = vlaneseq
        %v4610 = vshrl.u32 %v4609, 7
        %v4611 = vsub.s32 3, %v4610
        %v4612 = vrot.slane %v4596, %v4611
        %v4613 = vlaneseq
        %v4614 = vshrl.u32 %v4613, 7
        %v4615 = vsub.s32 4, %v4614
        %v4616 = vrot.slane %v4596, %v4615
        %v4617 = vlaneseq
        %v4618 = vshrl.u32 %v4617, 7
        %v4619 = vsub.s32 5, %v4618
        %v4620 = vrot.slane %v4596, %v4619
        %v4621 = vlaneseq
        %v4622 = vshrl.u32 %v4621, 7
        %v4623 = vsub.s32 6, %v4622
        %v4624 = vrot.slane %v4596, %v4623
        %v4625 = vlaneseq
        %v4626 = vshrl.u32 %v4625, 7
        %v4627 = vsub.s32 7, %v4626
        %v4628 = vrot.slane %v4596, %v4627
        %vm4629 = vcmp.eq.s32.totalorder %v180, %v4600
        %vm4630 = vcmp.eq.s32.totalorder %v180, %v4604
        %vm4631 = vcmp.eq.s32.totalorder %v180, %v4608
        %vm4632 = vcmp.eq.s32.totalorder %v180, %v4612
        %vm4633 = vcmp.eq.s32.totalorder %v180, %v4616
        %vm4634 = vcmp.eq.s32.totalorder %v180, %v4620
        %vm4635 = vcmp.eq.s32.totalorder %v180, %v4624
        %vm4636 = vcmp.eq.s32.totalorder %v180, %v4628
        %v4637 = vsel %vm4629, %v3152, 0.0
        %v4638 = vsel %vm4630, %v3156, 0.0
        %v4639 = vsel %vm4631, %v3160, 0.0
        %v4640 = vsel %vm4632, %v3164, 0.0
        %v4641 = vsel %vm4633, %v3168, 0.0
        %v4642 = vsel %vm4634, %v3172, 0.0
        %v4643 = vsel %vm4635, %v3176, 0.0
        %v4644 = vsel %vm4636, %v3180, 0.0
        %v4645 = vadd.f32 %v4588, %v4637
        %v4646 = vadd.f32 %v4589, %v4638
        %v4647 = vadd.f32 %v4590, %v4639
        %v4648 = vadd.f32 %v4591, %v4640
        %v4649 = vadd.f32 %v4592, %v4641
        %v4650 = vadd.f32 %v4593, %v4642
        %v4651 = vadd.f32 %v4594, %v4643
        %v4652 = vadd.f32 %v4595, %v4644
        %v4653 = vsub.s32 %v3015, 48
        %v4654 = vlaneseq
        %v4655 = vshrl.u32 %v4654, 7
        %v4656 = vsub.s32 0, %v4655
        %v4657 = vrot.slane %v4653, %v4656
        %v4658 = vlaneseq
        %v4659 = vshrl.u32 %v4658, 7
        %v4660 = vsub.s32 1, %v4659
        %v4661 = vrot.slane %v4653, %v4660
        %v4662 = vlaneseq
        %v4663 = vshrl.u32 %v4662, 7
        %v4664 = vsub.s32 2, %v4663
        %v4665 = vrot.slane %v4653, %v4664
        %v4666 = vlaneseq
        %v4667 = vshrl.u32 %v4666, 7
        %v4668 = vsub.s32 3, %v4667
        %v4669 = vrot.slane %v4653, %v4668
        %v4670 = vlaneseq
        %v4671 = vshrl.u32 %v4670, 7
        %v4672 = vsub.s32 4, %v4671
        %v4673 = vrot.slane %v4653, %v4672
        %v4674 = vlaneseq
        %v4675 = vshrl.u32 %v4674, 7
        %v4676 = vsub.s32 5, %v4675
        %v4677 = vrot.slane %v4653, %v4676
        %v4678 = vlaneseq
        %v4679 = vshrl.u32 %v4678, 7
        %v4680 = vsub.s32 6, %v4679
        %v4681 = vrot.slane %v4653, %v4680
        %v4682 = vlaneseq
        %v4683 = vshrl.u32 %v4682, 7
        %v4684 = vsub.s32 7, %v4683
        %v4685 = vrot.slane %v4653, %v4684
        %vm4686 = vcmp.eq.s32.totalorder %v180, %v4657
        %vm4687 = vcmp.eq.s32.totalorder %v180, %v4661
        %vm4688 = vcmp.eq.s32.totalorder %v180, %v4665
        %vm4689 = vcmp.eq.s32.totalorder %v180, %v4669
        %vm4690 = vcmp.eq.s32.totalorder %v180, %v4673
        %vm4691 = vcmp.eq.s32.totalorder %v180, %v4677
        %vm4692 = vcmp.eq.s32.totalorder %v180, %v4681
        %vm4693 = vcmp.eq.s32.totalorder %v180, %v4685
        %v4694 = vsel %vm4686, %v3249, 0.0
        %v4695 = vsel %vm4687, %v3253, 0.0
        %v4696 = vsel %vm4688, %v3257, 0.0
        %v4697 = vsel %vm4689, %v3261, 0.0
        %v4698 = vsel %vm4690, %v3265, 0.0
        %v4699 = vsel %vm4691, %v3269, 0.0
        %v4700 = vsel %vm4692, %v3273, 0.0
        %v4701 = vsel %vm4693, %v3277, 0.0
        %v4702 = vadd.f32 %v4645, %v4694
        %v4703 = vadd.f32 %v4646, %v4695
        %v4704 = vadd.f32 %v4647, %v4696
        %v4705 = vadd.f32 %v4648, %v4697
        %v4706 = vadd.f32 %v4649, %v4698
        %v4707 = vadd.f32 %v4650, %v4699
        %v4708 = vadd.f32 %v4651, %v4700
        %v4709 = vadd.f32 %v4652, %v4701
        %v4710 = vsub.s32 %v3018, 48
        %v4711 = vlaneseq
        %v4712 = vshrl.u32 %v4711, 7
        %v4713 = vsub.s32 0, %v4712
        %v4714 = vrot.slane %v4710, %v4713
        %v4715 = vlaneseq
        %v4716 = vshrl.u32 %v4715, 7
        %v4717 = vsub.s32 1, %v4716
        %v4718 = vrot.slane %v4710, %v4717
        %v4719 = vlaneseq
        %v4720 = vshrl.u32 %v4719, 7
        %v4721 = vsub.s32 2, %v4720
        %v4722 = vrot.slane %v4710, %v4721
        %v4723 = vlaneseq
        %v4724 = vshrl.u32 %v4723, 7
        %v4725 = vsub.s32 3, %v4724
        %v4726 = vrot.slane %v4710, %v4725
        %v4727 = vlaneseq
        %v4728 = vshrl.u32 %v4727, 7
        %v4729 = vsub.s32 4, %v4728
        %v4730 = vrot.slane %v4710, %v4729
        %v4731 = vlaneseq
        %v4732 = vshrl.u32 %v4731, 7
        %v4733 = vsub.s32 5, %v4732
        %v4734 = vrot.slane %v4710, %v4733
        %v4735 = vlaneseq
        %v4736 = vshrl.u32 %v4735, 7
        %v4737 = vsub.s32 6, %v4736
        %v4738 = vrot.slane %v4710, %v4737
        %v4739 = vlaneseq
        %v4740 = vshrl.u32 %v4739, 7
        %v4741 = vsub.s32 7, %v4740
        %v4742 = vrot.slane %v4710, %v4741
        %vm4743 = vcmp.eq.s32.totalorder %v180, %v4714
        %vm4744 = vcmp.eq.s32.totalorder %v180, %v4718
        %vm4745 = vcmp.eq.s32.totalorder %v180, %v4722
        %vm4746 = vcmp.eq.s32.totalorder %v180, %v4726
        %vm4747 = vcmp.eq.s32.totalorder %v180, %v4730
        %vm4748 = vcmp.eq.s32.totalorder %v180, %v4734
        %vm4749 = vcmp.eq.s32.totalorder %v180, %v4738
        %vm4750 = vcmp.eq.s32.totalorder %v180, %v4742
        %v4751 = vsel %vm4743, %v3346, 0.0
        %v4752 = vsel %vm4744, %v3350, 0.0
        %v4753 = vsel %vm4745, %v3354, 0.0
        %v4754 = vsel %vm4746, %v3358, 0.0
        %v4755 = vsel %vm4747, %v3362, 0.0
        %v4756 = vsel %vm4748, %v3366, 0.0
        %v4757 = vsel %vm4749, %v3370, 0.0
        %v4758 = vsel %vm4750, %v3374, 0.0
        %v4759 = vadd.f32 %v4702, %v4751
        %v4760 = vadd.f32 %v4703, %v4752
        %v4761 = vadd.f32 %v4704, %v4753
        %v4762 = vadd.f32 %v4705, %v4754
        %v4763 = vadd.f32 %v4706, %v4755
        %v4764 = vadd.f32 %v4707, %v4756
        %v4765 = vadd.f32 %v4708, %v4757
        %v4766 = vadd.f32 %v4709, %v4758
        %4767 = vst [vmem:[#allocation2 + $0x480] sm:$0xff] %v4759
        %4768 = vst [vmem:[#allocation2 + $0x488] sm:$0xff] %v4760
        %4769 = vst [vmem:[#allocation2 + $0x490] sm:$0xff] %v4761
        %4770 = vst [vmem:[#allocation2 + $0x498] sm:$0xff] %v4762
        %4771 = vst [vmem:[#allocation2 + $0x4a0] sm:$0xff] %v4763
        %4772 = vst [vmem:[#allocation2 + $0x4a8] sm:$0xff] %v4764
        %4773 = vst [vmem:[#allocation2 + $0x4b0] sm:$0xff] %v4765
        %4774 = vst [vmem:[#allocation2 + $0x4b8] sm:$0xff] %v4766
        %v4775 = vsub.s32 %v3006, 56
        %v4776 = vlaneseq
        %v4777 = vshrl.u32 %v4776, 7
        %v4778 = vsub.s32 0, %v4777
        %v4779 = vrot.slane %v4775, %v4778
        %v4780 = vlaneseq
        %v4781 = vshrl.u32 %v4780, 7
        %v4782 = vsub.s32 1, %v4781
        %v4783 = vrot.slane %v4775, %v4782
        %v4784 = vlaneseq
        %v4785 = vshrl.u32 %v4784, 7
        %v4786 = vsub.s32 2, %v4785
        %v4787 = vrot.slane %v4775, %v4786
        %v4788 = vlaneseq
        %v4789 = vshrl.u32 %v4788, 7
        %v4790 = vsub.s32 3, %v4789
        %v4791 = vrot.slane %v4775, %v4790
        %v4792 = vlaneseq
        %v4793 = vshrl.u32 %v4792, 7
        %v4794 = vsub.s32 4, %v4793
        %v4795 = vrot.slane %v4775, %v4794
        %v4796 = vlaneseq
        %v4797 = vshrl.u32 %v4796, 7
        %v4798 = vsub.s32 5, %v4797
        %v4799 = vrot.slane %v4775, %v4798
        %v4800 = vlaneseq
        %v4801 = vshrl.u32 %v4800, 7
        %v4802 = vsub.s32 6, %v4801
        %v4803 = vrot.slane %v4775, %v4802
        %v4804 = vlaneseq
        %v4805 = vshrl.u32 %v4804, 7
        %v4806 = vsub.s32 7, %v4805
        %v4807 = vrot.slane %v4775, %v4806
        %vm4808 = vcmp.eq.s32.totalorder %v180, %v4779
        %vm4809 = vcmp.eq.s32.totalorder %v180, %v4783
        %vm4810 = vcmp.eq.s32.totalorder %v180, %v4787
        %vm4811 = vcmp.eq.s32.totalorder %v180, %v4791
        %vm4812 = vcmp.eq.s32.totalorder %v180, %v4795
        %vm4813 = vcmp.eq.s32.totalorder %v180, %v4799
        %vm4814 = vcmp.eq.s32.totalorder %v180, %v4803
        %vm4815 = vcmp.eq.s32.totalorder %v180, %v4807
        %v4816 = vsel %vm4808, %v3063, 0.0
        %v4817 = vsel %vm4809, %v3067, 0.0
        %v4818 = vsel %vm4810, %v3071, 0.0
        %v4819 = vsel %vm4811, %v3075, 0.0
        %v4820 = vsel %vm4812, %v3079, 0.0
        %v4821 = vsel %vm4813, %v3083, 0.0
        %v4822 = vsel %vm4814, %v3087, 0.0
        %v4823 = vsel %vm4815, %v3091, 0.0
        %v4824 = vsub.s32 %v3011, 56
        %v4825 = vlaneseq
        %v4826 = vshrl.u32 %v4825, 7
        %v4827 = vsub.s32 0, %v4826
        %v4828 = vrot.slane %v4824, %v4827
        %v4829 = vlaneseq
        %v4830 = vshrl.u32 %v4829, 7
        %v4831 = vsub.s32 1, %v4830
        %v4832 = vrot.slane %v4824, %v4831
        %v4833 = vlaneseq
        %v4834 = vshrl.u32 %v4833, 7
        %v4835 = vsub.s32 2, %v4834
        %v4836 = vrot.slane %v4824, %v4835
        %v4837 = vlaneseq
        %v4838 = vshrl.u32 %v4837, 7
        %v4839 = vsub.s32 3, %v4838
        %v4840 = vrot.slane %v4824, %v4839
        %v4841 = vlaneseq
        %v4842 = vshrl.u32 %v4841, 7
        %v4843 = vsub.s32 4, %v4842
        %v4844 = vrot.slane %v4824, %v4843
        %v4845 = vlaneseq
        %v4846 = vshrl.u32 %v4845, 7
        %v4847 = vsub.s32 5, %v4846
        %v4848 = vrot.slane %v4824, %v4847
        %v4849 = vlaneseq
        %v4850 = vshrl.u32 %v4849, 7
        %v4851 = vsub.s32 6, %v4850
        %v4852 = vrot.slane %v4824, %v4851
        %v4853 = vlaneseq
        %v4854 = vshrl.u32 %v4853, 7
        %v4855 = vsub.s32 7, %v4854
        %v4856 = vrot.slane %v4824, %v4855
        %vm4857 = vcmp.eq.s32.totalorder %v180, %v4828
        %vm4858 = vcmp.eq.s32.totalorder %v180, %v4832
        %vm4859 = vcmp.eq.s32.totalorder %v180, %v4836
        %vm4860 = vcmp.eq.s32.totalorder %v180, %v4840
        %vm4861 = vcmp.eq.s32.totalorder %v180, %v4844
        %vm4862 = vcmp.eq.s32.totalorder %v180, %v4848
        %vm4863 = vcmp.eq.s32.totalorder %v180, %v4852
        %vm4864 = vcmp.eq.s32.totalorder %v180, %v4856
        %v4865 = vsel %vm4857, %v3152, 0.0
        %v4866 = vsel %vm4858, %v3156, 0.0
        %v4867 = vsel %vm4859, %v3160, 0.0
        %v4868 = vsel %vm4860, %v3164, 0.0
        %v4869 = vsel %vm4861, %v3168, 0.0
        %v4870 = vsel %vm4862, %v3172, 0.0
        %v4871 = vsel %vm4863, %v3176, 0.0
        %v4872 = vsel %vm4864, %v3180, 0.0
        %v4873 = vadd.f32 %v4816, %v4865
        %v4874 = vadd.f32 %v4817, %v4866
        %v4875 = vadd.f32 %v4818, %v4867
        %v4876 = vadd.f32 %v4819, %v4868
        %v4877 = vadd.f32 %v4820, %v4869
        %v4878 = vadd.f32 %v4821, %v4870
        %v4879 = vadd.f32 %v4822, %v4871
        %v4880 = vadd.f32 %v4823, %v4872
        %v4881 = vsub.s32 %v3015, 56
        %v4882 = vlaneseq
        %v4883 = vshrl.u32 %v4882, 7
        %v4884 = vsub.s32 0, %v4883
        %v4885 = vrot.slane %v4881, %v4884
        %v4886 = vlaneseq
        %v4887 = vshrl.u32 %v4886, 7
        %v4888 = vsub.s32 1, %v4887
        %v4889 = vrot.slane %v4881, %v4888
        %v4890 = vlaneseq
        %v4891 = vshrl.u32 %v4890, 7
        %v4892 = vsub.s32 2, %v4891
        %v4893 = vrot.slane %v4881, %v4892
        %v4894 = vlaneseq
        %v4895 = vshrl.u32 %v4894, 7
        %v4896 = vsub.s32 3, %v4895
        %v4897 = vrot.slane %v4881, %v4896
        %v4898 = vlaneseq
        %v4899 = vshrl.u32 %v4898, 7
        %v4900 = vsub.s32 4, %v4899
        %v4901 = vrot.slane %v4881, %v4900
        %v4902 = vlaneseq
        %v4903 = vshrl.u32 %v4902, 7
        %v4904 = vsub.s32 5, %v4903
        %v4905 = vrot.slane %v4881, %v4904
        %v4906 = vlaneseq
        %v4907 = vshrl.u32 %v4906, 7
        %v4908 = vsub.s32 6, %v4907
        %v4909 = vrot.slane %v4881, %v4908
        %v4910 = vlaneseq
        %v4911 = vshrl.u32 %v4910, 7
        %v4912 = vsub.s32 7, %v4911
        %v4913 = vrot.slane %v4881, %v4912
        %vm4914 = vcmp.eq.s32.totalorder %v180, %v4885
        %vm4915 = vcmp.eq.s32.totalorder %v180, %v4889
        %vm4916 = vcmp.eq.s32.totalorder %v180, %v4893
        %vm4917 = vcmp.eq.s32.totalorder %v180, %v4897
        %vm4918 = vcmp.eq.s32.totalorder %v180, %v4901
        %vm4919 = vcmp.eq.s32.totalorder %v180, %v4905
        %vm4920 = vcmp.eq.s32.totalorder %v180, %v4909
        %vm4921 = vcmp.eq.s32.totalorder %v180, %v4913
        %v4922 = vsel %vm4914, %v3249, 0.0
        %v4923 = vsel %vm4915, %v3253, 0.0
        %v4924 = vsel %vm4916, %v3257, 0.0
        %v4925 = vsel %vm4917, %v3261, 0.0
        %v4926 = vsel %vm4918, %v3265, 0.0
        %v4927 = vsel %vm4919, %v3269, 0.0
        %v4928 = vsel %vm4920, %v3273, 0.0
        %v4929 = vsel %vm4921, %v3277, 0.0
        %v4930 = vadd.f32 %v4873, %v4922
        %v4931 = vadd.f32 %v4874, %v4923
        %v4932 = vadd.f32 %v4875, %v4924
        %v4933 = vadd.f32 %v4876, %v4925
        %v4934 = vadd.f32 %v4877, %v4926
        %v4935 = vadd.f32 %v4878, %v4927
        %v4936 = vadd.f32 %v4879, %v4928
        %v4937 = vadd.f32 %v4880, %v4929
        %v4938 = vsub.s32 %v3018, 56
        %v4939 = vlaneseq
        %v4940 = vshrl.u32 %v4939, 7
        %v4941 = vsub.s32 0, %v4940
        %v4942 = vrot.slane %v4938, %v4941
        %v4943 = vlaneseq
        %v4944 = vshrl.u32 %v4943, 7
        %v4945 = vsub.s32 1, %v4944
        %v4946 = vrot.slane %v4938, %v4945
        %v4947 = vlaneseq
        %v4948 = vshrl.u32 %v4947, 7
        %v4949 = vsub.s32 2, %v4948
        %v4950 = vrot.slane %v4938, %v4949
        %v4951 = vlaneseq
        %v4952 = vshrl.u32 %v4951, 7
        %v4953 = vsub.s32 3, %v4952
        %v4954 = vrot.slane %v4938, %v4953
        %v4955 = vlaneseq
        %v4956 = vshrl.u32 %v4955, 7
        %v4957 = vsub.s32 4, %v4956
        %v4958 = vrot.slane %v4938, %v4957
        %v4959 = vlaneseq
        %v4960 = vshrl.u32 %v4959, 7
        %v4961 = vsub.s32 5, %v4960
        %v4962 = vrot.slane %v4938, %v4961
        %v4963 = vlaneseq
        %v4964 = vshrl.u32 %v4963, 7
        %v4965 = vsub.s32 6, %v4964
        %v4966 = vrot.slane %v4938, %v4965
        %v4967 = vlaneseq
        %v4968 = vshrl.u32 %v4967, 7
        %v4969 = vsub.s32 7, %v4968
        %v4970 = vrot.slane %v4938, %v4969
        %vm4971 = vcmp.eq.s32.totalorder %v180, %v4942
        %vm4972 = vcmp.eq.s32.totalorder %v180, %v4946
        %vm4973 = vcmp.eq.s32.totalorder %v180, %v4950
        %vm4974 = vcmp.eq.s32.totalorder %v180, %v4954
        %vm4975 = vcmp.eq.s32.totalorder %v180, %v4958
        %vm4976 = vcmp.eq.s32.totalorder %v180, %v4962
        %vm4977 = vcmp.eq.s32.totalorder %v180, %v4966
        %vm4978 = vcmp.eq.s32.totalorder %v180, %v4970
        %v4979 = vsel %vm4971, %v3346, 0.0
        %v4980 = vsel %vm4972, %v3350, 0.0
        %v4981 = vsel %vm4973, %v3354, 0.0
        %v4982 = vsel %vm4974, %v3358, 0.0
        %v4983 = vsel %vm4975, %v3362, 0.0
        %v4984 = vsel %vm4976, %v3366, 0.0
        %v4985 = vsel %vm4977, %v3370, 0.0
        %v4986 = vsel %vm4978, %v3374, 0.0
        %v4987 = vadd.f32 %v4930, %v4979
        %v4988 = vadd.f32 %v4931, %v4980
        %v4989 = vadd.f32 %v4932, %v4981
        %v4990 = vadd.f32 %v4933, %v4982
        %v4991 = vadd.f32 %v4934, %v4983
        %v4992 = vadd.f32 %v4935, %v4984
        %v4993 = vadd.f32 %v4936, %v4985
        %v4994 = vadd.f32 %v4937, %v4986
        %4995 = vst [vmem:[#allocation2 + $0x4c0] sm:$0xff] %v4987
        %4996 = vst [vmem:[#allocation2 + $0x4c8] sm:$0xff] %v4988
        %4997 = vst [vmem:[#allocation2 + $0x4d0] sm:$0xff] %v4989
        %4998 = vst [vmem:[#allocation2 + $0x4d8] sm:$0xff] %v4990
        %4999 = vst [vmem:[#allocation2 + $0x4e0] sm:$0xff] %v4991
        %5000 = vst [vmem:[#allocation2 + $0x4e8] sm:$0xff] %v4992
        %5001 = vst [vmem:[#allocation2 + $0x4f0] sm:$0xff] %v4993
        %5002 = vst [vmem:[#allocation2 + $0x4f8] sm:$0xff] %v4994
        %v5003 = vmul.f32 %v176, 16.0
        %v5004 = vfloor.f32 %v5003
        %v5005 = vsub.f32 %v5003, %v5004
        %v5006 = vcvt.f32.s32.to.zero.pseudo %v5004
        %v5007 = vsub.f32 1.0, %v5005
        %v5008 = vmul.f32 %v178, 16.0
        %v5009 = vfloor.f32 %v5008
        %v5010 = vsub.f32 %v5008, %v5009
        %v5011 = vcvt.f32.s32.to.zero.pseudo %v5009
        %v5012 = vsub.f32 1.0, %v5010
        %v5013 = vmul.f32 %v5007, %v5012
        %v5014 = vmul.u32 %v5011, 19349663
        %v5015 = vxor.u32 %v5006, %v5014
        %v5016 = vand.u32 %v5015, 63
        %v5017 = vmul.f32 %v5007, %v5010
        %v5018 = vadd.s32 %v5011, 1
        %v5019 = vmul.u32 %v5018, 19349663
        %v5020 = vxor.u32 %v5006, %v5019
        %v5021 = vand.u32 %v5020, 63
        %v5022 = vmul.f32 %v5005, %v5012
        %v5023 = vadd.s32 %v5006, 1
        %v5024 = vxor.u32 %v5023, %v5014
        %v5025 = vand.u32 %v5024, 63
        %v5026 = vmul.f32 %v5005, %v5010
        %v5027 = vxor.u32 %v5023, %v5019
        %v5028 = vand.u32 %v5027, 63
        %v5029 = vlaneseq
        %v5030 = vshrl.u32 %v5029, 7
        %v5031 = vsub.s32 0, %v5030
        %v5032 = vrot.slane %v5016, %v5031
        %v5033 = vlaneseq
        %v5034 = vshrl.u32 %v5033, 7
        %v5035 = vsub.s32 1, %v5034
        %v5036 = vrot.slane %v5016, %v5035
        %v5037 = vlaneseq
        %v5038 = vshrl.u32 %v5037, 7
        %v5039 = vsub.s32 2, %v5038
        %v5040 = vrot.slane %v5016, %v5039
        %v5041 = vlaneseq
        %v5042 = vshrl.u32 %v5041, 7
        %v5043 = vsub.s32 3, %v5042
        %v5044 = vrot.slane %v5016, %v5043
        %v5045 = vlaneseq
        %v5046 = vshrl.u32 %v5045, 7
        %v5047 = vsub.s32 4, %v5046
        %v5048 = vrot.slane %v5016, %v5047
        %v5049 = vlaneseq
        %v5050 = vshrl.u32 %v5049, 7
        %v5051 = vsub.s32 5, %v5050
        %v5052 = vrot.slane %v5016, %v5051
        %v5053 = vlaneseq
        %v5054 = vshrl.u32 %v5053, 7
        %v5055 = vsub.s32 6, %v5054
        %v5056 = vrot.slane %v5016, %v5055
        %v5057 = vlaneseq
        %v5058 = vshrl.u32 %v5057, 7
        %v5059 = vsub.s32 7, %v5058
        %v5060 = vrot.slane %v5016, %v5059
        %vm5061 = vcmp.eq.s32.totalorder %v180, %v5032
        %vm5062 = vcmp.eq.s32.totalorder %v180, %v5036
        %vm5063 = vcmp.eq.s32.totalorder %v180, %v5040
        %vm5064 = vcmp.eq.s32.totalorder %v180, %v5044
        %vm5065 = vcmp.eq.s32.totalorder %v180, %v5048
        %vm5066 = vcmp.eq.s32.totalorder %v180, %v5052
        %vm5067 = vcmp.eq.s32.totalorder %v180, %v5056
        %vm5068 = vcmp.eq.s32.totalorder %v180, %v5060
        %v5070 = vlaneseq
        %v5071 = vshrl.u32 %v5070, 7
        %v5072 = vsub.s32 0, %v5071
        %v5073 = vrot.slane %v5013, %v5072
        %v5074 = vlaneseq
        %v5075 = vshrl.u32 %v5074, 7
        %v5076 = vsub.s32 1, %v5075
        %v5077 = vrot.slane %v5013, %v5076
        %v5078 = vlaneseq
        %v5079 = vshrl.u32 %v5078, 7
        %v5080 = vsub.s32 2, %v5079
        %v5081 = vrot.slane %v5013, %v5080
        %v5082 = vlaneseq
        %v5083 = vshrl.u32 %v5082, 7
        %v5084 = vsub.s32 3, %v5083
        %v5085 = vrot.slane %v5013, %v5084
        %v5086 = vlaneseq
        %v5087 = vshrl.u32 %v5086, 7
        %v5088 = vsub.s32 4, %v5087
        %v5089 = vrot.slane %v5013, %v5088
        %v5090 = vlaneseq
        %v5091 = vshrl.u32 %v5090, 7
        %v5092 = vsub.s32 5, %v5091
        %v5093 = vrot.slane %v5013, %v5092
        %v5094 = vlaneseq
        %v5095 = vshrl.u32 %v5094, 7
        %v5096 = vsub.s32 6, %v5095
        %v5097 = vrot.slane %v5013, %v5096
        %v5098 = vlaneseq
        %v5099 = vshrl.u32 %v5098, 7
        %v5100 = vsub.s32 7, %v5099
        %v5101 = vrot.slane %v5013, %v5100
        %v5110 = vsel %vm5061, %v5073, 0.0
        %v5111 = vsel %vm5062, %v5077, 0.0
        %v5112 = vsel %vm5063, %v5081, 0.0
        %v5113 = vsel %vm5064, %v5085, 0.0
        %v5114 = vsel %vm5065, %v5089, 0.0
        %v5115 = vsel %vm5066, %v5093, 0.0
        %v5116 = vsel %vm5067, %v5097, 0.0
        %v5117 = vsel %vm5068, %v5101, 0.0
        %v5118 = vlaneseq
        %v5119 = vshrl.u32 %v5118, 7
        %v5120 = vsub.s32 0, %v5119
        %v5121 = vrot.slane %v5021, %v5120
        %v5122 = vlaneseq
        %v5123 = vshrl.u32 %v5122, 7
        %v5124 = vsub.s32 1, %v5123
        %v5125 = vrot.slane %v5021, %v5124
        %v5126 = vlaneseq
        %v5127 = vshrl.u32 %v5126, 7
        %v5128 = vsub.s32 2, %v5127
        %v5129 = vrot.slane %v5021, %v5128
        %v5130 = vlaneseq
        %v5131 = vshrl.u32 %v5130, 7
        %v5132 = vsub.s32 3, %v5131
        %v5133 = vrot.slane %v5021, %v5132
        %v5134 = vlaneseq
        %v5135 = vshrl.u32 %v5134, 7
        %v5136 = vsub.s32 4, %v5135
        %v5137 = vrot.slane %v5021, %v5136
        %v5138 = vlaneseq
        %v5139 = vshrl.u32 %v5138, 7
        %v5140 = vsub.s32 5, %v5139
        %v5141 = vrot.slane %v5021, %v5140
        %v5142 = vlaneseq
        %v5143 = vshrl.u32 %v5142, 7
        %v5144 = vsub.s32 6, %v5143
        %v5145 = vrot.slane %v5021, %v5144
        %v5146 = vlaneseq
        %v5147 = vshrl.u32 %v5146, 7
        %v5148 = vsub.s32 7, %v5147
        %v5149 = vrot.slane %v5021, %v5148
        %vm5150 = vcmp.eq.s32.totalorder %v180, %v5121
        %vm5151 = vcmp.eq.s32.totalorder %v180, %v5125
        %vm5152 = vcmp.eq.s32.totalorder %v180, %v5129
        %vm5153 = vcmp.eq.s32.totalorder %v180, %v5133
        %vm5154 = vcmp.eq.s32.totalorder %v180, %v5137
        %vm5155 = vcmp.eq.s32.totalorder %v180, %v5141
        %vm5156 = vcmp.eq.s32.totalorder %v180, %v5145
        %vm5157 = vcmp.eq.s32.totalorder %v180, %v5149
        %v5159 = vlaneseq
        %v5160 = vshrl.u32 %v5159, 7
        %v5161 = vsub.s32 0, %v5160
        %v5162 = vrot.slane %v5017, %v5161
        %v5163 = vlaneseq
        %v5164 = vshrl.u32 %v5163, 7
        %v5165 = vsub.s32 1, %v5164
        %v5166 = vrot.slane %v5017, %v5165
        %v5167 = vlaneseq
        %v5168 = vshrl.u32 %v5167, 7
        %v5169 = vsub.s32 2, %v5168
        %v5170 = vrot.slane %v5017, %v5169
        %v5171 = vlaneseq
        %v5172 = vshrl.u32 %v5171, 7
        %v5173 = vsub.s32 3, %v5172
        %v5174 = vrot.slane %v5017, %v5173
        %v5175 = vlaneseq
        %v5176 = vshrl.u32 %v5175, 7
        %v5177 = vsub.s32 4, %v5176
        %v5178 = vrot.slane %v5017, %v5177
        %v5179 = vlaneseq
        %v5180 = vshrl.u32 %v5179, 7
        %v5181 = vsub.s32 5, %v5180
        %v5182 = vrot.slane %v5017, %v5181
        %v5183 = vlaneseq
        %v5184 = vshrl.u32 %v5183, 7
        %v5185 = vsub.s32 6, %v5184
        %v5186 = vrot.slane %v5017, %v5185
        %v5187 = vlaneseq
        %v5188 = vshrl.u32 %v5187, 7
        %v5189 = vsub.s32 7, %v5188
        %v5190 = vrot.slane %v5017, %v5189
        %v5199 = vsel %vm5150, %v5162, 0.0
        %v5200 = vsel %vm5151, %v5166, 0.0
        %v5201 = vsel %vm5152, %v5170, 0.0
        %v5202 = vsel %vm5153, %v5174, 0.0
        %v5203 = vsel %vm5154, %v5178, 0.0
        %v5204 = vsel %vm5155, %v5182, 0.0
        %v5205 = vsel %vm5156, %v5186, 0.0
        %v5206 = vsel %vm5157, %v5190, 0.0
        %v5207 = vadd.f32 %v5110, %v5199
        %v5208 = vadd.f32 %v5111, %v5200
        %v5209 = vadd.f32 %v5112, %v5201
        %v5210 = vadd.f32 %v5113, %v5202
        %v5211 = vadd.f32 %v5114, %v5203
        %v5212 = vadd.f32 %v5115, %v5204
        %v5213 = vadd.f32 %v5116, %v5205
        %v5214 = vadd.f32 %v5117, %v5206
        %v5215 = vlaneseq
        %v5216 = vshrl.u32 %v5215, 7
        %v5217 = vsub.s32 0, %v5216
        %v5218 = vrot.slane %v5025, %v5217
        %v5219 = vlaneseq
        %v5220 = vshrl.u32 %v5219, 7
        %v5221 = vsub.s32 1, %v5220
        %v5222 = vrot.slane %v5025, %v5221
        %v5223 = vlaneseq
        %v5224 = vshrl.u32 %v5223, 7
        %v5225 = vsub.s32 2, %v5224
        %v5226 = vrot.slane %v5025, %v5225
        %v5227 = vlaneseq
        %v5228 = vshrl.u32 %v5227, 7
        %v5229 = vsub.s32 3, %v5228
        %v5230 = vrot.slane %v5025, %v5229
        %v5231 = vlaneseq
        %v5232 = vshrl.u32 %v5231, 7
        %v5233 = vsub.s32 4, %v5232
        %v5234 = vrot.slane %v5025, %v5233
        %v5235 = vlaneseq
        %v5236 = vshrl.u32 %v5235, 7
        %v5237 = vsub.s32 5, %v5236
        %v5238 = vrot.slane %v5025, %v5237
        %v5239 = vlaneseq
        %v5240 = vshrl.u32 %v5239, 7
        %v5241 = vsub.s32 6, %v5240
        %v5242 = vrot.slane %v5025, %v5241
        %v5243 = vlaneseq
        %v5244 = vshrl.u32 %v5243, 7
        %v5245 = vsub.s32 7, %v5244
        %v5246 = vrot.slane %v5025, %v5245
        %vm5247 = vcmp.eq.s32.totalorder %v180, %v5218
        %vm5248 = vcmp.eq.s32.totalorder %v180, %v5222
        %vm5249 = vcmp.eq.s32.totalorder %v180, %v5226
        %vm5250 = vcmp.eq.s32.totalorder %v180, %v5230
        %vm5251 = vcmp.eq.s32.totalorder %v180, %v5234
        %vm5252 = vcmp.eq.s32.totalorder %v180, %v5238
        %vm5253 = vcmp.eq.s32.totalorder %v180, %v5242
        %vm5254 = vcmp.eq.s32.totalorder %v180, %v5246
        %v5256 = vlaneseq
        %v5257 = vshrl.u32 %v5256, 7
        %v5258 = vsub.s32 0, %v5257
        %v5259 = vrot.slane %v5022, %v5258
        %v5260 = vlaneseq
        %v5261 = vshrl.u32 %v5260, 7
        %v5262 = vsub.s32 1, %v5261
        %v5263 = vrot.slane %v5022, %v5262
        %v5264 = vlaneseq
        %v5265 = vshrl.u32 %v5264, 7
        %v5266 = vsub.s32 2, %v5265
        %v5267 = vrot.slane %v5022, %v5266
        %v5268 = vlaneseq
        %v5269 = vshrl.u32 %v5268, 7
        %v5270 = vsub.s32 3, %v5269
        %v5271 = vrot.slane %v5022, %v5270
        %v5272 = vlaneseq
        %v5273 = vshrl.u32 %v5272, 7
        %v5274 = vsub.s32 4, %v5273
        %v5275 = vrot.slane %v5022, %v5274
        %v5276 = vlaneseq
        %v5277 = vshrl.u32 %v5276, 7
        %v5278 = vsub.s32 5, %v5277
        %v5279 = vrot.slane %v5022, %v5278
        %v5280 = vlaneseq
        %v5281 = vshrl.u32 %v5280, 7
        %v5282 = vsub.s32 6, %v5281
        %v5283 = vrot.slane %v5022, %v5282
        %v5284 = vlaneseq
        %v5285 = vshrl.u32 %v5284, 7
        %v5286 = vsub.s32 7, %v5285
        %v5287 = vrot.slane %v5022, %v5286
        %v5296 = vsel %vm5247, %v5259, 0.0
        %v5297 = vsel %vm5248, %v5263, 0.0
        %v5298 = vsel %vm5249, %v5267, 0.0
        %v5299 = vsel %vm5250, %v5271, 0.0
        %v5300 = vsel %vm5251, %v5275, 0.0
        %v5301 = vsel %vm5252, %v5279, 0.0
        %v5302 = vsel %vm5253, %v5283, 0.0
        %v5303 = vsel %vm5254, %v5287, 0.0
        %v5304 = vadd.f32 %v5207, %v5296
        %v5305 = vadd.f32 %v5208, %v5297
        %v5306 = vadd.f32 %v5209, %v5298
        %v5307 = vadd.f32 %v5210, %v5299
        %v5308 = vadd.f32 %v5211, %v5300
        %v5309 = vadd.f32 %v5212, %v5301
        %v5310 = vadd.f32 %v5213, %v5302
        %v5311 = vadd.f32 %v5214, %v5303
        %v5312 = vlaneseq
        %v5313 = vshrl.u32 %v5312, 7
        %v5314 = vsub.s32 0, %v5313
        %v5315 = vrot.slane %v5028, %v5314
        %v5316 = vlaneseq
        %v5317 = vshrl.u32 %v5316, 7
        %v5318 = vsub.s32 1, %v5317
        %v5319 = vrot.slane %v5028, %v5318
        %v5320 = vlaneseq
        %v5321 = vshrl.u32 %v5320, 7
        %v5322 = vsub.s32 2, %v5321
        %v5323 = vrot.slane %v5028, %v5322
        %v5324 = vlaneseq
        %v5325 = vshrl.u32 %v5324, 7
        %v5326 = vsub.s32 3, %v5325
        %v5327 = vrot.slane %v5028, %v5326
        %v5328 = vlaneseq
        %v5329 = vshrl.u32 %v5328, 7
        %v5330 = vsub.s32 4, %v5329
        %v5331 = vrot.slane %v5028, %v5330
        %v5332 = vlaneseq
        %v5333 = vshrl.u32 %v5332, 7
        %v5334 = vsub.s32 5, %v5333
        %v5335 = vrot.slane %v5028, %v5334
        %v5336 = vlaneseq
        %v5337 = vshrl.u32 %v5336, 7
        %v5338 = vsub.s32 6, %v5337
        %v5339 = vrot.slane %v5028, %v5338
        %v5340 = vlaneseq
        %v5341 = vshrl.u32 %v5340, 7
        %v5342 = vsub.s32 7, %v5341
        %v5343 = vrot.slane %v5028, %v5342
        %vm5344 = vcmp.eq.s32.totalorder %v180, %v5315
        %vm5345 = vcmp.eq.s32.totalorder %v180, %v5319
        %vm5346 = vcmp.eq.s32.totalorder %v180, %v5323
        %vm5347 = vcmp.eq.s32.totalorder %v180, %v5327
        %vm5348 = vcmp.eq.s32.totalorder %v180, %v5331
        %vm5349 = vcmp.eq.s32.totalorder %v180, %v5335
        %vm5350 = vcmp.eq.s32.totalorder %v180, %v5339
        %vm5351 = vcmp.eq.s32.totalorder %v180, %v5343
        %v5353 = vlaneseq
        %v5354 = vshrl.u32 %v5353, 7
        %v5355 = vsub.s32 0, %v5354
        %v5356 = vrot.slane %v5026, %v5355
        %v5357 = vlaneseq
        %v5358 = vshrl.u32 %v5357, 7
        %v5359 = vsub.s32 1, %v5358
        %v5360 = vrot.slane %v5026, %v5359
        %v5361 = vlaneseq
        %v5362 = vshrl.u32 %v5361, 7
        %v5363 = vsub.s32 2, %v5362
        %v5364 = vrot.slane %v5026, %v5363
        %v5365 = vlaneseq
        %v5366 = vshrl.u32 %v5365, 7
        %v5367 = vsub.s32 3, %v5366
        %v5368 = vrot.slane %v5026, %v5367
        %v5369 = vlaneseq
        %v5370 = vshrl.u32 %v5369, 7
        %v5371 = vsub.s32 4, %v5370
        %v5372 = vrot.slane %v5026, %v5371
        %v5373 = vlaneseq
        %v5374 = vshrl.u32 %v5373, 7
        %v5375 = vsub.s32 5, %v5374
        %v5376 = vrot.slane %v5026, %v5375
        %v5377 = vlaneseq
        %v5378 = vshrl.u32 %v5377, 7
        %v5379 = vsub.s32 6, %v5378
        %v5380 = vrot.slane %v5026, %v5379
        %v5381 = vlaneseq
        %v5382 = vshrl.u32 %v5381, 7
        %v5383 = vsub.s32 7, %v5382
        %v5384 = vrot.slane %v5026, %v5383
        %v5393 = vsel %vm5344, %v5356, 0.0
        %v5394 = vsel %vm5345, %v5360, 0.0
        %v5395 = vsel %vm5346, %v5364, 0.0
        %v5396 = vsel %vm5347, %v5368, 0.0
        %v5397 = vsel %vm5348, %v5372, 0.0
        %v5398 = vsel %vm5349, %v5376, 0.0
        %v5399 = vsel %vm5350, %v5380, 0.0
        %v5400 = vsel %vm5351, %v5384, 0.0
        %v5401 = vadd.f32 %v5304, %v5393
        %v5402 = vadd.f32 %v5305, %v5394
        %v5403 = vadd.f32 %v5306, %v5395
        %v5404 = vadd.f32 %v5307, %v5396
        %v5405 = vadd.f32 %v5308, %v5397
        %v5406 = vadd.f32 %v5309, %v5398
        %v5407 = vadd.f32 %v5310, %v5399
        %v5408 = vadd.f32 %v5311, %v5400
        %5409 = vst [vmem:[#allocation2 + $0x500] sm:$0xff] %v5401
        %5410 = vst [vmem:[#allocation2 + $0x508] sm:$0xff] %v5402
        %5411 = vst [vmem:[#allocation2 + $0x510] sm:$0xff] %v5403
        %5412 = vst [vmem:[#allocation2 + $0x518] sm:$0xff] %v5404
        %5413 = vst [vmem:[#allocation2 + $0x520] sm:$0xff] %v5405
        %5414 = vst [vmem:[#allocation2 + $0x528] sm:$0xff] %v5406
        %5415 = vst [vmem:[#allocation2 + $0x530] sm:$0xff] %v5407
        %5416 = vst [vmem:[#allocation2 + $0x538] sm:$0xff] %v5408
        %v5417 = vsub.s32 %v5016, 8
        %v5418 = vlaneseq
        %v5419 = vshrl.u32 %v5418, 7
        %v5420 = vsub.s32 0, %v5419
        %v5421 = vrot.slane %v5417, %v5420
        %v5422 = vlaneseq
        %v5423 = vshrl.u32 %v5422, 7
        %v5424 = vsub.s32 1, %v5423
        %v5425 = vrot.slane %v5417, %v5424
        %v5426 = vlaneseq
        %v5427 = vshrl.u32 %v5426, 7
        %v5428 = vsub.s32 2, %v5427
        %v5429 = vrot.slane %v5417, %v5428
        %v5430 = vlaneseq
        %v5431 = vshrl.u32 %v5430, 7
        %v5432 = vsub.s32 3, %v5431
        %v5433 = vrot.slane %v5417, %v5432
        %v5434 = vlaneseq
        %v5435 = vshrl.u32 %v5434, 7
        %v5436 = vsub.s32 4, %v5435
        %v5437 = vrot.slane %v5417, %v5436
        %v5438 = vlaneseq
        %v5439 = vshrl.u32 %v5438, 7
        %v5440 = vsub.s32 5, %v5439
        %v5441 = vrot.slane %v5417, %v5440
        %v5442 = vlaneseq
        %v5443 = vshrl.u32 %v5442, 7
        %v5444 = vsub.s32 6, %v5443
        %v5445 = vrot.slane %v5417, %v5444
        %v5446 = vlaneseq
        %v5447 = vshrl.u32 %v5446, 7
        %v5448 = vsub.s32 7, %v5447
        %v5449 = vrot.slane %v5417, %v5448
        %vm5450 = vcmp.eq.s32.totalorder %v180, %v5421
        %vm5451 = vcmp.eq.s32.totalorder %v180, %v5425
        %vm5452 = vcmp.eq.s32.totalorder %v180, %v5429
        %vm5453 = vcmp.eq.s32.totalorder %v180, %v5433
        %vm5454 = vcmp.eq.s32.totalorder %v180, %v5437
        %vm5455 = vcmp.eq.s32.totalorder %v180, %v5441
        %vm5456 = vcmp.eq.s32.totalorder %v180, %v5445
        %vm5457 = vcmp.eq.s32.totalorder %v180, %v5449
        %v5458 = vsel %vm5450, %v5073, 0.0
        %v5459 = vsel %vm5451, %v5077, 0.0
        %v5460 = vsel %vm5452, %v5081, 0.0
        %v5461 = vsel %vm5453, %v5085, 0.0
        %v5462 = vsel %vm5454, %v5089, 0.0
        %v5463 = vsel %vm5455, %v5093, 0.0
        %v5464 = vsel %vm5456, %v5097, 0.0
        %v5465 = vsel %vm5457, %v5101, 0.0
        %v5466 = vsub.s32 %v5021, 8
        %v5467 = vlaneseq
        %v5468 = vshrl.u32 %v5467, 7
        %v5469 = vsub.s32 0, %v5468
        %v5470 = vrot.slane %v5466, %v5469
        %v5471 = vlaneseq
        %v5472 = vshrl.u32 %v5471, 7
        %v5473 = vsub.s32 1, %v5472
        %v5474 = vrot.slane %v5466, %v5473
        %v5475 = vlaneseq
        %v5476 = vshrl.u32 %v5475, 7
        %v5477 = vsub.s32 2, %v5476
        %v5478 = vrot.slane %v5466, %v5477
        %v5479 = vlaneseq
        %v5480 = vshrl.u32 %v5479, 7
        %v5481 = vsub.s32 3, %v5480
        %v5482 = vrot.slane %v5466, %v5481
        %v5483 = vlaneseq
        %v5484 = vshrl.u32 %v5483, 7
        %v5485 = vsub.s32 4, %v5484
        %v5486 = vrot.slane %v5466, %v5485
        %v5487 = vlaneseq
        %v5488 = vshrl.u32 %v5487, 7
        %v5489 = vsub.s32 5, %v5488
        %v5490 = vrot.slane %v5466, %v5489
        %v5491 = vlaneseq
        %v5492 = vshrl.u32 %v5491, 7
        %v5493 = vsub.s32 6, %v5492
        %v5494 = vrot.slane %v5466, %v5493
        %v5495 = vlaneseq
        %v5496 = vshrl.u32 %v5495, 7
        %v5497 = vsub.s32 7, %v5496
        %v5498 = vrot.slane %v5466, %v5497
        %vm5499 = vcmp.eq.s32.totalorder %v180, %v5470
        %vm5500 = vcmp.eq.s32.totalorder %v180, %v5474
        %vm5501 = vcmp.eq.s32.totalorder %v180, %v5478
        %vm5502 = vcmp.eq.s32.totalorder %v180, %v5482
        %vm5503 = vcmp.eq.s32.totalorder %v180, %v5486
        %vm5504 = vcmp.eq.s32.totalorder %v180, %v5490
        %vm5505 = vcmp.eq.s32.totalorder %v180, %v5494
        %vm5506 = vcmp.eq.s32.totalorder %v180, %v5498
        %v5507 = vsel %vm5499, %v5162, 0.0
        %v5508 = vsel %vm5500, %v5166, 0.0
        %v5509 = vsel %vm5501, %v5170, 0.0
        %v5510 = vsel %vm5502, %v5174, 0.0
        %v5511 = vsel %vm5503, %v5178, 0.0
        %v5512 = vsel %vm5504, %v5182, 0.0
        %v5513 = vsel %vm5505, %v5186, 0.0
        %v5514 = vsel %vm5506, %v5190, 0.0
        %v5515 = vadd.f32 %v5458, %v5507
        %v5516 = vadd.f32 %v5459, %v5508
        %v5517 = vadd.f32 %v5460, %v5509
        %v5518 = vadd.f32 %v5461, %v5510
        %v5519 = vadd.f32 %v5462, %v5511
        %v5520 = vadd.f32 %v5463, %v5512
        %v5521 = vadd.f32 %v5464, %v5513
        %v5522 = vadd.f32 %v5465, %v5514
        %v5523 = vsub.s32 %v5025, 8
        %v5524 = vlaneseq
        %v5525 = vshrl.u32 %v5524, 7
        %v5526 = vsub.s32 0, %v5525
        %v5527 = vrot.slane %v5523, %v5526
        %v5528 = vlaneseq
        %v5529 = vshrl.u32 %v5528, 7
        %v5530 = vsub.s32 1, %v5529
        %v5531 = vrot.slane %v5523, %v5530
        %v5532 = vlaneseq
        %v5533 = vshrl.u32 %v5532, 7
        %v5534 = vsub.s32 2, %v5533
        %v5535 = vrot.slane %v5523, %v5534
        %v5536 = vlaneseq
        %v5537 = vshrl.u32 %v5536, 7
        %v5538 = vsub.s32 3, %v5537
        %v5539 = vrot.slane %v5523, %v5538
        %v5540 = vlaneseq
        %v5541 = vshrl.u32 %v5540, 7
        %v5542 = vsub.s32 4, %v5541
        %v5543 = vrot.slane %v5523, %v5542
        %v5544 = vlaneseq
        %v5545 = vshrl.u32 %v5544, 7
        %v5546 = vsub.s32 5, %v5545
        %v5547 = vrot.slane %v5523, %v5546
        %v5548 = vlaneseq
        %v5549 = vshrl.u32 %v5548, 7
        %v5550 = vsub.s32 6, %v5549
        %v5551 = vrot.slane %v5523, %v5550
        %v5552 = vlaneseq
        %v5553 = vshrl.u32 %v5552, 7
        %v5554 = vsub.s32 7, %v5553
        %v5555 = vrot.slane %v5523, %v5554
        %vm5556 = vcmp.eq.s32.totalorder %v180, %v5527
        %vm5557 = vcmp.eq.s32.totalorder %v180, %v5531
        %vm5558 = vcmp.eq.s32.totalorder %v180, %v5535
        %vm5559 = vcmp.eq.s32.totalorder %v180, %v5539
        %vm5560 = vcmp.eq.s32.totalorder %v180, %v5543
        %vm5561 = vcmp.eq.s32.totalorder %v180, %v5547
        %vm5562 = vcmp.eq.s32.totalorder %v180, %v5551
        %vm5563 = vcmp.eq.s32.totalorder %v180, %v5555
        %v5564 = vsel %vm5556, %v5259, 0.0
        %v5565 = vsel %vm5557, %v5263, 0.0
        %v5566 = vsel %vm5558, %v5267, 0.0
        %v5567 = vsel %vm5559, %v5271, 0.0
        %v5568 = vsel %vm5560, %v5275, 0.0
        %v5569 = vsel %vm5561, %v5279, 0.0
        %v5570 = vsel %vm5562, %v5283, 0.0
        %v5571 = vsel %vm5563, %v5287, 0.0
        %v5572 = vadd.f32 %v5515, %v5564
        %v5573 = vadd.f32 %v5516, %v5565
        %v5574 = vadd.f32 %v5517, %v5566
        %v5575 = vadd.f32 %v5518, %v5567
        %v5576 = vadd.f32 %v5519, %v5568
        %v5577 = vadd.f32 %v5520, %v5569
        %v5578 = vadd.f32 %v5521, %v5570
        %v5579 = vadd.f32 %v5522, %v5571
        %v5580 = vsub.s32 %v5028, 8
        %v5581 = vlaneseq
        %v5582 = vshrl.u32 %v5581, 7
        %v5583 = vsub.s32 0, %v5582
        %v5584 = vrot.slane %v5580, %v5583
        %v5585 = vlaneseq
        %v5586 = vshrl.u32 %v5585, 7
        %v5587 = vsub.s32 1, %v5586
        %v5588 = vrot.slane %v5580, %v5587
        %v5589 = vlaneseq
        %v5590 = vshrl.u32 %v5589, 7
        %v5591 = vsub.s32 2, %v5590
        %v5592 = vrot.slane %v5580, %v5591
        %v5593 = vlaneseq
        %v5594 = vshrl.u32 %v5593, 7
        %v5595 = vsub.s32 3, %v5594
        %v5596 = vrot.slane %v5580, %v5595
        %v5597 = vlaneseq
        %v5598 = vshrl.u32 %v5597, 7
        %v5599 = vsub.s32 4, %v5598
        %v5600 = vrot.slane %v5580, %v5599
        %v5601 = vlaneseq
        %v5602 = vshrl.u32 %v5601, 7
        %v5603 = vsub.s32 5, %v5602
        %v5604 = vrot.slane %v5580, %v5603
        %v5605 = vlaneseq
        %v5606 = vshrl.u32 %v5605, 7
        %v5607 = vsub.s32 6, %v5606
        %v5608 = vrot.slane %v5580, %v5607
        %v5609 = vlaneseq
        %v5610 = vshrl.u32 %v5609, 7
        %v5611 = vsub.s32 7, %v5610
        %v5612 = vrot.slane %v5580, %v5611
        %vm5613 = vcmp.eq.s32.totalorder %v180, %v5584
        %vm5614 = vcmp.eq.s32.totalorder %v180, %v5588
        %vm5615 = vcmp.eq.s32.totalorder %v180, %v5592
        %vm5616 = vcmp.eq.s32.totalorder %v180, %v5596
        %vm5617 = vcmp.eq.s32.totalorder %v180, %v5600
        %vm5618 = vcmp.eq.s32.totalorder %v180, %v5604
        %vm5619 = vcmp.eq.s32.totalorder %v180, %v5608
        %vm5620 = vcmp.eq.s32.totalorder %v180, %v5612
        %v5621 = vsel %vm5613, %v5356, 0.0
        %v5622 = vsel %vm5614, %v5360, 0.0
        %v5623 = vsel %vm5615, %v5364, 0.0
        %v5624 = vsel %vm5616, %v5368, 0.0
        %v5625 = vsel %vm5617, %v5372, 0.0
        %v5626 = vsel %vm5618, %v5376, 0.0
        %v5627 = vsel %vm5619, %v5380, 0.0
        %v5628 = vsel %vm5620, %v5384, 0.0
        %v5629 = vadd.f32 %v5572, %v5621
        %v5630 = vadd.f32 %v5573, %v5622
        %v5631 = vadd.f32 %v5574, %v5623
        %v5632 = vadd.f32 %v5575, %v5624
        %v5633 = vadd.f32 %v5576, %v5625
        %v5634 = vadd.f32 %v5577, %v5626
        %v5635 = vadd.f32 %v5578, %v5627
        %v5636 = vadd.f32 %v5579, %v5628
        %5637 = vst [vmem:[#allocation2 + $0x540] sm:$0xff] %v5629
        %5638 = vst [vmem:[#allocation2 + $0x548] sm:$0xff] %v5630
        %5639 = vst [vmem:[#allocation2 + $0x550] sm:$0xff] %v5631
        %5640 = vst [vmem:[#allocation2 + $0x558] sm:$0xff] %v5632
        %5641 = vst [vmem:[#allocation2 + $0x560] sm:$0xff] %v5633
        %5642 = vst [vmem:[#allocation2 + $0x568] sm:$0xff] %v5634
        %5643 = vst [vmem:[#allocation2 + $0x570] sm:$0xff] %v5635
        %5644 = vst [vmem:[#allocation2 + $0x578] sm:$0xff] %v5636
        %v5645 = vsub.s32 %v5016, 16
        %v5646 = vlaneseq
        %v5647 = vshrl.u32 %v5646, 7
        %v5648 = vsub.s32 0, %v5647
        %v5649 = vrot.slane %v5645, %v5648
        %v5650 = vlaneseq
        %v5651 = vshrl.u32 %v5650, 7
        %v5652 = vsub.s32 1, %v5651
        %v5653 = vrot.slane %v5645, %v5652
        %v5654 = vlaneseq
        %v5655 = vshrl.u32 %v5654, 7
        %v5656 = vsub.s32 2, %v5655
        %v5657 = vrot.slane %v5645, %v5656
        %v5658 = vlaneseq
        %v5659 = vshrl.u32 %v5658, 7
        %v5660 = vsub.s32 3, %v5659
        %v5661 = vrot.slane %v5645, %v5660
        %v5662 = vlaneseq
        %v5663 = vshrl.u32 %v5662, 7
        %v5664 = vsub.s32 4, %v5663
        %v5665 = vrot.slane %v5645, %v5664
        %v5666 = vlaneseq
        %v5667 = vshrl.u32 %v5666, 7
        %v5668 = vsub.s32 5, %v5667
        %v5669 = vrot.slane %v5645, %v5668
        %v5670 = vlaneseq
        %v5671 = vshrl.u32 %v5670, 7
        %v5672 = vsub.s32 6, %v5671
        %v5673 = vrot.slane %v5645, %v5672
        %v5674 = vlaneseq
        %v5675 = vshrl.u32 %v5674, 7
        %v5676 = vsub.s32 7, %v5675
        %v5677 = vrot.slane %v5645, %v5676
        %vm5678 = vcmp.eq.s32.totalorder %v180, %v5649
        %vm5679 = vcmp.eq.s32.totalorder %v180, %v5653
        %vm5680 = vcmp.eq.s32.totalorder %v180, %v5657
        %vm5681 = vcmp.eq.s32.totalorder %v180, %v5661
        %vm5682 = vcmp.eq.s32.totalorder %v180, %v5665
        %vm5683 = vcmp.eq.s32.totalorder %v180, %v5669
        %vm5684 = vcmp.eq.s32.totalorder %v180, %v5673
        %vm5685 = vcmp.eq.s32.totalorder %v180, %v5677
        %v5686 = vsel %vm5678, %v5073, 0.0
        %v5687 = vsel %vm5679, %v5077, 0.0
        %v5688 = vsel %vm5680, %v5081, 0.0
        %v5689 = vsel %vm5681, %v5085, 0.0
        %v5690 = vsel %vm5682, %v5089, 0.0
        %v5691 = vsel %vm5683, %v5093, 0.0
        %v5692 = vsel %vm5684, %v5097, 0.0
        %v5693 = vsel %vm5685, %v5101, 0.0
        %v5694 = vsub.s32 %v5021, 16
        %v5695 = vlaneseq
        %v5696 = vshrl.u32 %v5695, 7
        %v5697 = vsub.s32 0, %v5696
        %v5698 = vrot.slane %v5694, %v5697
        %v5699 = vlaneseq
        %v5700 = vshrl.u32 %v5699, 7
        %v5701 = vsub.s32 1, %v5700
        %v5702 = vrot.slane %v5694, %v5701
        %v5703 = vlaneseq
        %v5704 = vshrl.u32 %v5703, 7
        %v5705 = vsub.s32 2, %v5704
        %v5706 = vrot.slane %v5694, %v5705
        %v5707 = vlaneseq
        %v5708 = vshrl.u32 %v5707, 7
        %v5709 = vsub.s32 3, %v5708
        %v5710 = vrot.slane %v5694, %v5709
        %v5711 = vlaneseq
        %v5712 = vshrl.u32 %v5711, 7
        %v5713 = vsub.s32 4, %v5712
        %v5714 = vrot.slane %v5694, %v5713
        %v5715 = vlaneseq
        %v5716 = vshrl.u32 %v5715, 7
        %v5717 = vsub.s32 5, %v5716
        %v5718 = vrot.slane %v5694, %v5717
        %v5719 = vlaneseq
        %v5720 = vshrl.u32 %v5719, 7
        %v5721 = vsub.s32 6, %v5720
        %v5722 = vrot.slane %v5694, %v5721
        %v5723 = vlaneseq
        %v5724 = vshrl.u32 %v5723, 7
        %v5725 = vsub.s32 7, %v5724
        %v5726 = vrot.slane %v5694, %v5725
        %vm5727 = vcmp.eq.s32.totalorder %v180, %v5698
        %vm5728 = vcmp.eq.s32.totalorder %v180, %v5702
        %vm5729 = vcmp.eq.s32.totalorder %v180, %v5706
        %vm5730 = vcmp.eq.s32.totalorder %v180, %v5710
        %vm5731 = vcmp.eq.s32.totalorder %v180, %v5714
        %vm5732 = vcmp.eq.s32.totalorder %v180, %v5718
        %vm5733 = vcmp.eq.s32.totalorder %v180, %v5722
        %vm5734 = vcmp.eq.s32.totalorder %v180, %v5726
        %v5735 = vsel %vm5727, %v5162, 0.0
        %v5736 = vsel %vm5728, %v5166, 0.0
        %v5737 = vsel %vm5729, %v5170, 0.0
        %v5738 = vsel %vm5730, %v5174, 0.0
        %v5739 = vsel %vm5731, %v5178, 0.0
        %v5740 = vsel %vm5732, %v5182, 0.0
        %v5741 = vsel %vm5733, %v5186, 0.0
        %v5742 = vsel %vm5734, %v5190, 0.0
        %v5743 = vadd.f32 %v5686, %v5735
        %v5744 = vadd.f32 %v5687, %v5736
        %v5745 = vadd.f32 %v5688, %v5737
        %v5746 = vadd.f32 %v5689, %v5738
        %v5747 = vadd.f32 %v5690, %v5739
        %v5748 = vadd.f32 %v5691, %v5740
        %v5749 = vadd.f32 %v5692, %v5741
        %v5750 = vadd.f32 %v5693, %v5742
        %v5751 = vsub.s32 %v5025, 16
        %v5752 = vlaneseq
        %v5753 = vshrl.u32 %v5752, 7
        %v5754 = vsub.s32 0, %v5753
        %v5755 = vrot.slane %v5751, %v5754
        %v5756 = vlaneseq
        %v5757 = vshrl.u32 %v5756, 7
        %v5758 = vsub.s32 1, %v5757
        %v5759 = vrot.slane %v5751, %v5758
        %v5760 = vlaneseq
        %v5761 = vshrl.u32 %v5760, 7
        %v5762 = vsub.s32 2, %v5761
        %v5763 = vrot.slane %v5751, %v5762
        %v5764 = vlaneseq
        %v5765 = vshrl.u32 %v5764, 7
        %v5766 = vsub.s32 3, %v5765
        %v5767 = vrot.slane %v5751, %v5766
        %v5768 = vlaneseq
        %v5769 = vshrl.u32 %v5768, 7
        %v5770 = vsub.s32 4, %v5769
        %v5771 = vrot.slane %v5751, %v5770
        %v5772 = vlaneseq
        %v5773 = vshrl.u32 %v5772, 7
        %v5774 = vsub.s32 5, %v5773
        %v5775 = vrot.slane %v5751, %v5774
        %v5776 = vlaneseq
        %v5777 = vshrl.u32 %v5776, 7
        %v5778 = vsub.s32 6, %v5777
        %v5779 = vrot.slane %v5751, %v5778
        %v5780 = vlaneseq
        %v5781 = vshrl.u32 %v5780, 7
        %v5782 = vsub.s32 7, %v5781
        %v5783 = vrot.slane %v5751, %v5782
        %vm5784 = vcmp.eq.s32.totalorder %v180, %v5755
        %vm5785 = vcmp.eq.s32.totalorder %v180, %v5759
        %vm5786 = vcmp.eq.s32.totalorder %v180, %v5763
        %vm5787 = vcmp.eq.s32.totalorder %v180, %v5767
        %vm5788 = vcmp.eq.s32.totalorder %v180, %v5771
        %vm5789 = vcmp.eq.s32.totalorder %v180, %v5775
        %vm5790 = vcmp.eq.s32.totalorder %v180, %v5779
        %vm5791 = vcmp.eq.s32.totalorder %v180, %v5783
        %v5792 = vsel %vm5784, %v5259, 0.0
        %v5793 = vsel %vm5785, %v5263, 0.0
        %v5794 = vsel %vm5786, %v5267, 0.0
        %v5795 = vsel %vm5787, %v5271, 0.0
        %v5796 = vsel %vm5788, %v5275, 0.0
        %v5797 = vsel %vm5789, %v5279, 0.0
        %v5798 = vsel %vm5790, %v5283, 0.0
        %v5799 = vsel %vm5791, %v5287, 0.0
        %v5800 = vadd.f32 %v5743, %v5792
        %v5801 = vadd.f32 %v5744, %v5793
        %v5802 = vadd.f32 %v5745, %v5794
        %v5803 = vadd.f32 %v5746, %v5795
        %v5804 = vadd.f32 %v5747, %v5796
        %v5805 = vadd.f32 %v5748, %v5797
        %v5806 = vadd.f32 %v5749, %v5798
        %v5807 = vadd.f32 %v5750, %v5799
        %v5808 = vsub.s32 %v5028, 16
        %v5809 = vlaneseq
        %v5810 = vshrl.u32 %v5809, 7
        %v5811 = vsub.s32 0, %v5810
        %v5812 = vrot.slane %v5808, %v5811
        %v5813 = vlaneseq
        %v5814 = vshrl.u32 %v5813, 7
        %v5815 = vsub.s32 1, %v5814
        %v5816 = vrot.slane %v5808, %v5815
        %v5817 = vlaneseq
        %v5818 = vshrl.u32 %v5817, 7
        %v5819 = vsub.s32 2, %v5818
        %v5820 = vrot.slane %v5808, %v5819
        %v5821 = vlaneseq
        %v5822 = vshrl.u32 %v5821, 7
        %v5823 = vsub.s32 3, %v5822
        %v5824 = vrot.slane %v5808, %v5823
        %v5825 = vlaneseq
        %v5826 = vshrl.u32 %v5825, 7
        %v5827 = vsub.s32 4, %v5826
        %v5828 = vrot.slane %v5808, %v5827
        %v5829 = vlaneseq
        %v5830 = vshrl.u32 %v5829, 7
        %v5831 = vsub.s32 5, %v5830
        %v5832 = vrot.slane %v5808, %v5831
        %v5833 = vlaneseq
        %v5834 = vshrl.u32 %v5833, 7
        %v5835 = vsub.s32 6, %v5834
        %v5836 = vrot.slane %v5808, %v5835
        %v5837 = vlaneseq
        %v5838 = vshrl.u32 %v5837, 7
        %v5839 = vsub.s32 7, %v5838
        %v5840 = vrot.slane %v5808, %v5839
        %vm5841 = vcmp.eq.s32.totalorder %v180, %v5812
        %vm5842 = vcmp.eq.s32.totalorder %v180, %v5816
        %vm5843 = vcmp.eq.s32.totalorder %v180, %v5820
        %vm5844 = vcmp.eq.s32.totalorder %v180, %v5824
        %vm5845 = vcmp.eq.s32.totalorder %v180, %v5828
        %vm5846 = vcmp.eq.s32.totalorder %v180, %v5832
        %vm5847 = vcmp.eq.s32.totalorder %v180, %v5836
        %vm5848 = vcmp.eq.s32.totalorder %v180, %v5840
        %v5849 = vsel %vm5841, %v5356, 0.0
        %v5850 = vsel %vm5842, %v5360, 0.0
        %v5851 = vsel %vm5843, %v5364, 0.0
        %v5852 = vsel %vm5844, %v5368, 0.0
        %v5853 = vsel %vm5845, %v5372, 0.0
        %v5854 = vsel %vm5846, %v5376, 0.0
        %v5855 = vsel %vm5847, %v5380, 0.0
        %v5856 = vsel %vm5848, %v5384, 0.0
        %v5857 = vadd.f32 %v5800, %v5849
        %v5858 = vadd.f32 %v5801, %v5850
        %v5859 = vadd.f32 %v5802, %v5851
        %v5860 = vadd.f32 %v5803, %v5852
        %v5861 = vadd.f32 %v5804, %v5853
        %v5862 = vadd.f32 %v5805, %v5854
        %v5863 = vadd.f32 %v5806, %v5855
        %v5864 = vadd.f32 %v5807, %v5856
        %5865 = vst [vmem:[#allocation2 + $0x580] sm:$0xff] %v5857
        %5866 = vst [vmem:[#allocation2 + $0x588] sm:$0xff] %v5858
        %5867 = vst [vmem:[#allocation2 + $0x590] sm:$0xff] %v5859
        %5868 = vst [vmem:[#allocation2 + $0x598] sm:$0xff] %v5860
        %5869 = vst [vmem:[#allocation2 + $0x5a0] sm:$0xff] %v5861
        %5870 = vst [vmem:[#allocation2 + $0x5a8] sm:$0xff] %v5862
        %5871 = vst [vmem:[#allocation2 + $0x5b0] sm:$0xff] %v5863
        %5872 = vst [vmem:[#allocation2 + $0x5b8] sm:$0xff] %v5864
        %v5873 = vsub.s32 %v5016, 24
        %v5874 = vlaneseq
        %v5875 = vshrl.u32 %v5874, 7
        %v5876 = vsub.s32 0, %v5875
        %v5877 = vrot.slane %v5873, %v5876
        %v5878 = vlaneseq
        %v5879 = vshrl.u32 %v5878, 7
        %v5880 = vsub.s32 1, %v5879
        %v5881 = vrot.slane %v5873, %v5880
        %v5882 = vlaneseq
        %v5883 = vshrl.u32 %v5882, 7
        %v5884 = vsub.s32 2, %v5883
        %v5885 = vrot.slane %v5873, %v5884
        %v5886 = vlaneseq
        %v5887 = vshrl.u32 %v5886, 7
        %v5888 = vsub.s32 3, %v5887
        %v5889 = vrot.slane %v5873, %v5888
        %v5890 = vlaneseq
        %v5891 = vshrl.u32 %v5890, 7
        %v5892 = vsub.s32 4, %v5891
        %v5893 = vrot.slane %v5873, %v5892
        %v5894 = vlaneseq
        %v5895 = vshrl.u32 %v5894, 7
        %v5896 = vsub.s32 5, %v5895
        %v5897 = vrot.slane %v5873, %v5896
        %v5898 = vlaneseq
        %v5899 = vshrl.u32 %v5898, 7
        %v5900 = vsub.s32 6, %v5899
        %v5901 = vrot.slane %v5873, %v5900
        %v5902 = vlaneseq
        %v5903 = vshrl.u32 %v5902, 7
        %v5904 = vsub.s32 7, %v5903
        %v5905 = vrot.slane %v5873, %v5904
        %vm5906 = vcmp.eq.s32.totalorder %v180, %v5877
        %vm5907 = vcmp.eq.s32.totalorder %v180, %v5881
        %vm5908 = vcmp.eq.s32.totalorder %v180, %v5885
        %vm5909 = vcmp.eq.s32.totalorder %v180, %v5889
        %vm5910 = vcmp.eq.s32.totalorder %v180, %v5893
        %vm5911 = vcmp.eq.s32.totalorder %v180, %v5897
        %vm5912 = vcmp.eq.s32.totalorder %v180, %v5901
        %vm5913 = vcmp.eq.s32.totalorder %v180, %v5905
        %v5914 = vsel %vm5906, %v5073, 0.0
        %v5915 = vsel %vm5907, %v5077, 0.0
        %v5916 = vsel %vm5908, %v5081, 0.0
        %v5917 = vsel %vm5909, %v5085, 0.0
        %v5918 = vsel %vm5910, %v5089, 0.0
        %v5919 = vsel %vm5911, %v5093, 0.0
        %v5920 = vsel %vm5912, %v5097, 0.0
        %v5921 = vsel %vm5913, %v5101, 0.0
        %v5922 = vsub.s32 %v5021, 24
        %v5923 = vlaneseq
        %v5924 = vshrl.u32 %v5923, 7
        %v5925 = vsub.s32 0, %v5924
        %v5926 = vrot.slane %v5922, %v5925
        %v5927 = vlaneseq
        %v5928 = vshrl.u32 %v5927, 7
        %v5929 = vsub.s32 1, %v5928
        %v5930 = vrot.slane %v5922, %v5929
        %v5931 = vlaneseq
        %v5932 = vshrl.u32 %v5931, 7
        %v5933 = vsub.s32 2, %v5932
        %v5934 = vrot.slane %v5922, %v5933
        %v5935 = vlaneseq
        %v5936 = vshrl.u32 %v5935, 7
        %v5937 = vsub.s32 3, %v5936
        %v5938 = vrot.slane %v5922, %v5937
        %v5939 = vlaneseq
        %v5940 = vshrl.u32 %v5939, 7
        %v5941 = vsub.s32 4, %v5940
        %v5942 = vrot.slane %v5922, %v5941
        %v5943 = vlaneseq
        %v5944 = vshrl.u32 %v5943, 7
        %v5945 = vsub.s32 5, %v5944
        %v5946 = vrot.slane %v5922, %v5945
        %v5947 = vlaneseq
        %v5948 = vshrl.u32 %v5947, 7
        %v5949 = vsub.s32 6, %v5948
        %v5950 = vrot.slane %v5922, %v5949
        %v5951 = vlaneseq
        %v5952 = vshrl.u32 %v5951, 7
        %v5953 = vsub.s32 7, %v5952
        %v5954 = vrot.slane %v5922, %v5953
        %vm5955 = vcmp.eq.s32.totalorder %v180, %v5926
        %vm5956 = vcmp.eq.s32.totalorder %v180, %v5930
        %vm5957 = vcmp.eq.s32.totalorder %v180, %v5934
        %vm5958 = vcmp.eq.s32.totalorder %v180, %v5938
        %vm5959 = vcmp.eq.s32.totalorder %v180, %v5942
        %vm5960 = vcmp.eq.s32.totalorder %v180, %v5946
        %vm5961 = vcmp.eq.s32.totalorder %v180, %v5950
        %vm5962 = vcmp.eq.s32.totalorder %v180, %v5954
        %v5963 = vsel %vm5955, %v5162, 0.0
        %v5964 = vsel %vm5956, %v5166, 0.0
        %v5965 = vsel %vm5957, %v5170, 0.0
        %v5966 = vsel %vm5958, %v5174, 0.0
        %v5967 = vsel %vm5959, %v5178, 0.0
        %v5968 = vsel %vm5960, %v5182, 0.0
        %v5969 = vsel %vm5961, %v5186, 0.0
        %v5970 = vsel %vm5962, %v5190, 0.0
        %v5971 = vadd.f32 %v5914, %v5963
        %v5972 = vadd.f32 %v5915, %v5964
        %v5973 = vadd.f32 %v5916, %v5965
        %v5974 = vadd.f32 %v5917, %v5966
        %v5975 = vadd.f32 %v5918, %v5967
        %v5976 = vadd.f32 %v5919, %v5968
        %v5977 = vadd.f32 %v5920, %v5969
        %v5978 = vadd.f32 %v5921, %v5970
        %v5979 = vsub.s32 %v5025, 24
        %v5980 = vlaneseq
        %v5981 = vshrl.u32 %v5980, 7
        %v5982 = vsub.s32 0, %v5981
        %v5983 = vrot.slane %v5979, %v5982
        %v5984 = vlaneseq
        %v5985 = vshrl.u32 %v5984, 7
        %v5986 = vsub.s32 1, %v5985
        %v5987 = vrot.slane %v5979, %v5986
        %v5988 = vlaneseq
        %v5989 = vshrl.u32 %v5988, 7
        %v5990 = vsub.s32 2, %v5989
        %v5991 = vrot.slane %v5979, %v5990
        %v5992 = vlaneseq
        %v5993 = vshrl.u32 %v5992, 7
        %v5994 = vsub.s32 3, %v5993
        %v5995 = vrot.slane %v5979, %v5994
        %v5996 = vlaneseq
        %v5997 = vshrl.u32 %v5996, 7
        %v5998 = vsub.s32 4, %v5997
        %v5999 = vrot.slane %v5979, %v5998
        %v6000 = vlaneseq
        %v6001 = vshrl.u32 %v6000, 7
        %v6002 = vsub.s32 5, %v6001
        %v6003 = vrot.slane %v5979, %v6002
        %v6004 = vlaneseq
        %v6005 = vshrl.u32 %v6004, 7
        %v6006 = vsub.s32 6, %v6005
        %v6007 = vrot.slane %v5979, %v6006
        %v6008 = vlaneseq
        %v6009 = vshrl.u32 %v6008, 7
        %v6010 = vsub.s32 7, %v6009
        %v6011 = vrot.slane %v5979, %v6010
        %vm6012 = vcmp.eq.s32.totalorder %v180, %v5983
        %vm6013 = vcmp.eq.s32.totalorder %v180, %v5987
        %vm6014 = vcmp.eq.s32.totalorder %v180, %v5991
        %vm6015 = vcmp.eq.s32.totalorder %v180, %v5995
        %vm6016 = vcmp.eq.s32.totalorder %v180, %v5999
        %vm6017 = vcmp.eq.s32.totalorder %v180, %v6003
        %vm6018 = vcmp.eq.s32.totalorder %v180, %v6007
        %vm6019 = vcmp.eq.s32.totalorder %v180, %v6011
        %v6020 = vsel %vm6012, %v5259, 0.0
        %v6021 = vsel %vm6013, %v5263, 0.0
        %v6022 = vsel %vm6014, %v5267, 0.0
        %v6023 = vsel %vm6015, %v5271, 0.0
        %v6024 = vsel %vm6016, %v5275, 0.0
        %v6025 = vsel %vm6017, %v5279, 0.0
        %v6026 = vsel %vm6018, %v5283, 0.0
        %v6027 = vsel %vm6019, %v5287, 0.0
        %v6028 = vadd.f32 %v5971, %v6020
        %v6029 = vadd.f32 %v5972, %v6021
        %v6030 = vadd.f32 %v5973, %v6022
        %v6031 = vadd.f32 %v5974, %v6023
        %v6032 = vadd.f32 %v5975, %v6024
        %v6033 = vadd.f32 %v5976, %v6025
        %v6034 = vadd.f32 %v5977, %v6026
        %v6035 = vadd.f32 %v5978, %v6027
        %v6036 = vsub.s32 %v5028, 24
        %v6037 = vlaneseq
        %v6038 = vshrl.u32 %v6037, 7
        %v6039 = vsub.s32 0, %v6038
        %v6040 = vrot.slane %v6036, %v6039
        %v6041 = vlaneseq
        %v6042 = vshrl.u32 %v6041, 7
        %v6043 = vsub.s32 1, %v6042
        %v6044 = vrot.slane %v6036, %v6043
        %v6045 = vlaneseq
        %v6046 = vshrl.u32 %v6045, 7
        %v6047 = vsub.s32 2, %v6046
        %v6048 = vrot.slane %v6036, %v6047
        %v6049 = vlaneseq
        %v6050 = vshrl.u32 %v6049, 7
        %v6051 = vsub.s32 3, %v6050
        %v6052 = vrot.slane %v6036, %v6051
        %v6053 = vlaneseq
        %v6054 = vshrl.u32 %v6053, 7
        %v6055 = vsub.s32 4, %v6054
        %v6056 = vrot.slane %v6036, %v6055
        %v6057 = vlaneseq
        %v6058 = vshrl.u32 %v6057, 7
        %v6059 = vsub.s32 5, %v6058
        %v6060 = vrot.slane %v6036, %v6059
        %v6061 = vlaneseq
        %v6062 = vshrl.u32 %v6061, 7
        %v6063 = vsub.s32 6, %v6062
        %v6064 = vrot.slane %v6036, %v6063
        %v6065 = vlaneseq
        %v6066 = vshrl.u32 %v6065, 7
        %v6067 = vsub.s32 7, %v6066
        %v6068 = vrot.slane %v6036, %v6067
        %vm6069 = vcmp.eq.s32.totalorder %v180, %v6040
        %vm6070 = vcmp.eq.s32.totalorder %v180, %v6044
        %vm6071 = vcmp.eq.s32.totalorder %v180, %v6048
        %vm6072 = vcmp.eq.s32.totalorder %v180, %v6052
        %vm6073 = vcmp.eq.s32.totalorder %v180, %v6056
        %vm6074 = vcmp.eq.s32.totalorder %v180, %v6060
        %vm6075 = vcmp.eq.s32.totalorder %v180, %v6064
        %vm6076 = vcmp.eq.s32.totalorder %v180, %v6068
        %v6077 = vsel %vm6069, %v5356, 0.0
        %v6078 = vsel %vm6070, %v5360, 0.0
        %v6079 = vsel %vm6071, %v5364, 0.0
        %v6080 = vsel %vm6072, %v5368, 0.0
        %v6081 = vsel %vm6073, %v5372, 0.0
        %v6082 = vsel %vm6074, %v5376, 0.0
        %v6083 = vsel %vm6075, %v5380, 0.0
        %v6084 = vsel %vm6076, %v5384, 0.0
        %v6085 = vadd.f32 %v6028, %v6077
        %v6086 = vadd.f32 %v6029, %v6078
        %v6087 = vadd.f32 %v6030, %v6079
        %v6088 = vadd.f32 %v6031, %v6080
        %v6089 = vadd.f32 %v6032, %v6081
        %v6090 = vadd.f32 %v6033, %v6082
        %v6091 = vadd.f32 %v6034, %v6083
        %v6092 = vadd.f32 %v6035, %v6084
        %6093 = vst [vmem:[#allocation2 + $0x5c0] sm:$0xff] %v6085
        %6094 = vst [vmem:[#allocation2 + $0x5c8] sm:$0xff] %v6086
        %6095 = vst [vmem:[#allocation2 + $0x5d0] sm:$0xff] %v6087
        %6096 = vst [vmem:[#allocation2 + $0x5d8] sm:$0xff] %v6088
        %6097 = vst [vmem:[#allocation2 + $0x5e0] sm:$0xff] %v6089
        %6098 = vst [vmem:[#allocation2 + $0x5e8] sm:$0xff] %v6090
        %6099 = vst [vmem:[#allocation2 + $0x5f0] sm:$0xff] %v6091
        %6100 = vst [vmem:[#allocation2 + $0x5f8] sm:$0xff] %v6092
        %v6101 = vsub.s32 %v5016, 32
        %v6102 = vlaneseq
        %v6103 = vshrl.u32 %v6102, 7
        %v6104 = vsub.s32 0, %v6103
        %v6105 = vrot.slane %v6101, %v6104
        %v6106 = vlaneseq
        %v6107 = vshrl.u32 %v6106, 7
        %v6108 = vsub.s32 1, %v6107
        %v6109 = vrot.slane %v6101, %v6108
        %v6110 = vlaneseq
        %v6111 = vshrl.u32 %v6110, 7
        %v6112 = vsub.s32 2, %v6111
        %v6113 = vrot.slane %v6101, %v6112
        %v6114 = vlaneseq
        %v6115 = vshrl.u32 %v6114, 7
        %v6116 = vsub.s32 3, %v6115
        %v6117 = vrot.slane %v6101, %v6116
        %v6118 = vlaneseq
        %v6119 = vshrl.u32 %v6118, 7
        %v6120 = vsub.s32 4, %v6119
        %v6121 = vrot.slane %v6101, %v6120
        %v6122 = vlaneseq
        %v6123 = vshrl.u32 %v6122, 7
        %v6124 = vsub.s32 5, %v6123
        %v6125 = vrot.slane %v6101, %v6124
        %v6126 = vlaneseq
        %v6127 = vshrl.u32 %v6126, 7
        %v6128 = vsub.s32 6, %v6127
        %v6129 = vrot.slane %v6101, %v6128
        %v6130 = vlaneseq
        %v6131 = vshrl.u32 %v6130, 7
        %v6132 = vsub.s32 7, %v6131
        %v6133 = vrot.slane %v6101, %v6132
        %vm6134 = vcmp.eq.s32.totalorder %v180, %v6105
        %vm6135 = vcmp.eq.s32.totalorder %v180, %v6109
        %vm6136 = vcmp.eq.s32.totalorder %v180, %v6113
        %vm6137 = vcmp.eq.s32.totalorder %v180, %v6117
        %vm6138 = vcmp.eq.s32.totalorder %v180, %v6121
        %vm6139 = vcmp.eq.s32.totalorder %v180, %v6125
        %vm6140 = vcmp.eq.s32.totalorder %v180, %v6129
        %vm6141 = vcmp.eq.s32.totalorder %v180, %v6133
        %v6142 = vsel %vm6134, %v5073, 0.0
        %v6143 = vsel %vm6135, %v5077, 0.0
        %v6144 = vsel %vm6136, %v5081, 0.0
        %v6145 = vsel %vm6137, %v5085, 0.0
        %v6146 = vsel %vm6138, %v5089, 0.0
        %v6147 = vsel %vm6139, %v5093, 0.0
        %v6148 = vsel %vm6140, %v5097, 0.0
        %v6149 = vsel %vm6141, %v5101, 0.0
        %v6150 = vsub.s32 %v5021, 32
        %v6151 = vlaneseq
        %v6152 = vshrl.u32 %v6151, 7
        %v6153 = vsub.s32 0, %v6152
        %v6154 = vrot.slane %v6150, %v6153
        %v6155 = vlaneseq
        %v6156 = vshrl.u32 %v6155, 7
        %v6157 = vsub.s32 1, %v6156
        %v6158 = vrot.slane %v6150, %v6157
        %v6159 = vlaneseq
        %v6160 = vshrl.u32 %v6159, 7
        %v6161 = vsub.s32 2, %v6160
        %v6162 = vrot.slane %v6150, %v6161
        %v6163 = vlaneseq
        %v6164 = vshrl.u32 %v6163, 7
        %v6165 = vsub.s32 3, %v6164
        %v6166 = vrot.slane %v6150, %v6165
        %v6167 = vlaneseq
        %v6168 = vshrl.u32 %v6167, 7
        %v6169 = vsub.s32 4, %v6168
        %v6170 = vrot.slane %v6150, %v6169
        %v6171 = vlaneseq
        %v6172 = vshrl.u32 %v6171, 7
        %v6173 = vsub.s32 5, %v6172
        %v6174 = vrot.slane %v6150, %v6173
        %v6175 = vlaneseq
        %v6176 = vshrl.u32 %v6175, 7
        %v6177 = vsub.s32 6, %v6176
        %v6178 = vrot.slane %v6150, %v6177
        %v6179 = vlaneseq
        %v6180 = vshrl.u32 %v6179, 7
        %v6181 = vsub.s32 7, %v6180
        %v6182 = vrot.slane %v6150, %v6181
        %vm6183 = vcmp.eq.s32.totalorder %v180, %v6154
        %vm6184 = vcmp.eq.s32.totalorder %v180, %v6158
        %vm6185 = vcmp.eq.s32.totalorder %v180, %v6162
        %vm6186 = vcmp.eq.s32.totalorder %v180, %v6166
        %vm6187 = vcmp.eq.s32.totalorder %v180, %v6170
        %vm6188 = vcmp.eq.s32.totalorder %v180, %v6174
        %vm6189 = vcmp.eq.s32.totalorder %v180, %v6178
        %vm6190 = vcmp.eq.s32.totalorder %v180, %v6182
        %v6191 = vsel %vm6183, %v5162, 0.0
        %v6192 = vsel %vm6184, %v5166, 0.0
        %v6193 = vsel %vm6185, %v5170, 0.0
        %v6194 = vsel %vm6186, %v5174, 0.0
        %v6195 = vsel %vm6187, %v5178, 0.0
        %v6196 = vsel %vm6188, %v5182, 0.0
        %v6197 = vsel %vm6189, %v5186, 0.0
        %v6198 = vsel %vm6190, %v5190, 0.0
        %v6199 = vadd.f32 %v6142, %v6191
        %v6200 = vadd.f32 %v6143, %v6192
        %v6201 = vadd.f32 %v6144, %v6193
        %v6202 = vadd.f32 %v6145, %v6194
        %v6203 = vadd.f32 %v6146, %v6195
        %v6204 = vadd.f32 %v6147, %v6196
        %v6205 = vadd.f32 %v6148, %v6197
        %v6206 = vadd.f32 %v6149, %v6198
        %v6207 = vsub.s32 %v5025, 32
        %v6208 = vlaneseq
        %v6209 = vshrl.u32 %v6208, 7
        %v6210 = vsub.s32 0, %v6209
        %v6211 = vrot.slane %v6207, %v6210
        %v6212 = vlaneseq
        %v6213 = vshrl.u32 %v6212, 7
        %v6214 = vsub.s32 1, %v6213
        %v6215 = vrot.slane %v6207, %v6214
        %v6216 = vlaneseq
        %v6217 = vshrl.u32 %v6216, 7
        %v6218 = vsub.s32 2, %v6217
        %v6219 = vrot.slane %v6207, %v6218
        %v6220 = vlaneseq
        %v6221 = vshrl.u32 %v6220, 7
        %v6222 = vsub.s32 3, %v6221
        %v6223 = vrot.slane %v6207, %v6222
        %v6224 = vlaneseq
        %v6225 = vshrl.u32 %v6224, 7
        %v6226 = vsub.s32 4, %v6225
        %v6227 = vrot.slane %v6207, %v6226
        %v6228 = vlaneseq
        %v6229 = vshrl.u32 %v6228, 7
        %v6230 = vsub.s32 5, %v6229
        %v6231 = vrot.slane %v6207, %v6230
        %v6232 = vlaneseq
        %v6233 = vshrl.u32 %v6232, 7
        %v6234 = vsub.s32 6, %v6233
        %v6235 = vrot.slane %v6207, %v6234
        %v6236 = vlaneseq
        %v6237 = vshrl.u32 %v6236, 7
        %v6238 = vsub.s32 7, %v6237
        %v6239 = vrot.slane %v6207, %v6238
        %vm6240 = vcmp.eq.s32.totalorder %v180, %v6211
        %vm6241 = vcmp.eq.s32.totalorder %v180, %v6215
        %vm6242 = vcmp.eq.s32.totalorder %v180, %v6219
        %vm6243 = vcmp.eq.s32.totalorder %v180, %v6223
        %vm6244 = vcmp.eq.s32.totalorder %v180, %v6227
        %vm6245 = vcmp.eq.s32.totalorder %v180, %v6231
        %vm6246 = vcmp.eq.s32.totalorder %v180, %v6235
        %vm6247 = vcmp.eq.s32.totalorder %v180, %v6239
        %v6248 = vsel %vm6240, %v5259, 0.0
        %v6249 = vsel %vm6241, %v5263, 0.0
        %v6250 = vsel %vm6242, %v5267, 0.0
        %v6251 = vsel %vm6243, %v5271, 0.0
        %v6252 = vsel %vm6244, %v5275, 0.0
        %v6253 = vsel %vm6245, %v5279, 0.0
        %v6254 = vsel %vm6246, %v5283, 0.0
        %v6255 = vsel %vm6247, %v5287, 0.0
        %v6256 = vadd.f32 %v6199, %v6248
        %v6257 = vadd.f32 %v6200, %v6249
        %v6258 = vadd.f32 %v6201, %v6250
        %v6259 = vadd.f32 %v6202, %v6251
        %v6260 = vadd.f32 %v6203, %v6252
        %v6261 = vadd.f32 %v6204, %v6253
        %v6262 = vadd.f32 %v6205, %v6254
        %v6263 = vadd.f32 %v6206, %v6255
        %v6264 = vsub.s32 %v5028, 32
        %v6265 = vlaneseq
        %v6266 = vshrl.u32 %v6265, 7
        %v6267 = vsub.s32 0, %v6266
        %v6268 = vrot.slane %v6264, %v6267
        %v6269 = vlaneseq
        %v6270 = vshrl.u32 %v6269, 7
        %v6271 = vsub.s32 1, %v6270
        %v6272 = vrot.slane %v6264, %v6271
        %v6273 = vlaneseq
        %v6274 = vshrl.u32 %v6273, 7
        %v6275 = vsub.s32 2, %v6274
        %v6276 = vrot.slane %v6264, %v6275
        %v6277 = vlaneseq
        %v6278 = vshrl.u32 %v6277, 7
        %v6279 = vsub.s32 3, %v6278
        %v6280 = vrot.slane %v6264, %v6279
        %v6281 = vlaneseq
        %v6282 = vshrl.u32 %v6281, 7
        %v6283 = vsub.s32 4, %v6282
        %v6284 = vrot.slane %v6264, %v6283
        %v6285 = vlaneseq
        %v6286 = vshrl.u32 %v6285, 7
        %v6287 = vsub.s32 5, %v6286
        %v6288 = vrot.slane %v6264, %v6287
        %v6289 = vlaneseq
        %v6290 = vshrl.u32 %v6289, 7
        %v6291 = vsub.s32 6, %v6290
        %v6292 = vrot.slane %v6264, %v6291
        %v6293 = vlaneseq
        %v6294 = vshrl.u32 %v6293, 7
        %v6295 = vsub.s32 7, %v6294
        %v6296 = vrot.slane %v6264, %v6295
        %vm6297 = vcmp.eq.s32.totalorder %v180, %v6268
        %vm6298 = vcmp.eq.s32.totalorder %v180, %v6272
        %vm6299 = vcmp.eq.s32.totalorder %v180, %v6276
        %vm6300 = vcmp.eq.s32.totalorder %v180, %v6280
        %vm6301 = vcmp.eq.s32.totalorder %v180, %v6284
        %vm6302 = vcmp.eq.s32.totalorder %v180, %v6288
        %vm6303 = vcmp.eq.s32.totalorder %v180, %v6292
        %vm6304 = vcmp.eq.s32.totalorder %v180, %v6296
        %v6305 = vsel %vm6297, %v5356, 0.0
        %v6306 = vsel %vm6298, %v5360, 0.0
        %v6307 = vsel %vm6299, %v5364, 0.0
        %v6308 = vsel %vm6300, %v5368, 0.0
        %v6309 = vsel %vm6301, %v5372, 0.0
        %v6310 = vsel %vm6302, %v5376, 0.0
        %v6311 = vsel %vm6303, %v5380, 0.0
        %v6312 = vsel %vm6304, %v5384, 0.0
        %v6313 = vadd.f32 %v6256, %v6305
        %v6314 = vadd.f32 %v6257, %v6306
        %v6315 = vadd.f32 %v6258, %v6307
        %v6316 = vadd.f32 %v6259, %v6308
        %v6317 = vadd.f32 %v6260, %v6309
        %v6318 = vadd.f32 %v6261, %v6310
        %v6319 = vadd.f32 %v6262, %v6311
        %v6320 = vadd.f32 %v6263, %v6312
        %6321 = vst [vmem:[#allocation2 + $0x600] sm:$0xff] %v6313
        %6322 = vst [vmem:[#allocation2 + $0x608] sm:$0xff] %v6314
        %6323 = vst [vmem:[#allocation2 + $0x610] sm:$0xff] %v6315
        %6324 = vst [vmem:[#allocation2 + $0x618] sm:$0xff] %v6316
        %6325 = vst [vmem:[#allocation2 + $0x620] sm:$0xff] %v6317
        %6326 = vst [vmem:[#allocation2 + $0x628] sm:$0xff] %v6318
        %6327 = vst [vmem:[#allocation2 + $0x630] sm:$0xff] %v6319
        %6328 = vst [vmem:[#allocation2 + $0x638] sm:$0xff] %v6320
        %v6329 = vsub.s32 %v5016, 40
        %v6330 = vlaneseq
        %v6331 = vshrl.u32 %v6330, 7
        %v6332 = vsub.s32 0, %v6331
        %v6333 = vrot.slane %v6329, %v6332
        %v6334 = vlaneseq
        %v6335 = vshrl.u32 %v6334, 7
        %v6336 = vsub.s32 1, %v6335
        %v6337 = vrot.slane %v6329, %v6336
        %v6338 = vlaneseq
        %v6339 = vshrl.u32 %v6338, 7
        %v6340 = vsub.s32 2, %v6339
        %v6341 = vrot.slane %v6329, %v6340
        %v6342 = vlaneseq
        %v6343 = vshrl.u32 %v6342, 7
        %v6344 = vsub.s32 3, %v6343
        %v6345 = vrot.slane %v6329, %v6344
        %v6346 = vlaneseq
        %v6347 = vshrl.u32 %v6346, 7
        %v6348 = vsub.s32 4, %v6347
        %v6349 = vrot.slane %v6329, %v6348
        %v6350 = vlaneseq
        %v6351 = vshrl.u32 %v6350, 7
        %v6352 = vsub.s32 5, %v6351
        %v6353 = vrot.slane %v6329, %v6352
        %v6354 = vlaneseq
        %v6355 = vshrl.u32 %v6354, 7
        %v6356 = vsub.s32 6, %v6355
        %v6357 = vrot.slane %v6329, %v6356
        %v6358 = vlaneseq
        %v6359 = vshrl.u32 %v6358, 7
        %v6360 = vsub.s32 7, %v6359
        %v6361 = vrot.slane %v6329, %v6360
        %vm6362 = vcmp.eq.s32.totalorder %v180, %v6333
        %vm6363 = vcmp.eq.s32.totalorder %v180, %v6337
        %vm6364 = vcmp.eq.s32.totalorder %v180, %v6341
        %vm6365 = vcmp.eq.s32.totalorder %v180, %v6345
        %vm6366 = vcmp.eq.s32.totalorder %v180, %v6349
        %vm6367 = vcmp.eq.s32.totalorder %v180, %v6353
        %vm6368 = vcmp.eq.s32.totalorder %v180, %v6357
        %vm6369 = vcmp.eq.s32.totalorder %v180, %v6361
        %v6370 = vsel %vm6362, %v5073, 0.0
        %v6371 = vsel %vm6363, %v5077, 0.0
        %v6372 = vsel %vm6364, %v5081, 0.0
        %v6373 = vsel %vm6365, %v5085, 0.0
        %v6374 = vsel %vm6366, %v5089, 0.0
        %v6375 = vsel %vm6367, %v5093, 0.0
        %v6376 = vsel %vm6368, %v5097, 0.0
        %v6377 = vsel %vm6369, %v5101, 0.0
        %v6378 = vsub.s32 %v5021, 40
        %v6379 = vlaneseq
        %v6380 = vshrl.u32 %v6379, 7
        %v6381 = vsub.s32 0, %v6380
        %v6382 = vrot.slane %v6378, %v6381
        %v6383 = vlaneseq
        %v6384 = vshrl.u32 %v6383, 7
        %v6385 = vsub.s32 1, %v6384
        %v6386 = vrot.slane %v6378, %v6385
        %v6387 = vlaneseq
        %v6388 = vshrl.u32 %v6387, 7
        %v6389 = vsub.s32 2, %v6388
        %v6390 = vrot.slane %v6378, %v6389
        %v6391 = vlaneseq
        %v6392 = vshrl.u32 %v6391, 7
        %v6393 = vsub.s32 3, %v6392
        %v6394 = vrot.slane %v6378, %v6393
        %v6395 = vlaneseq
        %v6396 = vshrl.u32 %v6395, 7
        %v6397 = vsub.s32 4, %v6396
        %v6398 = vrot.slane %v6378, %v6397
        %v6399 = vlaneseq
        %v6400 = vshrl.u32 %v6399, 7
        %v6401 = vsub.s32 5, %v6400
        %v6402 = vrot.slane %v6378, %v6401
        %v6403 = vlaneseq
        %v6404 = vshrl.u32 %v6403, 7
        %v6405 = vsub.s32 6, %v6404
        %v6406 = vrot.slane %v6378, %v6405
        %v6407 = vlaneseq
        %v6408 = vshrl.u32 %v6407, 7
        %v6409 = vsub.s32 7, %v6408
        %v6410 = vrot.slane %v6378, %v6409
        %vm6411 = vcmp.eq.s32.totalorder %v180, %v6382
        %vm6412 = vcmp.eq.s32.totalorder %v180, %v6386
        %vm6413 = vcmp.eq.s32.totalorder %v180, %v6390
        %vm6414 = vcmp.eq.s32.totalorder %v180, %v6394
        %vm6415 = vcmp.eq.s32.totalorder %v180, %v6398
        %vm6416 = vcmp.eq.s32.totalorder %v180, %v6402
        %vm6417 = vcmp.eq.s32.totalorder %v180, %v6406
        %vm6418 = vcmp.eq.s32.totalorder %v180, %v6410
        %v6419 = vsel %vm6411, %v5162, 0.0
        %v6420 = vsel %vm6412, %v5166, 0.0
        %v6421 = vsel %vm6413, %v5170, 0.0
        %v6422 = vsel %vm6414, %v5174, 0.0
        %v6423 = vsel %vm6415, %v5178, 0.0
        %v6424 = vsel %vm6416, %v5182, 0.0
        %v6425 = vsel %vm6417, %v5186, 0.0
        %v6426 = vsel %vm6418, %v5190, 0.0
        %v6427 = vadd.f32 %v6370, %v6419
        %v6428 = vadd.f32 %v6371, %v6420
        %v6429 = vadd.f32 %v6372, %v6421
        %v6430 = vadd.f32 %v6373, %v6422
        %v6431 = vadd.f32 %v6374, %v6423
        %v6432 = vadd.f32 %v6375, %v6424
        %v6433 = vadd.f32 %v6376, %v6425
        %v6434 = vadd.f32 %v6377, %v6426
        %v6435 = vsub.s32 %v5025, 40
        %v6436 = vlaneseq
        %v6437 = vshrl.u32 %v6436, 7
        %v6438 = vsub.s32 0, %v6437
        %v6439 = vrot.slane %v6435, %v6438
        %v6440 = vlaneseq
        %v6441 = vshrl.u32 %v6440, 7
        %v6442 = vsub.s32 1, %v6441
        %v6443 = vrot.slane %v6435, %v6442
        %v6444 = vlaneseq
        %v6445 = vshrl.u32 %v6444, 7
        %v6446 = vsub.s32 2, %v6445
        %v6447 = vrot.slane %v6435, %v6446
        %v6448 = vlaneseq
        %v6449 = vshrl.u32 %v6448, 7
        %v6450 = vsub.s32 3, %v6449
        %v6451 = vrot.slane %v6435, %v6450
        %v6452 = vlaneseq
        %v6453 = vshrl.u32 %v6452, 7
        %v6454 = vsub.s32 4, %v6453
        %v6455 = vrot.slane %v6435, %v6454
        %v6456 = vlaneseq
        %v6457 = vshrl.u32 %v6456, 7
        %v6458 = vsub.s32 5, %v6457
        %v6459 = vrot.slane %v6435, %v6458
        %v6460 = vlaneseq
        %v6461 = vshrl.u32 %v6460, 7
        %v6462 = vsub.s32 6, %v6461
        %v6463 = vrot.slane %v6435, %v6462
        %v6464 = vlaneseq
        %v6465 = vshrl.u32 %v6464, 7
        %v6466 = vsub.s32 7, %v6465
        %v6467 = vrot.slane %v6435, %v6466
        %vm6468 = vcmp.eq.s32.totalorder %v180, %v6439
        %vm6469 = vcmp.eq.s32.totalorder %v180, %v6443
        %vm6470 = vcmp.eq.s32.totalorder %v180, %v6447
        %vm6471 = vcmp.eq.s32.totalorder %v180, %v6451
        %vm6472 = vcmp.eq.s32.totalorder %v180, %v6455
        %vm6473 = vcmp.eq.s32.totalorder %v180, %v6459
        %vm6474 = vcmp.eq.s32.totalorder %v180, %v6463
        %vm6475 = vcmp.eq.s32.totalorder %v180, %v6467
        %v6476 = vsel %vm6468, %v5259, 0.0
        %v6477 = vsel %vm6469, %v5263, 0.0
        %v6478 = vsel %vm6470, %v5267, 0.0
        %v6479 = vsel %vm6471, %v5271, 0.0
        %v6480 = vsel %vm6472, %v5275, 0.0
        %v6481 = vsel %vm6473, %v5279, 0.0
        %v6482 = vsel %vm6474, %v5283, 0.0
        %v6483 = vsel %vm6475, %v5287, 0.0
        %v6484 = vadd.f32 %v6427, %v6476
        %v6485 = vadd.f32 %v6428, %v6477
        %v6486 = vadd.f32 %v6429, %v6478
        %v6487 = vadd.f32 %v6430, %v6479
        %v6488 = vadd.f32 %v6431, %v6480
        %v6489 = vadd.f32 %v6432, %v6481
        %v6490 = vadd.f32 %v6433, %v6482
        %v6491 = vadd.f32 %v6434, %v6483
        %v6492 = vsub.s32 %v5028, 40
        %v6493 = vlaneseq
        %v6494 = vshrl.u32 %v6493, 7
        %v6495 = vsub.s32 0, %v6494
        %v6496 = vrot.slane %v6492, %v6495
        %v6497 = vlaneseq
        %v6498 = vshrl.u32 %v6497, 7
        %v6499 = vsub.s32 1, %v6498
        %v6500 = vrot.slane %v6492, %v6499
        %v6501 = vlaneseq
        %v6502 = vshrl.u32 %v6501, 7
        %v6503 = vsub.s32 2, %v6502
        %v6504 = vrot.slane %v6492, %v6503
        %v6505 = vlaneseq
        %v6506 = vshrl.u32 %v6505, 7
        %v6507 = vsub.s32 3, %v6506
        %v6508 = vrot.slane %v6492, %v6507
        %v6509 = vlaneseq
        %v6510 = vshrl.u32 %v6509, 7
        %v6511 = vsub.s32 4, %v6510
        %v6512 = vrot.slane %v6492, %v6511
        %v6513 = vlaneseq
        %v6514 = vshrl.u32 %v6513, 7
        %v6515 = vsub.s32 5, %v6514
        %v6516 = vrot.slane %v6492, %v6515
        %v6517 = vlaneseq
        %v6518 = vshrl.u32 %v6517, 7
        %v6519 = vsub.s32 6, %v6518
        %v6520 = vrot.slane %v6492, %v6519
        %v6521 = vlaneseq
        %v6522 = vshrl.u32 %v6521, 7
        %v6523 = vsub.s32 7, %v6522
        %v6524 = vrot.slane %v6492, %v6523
        %vm6525 = vcmp.eq.s32.totalorder %v180, %v6496
        %vm6526 = vcmp.eq.s32.totalorder %v180, %v6500
        %vm6527 = vcmp.eq.s32.totalorder %v180, %v6504
        %vm6528 = vcmp.eq.s32.totalorder %v180, %v6508
        %vm6529 = vcmp.eq.s32.totalorder %v180, %v6512
        %vm6530 = vcmp.eq.s32.totalorder %v180, %v6516
        %vm6531 = vcmp.eq.s32.totalorder %v180, %v6520
        %vm6532 = vcmp.eq.s32.totalorder %v180, %v6524
        %v6533 = vsel %vm6525, %v5356, 0.0
        %v6534 = vsel %vm6526, %v5360, 0.0
        %v6535 = vsel %vm6527, %v5364, 0.0
        %v6536 = vsel %vm6528, %v5368, 0.0
        %v6537 = vsel %vm6529, %v5372, 0.0
        %v6538 = vsel %vm6530, %v5376, 0.0
        %v6539 = vsel %vm6531, %v5380, 0.0
        %v6540 = vsel %vm6532, %v5384, 0.0
        %v6541 = vadd.f32 %v6484, %v6533
        %v6542 = vadd.f32 %v6485, %v6534
        %v6543 = vadd.f32 %v6486, %v6535
        %v6544 = vadd.f32 %v6487, %v6536
        %v6545 = vadd.f32 %v6488, %v6537
        %v6546 = vadd.f32 %v6489, %v6538
        %v6547 = vadd.f32 %v6490, %v6539
        %v6548 = vadd.f32 %v6491, %v6540
        %6549 = vst [vmem:[#allocation2 + $0x640] sm:$0xff] %v6541
        %6550 = vst [vmem:[#allocation2 + $0x648] sm:$0xff] %v6542
        %6551 = vst [vmem:[#allocation2 + $0x650] sm:$0xff] %v6543
        %6552 = vst [vmem:[#allocation2 + $0x658] sm:$0xff] %v6544
        %6553 = vst [vmem:[#allocation2 + $0x660] sm:$0xff] %v6545
        %6554 = vst [vmem:[#allocation2 + $0x668] sm:$0xff] %v6546
        %6555 = vst [vmem:[#allocation2 + $0x670] sm:$0xff] %v6547
        %6556 = vst [vmem:[#allocation2 + $0x678] sm:$0xff] %v6548
        %v6557 = vsub.s32 %v5016, 48
        %v6558 = vlaneseq
        %v6559 = vshrl.u32 %v6558, 7
        %v6560 = vsub.s32 0, %v6559
        %v6561 = vrot.slane %v6557, %v6560
        %v6562 = vlaneseq
        %v6563 = vshrl.u32 %v6562, 7
        %v6564 = vsub.s32 1, %v6563
        %v6565 = vrot.slane %v6557, %v6564
        %v6566 = vlaneseq
        %v6567 = vshrl.u32 %v6566, 7
        %v6568 = vsub.s32 2, %v6567
        %v6569 = vrot.slane %v6557, %v6568
        %v6570 = vlaneseq
        %v6571 = vshrl.u32 %v6570, 7
        %v6572 = vsub.s32 3, %v6571
        %v6573 = vrot.slane %v6557, %v6572
        %v6574 = vlaneseq
        %v6575 = vshrl.u32 %v6574, 7
        %v6576 = vsub.s32 4, %v6575
        %v6577 = vrot.slane %v6557, %v6576
        %v6578 = vlaneseq
        %v6579 = vshrl.u32 %v6578, 7
        %v6580 = vsub.s32 5, %v6579
        %v6581 = vrot.slane %v6557, %v6580
        %v6582 = vlaneseq
        %v6583 = vshrl.u32 %v6582, 7
        %v6584 = vsub.s32 6, %v6583
        %v6585 = vrot.slane %v6557, %v6584
        %v6586 = vlaneseq
        %v6587 = vshrl.u32 %v6586, 7
        %v6588 = vsub.s32 7, %v6587
        %v6589 = vrot.slane %v6557, %v6588
        %vm6590 = vcmp.eq.s32.totalorder %v180, %v6561
        %vm6591 = vcmp.eq.s32.totalorder %v180, %v6565
        %vm6592 = vcmp.eq.s32.totalorder %v180, %v6569
        %vm6593 = vcmp.eq.s32.totalorder %v180, %v6573
        %vm6594 = vcmp.eq.s32.totalorder %v180, %v6577
        %vm6595 = vcmp.eq.s32.totalorder %v180, %v6581
        %vm6596 = vcmp.eq.s32.totalorder %v180, %v6585
        %vm6597 = vcmp.eq.s32.totalorder %v180, %v6589
        %v6598 = vsel %vm6590, %v5073, 0.0
        %v6599 = vsel %vm6591, %v5077, 0.0
        %v6600 = vsel %vm6592, %v5081, 0.0
        %v6601 = vsel %vm6593, %v5085, 0.0
        %v6602 = vsel %vm6594, %v5089, 0.0
        %v6603 = vsel %vm6595, %v5093, 0.0
        %v6604 = vsel %vm6596, %v5097, 0.0
        %v6605 = vsel %vm6597, %v5101, 0.0
        %v6606 = vsub.s32 %v5021, 48
        %v6607 = vlaneseq
        %v6608 = vshrl.u32 %v6607, 7
        %v6609 = vsub.s32 0, %v6608
        %v6610 = vrot.slane %v6606, %v6609
        %v6611 = vlaneseq
        %v6612 = vshrl.u32 %v6611, 7
        %v6613 = vsub.s32 1, %v6612
        %v6614 = vrot.slane %v6606, %v6613
        %v6615 = vlaneseq
        %v6616 = vshrl.u32 %v6615, 7
        %v6617 = vsub.s32 2, %v6616
        %v6618 = vrot.slane %v6606, %v6617
        %v6619 = vlaneseq
        %v6620 = vshrl.u32 %v6619, 7
        %v6621 = vsub.s32 3, %v6620
        %v6622 = vrot.slane %v6606, %v6621
        %v6623 = vlaneseq
        %v6624 = vshrl.u32 %v6623, 7
        %v6625 = vsub.s32 4, %v6624
        %v6626 = vrot.slane %v6606, %v6625
        %v6627 = vlaneseq
        %v6628 = vshrl.u32 %v6627, 7
        %v6629 = vsub.s32 5, %v6628
        %v6630 = vrot.slane %v6606, %v6629
        %v6631 = vlaneseq
        %v6632 = vshrl.u32 %v6631, 7
        %v6633 = vsub.s32 6, %v6632
        %v6634 = vrot.slane %v6606, %v6633
        %v6635 = vlaneseq
        %v6636 = vshrl.u32 %v6635, 7
        %v6637 = vsub.s32 7, %v6636
        %v6638 = vrot.slane %v6606, %v6637
        %vm6639 = vcmp.eq.s32.totalorder %v180, %v6610
        %vm6640 = vcmp.eq.s32.totalorder %v180, %v6614
        %vm6641 = vcmp.eq.s32.totalorder %v180, %v6618
        %vm6642 = vcmp.eq.s32.totalorder %v180, %v6622
        %vm6643 = vcmp.eq.s32.totalorder %v180, %v6626
        %vm6644 = vcmp.eq.s32.totalorder %v180, %v6630
        %vm6645 = vcmp.eq.s32.totalorder %v180, %v6634
        %vm6646 = vcmp.eq.s32.totalorder %v180, %v6638
        %v6647 = vsel %vm6639, %v5162, 0.0
        %v6648 = vsel %vm6640, %v5166, 0.0
        %v6649 = vsel %vm6641, %v5170, 0.0
        %v6650 = vsel %vm6642, %v5174, 0.0
        %v6651 = vsel %vm6643, %v5178, 0.0
        %v6652 = vsel %vm6644, %v5182, 0.0
        %v6653 = vsel %vm6645, %v5186, 0.0
        %v6654 = vsel %vm6646, %v5190, 0.0
        %v6655 = vadd.f32 %v6598, %v6647
        %v6656 = vadd.f32 %v6599, %v6648
        %v6657 = vadd.f32 %v6600, %v6649
        %v6658 = vadd.f32 %v6601, %v6650
        %v6659 = vadd.f32 %v6602, %v6651
        %v6660 = vadd.f32 %v6603, %v6652
        %v6661 = vadd.f32 %v6604, %v6653
        %v6662 = vadd.f32 %v6605, %v6654
        %v6663 = vsub.s32 %v5025, 48
        %v6664 = vlaneseq
        %v6665 = vshrl.u32 %v6664, 7
        %v6666 = vsub.s32 0, %v6665
        %v6667 = vrot.slane %v6663, %v6666
        %v6668 = vlaneseq
        %v6669 = vshrl.u32 %v6668, 7
        %v6670 = vsub.s32 1, %v6669
        %v6671 = vrot.slane %v6663, %v6670
        %v6672 = vlaneseq
        %v6673 = vshrl.u32 %v6672, 7
        %v6674 = vsub.s32 2, %v6673
        %v6675 = vrot.slane %v6663, %v6674
        %v6676 = vlaneseq
        %v6677 = vshrl.u32 %v6676, 7
        %v6678 = vsub.s32 3, %v6677
        %v6679 = vrot.slane %v6663, %v6678
        %v6680 = vlaneseq
        %v6681 = vshrl.u32 %v6680, 7
        %v6682 = vsub.s32 4, %v6681
        %v6683 = vrot.slane %v6663, %v6682
        %v6684 = vlaneseq
        %v6685 = vshrl.u32 %v6684, 7
        %v6686 = vsub.s32 5, %v6685
        %v6687 = vrot.slane %v6663, %v6686
        %v6688 = vlaneseq
        %v6689 = vshrl.u32 %v6688, 7
        %v6690 = vsub.s32 6, %v6689
        %v6691 = vrot.slane %v6663, %v6690
        %v6692 = vlaneseq
        %v6693 = vshrl.u32 %v6692, 7
        %v6694 = vsub.s32 7, %v6693
        %v6695 = vrot.slane %v6663, %v6694
        %vm6696 = vcmp.eq.s32.totalorder %v180, %v6667
        %vm6697 = vcmp.eq.s32.totalorder %v180, %v6671
        %vm6698 = vcmp.eq.s32.totalorder %v180, %v6675
        %vm6699 = vcmp.eq.s32.totalorder %v180, %v6679
        %vm6700 = vcmp.eq.s32.totalorder %v180, %v6683
        %vm6701 = vcmp.eq.s32.totalorder %v180, %v6687
        %vm6702 = vcmp.eq.s32.totalorder %v180, %v6691
        %vm6703 = vcmp.eq.s32.totalorder %v180, %v6695
        %v6704 = vsel %vm6696, %v5259, 0.0
        %v6705 = vsel %vm6697, %v5263, 0.0
        %v6706 = vsel %vm6698, %v5267, 0.0
        %v6707 = vsel %vm6699, %v5271, 0.0
        %v6708 = vsel %vm6700, %v5275, 0.0
        %v6709 = vsel %vm6701, %v5279, 0.0
        %v6710 = vsel %vm6702, %v5283, 0.0
        %v6711 = vsel %vm6703, %v5287, 0.0
        %v6712 = vadd.f32 %v6655, %v6704
        %v6713 = vadd.f32 %v6656, %v6705
        %v6714 = vadd.f32 %v6657, %v6706
        %v6715 = vadd.f32 %v6658, %v6707
        %v6716 = vadd.f32 %v6659, %v6708
        %v6717 = vadd.f32 %v6660, %v6709
        %v6718 = vadd.f32 %v6661, %v6710
        %v6719 = vadd.f32 %v6662, %v6711
        %v6720 = vsub.s32 %v5028, 48
        %v6721 = vlaneseq
        %v6722 = vshrl.u32 %v6721, 7
        %v6723 = vsub.s32 0, %v6722
        %v6724 = vrot.slane %v6720, %v6723
        %v6725 = vlaneseq
        %v6726 = vshrl.u32 %v6725, 7
        %v6727 = vsub.s32 1, %v6726
        %v6728 = vrot.slane %v6720, %v6727
        %v6729 = vlaneseq
        %v6730 = vshrl.u32 %v6729, 7
        %v6731 = vsub.s32 2, %v6730
        %v6732 = vrot.slane %v6720, %v6731
        %v6733 = vlaneseq
        %v6734 = vshrl.u32 %v6733, 7
        %v6735 = vsub.s32 3, %v6734
        %v6736 = vrot.slane %v6720, %v6735
        %v6737 = vlaneseq
        %v6738 = vshrl.u32 %v6737, 7
        %v6739 = vsub.s32 4, %v6738
        %v6740 = vrot.slane %v6720, %v6739
        %v6741 = vlaneseq
        %v6742 = vshrl.u32 %v6741, 7
        %v6743 = vsub.s32 5, %v6742
        %v6744 = vrot.slane %v6720, %v6743
        %v6745 = vlaneseq
        %v6746 = vshrl.u32 %v6745, 7
        %v6747 = vsub.s32 6, %v6746
        %v6748 = vrot.slane %v6720, %v6747
        %v6749 = vlaneseq
        %v6750 = vshrl.u32 %v6749, 7
        %v6751 = vsub.s32 7, %v6750
        %v6752 = vrot.slane %v6720, %v6751
        %vm6753 = vcmp.eq.s32.totalorder %v180, %v6724
        %vm6754 = vcmp.eq.s32.totalorder %v180, %v6728
        %vm6755 = vcmp.eq.s32.totalorder %v180, %v6732
        %vm6756 = vcmp.eq.s32.totalorder %v180, %v6736
        %vm6757 = vcmp.eq.s32.totalorder %v180, %v6740
        %vm6758 = vcmp.eq.s32.totalorder %v180, %v6744
        %vm6759 = vcmp.eq.s32.totalorder %v180, %v6748
        %vm6760 = vcmp.eq.s32.totalorder %v180, %v6752
        %v6761 = vsel %vm6753, %v5356, 0.0
        %v6762 = vsel %vm6754, %v5360, 0.0
        %v6763 = vsel %vm6755, %v5364, 0.0
        %v6764 = vsel %vm6756, %v5368, 0.0
        %v6765 = vsel %vm6757, %v5372, 0.0
        %v6766 = vsel %vm6758, %v5376, 0.0
        %v6767 = vsel %vm6759, %v5380, 0.0
        %v6768 = vsel %vm6760, %v5384, 0.0
        %v6769 = vadd.f32 %v6712, %v6761
        %v6770 = vadd.f32 %v6713, %v6762
        %v6771 = vadd.f32 %v6714, %v6763
        %v6772 = vadd.f32 %v6715, %v6764
        %v6773 = vadd.f32 %v6716, %v6765
        %v6774 = vadd.f32 %v6717, %v6766
        %v6775 = vadd.f32 %v6718, %v6767
        %v6776 = vadd.f32 %v6719, %v6768
        %6777 = vst [vmem:[#allocation2 + $0x680] sm:$0xff] %v6769
        %6778 = vst [vmem:[#allocation2 + $0x688] sm:$0xff] %v6770
        %6779 = vst [vmem:[#allocation2 + $0x690] sm:$0xff] %v6771
        %6780 = vst [vmem:[#allocation2 + $0x698] sm:$0xff] %v6772
        %6781 = vst [vmem:[#allocation2 + $0x6a0] sm:$0xff] %v6773
        %6782 = vst [vmem:[#allocation2 + $0x6a8] sm:$0xff] %v6774
        %6783 = vst [vmem:[#allocation2 + $0x6b0] sm:$0xff] %v6775
        %6784 = vst [vmem:[#allocation2 + $0x6b8] sm:$0xff] %v6776
        %v6785 = vsub.s32 %v5016, 56
        %v6786 = vlaneseq
        %v6787 = vshrl.u32 %v6786, 7
        %v6788 = vsub.s32 0, %v6787
        %v6789 = vrot.slane %v6785, %v6788
        %v6790 = vlaneseq
        %v6791 = vshrl.u32 %v6790, 7
        %v6792 = vsub.s32 1, %v6791
        %v6793 = vrot.slane %v6785, %v6792
        %v6794 = vlaneseq
        %v6795 = vshrl.u32 %v6794, 7
        %v6796 = vsub.s32 2, %v6795
        %v6797 = vrot.slane %v6785, %v6796
        %v6798 = vlaneseq
        %v6799 = vshrl.u32 %v6798, 7
        %v6800 = vsub.s32 3, %v6799
        %v6801 = vrot.slane %v6785, %v6800
        %v6802 = vlaneseq
        %v6803 = vshrl.u32 %v6802, 7
        %v6804 = vsub.s32 4, %v6803
        %v6805 = vrot.slane %v6785, %v6804
        %v6806 = vlaneseq
        %v6807 = vshrl.u32 %v6806, 7
        %v6808 = vsub.s32 5, %v6807
        %v6809 = vrot.slane %v6785, %v6808
        %v6810 = vlaneseq
        %v6811 = vshrl.u32 %v6810, 7
        %v6812 = vsub.s32 6, %v6811
        %v6813 = vrot.slane %v6785, %v6812
        %v6814 = vlaneseq
        %v6815 = vshrl.u32 %v6814, 7
        %v6816 = vsub.s32 7, %v6815
        %v6817 = vrot.slane %v6785, %v6816
        %vm6818 = vcmp.eq.s32.totalorder %v180, %v6789
        %vm6819 = vcmp.eq.s32.totalorder %v180, %v6793
        %vm6820 = vcmp.eq.s32.totalorder %v180, %v6797
        %vm6821 = vcmp.eq.s32.totalorder %v180, %v6801
        %vm6822 = vcmp.eq.s32.totalorder %v180, %v6805
        %vm6823 = vcmp.eq.s32.totalorder %v180, %v6809
        %vm6824 = vcmp.eq.s32.totalorder %v180, %v6813
        %vm6825 = vcmp.eq.s32.totalorder %v180, %v6817
        %v6826 = vsel %vm6818, %v5073, 0.0
        %v6827 = vsel %vm6819, %v5077, 0.0
        %v6828 = vsel %vm6820, %v5081, 0.0
        %v6829 = vsel %vm6821, %v5085, 0.0
        %v6830 = vsel %vm6822, %v5089, 0.0
        %v6831 = vsel %vm6823, %v5093, 0.0
        %v6832 = vsel %vm6824, %v5097, 0.0
        %v6833 = vsel %vm6825, %v5101, 0.0
        %v6834 = vsub.s32 %v5021, 56
        %v6835 = vlaneseq
        %v6836 = vshrl.u32 %v6835, 7
        %v6837 = vsub.s32 0, %v6836
        %v6838 = vrot.slane %v6834, %v6837
        %v6839 = vlaneseq
        %v6840 = vshrl.u32 %v6839, 7
        %v6841 = vsub.s32 1, %v6840
        %v6842 = vrot.slane %v6834, %v6841
        %v6843 = vlaneseq
        %v6844 = vshrl.u32 %v6843, 7
        %v6845 = vsub.s32 2, %v6844
        %v6846 = vrot.slane %v6834, %v6845
        %v6847 = vlaneseq
        %v6848 = vshrl.u32 %v6847, 7
        %v6849 = vsub.s32 3, %v6848
        %v6850 = vrot.slane %v6834, %v6849
        %v6851 = vlaneseq
        %v6852 = vshrl.u32 %v6851, 7
        %v6853 = vsub.s32 4, %v6852
        %v6854 = vrot.slane %v6834, %v6853
        %v6855 = vlaneseq
        %v6856 = vshrl.u32 %v6855, 7
        %v6857 = vsub.s32 5, %v6856
        %v6858 = vrot.slane %v6834, %v6857
        %v6859 = vlaneseq
        %v6860 = vshrl.u32 %v6859, 7
        %v6861 = vsub.s32 6, %v6860
        %v6862 = vrot.slane %v6834, %v6861
        %v6863 = vlaneseq
        %v6864 = vshrl.u32 %v6863, 7
        %v6865 = vsub.s32 7, %v6864
        %v6866 = vrot.slane %v6834, %v6865
        %vm6867 = vcmp.eq.s32.totalorder %v180, %v6838
        %vm6868 = vcmp.eq.s32.totalorder %v180, %v6842
        %vm6869 = vcmp.eq.s32.totalorder %v180, %v6846
        %vm6870 = vcmp.eq.s32.totalorder %v180, %v6850
        %vm6871 = vcmp.eq.s32.totalorder %v180, %v6854
        %vm6872 = vcmp.eq.s32.totalorder %v180, %v6858
        %vm6873 = vcmp.eq.s32.totalorder %v180, %v6862
        %vm6874 = vcmp.eq.s32.totalorder %v180, %v6866
        %v6875 = vsel %vm6867, %v5162, 0.0
        %v6876 = vsel %vm6868, %v5166, 0.0
        %v6877 = vsel %vm6869, %v5170, 0.0
        %v6878 = vsel %vm6870, %v5174, 0.0
        %v6879 = vsel %vm6871, %v5178, 0.0
        %v6880 = vsel %vm6872, %v5182, 0.0
        %v6881 = vsel %vm6873, %v5186, 0.0
        %v6882 = vsel %vm6874, %v5190, 0.0
        %v6883 = vadd.f32 %v6826, %v6875
        %v6884 = vadd.f32 %v6827, %v6876
        %v6885 = vadd.f32 %v6828, %v6877
        %v6886 = vadd.f32 %v6829, %v6878
        %v6887 = vadd.f32 %v6830, %v6879
        %v6888 = vadd.f32 %v6831, %v6880
        %v6889 = vadd.f32 %v6832, %v6881
        %v6890 = vadd.f32 %v6833, %v6882
        %v6891 = vsub.s32 %v5025, 56
        %v6892 = vlaneseq
        %v6893 = vshrl.u32 %v6892, 7
        %v6894 = vsub.s32 0, %v6893
        %v6895 = vrot.slane %v6891, %v6894
        %v6896 = vlaneseq
        %v6897 = vshrl.u32 %v6896, 7
        %v6898 = vsub.s32 1, %v6897
        %v6899 = vrot.slane %v6891, %v6898
        %v6900 = vlaneseq
        %v6901 = vshrl.u32 %v6900, 7
        %v6902 = vsub.s32 2, %v6901
        %v6903 = vrot.slane %v6891, %v6902
        %v6904 = vlaneseq
        %v6905 = vshrl.u32 %v6904, 7
        %v6906 = vsub.s32 3, %v6905
        %v6907 = vrot.slane %v6891, %v6906
        %v6908 = vlaneseq
        %v6909 = vshrl.u32 %v6908, 7
        %v6910 = vsub.s32 4, %v6909
        %v6911 = vrot.slane %v6891, %v6910
        %v6912 = vlaneseq
        %v6913 = vshrl.u32 %v6912, 7
        %v6914 = vsub.s32 5, %v6913
        %v6915 = vrot.slane %v6891, %v6914
        %v6916 = vlaneseq
        %v6917 = vshrl.u32 %v6916, 7
        %v6918 = vsub.s32 6, %v6917
        %v6919 = vrot.slane %v6891, %v6918
        %v6920 = vlaneseq
        %v6921 = vshrl.u32 %v6920, 7
        %v6922 = vsub.s32 7, %v6921
        %v6923 = vrot.slane %v6891, %v6922
        %vm6924 = vcmp.eq.s32.totalorder %v180, %v6895
        %vm6925 = vcmp.eq.s32.totalorder %v180, %v6899
        %vm6926 = vcmp.eq.s32.totalorder %v180, %v6903
        %vm6927 = vcmp.eq.s32.totalorder %v180, %v6907
        %vm6928 = vcmp.eq.s32.totalorder %v180, %v6911
        %vm6929 = vcmp.eq.s32.totalorder %v180, %v6915
        %vm6930 = vcmp.eq.s32.totalorder %v180, %v6919
        %vm6931 = vcmp.eq.s32.totalorder %v180, %v6923
        %v6932 = vsel %vm6924, %v5259, 0.0
        %v6933 = vsel %vm6925, %v5263, 0.0
        %v6934 = vsel %vm6926, %v5267, 0.0
        %v6935 = vsel %vm6927, %v5271, 0.0
        %v6936 = vsel %vm6928, %v5275, 0.0
        %v6937 = vsel %vm6929, %v5279, 0.0
        %v6938 = vsel %vm6930, %v5283, 0.0
        %v6939 = vsel %vm6931, %v5287, 0.0
        %v6940 = vadd.f32 %v6883, %v6932
        %v6941 = vadd.f32 %v6884, %v6933
        %v6942 = vadd.f32 %v6885, %v6934
        %v6943 = vadd.f32 %v6886, %v6935
        %v6944 = vadd.f32 %v6887, %v6936
        %v6945 = vadd.f32 %v6888, %v6937
        %v6946 = vadd.f32 %v6889, %v6938
        %v6947 = vadd.f32 %v6890, %v6939
        %v6948 = vsub.s32 %v5028, 56
        %v6949 = vlaneseq
        %v6950 = vshrl.u32 %v6949, 7
        %v6951 = vsub.s32 0, %v6950
        %v6952 = vrot.slane %v6948, %v6951
        %v6953 = vlaneseq
        %v6954 = vshrl.u32 %v6953, 7
        %v6955 = vsub.s32 1, %v6954
        %v6956 = vrot.slane %v6948, %v6955
        %v6957 = vlaneseq
        %v6958 = vshrl.u32 %v6957, 7
        %v6959 = vsub.s32 2, %v6958
        %v6960 = vrot.slane %v6948, %v6959
        %v6961 = vlaneseq
        %v6962 = vshrl.u32 %v6961, 7
        %v6963 = vsub.s32 3, %v6962
        %v6964 = vrot.slane %v6948, %v6963
        %v6965 = vlaneseq
        %v6966 = vshrl.u32 %v6965, 7
        %v6967 = vsub.s32 4, %v6966
        %v6968 = vrot.slane %v6948, %v6967
        %v6969 = vlaneseq
        %v6970 = vshrl.u32 %v6969, 7
        %v6971 = vsub.s32 5, %v6970
        %v6972 = vrot.slane %v6948, %v6971
        %v6973 = vlaneseq
        %v6974 = vshrl.u32 %v6973, 7
        %v6975 = vsub.s32 6, %v6974
        %v6976 = vrot.slane %v6948, %v6975
        %v6977 = vlaneseq
        %v6978 = vshrl.u32 %v6977, 7
        %v6979 = vsub.s32 7, %v6978
        %v6980 = vrot.slane %v6948, %v6979
        %vm6981 = vcmp.eq.s32.totalorder %v180, %v6952
        %vm6982 = vcmp.eq.s32.totalorder %v180, %v6956
        %vm6983 = vcmp.eq.s32.totalorder %v180, %v6960
        %vm6984 = vcmp.eq.s32.totalorder %v180, %v6964
        %vm6985 = vcmp.eq.s32.totalorder %v180, %v6968
        %vm6986 = vcmp.eq.s32.totalorder %v180, %v6972
        %vm6987 = vcmp.eq.s32.totalorder %v180, %v6976
        %vm6988 = vcmp.eq.s32.totalorder %v180, %v6980
        %v6989 = vsel %vm6981, %v5356, 0.0
        %v6990 = vsel %vm6982, %v5360, 0.0
        %v6991 = vsel %vm6983, %v5364, 0.0
        %v6992 = vsel %vm6984, %v5368, 0.0
        %v6993 = vsel %vm6985, %v5372, 0.0
        %v6994 = vsel %vm6986, %v5376, 0.0
        %v6995 = vsel %vm6987, %v5380, 0.0
        %v6996 = vsel %vm6988, %v5384, 0.0
        %v6997 = vadd.f32 %v6940, %v6989
        %v6998 = vadd.f32 %v6941, %v6990
        %v6999 = vadd.f32 %v6942, %v6991
        %v7000 = vadd.f32 %v6943, %v6992
        %v7001 = vadd.f32 %v6944, %v6993
        %v7002 = vadd.f32 %v6945, %v6994
        %v7003 = vadd.f32 %v6946, %v6995
        %v7004 = vadd.f32 %v6947, %v6996
        %7005 = vst [vmem:[#allocation2 + $0x6c0] sm:$0xff] %v6997
        %7006 = vst [vmem:[#allocation2 + $0x6c8] sm:$0xff] %v6998
        %7007 = vst [vmem:[#allocation2 + $0x6d0] sm:$0xff] %v6999
        %7008 = vst [vmem:[#allocation2 + $0x6d8] sm:$0xff] %v7000
        %7009 = vst [vmem:[#allocation2 + $0x6e0] sm:$0xff] %v7001
        %7010 = vst [vmem:[#allocation2 + $0x6e8] sm:$0xff] %v7002
        %7011 = vst [vmem:[#allocation2 + $0x6f0] sm:$0xff] %v7003
        %7012 = vst [vmem:[#allocation2 + $0x6f8] sm:$0xff] %v7004
        %v7013 = vld [vmem:[#allocation6] sm:$0xff]
        %v7014 = vld [vmem:[#allocation2] sm:$0xff]
        %v7015 = vld [vmem:[#allocation2 + $0x8] sm:$0xff]
        %v7016 = vld [vmem:[#allocation2 + $0x10] sm:$0xff]
        %v7017 = vld [vmem:[#allocation2 + $0x18] sm:$0xff]
        %v7018 = vld [vmem:[#allocation2 + $0x20] sm:$0xff]
        %v7019 = vld [vmem:[#allocation2 + $0x28] sm:$0xff]
        %v7020 = vld [vmem:[#allocation2 + $0x30] sm:$0xff]
        %v7021 = vld [vmem:[#allocation2 + $0x38] sm:$0xff]
        %v7022 = vld [vmem:[#allocation2 + $0x40] sm:$0xff]
        %v7023 = vld [vmem:[#allocation2 + $0x48] sm:$0xff]
        %v7024 = vld [vmem:[#allocation2 + $0x50] sm:$0xff]
        %v7025 = vld [vmem:[#allocation2 + $0x58] sm:$0xff]
        %v7026 = vld [vmem:[#allocation2 + $0x60] sm:$0xff]
        %v7027 = vld [vmem:[#allocation2 + $0x68] sm:$0xff]
        %v7028 = vld [vmem:[#allocation2 + $0x70] sm:$0xff]
        %v7029 = vld [vmem:[#allocation2 + $0x78] sm:$0xff]
        %v7030 = vld [vmem:[#allocation2 + $0x80] sm:$0xff]
        %v7031 = vld [vmem:[#allocation2 + $0x88] sm:$0xff]
        %v7032 = vld [vmem:[#allocation2 + $0x90] sm:$0xff]
        %v7033 = vld [vmem:[#allocation2 + $0x98] sm:$0xff]
        %v7034 = vld [vmem:[#allocation2 + $0xa0] sm:$0xff]
        %v7035 = vld [vmem:[#allocation2 + $0xa8] sm:$0xff]
        %v7036 = vld [vmem:[#allocation2 + $0xb0] sm:$0xff]
        %v7037 = vld [vmem:[#allocation2 + $0xb8] sm:$0xff]
        %v7038 = vld [vmem:[#allocation2 + $0xc0] sm:$0xff]
        %v7039 = vld [vmem:[#allocation2 + $0xc8] sm:$0xff]
        %v7040 = vld [vmem:[#allocation2 + $0xd0] sm:$0xff]
        %v7041 = vld [vmem:[#allocation2 + $0xd8] sm:$0xff]
        %v7042 = vld [vmem:[#allocation2 + $0xe0] sm:$0xff]
        %v7043 = vld [vmem:[#allocation2 + $0xe8] sm:$0xff]
        %v7044 = vld [vmem:[#allocation2 + $0xf0] sm:$0xff]
        %v7045 = vld [vmem:[#allocation2 + $0xf8] sm:$0xff]
        %v7046 = vld [vmem:[#allocation2 + $0x100] sm:$0xff]
        %v7047 = vld [vmem:[#allocation2 + $0x108] sm:$0xff]
        %v7048 = vld [vmem:[#allocation2 + $0x110] sm:$0xff]
        %v7049 = vld [vmem:[#allocation2 + $0x118] sm:$0xff]
        %v7050 = vld [vmem:[#allocation2 + $0x120] sm:$0xff]
        %v7051 = vld [vmem:[#allocation2 + $0x128] sm:$0xff]
        %v7052 = vld [vmem:[#allocation2 + $0x130] sm:$0xff]
        %v7053 = vld [vmem:[#allocation2 + $0x138] sm:$0xff]
        %v7054 = vld [vmem:[#allocation2 + $0x140] sm:$0xff]
        %v7055 = vld [vmem:[#allocation2 + $0x148] sm:$0xff]
        %v7056 = vld [vmem:[#allocation2 + $0x150] sm:$0xff]
        %v7057 = vld [vmem:[#allocation2 + $0x158] sm:$0xff]
        %v7058 = vld [vmem:[#allocation2 + $0x160] sm:$0xff]
        %v7059 = vld [vmem:[#allocation2 + $0x168] sm:$0xff]
        %v7060 = vld [vmem:[#allocation2 + $0x170] sm:$0xff]
        %v7061 = vld [vmem:[#allocation2 + $0x178] sm:$0xff]
        %v7062 = vld [vmem:[#allocation2 + $0x180] sm:$0xff]
        %v7063 = vld [vmem:[#allocation2 + $0x188] sm:$0xff]
        %v7064 = vld [vmem:[#allocation2 + $0x190] sm:$0xff]
        %v7065 = vld [vmem:[#allocation2 + $0x198] sm:$0xff]
        %v7066 = vld [vmem:[#allocation2 + $0x1a0] sm:$0xff]
        %v7067 = vld [vmem:[#allocation2 + $0x1a8] sm:$0xff]
        %v7068 = vld [vmem:[#allocation2 + $0x1b0] sm:$0xff]
        %v7069 = vld [vmem:[#allocation2 + $0x1b8] sm:$0xff]
        %v7070 = vld [vmem:[#allocation2 + $0x1c0] sm:$0xff]
        %v7071 = vld [vmem:[#allocation2 + $0x1c8] sm:$0xff]
        %v7072 = vld [vmem:[#allocation2 + $0x1d0] sm:$0xff]
        %v7073 = vld [vmem:[#allocation2 + $0x1d8] sm:$0xff]
        %v7074 = vld [vmem:[#allocation2 + $0x1e0] sm:$0xff]
        %v7075 = vld [vmem:[#allocation2 + $0x1e8] sm:$0xff]
        %v7076 = vld [vmem:[#allocation2 + $0x1f0] sm:$0xff]
        %v7077 = vld [vmem:[#allocation2 + $0x1f8] sm:$0xff]
        %v7078 = vld [vmem:[#allocation2 + $0x200] sm:$0xff]
        %v7079 = vld [vmem:[#allocation2 + $0x208] sm:$0xff]
        %v7080 = vld [vmem:[#allocation2 + $0x210] sm:$0xff]
        %v7081 = vld [vmem:[#allocation2 + $0x218] sm:$0xff]
        %v7082 = vld [vmem:[#allocation2 + $0x220] sm:$0xff]
        %v7083 = vld [vmem:[#allocation2 + $0x228] sm:$0xff]
        %v7084 = vld [vmem:[#allocation2 + $0x230] sm:$0xff]
        %v7085 = vld [vmem:[#allocation2 + $0x238] sm:$0xff]
        %v7086 = vld [vmem:[#allocation2 + $0x240] sm:$0xff]
        %v7087 = vld [vmem:[#allocation2 + $0x248] sm:$0xff]
        %v7088 = vld [vmem:[#allocation2 + $0x250] sm:$0xff]
        %v7089 = vld [vmem:[#allocation2 + $0x258] sm:$0xff]
        %v7090 = vld [vmem:[#allocation2 + $0x260] sm:$0xff]
        %v7091 = vld [vmem:[#allocation2 + $0x268] sm:$0xff]
        %v7092 = vld [vmem:[#allocation2 + $0x270] sm:$0xff]
        %v7093 = vld [vmem:[#allocation2 + $0x278] sm:$0xff]
        %v7094 = vld [vmem:[#allocation2 + $0x280] sm:$0xff]
        %v7095 = vld [vmem:[#allocation2 + $0x288] sm:$0xff]
        %v7096 = vld [vmem:[#allocation2 + $0x290] sm:$0xff]
        %v7097 = vld [vmem:[#allocation2 + $0x298] sm:$0xff]
        %v7098 = vld [vmem:[#allocation2 + $0x2a0] sm:$0xff]
        %v7099 = vld [vmem:[#allocation2 + $0x2a8] sm:$0xff]
        %v7100 = vld [vmem:[#allocation2 + $0x2b0] sm:$0xff]
        %v7101 = vld [vmem:[#allocation2 + $0x2b8] sm:$0xff]
        %v7102 = vld [vmem:[#allocation2 + $0x2c0] sm:$0xff]
        %v7103 = vld [vmem:[#allocation2 + $0x2c8] sm:$0xff]
        %v7104 = vld [vmem:[#allocation2 + $0x2d0] sm:$0xff]
        %v7105 = vld [vmem:[#allocation2 + $0x2d8] sm:$0xff]
        %v7106 = vld [vmem:[#allocation2 + $0x2e0] sm:$0xff]
        %v7107 = vld [vmem:[#allocation2 + $0x2e8] sm:$0xff]
        %v7108 = vld [vmem:[#allocation2 + $0x2f0] sm:$0xff]
        %v7109 = vld [vmem:[#allocation2 + $0x2f8] sm:$0xff]
        %v7110 = vld [vmem:[#allocation2 + $0x300] sm:$0xff]
        %v7111 = vld [vmem:[#allocation2 + $0x308] sm:$0xff]
        %v7112 = vld [vmem:[#allocation2 + $0x310] sm:$0xff]
        %v7113 = vld [vmem:[#allocation2 + $0x318] sm:$0xff]
        %v7114 = vld [vmem:[#allocation2 + $0x320] sm:$0xff]
        %v7115 = vld [vmem:[#allocation2 + $0x328] sm:$0xff]
        %v7116 = vld [vmem:[#allocation2 + $0x330] sm:$0xff]
        %v7117 = vld [vmem:[#allocation2 + $0x338] sm:$0xff]
        %v7118 = vld [vmem:[#allocation2 + $0x340] sm:$0xff]
        %v7119 = vld [vmem:[#allocation2 + $0x348] sm:$0xff]
        %v7120 = vld [vmem:[#allocation2 + $0x350] sm:$0xff]
        %v7121 = vld [vmem:[#allocation2 + $0x358] sm:$0xff]
        %v7122 = vld [vmem:[#allocation2 + $0x360] sm:$0xff]
        %v7123 = vld [vmem:[#allocation2 + $0x368] sm:$0xff]
        %v7124 = vld [vmem:[#allocation2 + $0x370] sm:$0xff]
        %v7125 = vld [vmem:[#allocation2 + $0x378] sm:$0xff]
        %v7126 = vld [vmem:[#allocation2 + $0x380] sm:$0xff]
        %v7127 = vld [vmem:[#allocation2 + $0x388] sm:$0xff]
        %v7128 = vld [vmem:[#allocation2 + $0x390] sm:$0xff]
        %v7129 = vld [vmem:[#allocation2 + $0x398] sm:$0xff]
        %v7130 = vld [vmem:[#allocation2 + $0x3a0] sm:$0xff]
        %v7131 = vld [vmem:[#allocation2 + $0x3a8] sm:$0xff]
        %v7132 = vld [vmem:[#allocation2 + $0x3b0] sm:$0xff]
        %v7133 = vld [vmem:[#allocation2 + $0x3b8] sm:$0xff]
        %v7134 = vld [vmem:[#allocation2 + $0x3c0] sm:$0xff]
        %v7135 = vld [vmem:[#allocation2 + $0x3c8] sm:$0xff]
        %v7136 = vld [vmem:[#allocation2 + $0x3d0] sm:$0xff]
        %v7137 = vld [vmem:[#allocation2 + $0x3d8] sm:$0xff]
        %v7138 = vld [vmem:[#allocation2 + $0x3e0] sm:$0xff]
        %v7139 = vld [vmem:[#allocation2 + $0x3e8] sm:$0xff]
        %v7140 = vld [vmem:[#allocation2 + $0x3f0] sm:$0xff]
        %v7141 = vld [vmem:[#allocation2 + $0x3f8] sm:$0xff]
        %v7142 = vld [vmem:[#allocation2 + $0x400] sm:$0xff]
        %v7143 = vld [vmem:[#allocation2 + $0x408] sm:$0xff]
        %v7144 = vld [vmem:[#allocation2 + $0x410] sm:$0xff]
        %v7145 = vld [vmem:[#allocation2 + $0x418] sm:$0xff]
        %v7146 = vld [vmem:[#allocation2 + $0x420] sm:$0xff]
        %v7147 = vld [vmem:[#allocation2 + $0x428] sm:$0xff]
        %v7148 = vld [vmem:[#allocation2 + $0x430] sm:$0xff]
        %v7149 = vld [vmem:[#allocation2 + $0x438] sm:$0xff]
        %v7150 = vld [vmem:[#allocation2 + $0x440] sm:$0xff]
        %v7151 = vld [vmem:[#allocation2 + $0x448] sm:$0xff]
        %v7152 = vld [vmem:[#allocation2 + $0x450] sm:$0xff]
        %v7153 = vld [vmem:[#allocation2 + $0x458] sm:$0xff]
        %v7154 = vld [vmem:[#allocation2 + $0x460] sm:$0xff]
        %v7155 = vld [vmem:[#allocation2 + $0x468] sm:$0xff]
        %v7156 = vld [vmem:[#allocation2 + $0x470] sm:$0xff]
        %v7157 = vld [vmem:[#allocation2 + $0x478] sm:$0xff]
        %v7158 = vld [vmem:[#allocation2 + $0x480] sm:$0xff]
        %v7159 = vld [vmem:[#allocation2 + $0x488] sm:$0xff]
        %v7160 = vld [vmem:[#allocation2 + $0x490] sm:$0xff]
        %v7161 = vld [vmem:[#allocation2 + $0x498] sm:$0xff]
        %v7162 = vld [vmem:[#allocation2 + $0x4a0] sm:$0xff]
        %v7163 = vld [vmem:[#allocation2 + $0x4a8] sm:$0xff]
        %v7164 = vld [vmem:[#allocation2 + $0x4b0] sm:$0xff]
        %v7165 = vld [vmem:[#allocation2 + $0x4b8] sm:$0xff]
        %v7166 = vld [vmem:[#allocation2 + $0x4c0] sm:$0xff]
        %v7167 = vld [vmem:[#allocation2 + $0x4c8] sm:$0xff]
        %v7168 = vld [vmem:[#allocation2 + $0x4d0] sm:$0xff]
        %v7169 = vld [vmem:[#allocation2 + $0x4d8] sm:$0xff]
        %v7170 = vld [vmem:[#allocation2 + $0x4e0] sm:$0xff]
        %v7171 = vld [vmem:[#allocation2 + $0x4e8] sm:$0xff]
        %v7172 = vld [vmem:[#allocation2 + $0x4f0] sm:$0xff]
        %v7173 = vld [vmem:[#allocation2 + $0x4f8] sm:$0xff]
        %v7174 = vld [vmem:[#allocation2 + $0x500] sm:$0xff]
        %v7175 = vld [vmem:[#allocation2 + $0x508] sm:$0xff]
        %v7176 = vld [vmem:[#allocation2 + $0x510] sm:$0xff]
        %v7177 = vld [vmem:[#allocation2 + $0x518] sm:$0xff]
        %v7178 = vld [vmem:[#allocation2 + $0x520] sm:$0xff]
        %v7179 = vld [vmem:[#allocation2 + $0x528] sm:$0xff]
        %v7180 = vld [vmem:[#allocation2 + $0x530] sm:$0xff]
        %v7181 = vld [vmem:[#allocation2 + $0x538] sm:$0xff]
        %v7182 = vld [vmem:[#allocation2 + $0x540] sm:$0xff]
        %v7183 = vld [vmem:[#allocation2 + $0x548] sm:$0xff]
        %v7184 = vld [vmem:[#allocation2 + $0x550] sm:$0xff]
        %v7185 = vld [vmem:[#allocation2 + $0x558] sm:$0xff]
        %v7186 = vld [vmem:[#allocation2 + $0x560] sm:$0xff]
        %v7187 = vld [vmem:[#allocation2 + $0x568] sm:$0xff]
        %v7188 = vld [vmem:[#allocation2 + $0x570] sm:$0xff]
        %v7189 = vld [vmem:[#allocation2 + $0x578] sm:$0xff]
        %v7190 = vld [vmem:[#allocation2 + $0x580] sm:$0xff]
        %v7191 = vld [vmem:[#allocation2 + $0x588] sm:$0xff]
        %v7192 = vld [vmem:[#allocation2 + $0x590] sm:$0xff]
        %v7193 = vld [vmem:[#allocation2 + $0x598] sm:$0xff]
        %v7194 = vld [vmem:[#allocation2 + $0x5a0] sm:$0xff]
        %v7195 = vld [vmem:[#allocation2 + $0x5a8] sm:$0xff]
        %v7196 = vld [vmem:[#allocation2 + $0x5b0] sm:$0xff]
        %v7197 = vld [vmem:[#allocation2 + $0x5b8] sm:$0xff]
        %v7198 = vld [vmem:[#allocation2 + $0x5c0] sm:$0xff]
        %v7199 = vld [vmem:[#allocation2 + $0x5c8] sm:$0xff]
        %v7200 = vld [vmem:[#allocation2 + $0x5d0] sm:$0xff]
        %v7201 = vld [vmem:[#allocation2 + $0x5d8] sm:$0xff]
        %v7202 = vld [vmem:[#allocation2 + $0x5e0] sm:$0xff]
        %v7203 = vld [vmem:[#allocation2 + $0x5e8] sm:$0xff]
        %v7204 = vld [vmem:[#allocation2 + $0x5f0] sm:$0xff]
        %v7205 = vld [vmem:[#allocation2 + $0x5f8] sm:$0xff]
        %v7206 = vld [vmem:[#allocation2 + $0x600] sm:$0xff]
        %v7207 = vld [vmem:[#allocation2 + $0x608] sm:$0xff]
        %v7208 = vld [vmem:[#allocation2 + $0x610] sm:$0xff]
        %v7209 = vld [vmem:[#allocation2 + $0x618] sm:$0xff]
        %v7210 = vld [vmem:[#allocation2 + $0x620] sm:$0xff]
        %v7211 = vld [vmem:[#allocation2 + $0x628] sm:$0xff]
        %v7212 = vld [vmem:[#allocation2 + $0x630] sm:$0xff]
        %v7213 = vld [vmem:[#allocation2 + $0x638] sm:$0xff]
        %v7214 = vld [vmem:[#allocation2 + $0x640] sm:$0xff]
        %v7215 = vld [vmem:[#allocation2 + $0x648] sm:$0xff]
        %v7216 = vld [vmem:[#allocation2 + $0x650] sm:$0xff]
        %v7217 = vld [vmem:[#allocation2 + $0x658] sm:$0xff]
        %v7218 = vld [vmem:[#allocation2 + $0x660] sm:$0xff]
        %v7219 = vld [vmem:[#allocation2 + $0x668] sm:$0xff]
        %v7220 = vld [vmem:[#allocation2 + $0x670] sm:$0xff]
        %v7221 = vld [vmem:[#allocation2 + $0x678] sm:$0xff]
        %v7222 = vld [vmem:[#allocation2 + $0x680] sm:$0xff]
        %v7223 = vld [vmem:[#allocation2 + $0x688] sm:$0xff]
        %v7224 = vld [vmem:[#allocation2 + $0x690] sm:$0xff]
        %v7225 = vld [vmem:[#allocation2 + $0x698] sm:$0xff]
        %v7226 = vld [vmem:[#allocation2 + $0x6a0] sm:$0xff]
        %v7227 = vld [vmem:[#allocation2 + $0x6a8] sm:$0xff]
        %v7228 = vld [vmem:[#allocation2 + $0x6b0] sm:$0xff]
        %v7229 = vld [vmem:[#allocation2 + $0x6b8] sm:$0xff]
        %v7230 = vld [vmem:[#allocation2 + $0x6c0] sm:$0xff]
        %v7231 = vld [vmem:[#allocation2 + $0x6c8] sm:$0xff]
        %v7232 = vld [vmem:[#allocation2 + $0x6d0] sm:$0xff]
        %v7233 = vld [vmem:[#allocation2 + $0x6d8] sm:$0xff]
        %v7234 = vld [vmem:[#allocation2 + $0x6e0] sm:$0xff]
        %v7235 = vld [vmem:[#allocation2 + $0x6e8] sm:$0xff]
        %v7236 = vld [vmem:[#allocation2 + $0x6f0] sm:$0xff]
        %v7237 = vld [vmem:[#allocation2 + $0x6f8] sm:$0xff]
        %v7238 = vpack.c.bf16 %v7022, %v7014
        %v7239 = vpack.c.bf16 %v7023, %v7015
        %v7240 = vpack.c.bf16 %v7024, %v7016
        %v7241 = vpack.c.bf16 %v7025, %v7017
        %v7242 = vpack.c.bf16 %v7026, %v7018
        %v7243 = vpack.c.bf16 %v7027, %v7019
        %v7244 = vpack.c.bf16 %v7028, %v7020
        %v7245 = vpack.c.bf16 %v7029, %v7021
        %v7246 = vpack.c.bf16 %v7038, %v7030
        %v7247 = vpack.c.bf16 %v7039, %v7031
        %v7248 = vpack.c.bf16 %v7040, %v7032
        %v7249 = vpack.c.bf16 %v7041, %v7033
        %v7250 = vpack.c.bf16 %v7042, %v7034
        %v7251 = vpack.c.bf16 %v7043, %v7035
        %v7252 = vpack.c.bf16 %v7044, %v7036
        %v7253 = vpack.c.bf16 %v7045, %v7037
        %v7254 = vpack.c.bf16 %v7054, %v7046
        %v7255 = vpack.c.bf16 %v7055, %v7047
        %v7256 = vpack.c.bf16 %v7056, %v7048
        %v7257 = vpack.c.bf16 %v7057, %v7049
        %v7258 = vpack.c.bf16 %v7058, %v7050
        %v7259 = vpack.c.bf16 %v7059, %v7051
        %v7260 = vpack.c.bf16 %v7060, %v7052
        %v7261 = vpack.c.bf16 %v7061, %v7053
        %v7262 = vpack.c.bf16 %v7070, %v7062
        %v7263 = vpack.c.bf16 %v7071, %v7063
        %v7264 = vpack.c.bf16 %v7072, %v7064
        %v7265 = vpack.c.bf16 %v7073, %v7065
        %v7266 = vpack.c.bf16 %v7074, %v7066
        %v7267 = vpack.c.bf16 %v7075, %v7067
        %v7268 = vpack.c.bf16 %v7076, %v7068
        %v7269 = vpack.c.bf16 %v7077, %v7069
        %v7270 = vpack.c.bf16 %v7086, %v7078
        %v7271 = vpack.c.bf16 %v7087, %v7079
        %v7272 = vpack.c.bf16 %v7088, %v7080
        %v7273 = vpack.c.bf16 %v7089, %v7081
        %v7274 = vpack.c.bf16 %v7090, %v7082
        %v7275 = vpack.c.bf16 %v7091, %v7083
        %v7276 = vpack.c.bf16 %v7092, %v7084
        %v7277 = vpack.c.bf16 %v7093, %v7085
        %v7278 = vpack.c.bf16 %v7102, %v7094
        %v7279 = vpack.c.bf16 %v7103, %v7095
        %v7280 = vpack.c.bf16 %v7104, %v7096
        %v7281 = vpack.c.bf16 %v7105, %v7097
        %v7282 = vpack.c.bf16 %v7106, %v7098
        %v7283 = vpack.c.bf16 %v7107, %v7099
        %v7284 = vpack.c.bf16 %v7108, %v7100
        %v7285 = vpack.c.bf16 %v7109, %v7101
        %v7286 = vpack.c.bf16 %v7118, %v7110
        %v7287 = vpack.c.bf16 %v7119, %v7111
        %v7288 = vpack.c.bf16 %v7120, %v7112
        %v7289 = vpack.c.bf16 %v7121, %v7113
        %v7290 = vpack.c.bf16 %v7122, %v7114
        %v7291 = vpack.c.bf16 %v7123, %v7115
        %v7292 = vpack.c.bf16 %v7124, %v7116
        %v7293 = vpack.c.bf16 %v7125, %v7117
        %v7294 = vpack.c.bf16 %v7134, %v7126
        %v7295 = vpack.c.bf16 %v7135, %v7127
        %v7296 = vpack.c.bf16 %v7136, %v7128
        %v7297 = vpack.c.bf16 %v7137, %v7129
        %v7298 = vpack.c.bf16 %v7138, %v7130
        %v7299 = vpack.c.bf16 %v7139, %v7131
        %v7300 = vpack.c.bf16 %v7140, %v7132
        %v7301 = vpack.c.bf16 %v7141, %v7133
        %v7302 = vpack.c.bf16 %v7150, %v7142
        %v7303 = vpack.c.bf16 %v7151, %v7143
        %v7304 = vpack.c.bf16 %v7152, %v7144
        %v7305 = vpack.c.bf16 %v7153, %v7145
        %v7306 = vpack.c.bf16 %v7154, %v7146
        %v7307 = vpack.c.bf16 %v7155, %v7147
        %v7308 = vpack.c.bf16 %v7156, %v7148
        %v7309 = vpack.c.bf16 %v7157, %v7149
        %v7310 = vpack.c.bf16 %v7166, %v7158
        %v7311 = vpack.c.bf16 %v7167, %v7159
        %v7312 = vpack.c.bf16 %v7168, %v7160
        %v7313 = vpack.c.bf16 %v7169, %v7161
        %v7314 = vpack.c.bf16 %v7170, %v7162
        %v7315 = vpack.c.bf16 %v7171, %v7163
        %v7316 = vpack.c.bf16 %v7172, %v7164
        %v7317 = vpack.c.bf16 %v7173, %v7165
        %v7318 = vpack.c.bf16 %v7182, %v7174
        %v7319 = vpack.c.bf16 %v7183, %v7175
        %v7320 = vpack.c.bf16 %v7184, %v7176
        %v7321 = vpack.c.bf16 %v7185, %v7177
        %v7322 = vpack.c.bf16 %v7186, %v7178
        %v7323 = vpack.c.bf16 %v7187, %v7179
        %v7324 = vpack.c.bf16 %v7188, %v7180
        %v7325 = vpack.c.bf16 %v7189, %v7181
        %v7326 = vpack.c.bf16 %v7198, %v7190
        %v7327 = vpack.c.bf16 %v7199, %v7191
        %v7328 = vpack.c.bf16 %v7200, %v7192
        %v7329 = vpack.c.bf16 %v7201, %v7193
        %v7330 = vpack.c.bf16 %v7202, %v7194
        %v7331 = vpack.c.bf16 %v7203, %v7195
        %v7332 = vpack.c.bf16 %v7204, %v7196
        %v7333 = vpack.c.bf16 %v7205, %v7197
        %v7334 = vpack.c.bf16 %v7214, %v7206
        %v7335 = vpack.c.bf16 %v7215, %v7207
        %v7336 = vpack.c.bf16 %v7216, %v7208
        %v7337 = vpack.c.bf16 %v7217, %v7209
        %v7338 = vpack.c.bf16 %v7218, %v7210
        %v7339 = vpack.c.bf16 %v7219, %v7211
        %v7340 = vpack.c.bf16 %v7220, %v7212
        %v7341 = vpack.c.bf16 %v7221, %v7213
        %v7342 = vpack.c.bf16 %v7230, %v7222
        %v7343 = vpack.c.bf16 %v7231, %v7223
        %v7344 = vpack.c.bf16 %v7232, %v7224
        %v7345 = vpack.c.bf16 %v7233, %v7225
        %v7346 = vpack.c.bf16 %v7234, %v7226
        %v7347 = vpack.c.bf16 %v7235, %v7227
        %v7348 = vpack.c.bf16 %v7236, %v7228
        %v7349 = vpack.c.bf16 %v7237, %v7229
        %v7351 = vunpack.c.l.b16 %v7013
        %v7352 = vunpack.c.h.b16 %v7013
        %v7353 = vpack.c.b16 %v7351, %v7351
        %v7354 = vpack.c.b16 %v7352, %v7352
        %vm7356 = vcmask 785408
        %v7358 = vsel %vm7356, %v7354, 0
        %7360 = vmatprep.subr.bf16.mxu0 %v7295
        %7361 = vmatpush1.bf16.msra.mxu0 %v7294
        %7362 = vmatprep.subr.bf16.mxu0 %v7287
        %7363 = vmatpush1.bf16.msra.mxu0 %v7286
        %7364 = vmatprep.subr.bf16.mxu0 %v7279
        %7365 = vmatpush1.bf16.msra.mxu0 %v7278
        %7366 = vmatprep.subr.bf16.mxu0 %v7271
        %7367 = vmatpush1.bf16.msra.mxu0 %v7270
        %7368 = vmatprep.subr.bf16.mxu0 %v7263
        %7369 = vmatpush1.bf16.msra.mxu0 %v7262
        %7370 = vmatprep.subr.bf16.mxu0 %v7255
        %7371 = vmatpush1.bf16.msra.mxu0 %v7254
        %7372 = vmatprep.subr.bf16.mxu0 %v7247
        %7373 = vmatpush1.bf16.msra.mxu0 %v7246
        %7374 = vmatprep.subr.bf16.mxu0 %v7239
        %7375 = vmatpush1.bf16.msra.mxu0 %v7238
        %7376 = vmatprep.subr.bf16.mxu0 0
        %7377 = vmatpush2.bf16.msra.mxu0 0
        %7378 = vmatprep.subr.bf16.mxu0 0
        %7379 = vmatpush2.bf16.msra.mxu0 0
        %7380 = vmatprep.subr.bf16.mxu0 %v7343
        %7381 = vmatpush2.bf16.msra.mxu0 %v7342
        %7382 = vmatprep.subr.bf16.mxu0 %v7335
        %7383 = vmatpush2.bf16.msra.mxu0 %v7334
        %7384 = vmatprep.subr.bf16.mxu0 %v7327
        %7385 = vmatpush2.bf16.msra.mxu0 %v7326
        %7386 = vmatprep.subr.bf16.mxu0 %v7319
        %7387 = vmatpush2.bf16.msra.mxu0 %v7318
        %7388 = vmatprep.subr.bf16.mxu0 %v7311
        %7389 = vmatpush2.bf16.msra.mxu0 %v7310
        %7390 = vmatprep.subr.bf16.mxu0 %v7303
        %7391 = vmatpush2.bf16.msra.mxu0 %v7302
        %7392 = vmatprep.mubr.bf16.mxu0 %v7358
        %7393 = vmatmul.mubr.bf16.gmra.mxu0 %v7353
        %v7394 = vpop.f32.mrf.mxu0
        %v7395 = vadd.f32 0.0, %v7394
        %v7396 = vpop.f32.mrf.mxu0
        %v7397 = vadd.f32 0.0, %v7396
        %v7398 = vpop.f32.mrf.mxu0
        %v7399 = vpop.f32.mrf.mxu0
        %7400 = vdwg.mxu0
        %7401 = vmatprep.subr.bf16.mxu0 %v7297
        %7402 = vmatpush1.bf16.msra.mxu0 %v7296
        %7403 = vmatprep.subr.bf16.mxu0 %v7289
        %7404 = vmatpush1.bf16.msra.mxu0 %v7288
        %7405 = vmatprep.subr.bf16.mxu0 %v7281
        %7406 = vmatpush1.bf16.msra.mxu0 %v7280
        %7407 = vmatprep.subr.bf16.mxu0 %v7273
        %7408 = vmatpush1.bf16.msra.mxu0 %v7272
        %7409 = vmatprep.subr.bf16.mxu0 %v7265
        %7410 = vmatpush1.bf16.msra.mxu0 %v7264
        %7411 = vmatprep.subr.bf16.mxu0 %v7257
        %7412 = vmatpush1.bf16.msra.mxu0 %v7256
        %7413 = vmatprep.subr.bf16.mxu0 %v7249
        %7414 = vmatpush1.bf16.msra.mxu0 %v7248
        %7415 = vmatprep.subr.bf16.mxu0 %v7241
        %7416 = vmatpush1.bf16.msra.mxu0 %v7240
        %7417 = vmatprep.subr.bf16.mxu0 0
        %7418 = vmatpush2.bf16.msra.mxu0 0
        %7419 = vmatprep.subr.bf16.mxu0 0
        %7420 = vmatpush2.bf16.msra.mxu0 0
        %7421 = vmatprep.subr.bf16.mxu0 %v7345
        %7422 = vmatpush2.bf16.msra.mxu0 %v7344
        %7423 = vmatprep.subr.bf16.mxu0 %v7337
        %7424 = vmatpush2.bf16.msra.mxu0 %v7336
        %7425 = vmatprep.subr.bf16.mxu0 %v7329
        %7426 = vmatpush2.bf16.msra.mxu0 %v7328
        %7427 = vmatprep.subr.bf16.mxu0 %v7321
        %7428 = vmatpush2.bf16.msra.mxu0 %v7320
        %7429 = vmatprep.subr.bf16.mxu0 %v7313
        %7430 = vmatpush2.bf16.msra.mxu0 %v7312
        %7431 = vmatprep.subr.bf16.mxu0 %v7305
        %7432 = vmatpush2.bf16.msra.mxu0 %v7304
        %7433 = vmatprep.mubr.bf16.mxu0 %v7358
        %7434 = vmatmul.mubr.bf16.gmra.mxu0 %v7353
        %v7435 = vpop.f32.mrf.mxu0
        %v7436 = vadd.f32 0.0, %v7435
        %v7437 = vpop.f32.mrf.mxu0
        %v7438 = vadd.f32 0.0, %v7437
        %v7439 = vpop.f32.mrf.mxu0
        %v7440 = vpop.f32.mrf.mxu0
        %7441 = vdwg.mxu0
        %7442 = vmatprep.subr.bf16.mxu0 %v7299
        %7443 = vmatpush1.bf16.msra.mxu0 %v7298
        %7444 = vmatprep.subr.bf16.mxu0 %v7291
        %7445 = vmatpush1.bf16.msra.mxu0 %v7290
        %7446 = vmatprep.subr.bf16.mxu0 %v7283
        %7447 = vmatpush1.bf16.msra.mxu0 %v7282
        %7448 = vmatprep.subr.bf16.mxu0 %v7275
        %7449 = vmatpush1.bf16.msra.mxu0 %v7274
        %7450 = vmatprep.subr.bf16.mxu0 %v7267
        %7451 = vmatpush1.bf16.msra.mxu0 %v7266
        %7452 = vmatprep.subr.bf16.mxu0 %v7259
        %7453 = vmatpush1.bf16.msra.mxu0 %v7258
        %7454 = vmatprep.subr.bf16.mxu0 %v7251
        %7455 = vmatpush1.bf16.msra.mxu0 %v7250
        %7456 = vmatprep.subr.bf16.mxu0 %v7243
        %7457 = vmatpush1.bf16.msra.mxu0 %v7242
        %7458 = vmatprep.subr.bf16.mxu0 0
        %7459 = vmatpush2.bf16.msra.mxu0 0
        %7460 = vmatprep.subr.bf16.mxu0 0
        %7461 = vmatpush2.bf16.msra.mxu0 0
        %7462 = vmatprep.subr.bf16.mxu0 %v7347
        %7463 = vmatpush2.bf16.msra.mxu0 %v7346
        %7464 = vmatprep.subr.bf16.mxu0 %v7339
        %7465 = vmatpush2.bf16.msra.mxu0 %v7338
        %7466 = vmatprep.subr.bf16.mxu0 %v7331
        %7467 = vmatpush2.bf16.msra.mxu0 %v7330
        %7468 = vmatprep.subr.bf16.mxu0 %v7323
        %7469 = vmatpush2.bf16.msra.mxu0 %v7322
        %7470 = vmatprep.subr.bf16.mxu0 %v7315
        %7471 = vmatpush2.bf16.msra.mxu0 %v7314
        %7472 = vmatprep.subr.bf16.mxu0 %v7307
        %7473 = vmatpush2.bf16.msra.mxu0 %v7306
        %7474 = vmatprep.mubr.bf16.mxu0 %v7358
        %7475 = vmatmul.mubr.bf16.gmra.mxu0 %v7353
        %v7476 = vpop.f32.mrf.mxu0
        %v7477 = vadd.f32 0.0, %v7476
        %v7478 = vpop.f32.mrf.mxu0
        %v7479 = vadd.f32 0.0, %v7478
        %v7480 = vpop.f32.mrf.mxu0
        %v7481 = vpop.f32.mrf.mxu0
        %7482 = vdwg.mxu0
        %7483 = vmatprep.subr.bf16.mxu0 %v7301
        %7484 = vmatpush1.bf16.msra.mxu0 %v7300
        %7485 = vmatprep.subr.bf16.mxu0 %v7293
        %7486 = vmatpush1.bf16.msra.mxu0 %v7292
        %7487 = vmatprep.subr.bf16.mxu0 %v7285
        %7488 = vmatpush1.bf16.msra.mxu0 %v7284
        %7489 = vmatprep.subr.bf16.mxu0 %v7277
        %7490 = vmatpush1.bf16.msra.mxu0 %v7276
        %7491 = vmatprep.subr.bf16.mxu0 %v7269
        %7492 = vmatpush1.bf16.msra.mxu0 %v7268
        %7493 = vmatprep.subr.bf16.mxu0 %v7261
        %7494 = vmatpush1.bf16.msra.mxu0 %v7260
        %7495 = vmatprep.subr.bf16.mxu0 %v7253
        %7496 = vmatpush1.bf16.msra.mxu0 %v7252
        %7497 = vmatprep.subr.bf16.mxu0 %v7245
        %7498 = vmatpush1.bf16.msra.mxu0 %v7244
        %7499 = vmatprep.subr.bf16.mxu0 0
        %7500 = vmatpush2.bf16.msra.mxu0 0
        %7501 = vmatprep.subr.bf16.mxu0 0
        %7502 = vmatpush2.bf16.msra.mxu0 0
        %7503 = vmatprep.subr.bf16.mxu0 %v7349
        %7504 = vmatpush2.bf16.msra.mxu0 %v7348
        %7505 = vmatprep.subr.bf16.mxu0 %v7341
        %7506 = vmatpush2.bf16.msra.mxu0 %v7340
        %7507 = vmatprep.subr.bf16.mxu0 %v7333
        %7508 = vmatpush2.bf16.msra.mxu0 %v7332
        %7509 = vmatprep.subr.bf16.mxu0 %v7325
        %7510 = vmatpush2.bf16.msra.mxu0 %v7324
        %7511 = vmatprep.subr.bf16.mxu0 %v7317
        %7512 = vmatpush2.bf16.msra.mxu0 %v7316
        %7513 = vmatprep.subr.bf16.mxu0 %v7309
        %7514 = vmatpush2.bf16.msra.mxu0 %v7308
        %7515 = vmatprep.mubr.bf16.mxu0 %v7358
        %7516 = vmatmul.mubr.bf16.gmra.mxu0 %v7353
        %v7517 = vpop.f32.mrf.mxu0
        %v7518 = vadd.f32 0.0, %v7517
        %v7519 = vpop.f32.mrf.mxu0
        %v7520 = vadd.f32 0.0, %v7519
        %v7521 = vpop.f32.mrf.mxu0
        %v7522 = vpop.f32.mrf.mxu0
        %7523 = vdwg.mxu0
        %7524 = vst [vmem:[%s172] sm:$0xff] %v7395
        %7525 = vst [vmem:[%s172 + $0x8] sm:$0xff] %v7397
        %7526 = vst [vmem:[%s172 + $0x10] sm:$0xff] %v7436
        %7527 = vst [vmem:[%s172 + $0x18] sm:$0xff] %v7438
        %7528 = vst [vmem:[%s172 + $0x20] sm:$0xff] %v7477
        %7529 = vst [vmem:[%s172 + $0x28] sm:$0xff] %v7479
        %7530 = vst [vmem:[%s172 + $0x30] sm:$0xff] %v7518
        %7531 = vst [vmem:[%s172 + $0x38] sm:$0xff] %v7520
        %s7532 = sand.u32 %s75, 1
        %s7533 = scalar_lea.sflag [#allocation5], %s7532
        %s7534 = sand.u32 %s75, 1
        %s7535 = smul.addr %s7534, 64
        %s7536 = scalar_lea.vmem [#allocation8], %s7535
        // Predicated region
        $region37: #{tpu_custom_call.1} parent=27 // pred_check
          %p7537 = pneg %p85
        $region38: #{tpu_custom_call.1} parent=27 // pred_check_branch
          %7539 = sbr.rel (%p7537) target = $region40
        $region39: #{tpu_custom_call.1} parent=27 // pred_region
          %s7540 = smul.u32 8, %s20
          %s7542 = ssub.s32 1024, 1024
          %7543 = vsyncadd %s7533, %s7542
          %s7544 = smul.addr %s7540, 128
          %s7545 = scalar_lea.hbm %s2, %s7544
          %s7547 = sshll.u32 %s7536, 4
          %s7548 = int_to_ptr.vmem [resolvable:$true] %s7547
          %7550 = dma.vmem_to_hbm [thread:$0]  %s7548, 1024, %s7545, %s7533
        $region40: #{tpu_custom_call.1} parent=27 // pred_fallthru
          _
      $region28: #{tpu_custom_call.1} parent=5 // pred_fallthru
        _
      %p7551 = scmp.le.s32.totalorder 2, %s15
      // Predicated region
      $region41: #{tpu_custom_call.1} parent=5 // pred_check
        %p7552 = pneg %p7551
      $region42: #{tpu_custom_call.1} parent=5 // pred_check_branch
        %7554 = sbr.rel (%p7552) target = $region44
      $region43: #{tpu_custom_call.1} parent=5 // pred_region
        %s7555 = ssub.s32 %s15, 2
        // Predicated region
        $region45: #{tpu_custom_call.1} parent=43 // pred_check
          %p7556 = pneg %p91
        $region46: #{tpu_custom_call.1} parent=43 // pred_check_branch
          %7558 = sbr.rel (%p7556) target = $region48
        $region47: #{tpu_custom_call.1} parent=43 // pred_region
          %s7559 = sand.u32 %s76, 1
          %s7560 = scalar_lea.sflag [#allocation5], %s7559
          %s7561 = sand.u32 %s76, 1
          %s7562 = smul.addr %s7561, 64
          %s7563 = scalar_lea.vmem [#allocation8], %s7562
          %7564 = dma.done %s7560, 1024
        $region48: #{tpu_custom_call.1} parent=43 // pred_fallthru
          _
      $region44: #{tpu_custom_call.1} parent=5 // pred_fallthru
        _
    $region6: #{tpu_custom_call.1} parent=1 // loop_footer
      %s19 = sadd.s32 1, %s15
    $region7: #{tpu_custom_call.1} parent=1 // loop_footer_branch
      %14 = sbr.rel target = $region3
    $region8: #{tpu_custom_call.1} parent=1 // loop_exit
      _
    %7565 = vsyncpa [#allocation4], 1
    %s7566 = scalar_lea.sflag [#allocation4], 1
    %7567 = vsyncpa %s7566, 1
    %7568 = vsyncpa [#allocation7], 1
    %7569 = vsyncpa [#allocation5], 1
    %s7570 = scalar_lea.sflag [#allocation5], 1
    %7571 = vsyncpa %s7570, 1

</llo_original>
